<compile_context>
chip_gen: v5e
topology: v5e:2x2
jax: 0.10.0
libtpu: 0.0.40
codegen_flags: <defaults>
</compile_context>

<pallas_src>
import numpy as np
import jax
import jax.numpy as jnp
from jax.experimental import pallas as pl
from jax.experimental.pallas import tpu as pltpu


# ----------------------------------------------------------------------------
# Pallas kernel: full ConvGRU cell for one batch element.
# ----------------------------------------------------------------------------
def _convgru_kernel(x_ref, h_ref, wx_ref, wh_ref, bx_ref, bh_ref, out_ref,
                    xpad_ref, hpad_ref, px_ref, ph_ref):
    # x_ref   : (1, H, W, Cx)      f32   input image
    # h_ref   : (1, H, W, Ch)      f32   previous hidden state
    # wx_ref  : (k*k*Cx, 3*Ch)     bf16  fused im2col weights, gates [r, z, n]
    # wh_ref  : (k*k*Ch, 3*Ch)     bf16
    # bx_ref  : (1, 3*Ch)          f32
    # bh_ref  : (1, 3*Ch)          f32
    # out_ref : (1, H, W, Ch)      f32
    # xpad_ref: (H+2p, W+2p, Cx)   bf16  VMEM scratch (zero halo)
    # hpad_ref: (H+2p, W+2p, Ch)   bf16  VMEM scratch (zero halo)
    # px_ref  : (H*W, k*k*Cx)      bf16  im2col patch matrix of x
    # ph_ref  : (H*W, k*k*Ch)      bf16  im2col patch matrix of h
    H, W, Ch = out_ref.shape[1], out_ref.shape[2], out_ref.shape[3]
    Cx = x_ref.shape[3]
    p = (xpad_ref.shape[0] - H) // 2
    k = 2 * p + 1
    M = H * W

    # ---- in-kernel halo (replaces wrapper-side jnp.pad) ---------------------
    xpad_ref[...] = jnp.zeros(xpad_ref.shape, xpad_ref.dtype)
    hpad_ref[...] = jnp.zeros(hpad_ref.shape, hpad_ref.dtype)
    xpad_ref[p:p + H, p:p + W, :] = x_ref[0].astype(xpad_ref.dtype)
    hpad_ref[p:p + H, p:p + W, :] = h_ref[0].astype(hpad_ref.dtype)

    # ---- im2col: k*k shifted copies per source, done once, shared by gates --
    # (H, W, C) -> (H*W, C) is layout-trivial because W is a multiple of 8.
    t = 0
    for di in range(k):
        for dj in range(k):
            px_ref[:, t * Cx:(t + 1) * Cx] = (
                xpad_ref[di:di + H, dj:dj + W, :].reshape(M, Cx))
            ph_ref[:, t * Ch:(t + 1) * Ch] = (
                hpad_ref[di:di + H, dj:dj + W, :].reshape(M, Ch))
            t += 1

    # ---- one fused MXU matmul per source: all 3 gates at once (bf16 -> f32) -
    ax = jnp.dot(px_ref[...], wx_ref[...],
                 preferred_element_type=jnp.float32) + bx_ref[...]   # (M, 3*Ch)
    ah = jnp.dot(ph_ref[...], wh_ref[...],
                 preferred_element_type=jnp.float32) + bh_ref[...]   # (M, 3*Ch)

    # ---- GRU gate math (sequential consumption; columns [r | z | n]) --------
    ch2 = 2 * Ch
    rz = jax.nn.sigmoid(ax[:, :ch2] + ah[:, :ch2])                   # (M, 2*Ch)
    r = rz[:, :Ch]
    z = rz[:, Ch:ch2]
    n = jnp.tanh(ax[:, ch2:] + r * ah[:, ch2:])
    prev = h_ref[0].reshape(M, Ch)
    h_new = (1.0 - z) * n + z * prev
    out_ref[0] = h_new.reshape(H, W, Ch).astype(out_ref.dtype)


# ----------------------------------------------------------------------------
# JAX wrapper: BlockSpecs, grid over batch (one image per grid step / core).
# ----------------------------------------------------------------------------
def convgru_cell_nhwc(x, h, wx_mat, wh_mat, bx, bh, kernel_size):
    """x: (B,H,W,Cx) f32, h: (B,H,W,Ch) f32 (NHWC).
    wx_mat: (k*k*Cx, 3*Ch) bf16, wh_mat: (k*k*Ch, 3*Ch) bf16, gate order [r,z,n].
    bx, bh: (1, 3*Ch) f32."""
    B, H, W, Cx = x.shape
    Ch = h.shape[-1]
    k = kernel_size
    p = k // 2
    Hp, Wp = H + 2 * p, W + 2 * p
    G = 3 * Ch
    KKX = k * k * Cx
    KKH = k * k * Ch

    return pl.pallas_call(
        _convgru_kernel,
        out_shape=jax.ShapeDtypeStruct((B, H, W, Ch), jnp.float32),
        grid=(B,),
        in_specs=[
            pl.BlockSpec((1, H, W, Cx), lambda b: (b, 0, 0, 0)),
            pl.BlockSpec((1, H, W, Ch), lambda b: (b, 0, 0, 0)),
            pl.BlockSpec((KKX, G), lambda b: (0, 0)),
            pl.BlockSpec((KKH, G), lambda b: (0, 0)),
            pl.BlockSpec((1, G), lambda b: (0, 0)),
            pl.BlockSpec((1, G), lambda b: (0, 0)),
        ],
        out_specs=pl.BlockSpec((1, H, W, Ch), lambda b: (b, 0, 0, 0)),
        scratch_shapes=[
            pltpu.VMEM((Hp, Wp, Cx), jnp.bfloat16),   # padded x
            pltpu.VMEM((Hp, Wp, Ch), jnp.bfloat16),   # padded h
            pltpu.VMEM((H * W, KKX), jnp.bfloat16),   # im2col(x)
            pltpu.VMEM((H * W, KKH), jnp.bfloat16),   # im2col(h)
        ],
        compiler_params=pltpu.CompilerParams(
            dimension_semantics=("parallel",)),
    )(x, h, wx_mat, wh_mat, bx, bh)


# ----------------------------------------------------------------------------
# Parameter setup (mirrors nn.init uniform(-sqrt_k, sqrt_k), zero bias,
# AlSpectralNorm approximated as standard spectral normalization).
# ----------------------------------------------------------------------------
def _spectral_normalize(w, key, n_iter=5, eps=1e-12):
    """Spectral norm of a conv weight (Cout, Cin, k, k), like torch spectral_norm."""
    cout = w.shape[0]
    wm = w.reshape(cout, -1)
    u = jax.random.normal(key, (cout,), dtype=w.dtype)
    u = u / (jnp.linalg.norm(u) + eps)
    for _ in range(n_iter):
        v = wm.T @ u
        v = v / (jnp.linalg.norm(v) + eps)
        u = wm @ v
        u = u / (jnp.linalg.norm(u) + eps)
    sigma = u @ (wm @ v)
    return w / sigma


def _to_im2col_matrix(w):
    """(Cout, Cin, k, k) -> (k*k*Cin, Cout) matching the kernel's patch order."""
    cout, cin, k, _ = w.shape
    w_hwio = jnp.transpose(w, (2, 3, 1, 0))          # (k, k, Cin, Cout)
    return w_hwio.reshape(k * k * cin, cout)


def make_params(key, x_dim, h_dim, kernel_size):
    sqrt_k = float(np.sqrt(1.0 / h_dim))
    keys = jax.random.split(key, 12)
    cins = [x_dim, h_dim, x_dim, h_dim, x_dim, h_dim]  # rx, rh, zx, zh, nx, nh
    ws = []
    for i, cin in enumerate(cins):
        w = jax.random.uniform(keys[i], (h_dim, cin, kernel_size, kernel_size),
                               minval=-sqrt_k, maxval=sqrt_k, dtype=jnp.float32)
        w = _spectral_normalize(w, keys[6 + i])
        ws.append(w)
    # Fused im2col weight matrices, gate order [reset, update, new], bf16 for MXU.
    wx_mat = jnp.concatenate(
        [_to_im2col_matrix(ws[0]), _to_im2col_matrix(ws[2]),
         _to_im2col_matrix(ws[4])], axis=1).astype(jnp.bfloat16)
    wh_mat = jnp.concatenate(
        [_to_im2col_matrix(ws[1]), _to_im2col_matrix(ws[3]),
         _to_im2col_matrix(ws[5])], axis=1).astype(jnp.bfloat16)
    bx = jnp.zeros((1, 3 * h_dim), jnp.float32)   # module inits biases to 0.0
    bh = jnp.zeros((1, 3 * h_dim), jnp.float32)
    return wx_mat, wh_mat, bx, bh


# ----------------------------------------------------------------------------
# Pure-JAX reference (built from the same fused bf16 weights).
# ----------------------------------------------------------------------------
def _conv_ref(inp, wmat, cin, cout, k, gate):
    w = wmat[:, gate * cout:(gate + 1) * cout].astype(jnp.float32)
    w = w.reshape(k, k, cin, cout)                  # HWIO
    return jax.lax.conv_general_dilated(
        inp, w, window_strides=(1, 1), padding="SAME",
        dimension_numbers=("NHWC", "HWIO", "NHWC"))


def convgru_reference(x, h, wx_mat, wh_mat, bx, bh, k):
    Cx, Ch = x.shape[-1], h.shape[-1]
    ax = [_conv_ref(x, wx_mat, Cx, Ch, k, g) + bx[0, g * Ch:(g + 1) * Ch]
          for g in range(3)]
    ah = [_conv_ref(h, wh_mat, Ch, Ch, k, g) + bh[0, g * Ch:(g + 1) * Ch]
          for g in range(3)]
    r = jax.nn.sigmoid(ax[0] + ah[0])
    z = jax.nn.sigmoid(ax[1] + ah[1])
    n = jnp.tanh(ax[2] + r * ah[2])
    return (1.0 - z) * n + z * h


# ----------------------------------------------------------------------------
if __name__ == "__main__":
    B, Cx, Ch, H, W, K = 2, 4, 32, 16, 16, 3

    key = jax.random.PRNGKey(0)
    kx, kh, kp = jax.random.split(key, 3)

    # PyTorch-convention NCHW inputs, transposed to NHWC for the kernel.
    x_nchw = jax.random.normal(kx, (B, Cx, H, W), dtype=jnp.float32)
    h_nchw = jax.random.normal(kh, (B, Ch, H, W), dtype=jnp.float32)
    x = jnp.transpose(x_nchw, (0, 2, 3, 1))
    h = jnp.transpose(h_nchw, (0, 2, 3, 1))

    wx_mat, wh_mat, bx, bh = make_params(kp, Cx, Ch, K)

    out = jax.block_until_ready(convgru_cell_nhwc(x, h, wx_mat, wh_mat, bx, bh, K))
    ref = jax.block_until_ready(convgru_reference(x, h, wx_mat, wh_mat, bx, bh, K))

    assert out.shape == (B, H, W, Ch)
    # bf16 MXU operands in the kernel (f32 reference activations) -> loose tol.
    err = float(jnp.max(jnp.abs(out - ref)))
    assert err < 5e-2, f"mismatch vs JAX reference, max|err|={err}"

    print("KERNEL_OK")
</pallas_src>

<mosaic_0001>
module attributes {stable_mosaic.version = 11 : i64} {
  func.func @_convgru_kernel(%arg0: i32, %arg1: memref<1x16x16x4xf32, #tpu.memory_space<vmem>>, %arg2: memref<1x16x16x32xf32, #tpu.memory_space<vmem>>, %arg3: memref<36x96xbf16, #tpu.memory_space<vmem>>, %arg4: memref<288x96xbf16, #tpu.memory_space<vmem>>, %arg5: memref<1x96xf32, #tpu.memory_space<vmem>>, %arg6: memref<1x96xf32, #tpu.memory_space<vmem>>, %arg7: memref<1x16x16x32xf32, #tpu.memory_space<vmem>>, %arg8: memref<18x18x4xbf16, #tpu.memory_space<vmem>>, %arg9: memref<18x18x32xbf16, #tpu.memory_space<vmem>>, %arg10: memref<256x36xbf16, #tpu.memory_space<vmem>>, %arg11: memref<256x288xbf16, #tpu.memory_space<vmem>>) attributes {dimension_semantics = [#tpu.dimension_semantics<parallel>], iteration_bounds = array<i64: 2>, scalar_prefetch = 0 : i64, scratch_operands = 4 : i64, tpu.core_type = #tpu.core_type<tc>, window_params = [{transform_indices = @transform_0, window_bounds = array<i64: 1, 16, 16, 4>}, {transform_indices = @transform_1, window_bounds = array<i64: 1, 16, 16, 32>}, {pipeline_mode = #tpu.pipeline_mode<synchronous>, transform_indices = @transform_2, window_bounds = array<i64: 36, 96>}, {pipeline_mode = #tpu.pipeline_mode<synchronous>, transform_indices = @transform_3, window_bounds = array<i64: 288, 96>}, {pipeline_mode = #tpu.pipeline_mode<synchronous>, transform_indices = @transform_4, window_bounds = array<i64: 1, 96>}, {pipeline_mode = #tpu.pipeline_mode<synchronous>, transform_indices = @transform_5, window_bounds = array<i64: 1, 96>}, {transform_indices = @transform_6, window_bounds = array<i64: 1, 16, 16, 32>}]} {
    %cst = arith.constant 0.000000e+00 : bf16
    %0 = vector.broadcast %cst : bf16 to vector<18x18x4xbf16>
    %c0 = arith.constant 0 : index
    %c0_0 = arith.constant 0 : index
    %c0_1 = arith.constant 0 : index
    %1 = vector.load %arg8[%c0, %c0_0, %c0_1] : memref<18x18x4xbf16, #tpu.memory_space<vmem>>, vector<18x18x4xbf16>
    tpu.vector_store %arg8[%c0, %c0_0, %c0_1], %0 {strides = array<i32>} : memref<18x18x4xbf16, #tpu.memory_space<vmem>>, vector<18x18x4xbf16>,
    %cst_2 = arith.constant 0.000000e+00 : bf16
    %2 = vector.broadcast %cst_2 : bf16 to vector<18x18x32xbf16>
    %c0_3 = arith.constant 0 : index
    %c0_4 = arith.constant 0 : index
    %c0_5 = arith.constant 0 : index
    %3 = vector.load %arg9[%c0_3, %c0_4, %c0_5] : memref<18x18x32xbf16, #tpu.memory_space<vmem>>, vector<18x18x32xbf16>
    tpu.vector_store %arg9[%c0_3, %c0_4, %c0_5], %2 {strides = array<i32>} : memref<18x18x32xbf16, #tpu.memory_space<vmem>>, vector<18x18x32xbf16>,
    %c0_6 = arith.constant 0 : index
    %c0_7 = arith.constant 0 : index
    %c0_8 = arith.constant 0 : index
    %c0_9 = arith.constant 0 : index
    %4 = vector.load %arg1[%c0_6, %c0_7, %c0_8, %c0_9] : memref<1x16x16x4xf32, #tpu.memory_space<vmem>>, vector<1x16x16x4xf32>
    %5 = vector.shape_cast %4 : vector<1x16x16x4xf32> to vector<16x16x4xf32>
    %6 = arith.truncf %5 : vector<16x16x4xf32> to vector<16x16x4xbf16>
    %c1 = arith.constant 1 : index
    %c1_10 = arith.constant 1 : index
    %c0_11 = arith.constant 0 : index
    %7 = vector.load %arg8[%c1, %c1_10, %c0_11] : memref<18x18x4xbf16, #tpu.memory_space<vmem>>, vector<16x16x4xbf16>
    tpu.vector_store %arg8[%c1, %c1_10, %c0_11], %6 {strides = array<i32>} : memref<18x18x4xbf16, #tpu.memory_space<vmem>>, vector<16x16x4xbf16>,
    %c0_12 = arith.constant 0 : index
    %c0_13 = arith.constant 0 : index
    %c0_14 = arith.constant 0 : index
    %c0_15 = arith.constant 0 : index
    %8 = vector.load %arg2[%c0_12, %c0_13, %c0_14, %c0_15] : memref<1x16x16x32xf32, #tpu.memory_space<vmem>>, vector<1x16x16x32xf32>
    %9 = vector.shape_cast %8 : vector<1x16x16x32xf32> to vector<16x16x32xf32>
    %10 = arith.truncf %9 : vector<16x16x32xf32> to vector<16x16x32xbf16>
    %c1_16 = arith.constant 1 : index
    %c1_17 = arith.constant 1 : index
    %c0_18 = arith.constant 0 : index
    %11 = vector.load %arg9[%c1_16, %c1_17, %c0_18] : memref<18x18x32xbf16, #tpu.memory_space<vmem>>, vector<16x16x32xbf16>
    tpu.vector_store %arg9[%c1_16, %c1_17, %c0_18], %10 {strides = array<i32>} : memref<18x18x32xbf16, #tpu.memory_space<vmem>>, vector<16x16x32xbf16>,
    %c0_19 = arith.constant 0 : index
    %c0_20 = arith.constant 0 : index
    %c0_21 = arith.constant 0 : index
    %12 = vector.load %arg8[%c0_19, %c0_20, %c0_21] : memref<18x18x4xbf16, #tpu.memory_space<vmem>>, vector<16x16x4xbf16>
    %13 = vector.shape_cast %12 : vector<16x16x4xbf16> to vector<256x4xbf16>
    %c0_22 = arith.constant 0 : index
    %c0_23 = arith.constant 0 : index
    %14 = vector.load %arg10[%c0_22, %c0_23] : memref<256x36xbf16, #tpu.memory_space<vmem>>, vector<256x4xbf16>
    tpu.vector_store %arg10[%c0_22, %c0_23], %13 {strides = array<i32>} : memref<256x36xbf16, #tpu.memory_space<vmem>>, vector<256x4xbf16>,
    %c0_24 = arith.constant 0 : index
    %c0_25 = arith.constant 0 : index
    %c0_26 = arith.constant 0 : index
    %15 = vector.load %arg9[%c0_24, %c0_25, %c0_26] : memref<18x18x32xbf16, #tpu.memory_space<vmem>>, vector<16x16x32xbf16>
    %16 = vector.shape_cast %15 : vector<16x16x32xbf16> to vector<256x32xbf16>
    %c0_27 = arith.constant 0 : index
    %c0_28 = arith.constant 0 : index
    %17 = vector.load %arg11[%c0_27, %c0_28] : memref<256x288xbf16, #tpu.memory_space<vmem>>, vector<256x32xbf16>
    tpu.vector_store %arg11[%c0_27, %c0_28], %16 {strides = array<i32>} : memref<256x288xbf16, #tpu.memory_space<vmem>>, vector<256x32xbf16>,
    %c0_29 = arith.constant 0 : index
    %c1_30 = arith.constant 1 : index
    %c0_31 = arith.constant 0 : index
    %18 = vector.load %arg8[%c0_29, %c1_30, %c0_31] : memref<18x18x4xbf16, #tpu.memory_space<vmem>>, vector<16x16x4xbf16>
    %19 = vector.shape_cast %18 : vector<16x16x4xbf16> to vector<256x4xbf16>
    %c0_32 = arith.constant 0 : index
    %c4 = arith.constant 4 : index
    %20 = vector.load %arg10[%c0_32, %c4] : memref<256x36xbf16, #tpu.memory_space<vmem>>, vector<256x4xbf16>
    tpu.vector_store %arg10[%c0_32, %c4], %19 {strides = array<i32>} : memref<256x36xbf16, #tpu.memory_space<vmem>>, vector<256x4xbf16>,
    %c0_33 = arith.constant 0 : index
    %c1_34 = arith.constant 1 : index
    %c0_35 = arith.constant 0 : index
    %21 = vector.load %arg9[%c0_33, %c1_34, %c0_35] : memref<18x18x32xbf16, #tpu.memory_space<vmem>>, vector<16x16x32xbf16>
    %22 = vector.shape_cast %21 : vector<16x16x32xbf16> to vector<256x32xbf16>
    %c0_36 = arith.constant 0 : index
    %c32 = arith.constant 32 : index
    %23 = vector.load %arg11[%c0_36, %c32] : memref<256x288xbf16, #tpu.memory_space<vmem>>, vector<256x32xbf16>
    tpu.vector_store %arg11[%c0_36, %c32], %22 {strides = array<i32>} : memref<256x288xbf16, #tpu.memory_space<vmem>>, vector<256x32xbf16>,
    %c0_37 = arith.constant 0 : index
    %c2 = arith.constant 2 : index
    %c0_38 = arith.constant 0 : index
    %24 = vector.load %arg8[%c0_37, %c2, %c0_38] : memref<18x18x4xbf16, #tpu.memory_space<vmem>>, vector<16x16x4xbf16>
    %25 = vector.shape_cast %24 : vector<16x16x4xbf16> to vector<256x4xbf16>
    %c0_39 = arith.constant 0 : index
    %c8 = arith.constant 8 : index
    %26 = vector.load %arg10[%c0_39, %c8] : memref<256x36xbf16, #tpu.memory_space<vmem>>, vector<256x4xbf16>
    tpu.vector_store %arg10[%c0_39, %c8], %25 {strides = array<i32>} : memref<256x36xbf16, #tpu.memory_space<vmem>>, vector<256x4xbf16>,
    %c0_40 = arith.constant 0 : index
    %c2_41 = arith.constant 2 : index
    %c0_42 = arith.constant 0 : index
    %27 = vector.load %arg9[%c0_40, %c2_41, %c0_42] : memref<18x18x32xbf16, #tpu.memory_space<vmem>>, vector<16x16x32xbf16>
    %28 = vector.shape_cast %27 : vector<16x16x32xbf16> to vector<256x32xbf16>
    %c0_43 = arith.constant 0 : index
    %c64 = arith.constant 64 : index
    %29 = vector.load %arg11[%c0_43, %c64] : memref<256x288xbf16, #tpu.memory_space<vmem>>, vector<256x32xbf16>
    tpu.vector_store %arg11[%c0_43, %c64], %28 {strides = array<i32>} : memref<256x288xbf16, #tpu.memory_space<vmem>>, vector<256x32xbf16>,
    %c1_44 = arith.constant 1 : index
    %c0_45 = arith.constant 0 : index
    %c0_46 = arith.constant 0 : index
    %30 = vector.load %arg8[%c1_44, %c0_45, %c0_46] : memref<18x18x4xbf16, #tpu.memory_space<vmem>>, vector<16x16x4xbf16>
    %31 = vector.shape_cast %30 : vector<16x16x4xbf16> to vector<256x4xbf16>
    %c0_47 = arith.constant 0 : index
    %c12 = arith.constant 12 : index
    %32 = vector.load %arg10[%c0_47, %c12] : memref<256x36xbf16, #tpu.memory_space<vmem>>, vector<256x4xbf16>
    tpu.vector_store %arg10[%c0_47, %c12], %31 {strides = array<i32>} : memref<256x36xbf16, #tpu.memory_space<vmem>>, vector<256x4xbf16>,
    %c1_48 = arith.constant 1 : index
    %c0_49 = arith.constant 0 : index
    %c0_50 = arith.constant 0 : index
    %33 = vector.load %arg9[%c1_48, %c0_49, %c0_50] : memref<18x18x32xbf16, #tpu.memory_space<vmem>>, vector<16x16x32xbf16>
    %34 = vector.shape_cast %33 : vector<16x16x32xbf16> to vector<256x32xbf16>
    %c0_51 = arith.constant 0 : index
    %c96 = arith.constant 96 : index
    %35 = vector.load %arg11[%c0_51, %c96] : memref<256x288xbf16, #tpu.memory_space<vmem>>, vector<256x32xbf16>
    tpu.vector_store %arg11[%c0_51, %c96], %34 {strides = array<i32>} : memref<256x288xbf16, #tpu.memory_space<vmem>>, vector<256x32xbf16>,
    %c1_52 = arith.constant 1 : index
    %c1_53 = arith.constant 1 : index
    %c0_54 = arith.constant 0 : index
    %36 = vector.load %arg8[%c1_52, %c1_53, %c0_54] : memref<18x18x4xbf16, #tpu.memory_space<vmem>>, vector<16x16x4xbf16>
    %37 = vector.shape_cast %36 : vector<16x16x4xbf16> to vector<256x4xbf16>
    %c0_55 = arith.constant 0 : index
    %c16 = arith.constant 16 : index
    %38 = vector.load %arg10[%c0_55, %c16] : memref<256x36xbf16, #tpu.memory_space<vmem>>, vector<256x4xbf16>
    tpu.vector_store %arg10[%c0_55, %c16], %37 {strides = array<i32>} : memref<256x36xbf16, #tpu.memory_space<vmem>>, vector<256x4xbf16>,
    %c1_56 = arith.constant 1 : index
    %c1_57 = arith.constant 1 : index
    %c0_58 = arith.constant 0 : index
    %39 = vector.load %arg9[%c1_56, %c1_57, %c0_58] : memref<18x18x32xbf16, #tpu.memory_space<vmem>>, vector<16x16x32xbf16>
    %40 = vector.shape_cast %39 : vector<16x16x32xbf16> to vector<256x32xbf16>
    %c0_59 = arith.constant 0 : index
    %c128 = arith.constant 128 : index
    %41 = vector.load %arg11[%c0_59, %c128] : memref<256x288xbf16, #tpu.memory_space<vmem>>, vector<256x32xbf16>
    tpu.vector_store %arg11[%c0_59, %c128], %40 {strides = array<i32>} : memref<256x288xbf16, #tpu.memory_space<vmem>>, vector<256x32xbf16>,
    %c1_60 = arith.constant 1 : index
    %c2_61 = arith.constant 2 : index
    %c0_62 = arith.constant 0 : index
    %42 = vector.load %arg8[%c1_60, %c2_61, %c0_62] : memref<18x18x4xbf16, #tpu.memory_space<vmem>>, vector<16x16x4xbf16>
    %43 = vector.shape_cast %42 : vector<16x16x4xbf16> to vector<256x4xbf16>
    %c0_63 = arith.constant 0 : index
    %c20 = arith.constant 20 : index
    %44 = vector.load %arg10[%c0_63, %c20] : memref<256x36xbf16, #tpu.memory_space<vmem>>, vector<256x4xbf16>
    tpu.vector_store %arg10[%c0_63, %c20], %43 {strides = array<i32>} : memref<256x36xbf16, #tpu.memory_space<vmem>>, vector<256x4xbf16>,
    %c1_64 = arith.constant 1 : index
    %c2_65 = arith.constant 2 : index
    %c0_66 = arith.constant 0 : index
    %45 = vector.load %arg9[%c1_64, %c2_65, %c0_66] : memref<18x18x32xbf16, #tpu.memory_space<vmem>>, vector<16x16x32xbf16>
    %46 = vector.shape_cast %45 : vector<16x16x32xbf16> to vector<256x32xbf16>
    %c0_67 = arith.constant 0 : index
    %c160 = arith.constant 160 : index
    %47 = vector.load %arg11[%c0_67, %c160] : memref<256x288xbf16, #tpu.memory_space<vmem>>, vector<256x32xbf16>
    tpu.vector_store %arg11[%c0_67, %c160], %46 {strides = array<i32>} : memref<256x288xbf16, #tpu.memory_space<vmem>>, vector<256x32xbf16>,
    %c2_68 = arith.constant 2 : index
    %c0_69 = arith.constant 0 : index
    %c0_70 = arith.constant 0 : index
    %48 = vector.load %arg8[%c2_68, %c0_69, %c0_70] : memref<18x18x4xbf16, #tpu.memory_space<vmem>>, vector<16x16x4xbf16>
    %49 = vector.shape_cast %48 : vector<16x16x4xbf16> to vector<256x4xbf16>
    %c0_71 = arith.constant 0 : index
    %c24 = arith.constant 24 : index
    %50 = vector.load %arg10[%c0_71, %c24] : memref<256x36xbf16, #tpu.memory_space<vmem>>, vector<256x4xbf16>
    tpu.vector_store %arg10[%c0_71, %c24], %49 {strides = array<i32>} : memref<256x36xbf16, #tpu.memory_space<vmem>>, vector<256x4xbf16>,
    %c2_72 = arith.constant 2 : index
    %c0_73 = arith.constant 0 : index
    %c0_74 = arith.constant 0 : index
    %51 = vector.load %arg9[%c2_72, %c0_73, %c0_74] : memref<18x18x32xbf16, #tpu.memory_space<vmem>>, vector<16x16x32xbf16>
    %52 = vector.shape_cast %51 : vector<16x16x32xbf16> to vector<256x32xbf16>
    %c0_75 = arith.constant 0 : index
    %c192 = arith.constant 192 : index
    %53 = vector.load %arg11[%c0_75, %c192] : memref<256x288xbf16, #tpu.memory_space<vmem>>, vector<256x32xbf16>
    tpu.vector_store %arg11[%c0_75, %c192], %52 {strides = array<i32>} : memref<256x288xbf16, #tpu.memory_space<vmem>>, vector<256x32xbf16>,
    %c2_76 = arith.constant 2 : index
    %c1_77 = arith.constant 1 : index
    %c0_78 = arith.constant 0 : index
    %54 = vector.load %arg8[%c2_76, %c1_77, %c0_78] : memref<18x18x4xbf16, #tpu.memory_space<vmem>>, vector<16x16x4xbf16>
    %55 = vector.shape_cast %54 : vector<16x16x4xbf16> to vector<256x4xbf16>
    %c0_79 = arith.constant 0 : index
    %c28 = arith.constant 28 : index
    %56 = vector.load %arg10[%c0_79, %c28] : memref<256x36xbf16, #tpu.memory_space<vmem>>, vector<256x4xbf16>
    tpu.vector_store %arg10[%c0_79, %c28], %55 {strides = array<i32>} : memref<256x36xbf16, #tpu.memory_space<vmem>>, vector<256x4xbf16>,
    %c2_80 = arith.constant 2 : index
    %c1_81 = arith.constant 1 : index
    %c0_82 = arith.constant 0 : index
    %57 = vector.load %arg9[%c2_80, %c1_81, %c0_82] : memref<18x18x32xbf16, #tpu.memory_space<vmem>>, vector<16x16x32xbf16>
    %58 = vector.shape_cast %57 : vector<16x16x32xbf16> to vector<256x32xbf16>
    %c0_83 = arith.constant 0 : index
    %c224 = arith.constant 224 : index
    %59 = vector.load %arg11[%c0_83, %c224] : memref<256x288xbf16, #tpu.memory_space<vmem>>, vector<256x32xbf16>
    tpu.vector_store %arg11[%c0_83, %c224], %58 {strides = array<i32>} : memref<256x288xbf16, #tpu.memory_space<vmem>>, vector<256x32xbf16>,
    %c2_84 = arith.constant 2 : index
    %c2_85 = arith.constant 2 : index
    %c0_86 = arith.constant 0 : index
    %60 = vector.load %arg8[%c2_84, %c2_85, %c0_86] : memref<18x18x4xbf16, #tpu.memory_space<vmem>>, vector<16x16x4xbf16>
    %61 = vector.shape_cast %60 : vector<16x16x4xbf16> to vector<256x4xbf16>
    %c0_87 = arith.constant 0 : index
    %c32_88 = arith.constant 32 : index
    %62 = vector.load %arg10[%c0_87, %c32_88] : memref<256x36xbf16, #tpu.memory_space<vmem>>, vector<256x4xbf16>
    tpu.vector_store %arg10[%c0_87, %c32_88], %61 {strides = array<i32>} : memref<256x36xbf16, #tpu.memory_space<vmem>>, vector<256x4xbf16>,
    %c2_89 = arith.constant 2 : index
    %c2_90 = arith.constant 2 : index
    %c0_91 = arith.constant 0 : index
    %63 = vector.load %arg9[%c2_89, %c2_90, %c0_91] : memref<18x18x32xbf16, #tpu.memory_space<vmem>>, vector<16x16x32xbf16>
    %64 = vector.shape_cast %63 : vector<16x16x32xbf16> to vector<256x32xbf16>
    %c0_92 = arith.constant 0 : index
    %c256 = arith.constant 256 : index
    %65 = vector.load %arg11[%c0_92, %c256] : memref<256x288xbf16, #tpu.memory_space<vmem>>, vector<256x32xbf16>
    tpu.vector_store %arg11[%c0_92, %c256], %64 {strides = array<i32>} : memref<256x288xbf16, #tpu.memory_space<vmem>>, vector<256x32xbf16>,
    %c0_93 = arith.constant 0 : index
    %c0_94 = arith.constant 0 : index
    %66 = vector.load %arg10[%c0_93, %c0_94] : memref<256x36xbf16, #tpu.memory_space<vmem>>, vector<256x36xbf16>
    %c0_95 = arith.constant 0 : index
    %c0_96 = arith.constant 0 : index
    %67 = vector.load %arg3[%c0_95, %c0_96] : memref<36x96xbf16, #tpu.memory_space<vmem>>, vector<36x96xbf16>
    %cst_97 = arith.constant dense<0.000000e+00> : vector<256x96xf32>
    %68 = tpu.matmul %66, %67, %cst_97 {dimension_numbers = #tpu.dot_dimension_numbers<[1], [0], [0], [1], [0, 0, 1, 1], [], []>} : vector<256x36xbf16>, vector<36x96xbf16>, vector<256x96xf32> -> vector<256x96xf32>
    %c0_98 = arith.constant 0 : index
    %c0_99 = arith.constant 0 : index
    %69 = vector.load %arg5[%c0_98, %c0_99] : memref<1x96xf32, #tpu.memory_space<vmem>>, vector<1x96xf32>
    %70 = vector.broadcast %69 : vector<1x96xf32> to vector<256x96xf32>
    %71 = arith.addf %68, %70 : vector<256x96xf32>
    %c0_100 = arith.constant 0 : index
    %c0_101 = arith.constant 0 : index
    %72 = vector.load %arg11[%c0_100, %c0_101] : memref<256x288xbf16, #tpu.memory_space<vmem>>, vector<256x288xbf16>
    %c0_102 = arith.constant 0 : index
    %c0_103 = arith.constant 0 : index
    %73 = vector.load %arg4[%c0_102, %c0_103] : memref<288x96xbf16, #tpu.memory_space<vmem>>, vector<288x96xbf16>
    %cst_104 = arith.constant dense<0.000000e+00> : vector<256x96xf32>
    %74 = tpu.matmul %72, %73, %cst_104 {dimension_numbers = #tpu.dot_dimension_numbers<[1], [0], [0], [1], [0, 0, 1, 1], [], []>} : vector<256x288xbf16>, vector<288x96xbf16>, vector<256x96xf32> -> vector<256x96xf32>
    %c0_105 = arith.constant 0 : index
    %c0_106 = arith.constant 0 : index
    %75 = vector.load %arg6[%c0_105, %c0_106] : memref<1x96xf32, #tpu.memory_space<vmem>>, vector<1x96xf32>
    %76 = vector.broadcast %75 : vector<1x96xf32> to vector<256x96xf32>
    %77 = arith.addf %74, %76 : vector<256x96xf32>
    %78 = vector.extract_strided_slice %71 {offsets = [0, 0], sizes = [256, 64], strides = [1, 1]} : vector<256x96xf32> to vector<256x64xf32>
    %79 = vector.extract_strided_slice %77 {offsets = [0, 0], sizes = [256, 64], strides = [1, 1]} : vector<256x96xf32> to vector<256x64xf32>
    %80 = arith.addf %78, %79 : vector<256x64xf32>
    %81 = arith.negf %80 : vector<256x64xf32>
    %82 = math.exp %81 : vector<256x64xf32>
    %cst_107 = arith.constant 1.000000e+00 : f32
    %83 = vector.broadcast %cst_107 : f32 to vector<256x64xf32>
    %84 = arith.addf %83, %82 : vector<256x64xf32>
    %85 = arith.divf %83, %84 : vector<256x64xf32>
    %86 = vector.extract_strided_slice %85 {offsets = [0, 0], sizes = [256, 32], strides = [1, 1]} : vector<256x64xf32> to vector<256x32xf32>
    %87 = vector.extract_strided_slice %85 {offsets = [0, 32], sizes = [256, 32], strides = [1, 1]} : vector<256x64xf32> to vector<256x32xf32>
    %88 = vector.extract_strided_slice %71 {offsets = [0, 64], sizes = [256, 32], strides = [1, 1]} : vector<256x96xf32> to vector<256x32xf32>
    %89 = vector.extract_strided_slice %77 {offsets = [0, 64], sizes = [256, 32], strides = [1, 1]} : vector<256x96xf32> to vector<256x32xf32>
    %90 = arith.mulf %86, %89 : vector<256x32xf32>
    %91 = arith.addf %88, %90 : vector<256x32xf32>
    %92 = math.tanh %91 : vector<256x32xf32>
    %c0_108 = arith.constant 0 : index
    %c0_109 = arith.constant 0 : index
    %c0_110 = arith.constant 0 : index
    %c0_111 = arith.constant 0 : index
    %93 = vector.load %arg2[%c0_108, %c0_109, %c0_110, %c0_111] : memref<1x16x16x32xf32, #tpu.memory_space<vmem>>, vector<1x16x16x32xf32>
    %94 = vector.shape_cast %93 : vector<1x16x16x32xf32> to vector<16x16x32xf32>
    %95 = vector.shape_cast %94 : vector<16x16x32xf32> to vector<256x32xf32>
    %cst_112 = arith.constant 1.000000e+00 : f32
    %96 = vector.broadcast %cst_112 : f32 to vector<256x32xf32>
    %97 = arith.subf %96, %87 : vector<256x32xf32>
    %98 = arith.mulf %97, %92 : vector<256x32xf32>
    %99 = arith.mulf %87, %95 : vector<256x32xf32>
    %100 = arith.addf %98, %99 : vector<256x32xf32>
    %101 = vector.shape_cast %100 : vector<256x32xf32> to vector<16x16x32xf32>
    %c0_113 = arith.constant 0 : index
    %c0_114 = arith.constant 0 : index
    %c0_115 = arith.constant 0 : index
    %c0_116 = arith.constant 0 : index
    %102 = vector.load %arg7[%c0_113, %c0_114, %c0_115, %c0_116] : memref<1x16x16x32xf32, #tpu.memory_space<vmem>>, vector<1x16x16x32xf32>
    %103 = vector.shape_cast %102 : vector<1x16x16x32xf32> to vector<16x16x32xf32>
    %104 = vector.shape_cast %101 : vector<16x16x32xf32> to vector<1x16x16x32xf32>
    tpu.vector_store %arg7[%c0_113, %c0_114, %c0_115, %c0_116], %104 {strides = array<i32>} : memref<1x16x16x32xf32, #tpu.memory_space<vmem>>, vector<1x16x16x32xf32>,
    return
  }
  func.func @transform_0(%arg0: i32) -> (i32, i32, i32, i32) {
    %c0_i32 = arith.constant 0 : i32
    %c0_i32_0 = arith.constant 0 : i32
    %c0_i32_1 = arith.constant 0 : i32
    %c0_i32_2 = arith.constant 0 : i32
    return %arg0, %c0_i32, %c0_i32_0, %c0_i32_1 : i32, i32, i32, i32
  }
  func.func @transform_1(%arg0: i32) -> (i32, i32, i32, i32) {
    %c0_i32 = arith.constant 0 : i32
    %c0_i32_0 = arith.constant 0 : i32
    %c0_i32_1 = arith.constant 0 : i32
    %c0_i32_2 = arith.constant 0 : i32
    return %arg0, %c0_i32, %c0_i32_0, %c0_i32_1 : i32, i32, i32, i32
  }
  func.func @transform_2(%arg0: i32) -> (i32, i32) {
    %c0_i32 = arith.constant 0 : i32
    %c0_i32_0 = arith.constant 0 : i32
    %c0_i32_1 = arith.constant 0 : i32
    return %c0_i32, %c0_i32_0 : i32, i32
  }
  func.func @transform_3(%arg0: i32) -> (i32, i32) {
    %c0_i32 = arith.constant 0 : i32
    %c0_i32_0 = arith.constant 0 : i32
    %c0_i32_1 = arith.constant 0 : i32
    return %c0_i32, %c0_i32_0 : i32, i32
  }
  func.func @transform_4(%arg0: i32) -> (i32, i32) {
    %c0_i32 = arith.constant 0 : i32
    %c0_i32_0 = arith.constant 0 : i32
    %c0_i32_1 = arith.constant 0 : i32
    return %c0_i32, %c0_i32_0 : i32, i32
  }
  func.func @transform_5(%arg0: i32) -> (i32, i32) {
    %c0_i32 = arith.constant 0 : i32
    %c0_i32_0 = arith.constant 0 : i32
    %c0_i32_1 = arith.constant 0 : i32
    return %c0_i32, %c0_i32_0 : i32, i32
  }
  func.func @transform_6(%arg0: i32) -> (i32, i32, i32, i32) {
    %c0_i32 = arith.constant 0 : i32
    %c0_i32_0 = arith.constant 0 : i32
    %c0_i32_1 = arith.constant 0 : i32
    %c0_i32_2 = arith.constant 0 : i32
    return %arg0, %c0_i32, %c0_i32_0, %c0_i32_1 : i32, i32, i32, i32
  }
}

</mosaic_0001>

<llo_original>
// kernel: tpu_custom_call.1
$region0: #{tpu_custom_call.1}
  #allocation0 [shape = 'u32[]', space=smem, size = 0x4, offset = 0x4, fixed_abs, tag = 'smem constant byte address 0x4 - core index']
  #allocation1 [shape = 'u32[72,128]{1,0:T(1,128)}', space=vmem, size = 0x9000, scoped, tag = 'internal scratch']
  #allocation2 [shape = 'bf16[18,18,4]{2,1,0:T(8,128)(2,1)}', space=vmem, size = 0x1b000, scoped, tag = 'scratch operand']
  #allocation3 [shape = 'bf16[18,18,32]{2,1,0:T(8,128)(2,1)}', space=vmem, size = 0x1b000, scoped, tag = 'scratch operand']
  #allocation4 [shape = 'bf16[256,36]{1,0:T(8,128)(2,1)}', space=vmem, size = 0x10000, scoped, tag = 'scratch operand']
  #allocation5 [shape = 'bf16[256,288]{1,0:T(8,128)(2,1)}', space=vmem, size = 0x30000, scoped, tag = 'scratch operand']
  %s0 = inlined_call_operand.vmem [shape: f32[2,16,16,4], index: 0, kind: input, shape index: {}]
  %s1 = inlined_call_operand.vmem [shape: f32[2,16,16,32], index: 1, kind: input, shape index: {}]
  %s2 = inlined_call_operand.vmem [shape: bf16[36,96], index: 2, kind: input, shape index: {}]
  %s3 = inlined_call_operand.hbm [shape: bf16[288,96], index: 3, kind: input, shape index: {}]
  %s4 = inlined_call_operand.vmem [shape: f32[1,96], index: 4, kind: input, shape index: {}]
  %s5 = inlined_call_operand.vmem [shape: f32[1,96], index: 5, kind: input, shape index: {}]
  %s6 = inlined_call_operand.hbm [shape: f32[2,16,16,32], index: 6, kind: output, shape index: {}]
  %s7 = sld [smem:[#allocation0]]
  $region61: #{tpu_custom_call.1} parent=0
    _
  %s9 = ssub.s32 1, %s7
  %s10 = scalar_select 0, %s9, %s7
  $region1: #{tpu_custom_call.1} parent=0
    #allocation6 [shape = 'u8[73728]{0}', space=vmem, size = 0x12000, scoped, tag = 'input window, operand 3, single buffered']
    #allocation7 [shape = 's32[2]{0}', space=sflag, size = 0x8, scoped, tag = 'scoped memory for tpu_custom_call.1']
    #allocation8 [shape = 's32[2]{0}', space=sflag, size = 0x8, scoped, tag = 'scoped memory for tpu_custom_call.1']
    #allocation9 [shape = 'u8[262144]{0}', space=vmem, size = 0x40000, scoped, tag = 'output window, operand 0']
    %11 = vsyncpa [#allocation7], 0
    %12 = vsyncpa [#allocation8], 0
    %s13 = scalar_lea.sflag [#allocation8], 1
    %14 = vsyncpa %s13, 0
    loop: start=0, step=1, limit=4
    $region2: #{tpu_custom_call.1} parent=1 // loop_pre_header
      _
    $region3: #{tpu_custom_call.1} parent=1 // loop_header
      %s16 = sphi 0, %s20
      %p17 = scmp.ge.s32.totalorder %s16, 4
      %s26 = sphi 0, %s28
      %s29 = sphi 0, %s26
      %s30 = sphi 0, %s29
      %s46 = sphi 0, %s30
      %s52 = sphi 0, %s54
      %s55 = sphi 0, %s52
      %s56 = sphi 0, %s55
      %s72 = sphi 0, %s56
      %s76 = sphi 0, %s76
      %s78 = sphi 0, %s76
      %s79 = sphi 0, %s78
      %s93 = sphi 0, %s79
      %s97 = sphi 0, %s97
      %s99 = sphi 0, %s97
      %s100 = sphi 0, %s99
      %s114 = sphi 0, %s100
      %s118 = sphi 0, %s118
      %s120 = sphi 0, %s118
      %s121 = sphi 0, %s120
      %s135 = sphi 0, %s121
      %s139 = sphi 0, %s139
      %s141 = sphi 0, %s139
      %s142 = sphi 0, %s141
      %s156 = sphi 0, %s142
      %s162 = sphi 0, %s164
      %s165 = sphi 0, %s162
      %s166 = sphi 0, %s165
      %s182 = sphi 0, %s166
    $region4: #{tpu_custom_call.1} parent=1 // loop_header_branch
      %19 = sbr.rel (%p17) target = $region8
    $region5: #{tpu_custom_call.1} parent=1 // loop_body
      %s21 = ssub.s32 %s16, 1
      %s22 = ssub.s32 %s16, 2
      %s23 = sadd.s32 %s16, 1
      %s24 = ssub.s32 %s16, %s23
      %p25 = scmp.eq.s32.totalorder %s24, 0
      %s27 = sadd.s32 %s26, 1
      %s28 = scalar_select %p25, %s26, %s27
      %p31 = pneg %p25
      %p32 = scmp.eq.s32.totalorder %s16, 1
      %p33 = por %p31, %p32
      %p34 = scmp.ne.s32.totalorder %s26, %s29
      %p35 = scmp.eq.s32.totalorder %s16, 0
      %p36 = por %p34, %p35
      %p37 = scmp.ne.s32.totalorder %s26, %s29
      %p38 = scmp.eq.s32.totalorder %s21, 1
      %p39 = por %p37, %p38
      %p40 = scmp.ne.s32.totalorder %s29, %s30
      %p41 = scmp.eq.s32.totalorder %s21, 0
      %p42 = por %p40, %p41
      %p43 = scmp.ne.s32.totalorder %s29, %s30
      %p44 = scmp.eq.s32.totalorder %s22, 1
      %p45 = por %p43, %p44
      %p47 = scmp.ne.s32.totalorder %s30, %s46
      %p48 = scmp.eq.s32.totalorder %s22, 0
      %p49 = por %p47, %p48
      %s50 = ssub.s32 %s16, %s23
      %p51 = scmp.eq.s32.totalorder %s50, 0
      %s53 = sadd.s32 %s52, 1
      %s54 = scalar_select %p51, %s52, %s53
      %p57 = pneg %p51
      %p58 = scmp.eq.s32.totalorder %s16, 1
      %p59 = por %p57, %p58
      %p60 = scmp.ne.s32.totalorder %s52, %s55
      %p61 = scmp.eq.s32.totalorder %s16, 0
      %p62 = por %p60, %p61
      %p63 = scmp.ne.s32.totalorder %s52, %s55
      %p64 = scmp.eq.s32.totalorder %s21, 1
      %p65 = por %p63, %p64
      %p66 = scmp.ne.s32.totalorder %s55, %s56
      %p67 = scmp.eq.s32.totalorder %s21, 0
      %p68 = por %p66, %p67
      %p69 = scmp.ne.s32.totalorder %s55, %s56
      %p70 = scmp.eq.s32.totalorder %s22, 1
      %p71 = por %p69, %p70
      %p73 = scmp.ne.s32.totalorder %s56, %s72
      %p74 = scmp.eq.s32.totalorder %s22, 0
      %p75 = por %p73, %p74
      %s77 = sadd.s32 %s76, 1
      %p80 = scmp.eq.s32.totalorder %s16, 1
      %p81 = scmp.ne.s32.totalorder %s76, %s78
      %p82 = scmp.eq.s32.totalorder %s16, 0
      %p83 = por %p81, %p82
      %p84 = scmp.ne.s32.totalorder %s76, %s78
      %p85 = scmp.eq.s32.totalorder %s21, 1
      %p86 = por %p84, %p85
      %p87 = scmp.ne.s32.totalorder %s78, %s79
      %p88 = scmp.eq.s32.totalorder %s21, 0
      %p89 = por %p87, %p88
      %p90 = scmp.ne.s32.totalorder %s78, %s79
      %p91 = scmp.eq.s32.totalorder %s22, 1
      %p92 = por %p90, %p91
      %p94 = scmp.ne.s32.totalorder %s79, %s93
      %p95 = scmp.eq.s32.totalorder %s22, 0
      %p96 = por %p94, %p95
      %s98 = sadd.s32 %s97, 1
      %p101 = scmp.eq.s32.totalorder %s16, 1
      %p102 = scmp.ne.s32.totalorder %s97, %s99
      %p103 = scmp.eq.s32.totalorder %s16, 0
      %p104 = por %p102, %p103
      %p105 = scmp.ne.s32.totalorder %s97, %s99
      %p106 = scmp.eq.s32.totalorder %s21, 1
      %p107 = por %p105, %p106
      %p108 = scmp.ne.s32.totalorder %s99, %s100
      %p109 = scmp.eq.s32.totalorder %s21, 0
      %p110 = por %p108, %p109
      %p111 = scmp.ne.s32.totalorder %s99, %s100
      %p112 = scmp.eq.s32.totalorder %s22, 1
      %p113 = por %p111, %p112
      %p115 = scmp.ne.s32.totalorder %s100, %s114
      %p116 = scmp.eq.s32.totalorder %s22, 0
      %p117 = por %p115, %p116
      %s119 = sadd.s32 %s118, 1
      %p122 = scmp.eq.s32.totalorder %s16, 1
      %p123 = scmp.ne.s32.totalorder %s118, %s120
      %p124 = scmp.eq.s32.totalorder %s16, 0
      %p125 = por %p123, %p124
      %p126 = scmp.ne.s32.totalorder %s118, %s120
      %p127 = scmp.eq.s32.totalorder %s21, 1
      %p128 = por %p126, %p127
      %p129 = scmp.ne.s32.totalorder %s120, %s121
      %p130 = scmp.eq.s32.totalorder %s21, 0
      %p131 = por %p129, %p130
      %p132 = scmp.ne.s32.totalorder %s120, %s121
      %p133 = scmp.eq.s32.totalorder %s22, 1
      %p134 = por %p132, %p133
      %p136 = scmp.ne.s32.totalorder %s121, %s135
      %p137 = scmp.eq.s32.totalorder %s22, 0
      %p138 = por %p136, %p137
      %s140 = sadd.s32 %s139, 1
      %p143 = scmp.eq.s32.totalorder %s16, 1
      %p144 = scmp.ne.s32.totalorder %s139, %s141
      %p145 = scmp.eq.s32.totalorder %s16, 0
      %p146 = por %p144, %p145
      %p147 = scmp.ne.s32.totalorder %s139, %s141
      %p148 = scmp.eq.s32.totalorder %s21, 1
      %p149 = por %p147, %p148
      %p150 = scmp.ne.s32.totalorder %s141, %s142
      %p151 = scmp.eq.s32.totalorder %s21, 0
      %p152 = por %p150, %p151
      %p153 = scmp.ne.s32.totalorder %s141, %s142
      %p154 = scmp.eq.s32.totalorder %s22, 1
      %p155 = por %p153, %p154
      %p157 = scmp.ne.s32.totalorder %s142, %s156
      %p158 = scmp.eq.s32.totalorder %s22, 0
      %p159 = por %p157, %p158
      %s160 = ssub.s32 %s16, %s23
      %p161 = scmp.eq.s32.totalorder %s160, 0
      %s163 = sadd.s32 %s162, 1
      %s164 = scalar_select %p161, %s162, %s163
      %p167 = pneg %p161
      %p168 = scmp.eq.s32.totalorder %s16, 1
      %p169 = por %p167, %p168
      %p170 = scmp.ne.s32.totalorder %s162, %s165
      %p171 = scmp.eq.s32.totalorder %s16, 0
      %p172 = por %p170, %p171
      %p173 = scmp.ne.s32.totalorder %s162, %s165
      %p174 = scmp.eq.s32.totalorder %s21, 1
      %p175 = por %p173, %p174
      %p176 = scmp.ne.s32.totalorder %s165, %s166
      %p177 = scmp.eq.s32.totalorder %s21, 0
      %p178 = por %p176, %p177
      %p179 = scmp.ne.s32.totalorder %s165, %s166
      %p180 = scmp.eq.s32.totalorder %s22, 1
      %p181 = por %p179, %p180
      %p183 = scmp.ne.s32.totalorder %s166, %s182
      %p184 = scmp.eq.s32.totalorder %s22, 0
      %p185 = por %p183, %p184
      %p186 = scmp.le.s32.totalorder 1, %s16
      %p187 = scmp.lt.s32.totalorder %s16, 3
      %p188 = pnand %p186, %p187
      %p189 = pneg %p188
      // Predicated region
      $region9: #{tpu_custom_call.1} parent=5 // pred_check
        _
      $region10: #{tpu_custom_call.1} parent=5 // pred_check_branch
        %191 = sbr.rel (%p188) target = $region12
      $region11: #{tpu_custom_call.1} parent=5 // pred_region
        %s192 = ssub.s32 %s16, 1
        // Predicated region
        $region13: #{tpu_custom_call.1} parent=11 // pred_check
          %p193 = pneg %p89
        $region14: #{tpu_custom_call.1} parent=11 // pred_check_branch
          %195 = sbr.rel (%p193) target = $region16
        $region15: #{tpu_custom_call.1} parent=11 // pred_region
          _
        $region16: #{tpu_custom_call.1} parent=11 // pred_fallthru
          _
        // Predicated region
        $region17: #{tpu_custom_call.1} parent=11 // pred_check
          %p196 = pneg %p110
        $region18: #{tpu_custom_call.1} parent=11 // pred_check_branch
          %198 = sbr.rel (%p196) target = $region20
        $region19: #{tpu_custom_call.1} parent=11 // pred_region
          %200 = vsyncadd [#allocation7], 0
          %s201 = sshll.u32 %s3, 4
          %s202 = int_to_ptr.hbm [resolvable:$true] %s201
          %s203 = sshll.u32 [#allocation6], 4
          %s204 = int_to_ptr.vmem [resolvable:$true] %s203
          %209 = dma.hbm_to_vmem [thread:$0]  %s202, 2304, %s204, [#allocation7], 64, 64, 4
        $region20: #{tpu_custom_call.1} parent=11 // pred_fallthru
          _
        // Predicated region
        $region21: #{tpu_custom_call.1} parent=11 // pred_check
          %p210 = pneg %p131
        $region22: #{tpu_custom_call.1} parent=11 // pred_check_branch
          %212 = sbr.rel (%p210) target = $region24
        $region23: #{tpu_custom_call.1} parent=11 // pred_region
          _
        $region24: #{tpu_custom_call.1} parent=11 // pred_fallthru
          _
        // Predicated region
        $region25: #{tpu_custom_call.1} parent=11 // pred_check
          %p213 = pneg %p152
        $region26: #{tpu_custom_call.1} parent=11 // pred_check_branch
          %215 = sbr.rel (%p213) target = $region28
        $region27: #{tpu_custom_call.1} parent=11 // pred_region
          _
        $region28: #{tpu_custom_call.1} parent=11 // pred_fallthru
          _
      $region12: #{tpu_custom_call.1} parent=5 // pred_fallthru
        _
      %p216 = scmp.lt.s32.totalorder %s16, 2
      // Predicated region
      $region29: #{tpu_custom_call.1} parent=5 // pred_check
        %p217 = pneg %p216
      $region30: #{tpu_custom_call.1} parent=5 // pred_check_branch
        %219 = sbr.rel (%p217) target = $region32
      $region31: #{tpu_custom_call.1} parent=5 // pred_region
        // Predicated region
        $region33: #{tpu_custom_call.1} parent=31 // pred_check
          %p220 = pneg %p36
        $region34: #{tpu_custom_call.1} parent=31 // pred_check_branch
          %222 = sbr.rel (%p220) target = $region36
        $region35: #{tpu_custom_call.1} parent=31 // pred_region
          %p223 = scmp.lt.s32.totalorder %s16, 1
          %s224 = scalar_select %p223, %s16, 1
          %s225 = smul.addr %s224, 32
          %s226 = smul.addr %s225, 8
          %s227 = scalar_lea.vmem %s0, %s226
        $region36: #{tpu_custom_call.1} parent=31 // pred_fallthru
          _
        // Predicated region
        $region37: #{tpu_custom_call.1} parent=31 // pred_check
          %p228 = pneg %p62
        $region38: #{tpu_custom_call.1} parent=31 // pred_check_branch
          %230 = sbr.rel (%p228) target = $region40
        $region39: #{tpu_custom_call.1} parent=31 // pred_region
          %p231 = scmp.lt.s32.totalorder %s16, 1
          %s232 = scalar_select %p231, %s16, 1
          %s233 = smul.addr %s232, 32
          %s234 = smul.addr %s233, 8
          %s235 = scalar_lea.vmem %s1, %s234
        $region40: #{tpu_custom_call.1} parent=31 // pred_fallthru
          _
      $region32: #{tpu_custom_call.1} parent=5 // pred_fallthru
        _
      %p236 = scmp.le.s32.totalorder 1, %s16
      %p237 = scmp.lt.s32.totalorder %s16, 3
      %p238 = pnand %p236, %p237
      %p239 = pneg %p238
      // Predicated region
      $region41: #{tpu_custom_call.1} parent=5 // pred_check
        _
      $region42: #{tpu_custom_call.1} parent=5 // pred_check_branch
        %241 = sbr.rel (%p238) target = $region44
      $region43: #{tpu_custom_call.1} parent=5 // pred_region
        %s242 = ssub.s32 %s16, 1
        // Predicated region
        $region45: #{tpu_custom_call.1} parent=43 // pred_check
          %p243 = pneg %p110
        $region46: #{tpu_custom_call.1} parent=43 // pred_check_branch
          %245 = sbr.rel (%p243) target = $region48
        $region47: #{tpu_custom_call.1} parent=43 // pred_region
          %247 = dma.done [#allocation7], 2304
        $region48: #{tpu_custom_call.1} parent=43 // pred_fallthru
          _
        %p248 = scmp.lt.s32.totalorder %s21, 1
        %s249 = scalar_select %p248, %s21, 1
        %s250 = smul.addr %s249, 32
        %s251 = smul.addr %s250, 8
        %s252 = scalar_lea.vmem %s0, %s251
        %p253 = pneg %p42
        %p254 = pneg %p39
        %p255 = scmp.lt.s32.totalorder %s21, 1
        %s256 = scalar_select %p255, %s21, 1
        %s257 = smul.addr %s256, 32
        %s258 = smul.addr %s257, 8
        %s259 = scalar_lea.vmem %s1, %s258
        %p260 = pneg %p68
        %p261 = pneg %p65
        %p262 = pneg %p89
        %p263 = pneg %p86
        %p264 = pneg %p110
        %p265 = pneg %p107
        %p266 = pneg %p131
        %p267 = pneg %p128
        %p268 = pneg %p152
        %p269 = pneg %p149
        %p270 = pneg %p178
        %p271 = pneg %p175
        %s272 = sand.u32 %s165, 1
        %s273 = scalar_lea.sflag [#allocation8], %s272
        %s274 = sand.u32 %s165, 1
        %s275 = smul.addr %s274, 256
        %s276 = scalar_lea.vmem [#allocation9], %s275
        %p277 = scmp.lt.s32.totalorder %s21, 1
        %s278 = scalar_select %p277, %s21, 1
        %s279 = smul.addr %s278, 32
        %s280 = smul.addr %s279, 8
        %s281 = scalar_lea.vmem %s0, %s280
        %p282 = scmp.lt.s32.totalorder %s21, 1
        %s283 = scalar_select %p282, %s21, 1
        %s284 = smul.addr %s283, 32
        %s285 = smul.addr %s284, 8
        %s286 = scalar_lea.vmem %s1, %s285
        %vm288 = vcmask 27648
        %289 = vst.msk [vmem:[#allocation2] sm:$0xf] %vm288, 0
        %290 = vst.msk [vmem:[#allocation2 + $0x4] sm:$0xf] %vm288, 0
        %vm291 = vcmask 24576
        %292 = vst.msk [vmem:[#allocation2 + $0x8] sm:$0x1] %vm291, 0
        %293 = vst.msk [vmem:[#allocation2 + $0xc] sm:$0xf] %vm288, 0
        %294 = vst.msk [vmem:[#allocation2 + $0x10] sm:$0xf] %vm288, 0
        %295 = vst.msk [vmem:[#allocation2 + $0x14] sm:$0x1] %vm291, 0
        %296 = vst.msk [vmem:[#allocation2 + $0x18] sm:$0xf] %vm288, 0
        %297 = vst.msk [vmem:[#allocation2 + $0x1c] sm:$0xf] %vm288, 0
        %298 = vst.msk [vmem:[#allocation2 + $0x20] sm:$0x1] %vm291, 0
        %299 = vst.msk [vmem:[#allocation2 + $0x24] sm:$0xf] %vm288, 0
        %300 = vst.msk [vmem:[#allocation2 + $0x28] sm:$0xf] %vm288, 0
        %301 = vst.msk [vmem:[#allocation2 + $0x2c] sm:$0x1] %vm291, 0
        %302 = vst.msk [vmem:[#allocation2 + $0x30] sm:$0xf] %vm288, 0
        %303 = vst.msk [vmem:[#allocation2 + $0x34] sm:$0xf] %vm288, 0
        %304 = vst.msk [vmem:[#allocation2 + $0x38] sm:$0x1] %vm291, 0
        %305 = vst.msk [vmem:[#allocation2 + $0x3c] sm:$0xf] %vm288, 0
        %306 = vst.msk [vmem:[#allocation2 + $0x40] sm:$0xf] %vm288, 0
        %307 = vst.msk [vmem:[#allocation2 + $0x44] sm:$0x1] %vm291, 0
        %308 = vst.msk [vmem:[#allocation2 + $0x48] sm:$0xf] %vm288, 0
        %309 = vst.msk [vmem:[#allocation2 + $0x4c] sm:$0xf] %vm288, 0
        %310 = vst.msk [vmem:[#allocation2 + $0x50] sm:$0x1] %vm291, 0
        %311 = vst.msk [vmem:[#allocation2 + $0x54] sm:$0xf] %vm288, 0
        %312 = vst.msk [vmem:[#allocation2 + $0x58] sm:$0xf] %vm288, 0
        %313 = vst.msk [vmem:[#allocation2 + $0x5c] sm:$0x1] %vm291, 0
        %314 = vst.msk [vmem:[#allocation2 + $0x60] sm:$0xf] %vm288, 0
        %315 = vst.msk [vmem:[#allocation2 + $0x64] sm:$0xf] %vm288, 0
        %316 = vst.msk [vmem:[#allocation2 + $0x68] sm:$0x1] %vm291, 0
        %317 = vst.msk [vmem:[#allocation2 + $0x6c] sm:$0xf] %vm288, 0
        %318 = vst.msk [vmem:[#allocation2 + $0x70] sm:$0xf] %vm288, 0
        %319 = vst.msk [vmem:[#allocation2 + $0x74] sm:$0x1] %vm291, 0
        %320 = vst.msk [vmem:[#allocation2 + $0x78] sm:$0xf] %vm288, 0
        %321 = vst.msk [vmem:[#allocation2 + $0x7c] sm:$0xf] %vm288, 0
        %322 = vst.msk [vmem:[#allocation2 + $0x80] sm:$0x1] %vm291, 0
        %323 = vst.msk [vmem:[#allocation2 + $0x84] sm:$0xf] %vm288, 0
        %324 = vst.msk [vmem:[#allocation2 + $0x88] sm:$0xf] %vm288, 0
        %325 = vst.msk [vmem:[#allocation2 + $0x8c] sm:$0x1] %vm291, 0
        %326 = vst.msk [vmem:[#allocation2 + $0x90] sm:$0xf] %vm288, 0
        %327 = vst.msk [vmem:[#allocation2 + $0x94] sm:$0xf] %vm288, 0
        %328 = vst.msk [vmem:[#allocation2 + $0x98] sm:$0x1] %vm291, 0
        %329 = vst.msk [vmem:[#allocation2 + $0x9c] sm:$0xf] %vm288, 0
        %330 = vst.msk [vmem:[#allocation2 + $0xa0] sm:$0xf] %vm288, 0
        %331 = vst.msk [vmem:[#allocation2 + $0xa4] sm:$0x1] %vm291, 0
        %332 = vst.msk [vmem:[#allocation2 + $0xa8] sm:$0xf] %vm288, 0
        %333 = vst.msk [vmem:[#allocation2 + $0xac] sm:$0xf] %vm288, 0
        %334 = vst.msk [vmem:[#allocation2 + $0xb0] sm:$0x1] %vm291, 0
        %335 = vst.msk [vmem:[#allocation2 + $0xb4] sm:$0xf] %vm288, 0
        %336 = vst.msk [vmem:[#allocation2 + $0xb8] sm:$0xf] %vm288, 0
        %337 = vst.msk [vmem:[#allocation2 + $0xbc] sm:$0x1] %vm291, 0
        %338 = vst.msk [vmem:[#allocation2 + $0xc0] sm:$0xf] %vm288, 0
        %339 = vst.msk [vmem:[#allocation2 + $0xc4] sm:$0xf] %vm288, 0
        %340 = vst.msk [vmem:[#allocation2 + $0xc8] sm:$0x1] %vm291, 0
        %341 = vst.msk [vmem:[#allocation2 + $0xcc] sm:$0xf] %vm288, 0
        %342 = vst.msk [vmem:[#allocation2 + $0xd0] sm:$0xf] %vm288, 0
        %343 = vst.msk [vmem:[#allocation2 + $0xd4] sm:$0x1] %vm291, 0
        %vm344 = vcmask 257024
        %345 = vst.msk [vmem:[#allocation3] sm:$0xf] %vm344, 0
        %346 = vst.msk [vmem:[#allocation3 + $0x4] sm:$0xf] %vm344, 0
        %vm347 = vcmask 253952
        %348 = vst.msk [vmem:[#allocation3 + $0x8] sm:$0x1] %vm347, 0
        %349 = vst.msk [vmem:[#allocation3 + $0xc] sm:$0xf] %vm344, 0
        %350 = vst.msk [vmem:[#allocation3 + $0x10] sm:$0xf] %vm344, 0
        %351 = vst.msk [vmem:[#allocation3 + $0x14] sm:$0x1] %vm347, 0
        %352 = vst.msk [vmem:[#allocation3 + $0x18] sm:$0xf] %vm344, 0
        %353 = vst.msk [vmem:[#allocation3 + $0x1c] sm:$0xf] %vm344, 0
        %354 = vst.msk [vmem:[#allocation3 + $0x20] sm:$0x1] %vm347, 0
        %355 = vst.msk [vmem:[#allocation3 + $0x24] sm:$0xf] %vm344, 0
        %356 = vst.msk [vmem:[#allocation3 + $0x28] sm:$0xf] %vm344, 0
        %357 = vst.msk [vmem:[#allocation3 + $0x2c] sm:$0x1] %vm347, 0
        %358 = vst.msk [vmem:[#allocation3 + $0x30] sm:$0xf] %vm344, 0
        %359 = vst.msk [vmem:[#allocation3 + $0x34] sm:$0xf] %vm344, 0
        %360 = vst.msk [vmem:[#allocation3 + $0x38] sm:$0x1] %vm347, 0
        %361 = vst.msk [vmem:[#allocation3 + $0x3c] sm:$0xf] %vm344, 0
        %362 = vst.msk [vmem:[#allocation3 + $0x40] sm:$0xf] %vm344, 0
        %363 = vst.msk [vmem:[#allocation3 + $0x44] sm:$0x1] %vm347, 0
        %364 = vst.msk [vmem:[#allocation3 + $0x48] sm:$0xf] %vm344, 0
        %365 = vst.msk [vmem:[#allocation3 + $0x4c] sm:$0xf] %vm344, 0
        %366 = vst.msk [vmem:[#allocation3 + $0x50] sm:$0x1] %vm347, 0
        %367 = vst.msk [vmem:[#allocation3 + $0x54] sm:$0xf] %vm344, 0
        %368 = vst.msk [vmem:[#allocation3 + $0x58] sm:$0xf] %vm344, 0
        %369 = vst.msk [vmem:[#allocation3 + $0x5c] sm:$0x1] %vm347, 0
        %370 = vst.msk [vmem:[#allocation3 + $0x60] sm:$0xf] %vm344, 0
        %371 = vst.msk [vmem:[#allocation3 + $0x64] sm:$0xf] %vm344, 0
        %372 = vst.msk [vmem:[#allocation3 + $0x68] sm:$0x1] %vm347, 0
        %373 = vst.msk [vmem:[#allocation3 + $0x6c] sm:$0xf] %vm344, 0
        %374 = vst.msk [vmem:[#allocation3 + $0x70] sm:$0xf] %vm344, 0
        %375 = vst.msk [vmem:[#allocation3 + $0x74] sm:$0x1] %vm347, 0
        %376 = vst.msk [vmem:[#allocation3 + $0x78] sm:$0xf] %vm344, 0
        %377 = vst.msk [vmem:[#allocation3 + $0x7c] sm:$0xf] %vm344, 0
        %378 = vst.msk [vmem:[#allocation3 + $0x80] sm:$0x1] %vm347, 0
        %379 = vst.msk [vmem:[#allocation3 + $0x84] sm:$0xf] %vm344, 0
        %380 = vst.msk [vmem:[#allocation3 + $0x88] sm:$0xf] %vm344, 0
        %381 = vst.msk [vmem:[#allocation3 + $0x8c] sm:$0x1] %vm347, 0
        %382 = vst.msk [vmem:[#allocation3 + $0x90] sm:$0xf] %vm344, 0
        %383 = vst.msk [vmem:[#allocation3 + $0x94] sm:$0xf] %vm344, 0
        %384 = vst.msk [vmem:[#allocation3 + $0x98] sm:$0x1] %vm347, 0
        %385 = vst.msk [vmem:[#allocation3 + $0x9c] sm:$0xf] %vm344, 0
        %386 = vst.msk [vmem:[#allocation3 + $0xa0] sm:$0xf] %vm344, 0
        %387 = vst.msk [vmem:[#allocation3 + $0xa4] sm:$0x1] %vm347, 0
        %388 = vst.msk [vmem:[#allocation3 + $0xa8] sm:$0xf] %vm344, 0
        %389 = vst.msk [vmem:[#allocation3 + $0xac] sm:$0xf] %vm344, 0
        %390 = vst.msk [vmem:[#allocation3 + $0xb0] sm:$0x1] %vm347, 0
        %391 = vst.msk [vmem:[#allocation3 + $0xb4] sm:$0xf] %vm344, 0
        %392 = vst.msk [vmem:[#allocation3 + $0xb8] sm:$0xf] %vm344, 0
        %393 = vst.msk [vmem:[#allocation3 + $0xbc] sm:$0x1] %vm347, 0
        %394 = vst.msk [vmem:[#allocation3 + $0xc0] sm:$0xf] %vm344, 0
        %395 = vst.msk [vmem:[#allocation3 + $0xc4] sm:$0xf] %vm344, 0
        %396 = vst.msk [vmem:[#allocation3 + $0xc8] sm:$0x1] %vm347, 0
        %397 = vst.msk [vmem:[#allocation3 + $0xcc] sm:$0xf] %vm344, 0
        %398 = vst.msk [vmem:[#allocation3 + $0xd0] sm:$0xf] %vm344, 0
        %399 = vst.msk [vmem:[#allocation3 + $0xd4] sm:$0x1] %vm347, 0
        %v400 = vld [vmem:[%s281] sm:$0xff]
        %v401 = vld [vmem:[%s281 + $0x8] sm:$0xff]
        %v402 = vld [vmem:[%s281 + $0x10] sm:$0xff]
        %v403 = vld [vmem:[%s281 + $0x18] sm:$0xff]
        %v404 = vld [vmem:[%s281 + $0x20] sm:$0xff]
        %v405 = vld [vmem:[%s281 + $0x28] sm:$0xff]
        %v406 = vld [vmem:[%s281 + $0x30] sm:$0xff]
        %v407 = vld [vmem:[%s281 + $0x38] sm:$0xff]
        %v408 = vld [vmem:[%s281 + $0x40] sm:$0xff]
        %v409 = vld [vmem:[%s281 + $0x48] sm:$0xff]
        %v410 = vld [vmem:[%s281 + $0x50] sm:$0xff]
        %v411 = vld [vmem:[%s281 + $0x58] sm:$0xff]
        %v412 = vld [vmem:[%s281 + $0x60] sm:$0xff]
        %v413 = vld [vmem:[%s281 + $0x68] sm:$0xff]
        %v414 = vld [vmem:[%s281 + $0x70] sm:$0xff]
        %v415 = vld [vmem:[%s281 + $0x78] sm:$0xff]
        %v416 = vld [vmem:[%s281 + $0x80] sm:$0xff]
        %v417 = vld [vmem:[%s281 + $0x88] sm:$0xff]
        %v418 = vld [vmem:[%s281 + $0x90] sm:$0xff]
        %v419 = vld [vmem:[%s281 + $0x98] sm:$0xff]
        %v420 = vld [vmem:[%s281 + $0xa0] sm:$0xff]
        %v421 = vld [vmem:[%s281 + $0xa8] sm:$0xff]
        %v422 = vld [vmem:[%s281 + $0xb0] sm:$0xff]
        %v423 = vld [vmem:[%s281 + $0xb8] sm:$0xff]
        %v424 = vld [vmem:[%s281 + $0xc0] sm:$0xff]
        %v425 = vld [vmem:[%s281 + $0xc8] sm:$0xff]
        %v426 = vld [vmem:[%s281 + $0xd0] sm:$0xff]
        %v427 = vld [vmem:[%s281 + $0xd8] sm:$0xff]
        %v428 = vld [vmem:[%s281 + $0xe0] sm:$0xff]
        %v429 = vld [vmem:[%s281 + $0xe8] sm:$0xff]
        %v430 = vld [vmem:[%s281 + $0xf0] sm:$0xff]
        %v431 = vld [vmem:[%s281 + $0xf8] sm:$0xff]
        %v432 = vpack.c.bf16 %v400, %v400
        %v433 = vpack.c.bf16 %v401, %v401
        %v434 = vpack.c.bf16 %v402, %v402
        %v435 = vpack.c.bf16 %v403, %v403
        %v436 = vpack.c.bf16 %v404, %v404
        %v437 = vpack.c.bf16 %v405, %v405
        %v438 = vpack.c.bf16 %v406, %v406
        %v439 = vpack.c.bf16 %v407, %v407
        %v440 = vpack.c.bf16 %v408, %v408
        %v441 = vpack.c.bf16 %v409, %v409
        %v442 = vpack.c.bf16 %v410, %v410
        %v443 = vpack.c.bf16 %v411, %v411
        %v444 = vpack.c.bf16 %v412, %v412
        %v445 = vpack.c.bf16 %v413, %v413
        %v446 = vpack.c.bf16 %v414, %v414
        %v447 = vpack.c.bf16 %v415, %v415
        %v448 = vpack.c.bf16 %v416, %v416
        %v449 = vpack.c.bf16 %v417, %v417
        %v450 = vpack.c.bf16 %v418, %v418
        %v451 = vpack.c.bf16 %v419, %v419
        %v452 = vpack.c.bf16 %v420, %v420
        %v453 = vpack.c.bf16 %v421, %v421
        %v454 = vpack.c.bf16 %v422, %v422
        %v455 = vpack.c.bf16 %v423, %v423
        %v456 = vpack.c.bf16 %v424, %v424
        %v457 = vpack.c.bf16 %v425, %v425
        %v458 = vpack.c.bf16 %v426, %v426
        %v459 = vpack.c.bf16 %v427, %v427
        %v460 = vpack.c.bf16 %v428, %v428
        %v461 = vpack.c.bf16 %v429, %v429
        %v462 = vpack.c.bf16 %v430, %v430
        %v463 = vpack.c.bf16 %v431, %v431
        %vm464 = vsmask.f32 256
        %vm465 = vsmask.f32 4368
        %vm466 = vmor %vm464, %vm465
        %v468 = vshrl.u32 %v432, 16
        %v470 = vrot.slane %v468, 7
        %v471 = vshll.u32 %v432, 16
        %v473 = vor.u32 %v470, %v471
        %v474 = vrot.slane %v470, 4
        %v476 = vshrl.u32 %v433, 16
        %v478 = vrot.slane %v476, 7
        %v479 = vshll.u32 %v433, 16
        %v481 = vor.u32 %v478, %v479
        %v482 = vsel %vm466, %v474, %v481
        %v483 = vrot.slane %v478, 4
        %v485 = vshrl.u32 %v434, 16
        %v487 = vrot.slane %v485, 7
        %v488 = vshll.u32 %v434, 16
        %v490 = vor.u32 %v487, %v488
        %v491 = vrot.slane %v487, 4
        %v493 = vshrl.u32 %v435, 16
        %v495 = vrot.slane %v493, 7
        %v496 = vshll.u32 %v435, 16
        %v498 = vor.u32 %v495, %v496
        %v499 = vsel %vm466, %v491, %v498
        %v500 = vrot.slane %v495, 4
        %v502 = vshrl.u32 %v436, 16
        %v504 = vrot.slane %v502, 7
        %v505 = vshll.u32 %v436, 16
        %v507 = vor.u32 %v504, %v505
        %v508 = vrot.slane %v504, 4
        %v510 = vshrl.u32 %v437, 16
        %v512 = vrot.slane %v510, 7
        %v513 = vshll.u32 %v437, 16
        %v515 = vor.u32 %v512, %v513
        %v516 = vsel %vm466, %v508, %v515
        %v517 = vrot.slane %v512, 4
        %v519 = vshrl.u32 %v438, 16
        %v521 = vrot.slane %v519, 7
        %v522 = vshll.u32 %v438, 16
        %v524 = vor.u32 %v521, %v522
        %v525 = vrot.slane %v521, 4
        %v527 = vshrl.u32 %v439, 16
        %v529 = vrot.slane %v527, 7
        %v530 = vshll.u32 %v439, 16
        %v532 = vor.u32 %v529, %v530
        %v533 = vsel %vm466, %v525, %v532
        %v534 = vrot.slane %v529, 4
        %v536 = vshrl.u32 %v440, 16
        %v538 = vrot.slane %v536, 7
        %v539 = vshll.u32 %v440, 16
        %v541 = vor.u32 %v538, %v539
        %v542 = vrot.slane %v538, 4
        %v544 = vshrl.u32 %v441, 16
        %v546 = vrot.slane %v544, 7
        %v547 = vshll.u32 %v441, 16
        %v549 = vor.u32 %v546, %v547
        %v550 = vsel %vm466, %v542, %v549
        %v551 = vrot.slane %v546, 4
        %v553 = vshrl.u32 %v442, 16
        %v555 = vrot.slane %v553, 7
        %v556 = vshll.u32 %v442, 16
        %v558 = vor.u32 %v555, %v556
        %v559 = vrot.slane %v555, 4
        %v561 = vshrl.u32 %v443, 16
        %v563 = vrot.slane %v561, 7
        %v564 = vshll.u32 %v443, 16
        %v566 = vor.u32 %v563, %v564
        %v567 = vsel %vm466, %v559, %v566
        %v568 = vrot.slane %v563, 4
        %v570 = vshrl.u32 %v444, 16
        %v572 = vrot.slane %v570, 7
        %v573 = vshll.u32 %v444, 16
        %v575 = vor.u32 %v572, %v573
        %v576 = vrot.slane %v572, 4
        %v578 = vshrl.u32 %v445, 16
        %v580 = vrot.slane %v578, 7
        %v581 = vshll.u32 %v445, 16
        %v583 = vor.u32 %v580, %v581
        %v584 = vsel %vm466, %v576, %v583
        %v585 = vrot.slane %v580, 4
        %v587 = vshrl.u32 %v446, 16
        %v589 = vrot.slane %v587, 7
        %v590 = vshll.u32 %v446, 16
        %v592 = vor.u32 %v589, %v590
        %v593 = vrot.slane %v589, 4
        %v595 = vshrl.u32 %v447, 16
        %v597 = vrot.slane %v595, 7
        %v598 = vshll.u32 %v447, 16
        %v600 = vor.u32 %v597, %v598
        %v601 = vsel %vm466, %v593, %v600
        %v602 = vrot.slane %v597, 4
        %v604 = vshrl.u32 %v448, 16
        %v606 = vrot.slane %v604, 7
        %v607 = vshll.u32 %v448, 16
        %v609 = vor.u32 %v606, %v607
        %v610 = vrot.slane %v606, 4
        %v612 = vshrl.u32 %v449, 16
        %v614 = vrot.slane %v612, 7
        %v615 = vshll.u32 %v449, 16
        %v617 = vor.u32 %v614, %v615
        %v618 = vsel %vm466, %v610, %v617
        %v619 = vrot.slane %v614, 4
        %v621 = vshrl.u32 %v450, 16
        %v623 = vrot.slane %v621, 7
        %v624 = vshll.u32 %v450, 16
        %v626 = vor.u32 %v623, %v624
        %v627 = vrot.slane %v623, 4
        %v629 = vshrl.u32 %v451, 16
        %v631 = vrot.slane %v629, 7
        %v632 = vshll.u32 %v451, 16
        %v634 = vor.u32 %v631, %v632
        %v635 = vsel %vm466, %v627, %v634
        %v636 = vrot.slane %v631, 4
        %v638 = vshrl.u32 %v452, 16
        %v640 = vrot.slane %v638, 7
        %v641 = vshll.u32 %v452, 16
        %v643 = vor.u32 %v640, %v641
        %v644 = vrot.slane %v640, 4
        %v646 = vshrl.u32 %v453, 16
        %v648 = vrot.slane %v646, 7
        %v649 = vshll.u32 %v453, 16
        %v651 = vor.u32 %v648, %v649
        %v652 = vsel %vm466, %v644, %v651
        %v653 = vrot.slane %v648, 4
        %v655 = vshrl.u32 %v454, 16
        %v657 = vrot.slane %v655, 7
        %v658 = vshll.u32 %v454, 16
        %v660 = vor.u32 %v657, %v658
        %v661 = vrot.slane %v657, 4
        %v663 = vshrl.u32 %v455, 16
        %v665 = vrot.slane %v663, 7
        %v666 = vshll.u32 %v455, 16
        %v668 = vor.u32 %v665, %v666
        %v669 = vsel %vm466, %v661, %v668
        %v670 = vrot.slane %v665, 4
        %v672 = vshrl.u32 %v456, 16
        %v674 = vrot.slane %v672, 7
        %v675 = vshll.u32 %v456, 16
        %v677 = vor.u32 %v674, %v675
        %v678 = vrot.slane %v674, 4
        %v680 = vshrl.u32 %v457, 16
        %v682 = vrot.slane %v680, 7
        %v683 = vshll.u32 %v457, 16
        %v685 = vor.u32 %v682, %v683
        %v686 = vsel %vm466, %v678, %v685
        %v687 = vrot.slane %v682, 4
        %v689 = vshrl.u32 %v458, 16
        %v691 = vrot.slane %v689, 7
        %v692 = vshll.u32 %v458, 16
        %v694 = vor.u32 %v691, %v692
        %v695 = vrot.slane %v691, 4
        %v697 = vshrl.u32 %v459, 16
        %v699 = vrot.slane %v697, 7
        %v700 = vshll.u32 %v459, 16
        %v702 = vor.u32 %v699, %v700
        %v703 = vsel %vm466, %v695, %v702
        %v704 = vrot.slane %v699, 4
        %v706 = vshrl.u32 %v460, 16
        %v708 = vrot.slane %v706, 7
        %v709 = vshll.u32 %v460, 16
        %v711 = vor.u32 %v708, %v709
        %v712 = vrot.slane %v708, 4
        %v714 = vshrl.u32 %v461, 16
        %v716 = vrot.slane %v714, 7
        %v717 = vshll.u32 %v461, 16
        %v719 = vor.u32 %v716, %v717
        %v720 = vsel %vm466, %v712, %v719
        %v721 = vrot.slane %v716, 4
        %v723 = vshrl.u32 %v462, 16
        %v725 = vrot.slane %v723, 7
        %v726 = vshll.u32 %v462, 16
        %v728 = vor.u32 %v725, %v726
        %v729 = vrot.slane %v725, 4
        %v731 = vshrl.u32 %v463, 16
        %v733 = vrot.slane %v731, 7
        %v734 = vshll.u32 %v463, 16
        %v736 = vor.u32 %v733, %v734
        %v737 = vsel %vm466, %v729, %v736
        %v738 = vrot.slane %v733, 4
        %s787 = scalar_lea.vmem [#allocation2], 12
        %vm788 = vcmask 27648
        %vm789 = vsmask.f32 7938
        %vm790 = vmand %vm788, %vm789
        %v791 = vld [vmem:[%s787] sm:$0xf]
        %v792 = vsel %vm790, %v473, %v791
        %793 = vst [vmem:[%s787] sm:$0xf] %v792
        %794 = vst.msk [vmem:[%s787 + $0x4] sm:$0xf] %vm288, %v482
        %vm795 = vcmask 24576
        %vm796 = vmand %vm795, %vm464
        %v797 = vld [vmem:[%s787 + $0x8] sm:$0x1]
        %v798 = vsel %vm796, %v483, %v797
        %799 = vst [vmem:[%s787 + $0x8] sm:$0x1] %v798
        %v800 = vld [vmem:[%s787 + $0xc] sm:$0xf]
        %v801 = vsel %vm790, %v490, %v800
        %802 = vst [vmem:[%s787 + $0xc] sm:$0xf] %v801
        %803 = vst.msk [vmem:[%s787 + $0x10] sm:$0xf] %vm288, %v499
        %v804 = vld [vmem:[%s787 + $0x14] sm:$0x1]
        %v805 = vsel %vm796, %v500, %v804
        %806 = vst [vmem:[%s787 + $0x14] sm:$0x1] %v805
        %v807 = vld [vmem:[%s787 + $0x18] sm:$0xf]
        %v808 = vsel %vm790, %v507, %v807
        %809 = vst [vmem:[%s787 + $0x18] sm:$0xf] %v808
        %810 = vst.msk [vmem:[%s787 + $0x1c] sm:$0xf] %vm288, %v516
        %v811 = vld [vmem:[%s787 + $0x20] sm:$0x1]
        %v812 = vsel %vm796, %v517, %v811
        %813 = vst [vmem:[%s787 + $0x20] sm:$0x1] %v812
        %v814 = vld [vmem:[%s787 + $0x24] sm:$0xf]
        %v815 = vsel %vm790, %v524, %v814
        %816 = vst [vmem:[%s787 + $0x24] sm:$0xf] %v815
        %817 = vst.msk [vmem:[%s787 + $0x28] sm:$0xf] %vm288, %v533
        %v818 = vld [vmem:[%s787 + $0x2c] sm:$0x1]
        %v819 = vsel %vm796, %v534, %v818
        %820 = vst [vmem:[%s787 + $0x2c] sm:$0x1] %v819
        %v821 = vld [vmem:[%s787 + $0x30] sm:$0xf]
        %v822 = vsel %vm790, %v541, %v821
        %823 = vst [vmem:[%s787 + $0x30] sm:$0xf] %v822
        %824 = vst.msk [vmem:[%s787 + $0x34] sm:$0xf] %vm288, %v550
        %v825 = vld [vmem:[%s787 + $0x38] sm:$0x1]
        %v826 = vsel %vm796, %v551, %v825
        %827 = vst [vmem:[%s787 + $0x38] sm:$0x1] %v826
        %v828 = vld [vmem:[%s787 + $0x3c] sm:$0xf]
        %v829 = vsel %vm790, %v558, %v828
        %830 = vst [vmem:[%s787 + $0x3c] sm:$0xf] %v829
        %831 = vst.msk [vmem:[%s787 + $0x40] sm:$0xf] %vm288, %v567
        %v832 = vld [vmem:[%s787 + $0x44] sm:$0x1]
        %v833 = vsel %vm796, %v568, %v832
        %834 = vst [vmem:[%s787 + $0x44] sm:$0x1] %v833
        %v835 = vld [vmem:[%s787 + $0x48] sm:$0xf]
        %v836 = vsel %vm790, %v575, %v835
        %837 = vst [vmem:[%s787 + $0x48] sm:$0xf] %v836
        %838 = vst.msk [vmem:[%s787 + $0x4c] sm:$0xf] %vm288, %v584
        %v839 = vld [vmem:[%s787 + $0x50] sm:$0x1]
        %v840 = vsel %vm796, %v585, %v839
        %841 = vst [vmem:[%s787 + $0x50] sm:$0x1] %v840
        %v842 = vld [vmem:[%s787 + $0x54] sm:$0xf]
        %v843 = vsel %vm790, %v592, %v842
        %844 = vst [vmem:[%s787 + $0x54] sm:$0xf] %v843
        %845 = vst.msk [vmem:[%s787 + $0x58] sm:$0xf] %vm288, %v601
        %v846 = vld [vmem:[%s787 + $0x5c] sm:$0x1]
        %v847 = vsel %vm796, %v602, %v846
        %848 = vst [vmem:[%s787 + $0x5c] sm:$0x1] %v847
        %v849 = vld [vmem:[%s787 + $0x60] sm:$0xf]
        %v850 = vsel %vm790, %v609, %v849
        %851 = vst [vmem:[%s787 + $0x60] sm:$0xf] %v850
        %852 = vst.msk [vmem:[%s787 + $0x64] sm:$0xf] %vm288, %v618
        %v853 = vld [vmem:[%s787 + $0x68] sm:$0x1]
        %v854 = vsel %vm796, %v619, %v853
        %855 = vst [vmem:[%s787 + $0x68] sm:$0x1] %v854
        %v856 = vld [vmem:[%s787 + $0x6c] sm:$0xf]
        %v857 = vsel %vm790, %v626, %v856
        %858 = vst [vmem:[%s787 + $0x6c] sm:$0xf] %v857
        %859 = vst.msk [vmem:[%s787 + $0x70] sm:$0xf] %vm288, %v635
        %v860 = vld [vmem:[%s787 + $0x74] sm:$0x1]
        %v861 = vsel %vm796, %v636, %v860
        %862 = vst [vmem:[%s787 + $0x74] sm:$0x1] %v861
        %v863 = vld [vmem:[%s787 + $0x78] sm:$0xf]
        %v864 = vsel %vm790, %v643, %v863
        %865 = vst [vmem:[%s787 + $0x78] sm:$0xf] %v864
        %866 = vst.msk [vmem:[%s787 + $0x7c] sm:$0xf] %vm288, %v652
        %v867 = vld [vmem:[%s787 + $0x80] sm:$0x1]
        %v868 = vsel %vm796, %v653, %v867
        %869 = vst [vmem:[%s787 + $0x80] sm:$0x1] %v868
        %v870 = vld [vmem:[%s787 + $0x84] sm:$0xf]
        %v871 = vsel %vm790, %v660, %v870
        %872 = vst [vmem:[%s787 + $0x84] sm:$0xf] %v871
        %873 = vst.msk [vmem:[%s787 + $0x88] sm:$0xf] %vm288, %v669
        %v874 = vld [vmem:[%s787 + $0x8c] sm:$0x1]
        %v875 = vsel %vm796, %v670, %v874
        %876 = vst [vmem:[%s787 + $0x8c] sm:$0x1] %v875
        %v877 = vld [vmem:[%s787 + $0x90] sm:$0xf]
        %v878 = vsel %vm790, %v677, %v877
        %879 = vst [vmem:[%s787 + $0x90] sm:$0xf] %v878
        %880 = vst.msk [vmem:[%s787 + $0x94] sm:$0xf] %vm288, %v686
        %v881 = vld [vmem:[%s787 + $0x98] sm:$0x1]
        %v882 = vsel %vm796, %v687, %v881
        %883 = vst [vmem:[%s787 + $0x98] sm:$0x1] %v882
        %v884 = vld [vmem:[%s787 + $0x9c] sm:$0xf]
        %v885 = vsel %vm790, %v694, %v884
        %886 = vst [vmem:[%s787 + $0x9c] sm:$0xf] %v885
        %887 = vst.msk [vmem:[%s787 + $0xa0] sm:$0xf] %vm288, %v703
        %v888 = vld [vmem:[%s787 + $0xa4] sm:$0x1]
        %v889 = vsel %vm796, %v704, %v888
        %890 = vst [vmem:[%s787 + $0xa4] sm:$0x1] %v889
        %v891 = vld [vmem:[%s787 + $0xa8] sm:$0xf]
        %v892 = vsel %vm790, %v711, %v891
        %893 = vst [vmem:[%s787 + $0xa8] sm:$0xf] %v892
        %894 = vst.msk [vmem:[%s787 + $0xac] sm:$0xf] %vm288, %v720
        %v895 = vld [vmem:[%s787 + $0xb0] sm:$0x1]
        %v896 = vsel %vm796, %v721, %v895
        %897 = vst [vmem:[%s787 + $0xb0] sm:$0x1] %v896
        %v898 = vld [vmem:[%s787 + $0xb4] sm:$0xf]
        %v899 = vsel %vm790, %v728, %v898
        %900 = vst [vmem:[%s787 + $0xb4] sm:$0xf] %v899
        %901 = vst.msk [vmem:[%s787 + $0xb8] sm:$0xf] %vm288, %v737
        %v902 = vld [vmem:[%s787 + $0xbc] sm:$0x1]
        %v903 = vsel %vm796, %v738, %v902
        %904 = vst [vmem:[%s787 + $0xbc] sm:$0x1] %v903
        %v905 = vld [vmem:[%s286] sm:$0xff]
        %v906 = vld [vmem:[%s286 + $0x8] sm:$0xff]
        %v907 = vld [vmem:[%s286 + $0x10] sm:$0xff]
        %v908 = vld [vmem:[%s286 + $0x18] sm:$0xff]
        %v909 = vld [vmem:[%s286 + $0x20] sm:$0xff]
        %v910 = vld [vmem:[%s286 + $0x28] sm:$0xff]
        %v911 = vld [vmem:[%s286 + $0x30] sm:$0xff]
        %v912 = vld [vmem:[%s286 + $0x38] sm:$0xff]
        %v913 = vld [vmem:[%s286 + $0x40] sm:$0xff]
        %v914 = vld [vmem:[%s286 + $0x48] sm:$0xff]
        %v915 = vld [vmem:[%s286 + $0x50] sm:$0xff]
        %v916 = vld [vmem:[%s286 + $0x58] sm:$0xff]
        %v917 = vld [vmem:[%s286 + $0x60] sm:$0xff]
        %v918 = vld [vmem:[%s286 + $0x68] sm:$0xff]
        %v919 = vld [vmem:[%s286 + $0x70] sm:$0xff]
        %v920 = vld [vmem:[%s286 + $0x78] sm:$0xff]
        %v921 = vld [vmem:[%s286 + $0x80] sm:$0xff]
        %v922 = vld [vmem:[%s286 + $0x88] sm:$0xff]
        %v923 = vld [vmem:[%s286 + $0x90] sm:$0xff]
        %v924 = vld [vmem:[%s286 + $0x98] sm:$0xff]
        %v925 = vld [vmem:[%s286 + $0xa0] sm:$0xff]
        %v926 = vld [vmem:[%s286 + $0xa8] sm:$0xff]
        %v927 = vld [vmem:[%s286 + $0xb0] sm:$0xff]
        %v928 = vld [vmem:[%s286 + $0xb8] sm:$0xff]
        %v929 = vld [vmem:[%s286 + $0xc0] sm:$0xff]
        %v930 = vld [vmem:[%s286 + $0xc8] sm:$0xff]
        %v931 = vld [vmem:[%s286 + $0xd0] sm:$0xff]
        %v932 = vld [vmem:[%s286 + $0xd8] sm:$0xff]
        %v933 = vld [vmem:[%s286 + $0xe0] sm:$0xff]
        %v934 = vld [vmem:[%s286 + $0xe8] sm:$0xff]
        %v935 = vld [vmem:[%s286 + $0xf0] sm:$0xff]
        %v936 = vld [vmem:[%s286 + $0xf8] sm:$0xff]
        %v937 = vpack.c.bf16 %v905, %v905
        %v938 = vpack.c.bf16 %v906, %v906
        %v939 = vpack.c.bf16 %v907, %v907
        %v940 = vpack.c.bf16 %v908, %v908
        %v941 = vpack.c.bf16 %v909, %v909
        %v942 = vpack.c.bf16 %v910, %v910
        %v943 = vpack.c.bf16 %v911, %v911
        %v944 = vpack.c.bf16 %v912, %v912
        %v945 = vpack.c.bf16 %v913, %v913
        %v946 = vpack.c.bf16 %v914, %v914
        %v947 = vpack.c.bf16 %v915, %v915
        %v948 = vpack.c.bf16 %v916, %v916
        %v949 = vpack.c.bf16 %v917, %v917
        %v950 = vpack.c.bf16 %v918, %v918
        %v951 = vpack.c.bf16 %v919, %v919
        %v952 = vpack.c.bf16 %v920, %v920
        %v953 = vpack.c.bf16 %v921, %v921
        %v954 = vpack.c.bf16 %v922, %v922
        %v955 = vpack.c.bf16 %v923, %v923
        %v956 = vpack.c.bf16 %v924, %v924
        %v957 = vpack.c.bf16 %v925, %v925
        %v958 = vpack.c.bf16 %v926, %v926
        %v959 = vpack.c.bf16 %v927, %v927
        %v960 = vpack.c.bf16 %v928, %v928
        %v961 = vpack.c.bf16 %v929, %v929
        %v962 = vpack.c.bf16 %v930, %v930
        %v963 = vpack.c.bf16 %v931, %v931
        %v964 = vpack.c.bf16 %v932, %v932
        %v965 = vpack.c.bf16 %v933, %v933
        %v966 = vpack.c.bf16 %v934, %v934
        %v967 = vpack.c.bf16 %v935, %v935
        %v968 = vpack.c.bf16 %v936, %v936
        %v970 = vshrl.u32 %v937, 16
        %v972 = vrot.slane %v970, 7
        %v973 = vshll.u32 %v937, 16
        %v975 = vor.u32 %v972, %v973
        %v976 = vrot.slane %v972, 4
        %v978 = vshrl.u32 %v938, 16
        %v980 = vrot.slane %v978, 7
        %v981 = vshll.u32 %v938, 16
        %v983 = vor.u32 %v980, %v981
        %v984 = vsel %vm466, %v976, %v983
        %v985 = vrot.slane %v980, 4
        %v987 = vshrl.u32 %v939, 16
        %v989 = vrot.slane %v987, 7
        %v990 = vshll.u32 %v939, 16
        %v992 = vor.u32 %v989, %v990
        %v993 = vrot.slane %v989, 4
        %v995 = vshrl.u32 %v940, 16
        %v997 = vrot.slane %v995, 7
        %v998 = vshll.u32 %v940, 16
        %v1000 = vor.u32 %v997, %v998
        %v1001 = vsel %vm466, %v993, %v1000
        %v1002 = vrot.slane %v997, 4
        %v1004 = vshrl.u32 %v941, 16
        %v1006 = vrot.slane %v1004, 7
        %v1007 = vshll.u32 %v941, 16
        %v1009 = vor.u32 %v1006, %v1007
        %v1010 = vrot.slane %v1006, 4
        %v1012 = vshrl.u32 %v942, 16
        %v1014 = vrot.slane %v1012, 7
        %v1015 = vshll.u32 %v942, 16
        %v1017 = vor.u32 %v1014, %v1015
        %v1018 = vsel %vm466, %v1010, %v1017
        %v1019 = vrot.slane %v1014, 4
        %v1021 = vshrl.u32 %v943, 16
        %v1023 = vrot.slane %v1021, 7
        %v1024 = vshll.u32 %v943, 16
        %v1026 = vor.u32 %v1023, %v1024
        %v1027 = vrot.slane %v1023, 4
        %v1029 = vshrl.u32 %v944, 16
        %v1031 = vrot.slane %v1029, 7
        %v1032 = vshll.u32 %v944, 16
        %v1034 = vor.u32 %v1031, %v1032
        %v1035 = vsel %vm466, %v1027, %v1034
        %v1036 = vrot.slane %v1031, 4
        %v1038 = vshrl.u32 %v945, 16
        %v1040 = vrot.slane %v1038, 7
        %v1041 = vshll.u32 %v945, 16
        %v1043 = vor.u32 %v1040, %v1041
        %v1044 = vrot.slane %v1040, 4
        %v1046 = vshrl.u32 %v946, 16
        %v1048 = vrot.slane %v1046, 7
        %v1049 = vshll.u32 %v946, 16
        %v1051 = vor.u32 %v1048, %v1049
        %v1052 = vsel %vm466, %v1044, %v1051
        %v1053 = vrot.slane %v1048, 4
        %v1055 = vshrl.u32 %v947, 16
        %v1057 = vrot.slane %v1055, 7
        %v1058 = vshll.u32 %v947, 16
        %v1060 = vor.u32 %v1057, %v1058
        %v1061 = vrot.slane %v1057, 4
        %v1063 = vshrl.u32 %v948, 16
        %v1065 = vrot.slane %v1063, 7
        %v1066 = vshll.u32 %v948, 16
        %v1068 = vor.u32 %v1065, %v1066
        %v1069 = vsel %vm466, %v1061, %v1068
        %v1070 = vrot.slane %v1065, 4
        %v1072 = vshrl.u32 %v949, 16
        %v1074 = vrot.slane %v1072, 7
        %v1075 = vshll.u32 %v949, 16
        %v1077 = vor.u32 %v1074, %v1075
        %v1078 = vrot.slane %v1074, 4
        %v1080 = vshrl.u32 %v950, 16
        %v1082 = vrot.slane %v1080, 7
        %v1083 = vshll.u32 %v950, 16
        %v1085 = vor.u32 %v1082, %v1083
        %v1086 = vsel %vm466, %v1078, %v1085
        %v1087 = vrot.slane %v1082, 4
        %v1089 = vshrl.u32 %v951, 16
        %v1091 = vrot.slane %v1089, 7
        %v1092 = vshll.u32 %v951, 16
        %v1094 = vor.u32 %v1091, %v1092
        %v1095 = vrot.slane %v1091, 4
        %v1097 = vshrl.u32 %v952, 16
        %v1099 = vrot.slane %v1097, 7
        %v1100 = vshll.u32 %v952, 16
        %v1102 = vor.u32 %v1099, %v1100
        %v1103 = vsel %vm466, %v1095, %v1102
        %v1104 = vrot.slane %v1099, 4
        %v1106 = vshrl.u32 %v953, 16
        %v1108 = vrot.slane %v1106, 7
        %v1109 = vshll.u32 %v953, 16
        %v1111 = vor.u32 %v1108, %v1109
        %v1112 = vrot.slane %v1108, 4
        %v1114 = vshrl.u32 %v954, 16
        %v1116 = vrot.slane %v1114, 7
        %v1117 = vshll.u32 %v954, 16
        %v1119 = vor.u32 %v1116, %v1117
        %v1120 = vsel %vm466, %v1112, %v1119
        %v1121 = vrot.slane %v1116, 4
        %v1123 = vshrl.u32 %v955, 16
        %v1125 = vrot.slane %v1123, 7
        %v1126 = vshll.u32 %v955, 16
        %v1128 = vor.u32 %v1125, %v1126
        %v1129 = vrot.slane %v1125, 4
        %v1131 = vshrl.u32 %v956, 16
        %v1133 = vrot.slane %v1131, 7
        %v1134 = vshll.u32 %v956, 16
        %v1136 = vor.u32 %v1133, %v1134
        %v1137 = vsel %vm466, %v1129, %v1136
        %v1138 = vrot.slane %v1133, 4
        %v1140 = vshrl.u32 %v957, 16
        %v1142 = vrot.slane %v1140, 7
        %v1143 = vshll.u32 %v957, 16
        %v1145 = vor.u32 %v1142, %v1143
        %v1146 = vrot.slane %v1142, 4
        %v1148 = vshrl.u32 %v958, 16
        %v1150 = vrot.slane %v1148, 7
        %v1151 = vshll.u32 %v958, 16
        %v1153 = vor.u32 %v1150, %v1151
        %v1154 = vsel %vm466, %v1146, %v1153
        %v1155 = vrot.slane %v1150, 4
        %v1157 = vshrl.u32 %v959, 16
        %v1159 = vrot.slane %v1157, 7
        %v1160 = vshll.u32 %v959, 16
        %v1162 = vor.u32 %v1159, %v1160
        %v1163 = vrot.slane %v1159, 4
        %v1165 = vshrl.u32 %v960, 16
        %v1167 = vrot.slane %v1165, 7
        %v1168 = vshll.u32 %v960, 16
        %v1170 = vor.u32 %v1167, %v1168
        %v1171 = vsel %vm466, %v1163, %v1170
        %v1172 = vrot.slane %v1167, 4
        %v1174 = vshrl.u32 %v961, 16
        %v1176 = vrot.slane %v1174, 7
        %v1177 = vshll.u32 %v961, 16
        %v1179 = vor.u32 %v1176, %v1177
        %v1180 = vrot.slane %v1176, 4
        %v1182 = vshrl.u32 %v962, 16
        %v1184 = vrot.slane %v1182, 7
        %v1185 = vshll.u32 %v962, 16
        %v1187 = vor.u32 %v1184, %v1185
        %v1188 = vsel %vm466, %v1180, %v1187
        %v1189 = vrot.slane %v1184, 4
        %v1191 = vshrl.u32 %v963, 16
        %v1193 = vrot.slane %v1191, 7
        %v1194 = vshll.u32 %v963, 16
        %v1196 = vor.u32 %v1193, %v1194
        %v1197 = vrot.slane %v1193, 4
        %v1199 = vshrl.u32 %v964, 16
        %v1201 = vrot.slane %v1199, 7
        %v1202 = vshll.u32 %v964, 16
        %v1204 = vor.u32 %v1201, %v1202
        %v1205 = vsel %vm466, %v1197, %v1204
        %v1206 = vrot.slane %v1201, 4
        %v1208 = vshrl.u32 %v965, 16
        %v1210 = vrot.slane %v1208, 7
        %v1211 = vshll.u32 %v965, 16
        %v1213 = vor.u32 %v1210, %v1211
        %v1214 = vrot.slane %v1210, 4
        %v1216 = vshrl.u32 %v966, 16
        %v1218 = vrot.slane %v1216, 7
        %v1219 = vshll.u32 %v966, 16
        %v1221 = vor.u32 %v1218, %v1219
        %v1222 = vsel %vm466, %v1214, %v1221
        %v1223 = vrot.slane %v1218, 4
        %v1225 = vshrl.u32 %v967, 16
        %v1227 = vrot.slane %v1225, 7
        %v1228 = vshll.u32 %v967, 16
        %v1230 = vor.u32 %v1227, %v1228
        %v1231 = vrot.slane %v1227, 4
        %v1233 = vshrl.u32 %v968, 16
        %v1235 = vrot.slane %v1233, 7
        %v1236 = vshll.u32 %v968, 16
        %v1238 = vor.u32 %v1235, %v1236
        %v1239 = vsel %vm466, %v1231, %v1238
        %v1240 = vrot.slane %v1235, 4
        %s1289 = scalar_lea.vmem [#allocation3], 12
        %vm1290 = vcmask 257024
        %vm1291 = vmand %vm1290, %vm789
        %v1292 = vld [vmem:[%s1289] sm:$0xf]
        %v1293 = vsel %vm1291, %v975, %v1292
        %1294 = vst [vmem:[%s1289] sm:$0xf] %v1293
        %1295 = vst.msk [vmem:[%s1289 + $0x4] sm:$0xf] %vm344, %v984
        %vm1296 = vcmask 253952
        %vm1297 = vmand %vm1296, %vm464
        %v1298 = vld [vmem:[%s1289 + $0x8] sm:$0x1]
        %v1299 = vsel %vm1297, %v985, %v1298
        %1300 = vst [vmem:[%s1289 + $0x8] sm:$0x1] %v1299
        %v1301 = vld [vmem:[%s1289 + $0xc] sm:$0xf]
        %v1302 = vsel %vm1291, %v992, %v1301
        %1303 = vst [vmem:[%s1289 + $0xc] sm:$0xf] %v1302
        %1304 = vst.msk [vmem:[%s1289 + $0x10] sm:$0xf] %vm344, %v1001
        %v1305 = vld [vmem:[%s1289 + $0x14] sm:$0x1]
        %v1306 = vsel %vm1297, %v1002, %v1305
        %1307 = vst [vmem:[%s1289 + $0x14] sm:$0x1] %v1306
        %v1308 = vld [vmem:[%s1289 + $0x18] sm:$0xf]
        %v1309 = vsel %vm1291, %v1009, %v1308
        %1310 = vst [vmem:[%s1289 + $0x18] sm:$0xf] %v1309
        %1311 = vst.msk [vmem:[%s1289 + $0x1c] sm:$0xf] %vm344, %v1018
        %v1312 = vld [vmem:[%s1289 + $0x20] sm:$0x1]
        %v1313 = vsel %vm1297, %v1019, %v1312
        %1314 = vst [vmem:[%s1289 + $0x20] sm:$0x1] %v1313
        %v1315 = vld [vmem:[%s1289 + $0x24] sm:$0xf]
        %v1316 = vsel %vm1291, %v1026, %v1315
        %1317 = vst [vmem:[%s1289 + $0x24] sm:$0xf] %v1316
        %1318 = vst.msk [vmem:[%s1289 + $0x28] sm:$0xf] %vm344, %v1035
        %v1319 = vld [vmem:[%s1289 + $0x2c] sm:$0x1]
        %v1320 = vsel %vm1297, %v1036, %v1319
        %1321 = vst [vmem:[%s1289 + $0x2c] sm:$0x1] %v1320
        %v1322 = vld [vmem:[%s1289 + $0x30] sm:$0xf]
        %v1323 = vsel %vm1291, %v1043, %v1322
        %1324 = vst [vmem:[%s1289 + $0x30] sm:$0xf] %v1323
        %1325 = vst.msk [vmem:[%s1289 + $0x34] sm:$0xf] %vm344, %v1052
        %v1326 = vld [vmem:[%s1289 + $0x38] sm:$0x1]
        %v1327 = vsel %vm1297, %v1053, %v1326
        %1328 = vst [vmem:[%s1289 + $0x38] sm:$0x1] %v1327
        %v1329 = vld [vmem:[%s1289 + $0x3c] sm:$0xf]
        %v1330 = vsel %vm1291, %v1060, %v1329
        %1331 = vst [vmem:[%s1289 + $0x3c] sm:$0xf] %v1330
        %1332 = vst.msk [vmem:[%s1289 + $0x40] sm:$0xf] %vm344, %v1069
        %v1333 = vld [vmem:[%s1289 + $0x44] sm:$0x1]
        %v1334 = vsel %vm1297, %v1070, %v1333
        %1335 = vst [vmem:[%s1289 + $0x44] sm:$0x1] %v1334
        %v1336 = vld [vmem:[%s1289 + $0x48] sm:$0xf]
        %v1337 = vsel %vm1291, %v1077, %v1336
        %1338 = vst [vmem:[%s1289 + $0x48] sm:$0xf] %v1337
        %1339 = vst.msk [vmem:[%s1289 + $0x4c] sm:$0xf] %vm344, %v1086
        %v1340 = vld [vmem:[%s1289 + $0x50] sm:$0x1]
        %v1341 = vsel %vm1297, %v1087, %v1340
        %1342 = vst [vmem:[%s1289 + $0x50] sm:$0x1] %v1341
        %v1343 = vld [vmem:[%s1289 + $0x54] sm:$0xf]
        %v1344 = vsel %vm1291, %v1094, %v1343
        %1345 = vst [vmem:[%s1289 + $0x54] sm:$0xf] %v1344
        %1346 = vst.msk [vmem:[%s1289 + $0x58] sm:$0xf] %vm344, %v1103
        %v1347 = vld [vmem:[%s1289 + $0x5c] sm:$0x1]
        %v1348 = vsel %vm1297, %v1104, %v1347
        %1349 = vst [vmem:[%s1289 + $0x5c] sm:$0x1] %v1348
        %v1350 = vld [vmem:[%s1289 + $0x60] sm:$0xf]
        %v1351 = vsel %vm1291, %v1111, %v1350
        %1352 = vst [vmem:[%s1289 + $0x60] sm:$0xf] %v1351
        %1353 = vst.msk [vmem:[%s1289 + $0x64] sm:$0xf] %vm344, %v1120
        %v1354 = vld [vmem:[%s1289 + $0x68] sm:$0x1]
        %v1355 = vsel %vm1297, %v1121, %v1354
        %1356 = vst [vmem:[%s1289 + $0x68] sm:$0x1] %v1355
        %v1357 = vld [vmem:[%s1289 + $0x6c] sm:$0xf]
        %v1358 = vsel %vm1291, %v1128, %v1357
        %1359 = vst [vmem:[%s1289 + $0x6c] sm:$0xf] %v1358
        %1360 = vst.msk [vmem:[%s1289 + $0x70] sm:$0xf] %vm344, %v1137
        %v1361 = vld [vmem:[%s1289 + $0x74] sm:$0x1]
        %v1362 = vsel %vm1297, %v1138, %v1361
        %1363 = vst [vmem:[%s1289 + $0x74] sm:$0x1] %v1362
        %v1364 = vld [vmem:[%s1289 + $0x78] sm:$0xf]
        %v1365 = vsel %vm1291, %v1145, %v1364
        %1366 = vst [vmem:[%s1289 + $0x78] sm:$0xf] %v1365
        %1367 = vst.msk [vmem:[%s1289 + $0x7c] sm:$0xf] %vm344, %v1154
        %v1368 = vld [vmem:[%s1289 + $0x80] sm:$0x1]
        %v1369 = vsel %vm1297, %v1155, %v1368
        %1370 = vst [vmem:[%s1289 + $0x80] sm:$0x1] %v1369
        %v1371 = vld [vmem:[%s1289 + $0x84] sm:$0xf]
        %v1372 = vsel %vm1291, %v1162, %v1371
        %1373 = vst [vmem:[%s1289 + $0x84] sm:$0xf] %v1372
        %1374 = vst.msk [vmem:[%s1289 + $0x88] sm:$0xf] %vm344, %v1171
        %v1375 = vld [vmem:[%s1289 + $0x8c] sm:$0x1]
        %v1376 = vsel %vm1297, %v1172, %v1375
        %1377 = vst [vmem:[%s1289 + $0x8c] sm:$0x1] %v1376
        %v1378 = vld [vmem:[%s1289 + $0x90] sm:$0xf]
        %v1379 = vsel %vm1291, %v1179, %v1378
        %1380 = vst [vmem:[%s1289 + $0x90] sm:$0xf] %v1379
        %1381 = vst.msk [vmem:[%s1289 + $0x94] sm:$0xf] %vm344, %v1188
        %v1382 = vld [vmem:[%s1289 + $0x98] sm:$0x1]
        %v1383 = vsel %vm1297, %v1189, %v1382
        %1384 = vst [vmem:[%s1289 + $0x98] sm:$0x1] %v1383
        %v1385 = vld [vmem:[%s1289 + $0x9c] sm:$0xf]
        %v1386 = vsel %vm1291, %v1196, %v1385
        %1387 = vst [vmem:[%s1289 + $0x9c] sm:$0xf] %v1386
        %1388 = vst.msk [vmem:[%s1289 + $0xa0] sm:$0xf] %vm344, %v1205
        %v1389 = vld [vmem:[%s1289 + $0xa4] sm:$0x1]
        %v1390 = vsel %vm1297, %v1206, %v1389
        %1391 = vst [vmem:[%s1289 + $0xa4] sm:$0x1] %v1390
        %v1392 = vld [vmem:[%s1289 + $0xa8] sm:$0xf]
        %v1393 = vsel %vm1291, %v1213, %v1392
        %1394 = vst [vmem:[%s1289 + $0xa8] sm:$0xf] %v1393
        %1395 = vst.msk [vmem:[%s1289 + $0xac] sm:$0xf] %vm344, %v1222
        %v1396 = vld [vmem:[%s1289 + $0xb0] sm:$0x1]
        %v1397 = vsel %vm1297, %v1223, %v1396
        %1398 = vst [vmem:[%s1289 + $0xb0] sm:$0x1] %v1397
        %v1399 = vld [vmem:[%s1289 + $0xb4] sm:$0xf]
        %v1400 = vsel %vm1291, %v1230, %v1399
        %1401 = vst [vmem:[%s1289 + $0xb4] sm:$0xf] %v1400
        %1402 = vst.msk [vmem:[%s1289 + $0xb8] sm:$0xf] %vm344, %v1239
        %v1403 = vld [vmem:[%s1289 + $0xbc] sm:$0x1]
        %v1404 = vsel %vm1297, %v1240, %v1403
        %1405 = vst [vmem:[%s1289 + $0xbc] sm:$0x1] %v1404
        %v1406 = vld [vmem:[#allocation2] sm:$0xf]
        %v1407 = vld [vmem:[#allocation2 + $0x4] sm:$0xf]
        %v1408 = vld [vmem:[#allocation2 + $0xc] sm:$0xf]
        %v1409 = vld [vmem:[#allocation2 + $0x10] sm:$0xf]
        %v1410 = vld [vmem:[#allocation2 + $0x18] sm:$0xf]
        %v1411 = vld [vmem:[#allocation2 + $0x1c] sm:$0xf]
        %v1412 = vld [vmem:[#allocation2 + $0x24] sm:$0xf]
        %v1413 = vld [vmem:[#allocation2 + $0x28] sm:$0xf]
        %v1414 = vld [vmem:[#allocation2 + $0x30] sm:$0xf]
        %v1415 = vld [vmem:[#allocation2 + $0x34] sm:$0xf]
        %v1416 = vld [vmem:[#allocation2 + $0x3c] sm:$0xf]
        %v1417 = vld [vmem:[#allocation2 + $0x40] sm:$0xf]
        %v1418 = vld [vmem:[#allocation2 + $0x48] sm:$0xf]
        %v1419 = vld [vmem:[#allocation2 + $0x4c] sm:$0xf]
        %v1420 = vld [vmem:[#allocation2 + $0x54] sm:$0xf]
        %v1421 = vld [vmem:[#allocation2 + $0x58] sm:$0xf]
        %v1422 = vld [vmem:[#allocation2 + $0x60] sm:$0xf]
        %v1423 = vld [vmem:[#allocation2 + $0x64] sm:$0xf]
        %v1424 = vld [vmem:[#allocation2 + $0x6c] sm:$0xf]
        %v1425 = vld [vmem:[#allocation2 + $0x70] sm:$0xf]
        %v1426 = vld [vmem:[#allocation2 + $0x78] sm:$0xf]
        %v1427 = vld [vmem:[#allocation2 + $0x7c] sm:$0xf]
        %v1428 = vld [vmem:[#allocation2 + $0x84] sm:$0xf]
        %v1429 = vld [vmem:[#allocation2 + $0x88] sm:$0xf]
        %v1430 = vld [vmem:[#allocation2 + $0x90] sm:$0xf]
        %v1431 = vld [vmem:[#allocation2 + $0x94] sm:$0xf]
        %v1432 = vld [vmem:[#allocation2 + $0x9c] sm:$0xf]
        %v1433 = vld [vmem:[#allocation2 + $0xa0] sm:$0xf]
        %v1434 = vld [vmem:[#allocation2 + $0xa8] sm:$0xf]
        %v1435 = vld [vmem:[#allocation2 + $0xac] sm:$0xf]
        %v1436 = vld [vmem:[#allocation2 + $0xb4] sm:$0xf]
        %v1437 = vld [vmem:[#allocation2 + $0xb8] sm:$0xf]
        %1438 = vst.msk [vmem:[#allocation4] sm:$0xf] %vm288, %v1406
        %1439 = vst.msk [vmem:[#allocation4 + $0x4] sm:$0xf] %vm288, %v1407
        %1440 = vst.msk [vmem:[#allocation4 + $0x8] sm:$0xf] %vm288, %v1408
        %1441 = vst.msk [vmem:[#allocation4 + $0xc] sm:$0xf] %vm288, %v1409
        %1442 = vst.msk [vmem:[#allocation4 + $0x10] sm:$0xf] %vm288, %v1410
        %1443 = vst.msk [vmem:[#allocation4 + $0x14] sm:$0xf] %vm288, %v1411
        %1444 = vst.msk [vmem:[#allocation4 + $0x18] sm:$0xf] %vm288, %v1412
        %1445 = vst.msk [vmem:[#allocation4 + $0x1c] sm:$0xf] %vm288, %v1413
        %1446 = vst.msk [vmem:[#allocation4 + $0x20] sm:$0xf] %vm288, %v1414
        %1447 = vst.msk [vmem:[#allocation4 + $0x24] sm:$0xf] %vm288, %v1415
        %1448 = vst.msk [vmem:[#allocation4 + $0x28] sm:$0xf] %vm288, %v1416
        %1449 = vst.msk [vmem:[#allocation4 + $0x2c] sm:$0xf] %vm288, %v1417
        %1450 = vst.msk [vmem:[#allocation4 + $0x30] sm:$0xf] %vm288, %v1418
        %1451 = vst.msk [vmem:[#allocation4 + $0x34] sm:$0xf] %vm288, %v1419
        %1452 = vst.msk [vmem:[#allocation4 + $0x38] sm:$0xf] %vm288, %v1420
        %1453 = vst.msk [vmem:[#allocation4 + $0x3c] sm:$0xf] %vm288, %v1421
        %1454 = vst.msk [vmem:[#allocation4 + $0x40] sm:$0xf] %vm288, %v1422
        %1455 = vst.msk [vmem:[#allocation4 + $0x44] sm:$0xf] %vm288, %v1423
        %1456 = vst.msk [vmem:[#allocation4 + $0x48] sm:$0xf] %vm288, %v1424
        %1457 = vst.msk [vmem:[#allocation4 + $0x4c] sm:$0xf] %vm288, %v1425
        %1458 = vst.msk [vmem:[#allocation4 + $0x50] sm:$0xf] %vm288, %v1426
        %1459 = vst.msk [vmem:[#allocation4 + $0x54] sm:$0xf] %vm288, %v1427
        %1460 = vst.msk [vmem:[#allocation4 + $0x58] sm:$0xf] %vm288, %v1428
        %1461 = vst.msk [vmem:[#allocation4 + $0x5c] sm:$0xf] %vm288, %v1429
        %1462 = vst.msk [vmem:[#allocation4 + $0x60] sm:$0xf] %vm288, %v1430
        %1463 = vst.msk [vmem:[#allocation4 + $0x64] sm:$0xf] %vm288, %v1431
        %1464 = vst.msk [vmem:[#allocation4 + $0x68] sm:$0xf] %vm288, %v1432
        %1465 = vst.msk [vmem:[#allocation4 + $0x6c] sm:$0xf] %vm288, %v1433
        %1466 = vst.msk [vmem:[#allocation4 + $0x70] sm:$0xf] %vm288, %v1434
        %1467 = vst.msk [vmem:[#allocation4 + $0x74] sm:$0xf] %vm288, %v1435
        %1468 = vst.msk [vmem:[#allocation4 + $0x78] sm:$0xf] %vm288, %v1436
        %1469 = vst.msk [vmem:[#allocation4 + $0x7c] sm:$0xf] %vm288, %v1437
        %v1470 = vld [vmem:[#allocation3] sm:$0xf]
        %v1471 = vld [vmem:[#allocation3 + $0x4] sm:$0xf]
        %v1472 = vld [vmem:[#allocation3 + $0xc] sm:$0xf]
        %v1473 = vld [vmem:[#allocation3 + $0x10] sm:$0xf]
        %v1474 = vld [vmem:[#allocation3 + $0x18] sm:$0xf]
        %v1475 = vld [vmem:[#allocation3 + $0x1c] sm:$0xf]
        %v1476 = vld [vmem:[#allocation3 + $0x24] sm:$0xf]
        %v1477 = vld [vmem:[#allocation3 + $0x28] sm:$0xf]
        %v1478 = vld [vmem:[#allocation3 + $0x30] sm:$0xf]
        %v1479 = vld [vmem:[#allocation3 + $0x34] sm:$0xf]
        %v1480 = vld [vmem:[#allocation3 + $0x3c] sm:$0xf]
        %v1481 = vld [vmem:[#allocation3 + $0x40] sm:$0xf]
        %v1482 = vld [vmem:[#allocation3 + $0x48] sm:$0xf]
        %v1483 = vld [vmem:[#allocation3 + $0x4c] sm:$0xf]
        %v1484 = vld [vmem:[#allocation3 + $0x54] sm:$0xf]
        %v1485 = vld [vmem:[#allocation3 + $0x58] sm:$0xf]
        %v1486 = vld [vmem:[#allocation3 + $0x60] sm:$0xf]
        %v1487 = vld [vmem:[#allocation3 + $0x64] sm:$0xf]
        %v1488 = vld [vmem:[#allocation3 + $0x6c] sm:$0xf]
        %v1489 = vld [vmem:[#allocation3 + $0x70] sm:$0xf]
        %v1490 = vld [vmem:[#allocation3 + $0x78] sm:$0xf]
        %v1491 = vld [vmem:[#allocation3 + $0x7c] sm:$0xf]
        %v1492 = vld [vmem:[#allocation3 + $0x84] sm:$0xf]
        %v1493 = vld [vmem:[#allocation3 + $0x88] sm:$0xf]
        %v1494 = vld [vmem:[#allocation3 + $0x90] sm:$0xf]
        %v1495 = vld [vmem:[#allocation3 + $0x94] sm:$0xf]
        %v1496 = vld [vmem:[#allocation3 + $0x9c] sm:$0xf]
        %v1497 = vld [vmem:[#allocation3 + $0xa0] sm:$0xf]
        %v1498 = vld [vmem:[#allocation3 + $0xa8] sm:$0xf]
        %v1499 = vld [vmem:[#allocation3 + $0xac] sm:$0xf]
        %v1500 = vld [vmem:[#allocation3 + $0xb4] sm:$0xf]
        %v1501 = vld [vmem:[#allocation3 + $0xb8] sm:$0xf]
        %1502 = vst.msk [vmem:[#allocation5] sm:$0xf] %vm344, %v1470
        %1503 = vst.msk [vmem:[#allocation5 + $0xc] sm:$0xf] %vm344, %v1471
        %1504 = vst.msk [vmem:[#allocation5 + $0x18] sm:$0xf] %vm344, %v1472
        %1505 = vst.msk [vmem:[#allocation5 + $0x24] sm:$0xf] %vm344, %v1473
        %1506 = vst.msk [vmem:[#allocation5 + $0x30] sm:$0xf] %vm344, %v1474
        %1507 = vst.msk [vmem:[#allocation5 + $0x3c] sm:$0xf] %vm344, %v1475
        %1508 = vst.msk [vmem:[#allocation5 + $0x48] sm:$0xf] %vm344, %v1476
        %1509 = vst.msk [vmem:[#allocation5 + $0x54] sm:$0xf] %vm344, %v1477
        %1510 = vst.msk [vmem:[#allocation5 + $0x60] sm:$0xf] %vm344, %v1478
        %1511 = vst.msk [vmem:[#allocation5 + $0x6c] sm:$0xf] %vm344, %v1479
        %1512 = vst.msk [vmem:[#allocation5 + $0x78] sm:$0xf] %vm344, %v1480
        %1513 = vst.msk [vmem:[#allocation5 + $0x84] sm:$0xf] %vm344, %v1481
        %1514 = vst.msk [vmem:[#allocation5 + $0x90] sm:$0xf] %vm344, %v1482
        %1515 = vst.msk [vmem:[#allocation5 + $0x9c] sm:$0xf] %vm344, %v1483
        %1516 = vst.msk [vmem:[#allocation5 + $0xa8] sm:$0xf] %vm344, %v1484
        %1517 = vst.msk [vmem:[#allocation5 + $0xb4] sm:$0xf] %vm344, %v1485
        %1518 = vst.msk [vmem:[#allocation5 + $0xc0] sm:$0xf] %vm344, %v1486
        %1519 = vst.msk [vmem:[#allocation5 + $0xcc] sm:$0xf] %vm344, %v1487
        %1520 = vst.msk [vmem:[#allocation5 + $0xd8] sm:$0xf] %vm344, %v1488
        %1521 = vst.msk [vmem:[#allocation5 + $0xe4] sm:$0xf] %vm344, %v1489
        %1522 = vst.msk [vmem:[#allocation5 + $0xf0] sm:$0xf] %vm344, %v1490
        %1523 = vst.msk [vmem:[#allocation5 + $0xfc] sm:$0xf] %vm344, %v1491
        %1524 = vst.msk [vmem:[#allocation5 + $0x108] sm:$0xf] %vm344, %v1492
        %1525 = vst.msk [vmem:[#allocation5 + $0x114] sm:$0xf] %vm344, %v1493
        %1526 = vst.msk [vmem:[#allocation5 + $0x120] sm:$0xf] %vm344, %v1494
        %1527 = vst.msk [vmem:[#allocation5 + $0x12c] sm:$0xf] %vm344, %v1495
        %1528 = vst.msk [vmem:[#allocation5 + $0x138] sm:$0xf] %vm344, %v1496
        %1529 = vst.msk [vmem:[#allocation5 + $0x144] sm:$0xf] %vm344, %v1497
        %1530 = vst.msk [vmem:[#allocation5 + $0x150] sm:$0xf] %vm344, %v1498
        %1531 = vst.msk [vmem:[#allocation5 + $0x15c] sm:$0xf] %vm344, %v1499
        %1532 = vst.msk [vmem:[#allocation5 + $0x168] sm:$0xf] %vm344, %v1500
        %1533 = vst.msk [vmem:[#allocation5 + $0x174] sm:$0xf] %vm344, %v1501
        %v1534 = vld [vmem:[#allocation2] sm:$0xf]
        %v1535 = vld [vmem:[#allocation2 + $0x4] sm:$0xf]
        %v1536 = vld [vmem:[#allocation2 + $0x8] sm:$0x1]
        %v1537 = vld [vmem:[#allocation2 + $0xc] sm:$0xf]
        %v1538 = vld [vmem:[#allocation2 + $0x10] sm:$0xf]
        %v1539 = vld [vmem:[#allocation2 + $0x14] sm:$0x1]
        %v1540 = vld [vmem:[#allocation2 + $0x18] sm:$0xf]
        %v1541 = vld [vmem:[#allocation2 + $0x1c] sm:$0xf]
        %v1542 = vld [vmem:[#allocation2 + $0x20] sm:$0x1]
        %v1543 = vld [vmem:[#allocation2 + $0x24] sm:$0xf]
        %v1544 = vld [vmem:[#allocation2 + $0x28] sm:$0xf]
        %v1545 = vld [vmem:[#allocation2 + $0x2c] sm:$0x1]
        %v1546 = vld [vmem:[#allocation2 + $0x30] sm:$0xf]
        %v1547 = vld [vmem:[#allocation2 + $0x34] sm:$0xf]
        %v1548 = vld [vmem:[#allocation2 + $0x38] sm:$0x1]
        %v1549 = vld [vmem:[#allocation2 + $0x3c] sm:$0xf]
        %v1550 = vld [vmem:[#allocation2 + $0x40] sm:$0xf]
        %v1551 = vld [vmem:[#allocation2 + $0x44] sm:$0x1]
        %v1552 = vld [vmem:[#allocation2 + $0x48] sm:$0xf]
        %v1553 = vld [vmem:[#allocation2 + $0x4c] sm:$0xf]
        %v1554 = vld [vmem:[#allocation2 + $0x50] sm:$0x1]
        %v1555 = vld [vmem:[#allocation2 + $0x54] sm:$0xf]
        %v1556 = vld [vmem:[#allocation2 + $0x58] sm:$0xf]
        %v1557 = vld [vmem:[#allocation2 + $0x5c] sm:$0x1]
        %v1558 = vld [vmem:[#allocation2 + $0x60] sm:$0xf]
        %v1559 = vld [vmem:[#allocation2 + $0x64] sm:$0xf]
        %v1560 = vld [vmem:[#allocation2 + $0x68] sm:$0x1]
        %v1561 = vld [vmem:[#allocation2 + $0x6c] sm:$0xf]
        %v1562 = vld [vmem:[#allocation2 + $0x70] sm:$0xf]
        %v1563 = vld [vmem:[#allocation2 + $0x74] sm:$0x1]
        %v1564 = vld [vmem:[#allocation2 + $0x78] sm:$0xf]
        %v1565 = vld [vmem:[#allocation2 + $0x7c] sm:$0xf]
        %v1566 = vld [vmem:[#allocation2 + $0x80] sm:$0x1]
        %v1567 = vld [vmem:[#allocation2 + $0x84] sm:$0xf]
        %v1568 = vld [vmem:[#allocation2 + $0x88] sm:$0xf]
        %v1569 = vld [vmem:[#allocation2 + $0x8c] sm:$0x1]
        %v1570 = vld [vmem:[#allocation2 + $0x90] sm:$0xf]
        %v1571 = vld [vmem:[#allocation2 + $0x94] sm:$0xf]
        %v1572 = vld [vmem:[#allocation2 + $0x98] sm:$0x1]
        %v1573 = vld [vmem:[#allocation2 + $0x9c] sm:$0xf]
        %v1574 = vld [vmem:[#allocation2 + $0xa0] sm:$0xf]
        %v1575 = vld [vmem:[#allocation2 + $0xa4] sm:$0x1]
        %v1576 = vld [vmem:[#allocation2 + $0xa8] sm:$0xf]
        %v1577 = vld [vmem:[#allocation2 + $0xac] sm:$0xf]
        %v1578 = vld [vmem:[#allocation2 + $0xb0] sm:$0x1]
        %v1579 = vld [vmem:[#allocation2 + $0xb4] sm:$0xf]
        %v1580 = vld [vmem:[#allocation2 + $0xb8] sm:$0xf]
        %v1581 = vld [vmem:[#allocation2 + $0xbc] sm:$0x1]
        %vm1582 = vsmask.f32 3328
        %vm1583 = vsmask.f32 7440
        %vm1584 = vmor %vm1582, %vm1583
        %v1586 = vshrl.u32 %v1534, 16
        %v1588 = vrot.slane %v1586, 4
        %v1589 = vshll.u32 %v1534, 16
        %v1591 = vrot.slane %v1589, 5
        %v1592 = vor.u32 %v1588, %v1591
        %v1593 = vrot.slane %v1592, 4
        %v1595 = vshll.u32 %v1535, 16
        %v1597 = vrot.slane %v1595, 5
        %v1598 = vsel %vm1584, %v1593, %v1597
        %v1599 = vshrl.u32 %v1535, 16
        %v1601 = vrot.slane %v1599, 4
        %v1602 = vor.u32 %v1601, %v1597
        %v1603 = vrot.slane %v1602, 4
        %v1605 = vshll.u32 %v1536, 16
        %v1607 = vrot.slane %v1605, 5
        %v1608 = vsel %vm1584, %v1603, %v1607
        %v1610 = vshrl.u32 %v1537, 16
        %v1612 = vrot.slane %v1610, 4
        %v1613 = vshll.u32 %v1537, 16
        %v1615 = vrot.slane %v1613, 5
        %v1616 = vor.u32 %v1612, %v1615
        %v1617 = vrot.slane %v1616, 4
        %v1619 = vshll.u32 %v1538, 16
        %v1621 = vrot.slane %v1619, 5
        %v1622 = vsel %vm1584, %v1617, %v1621
        %v1623 = vshrl.u32 %v1538, 16
        %v1625 = vrot.slane %v1623, 4
        %v1626 = vor.u32 %v1625, %v1621
        %v1627 = vrot.slane %v1626, 4
        %v1629 = vshll.u32 %v1539, 16
        %v1631 = vrot.slane %v1629, 5
        %v1632 = vsel %vm1584, %v1627, %v1631
        %v1634 = vshrl.u32 %v1540, 16
        %v1636 = vrot.slane %v1634, 4
        %v1637 = vshll.u32 %v1540, 16
        %v1639 = vrot.slane %v1637, 5
        %v1640 = vor.u32 %v1636, %v1639
        %v1641 = vrot.slane %v1640, 4
        %v1643 = vshll.u32 %v1541, 16
        %v1645 = vrot.slane %v1643, 5
        %v1646 = vsel %vm1584, %v1641, %v1645
        %v1647 = vshrl.u32 %v1541, 16
        %v1649 = vrot.slane %v1647, 4
        %v1650 = vor.u32 %v1649, %v1645
        %v1651 = vrot.slane %v1650, 4
        %v1653 = vshll.u32 %v1542, 16
        %v1655 = vrot.slane %v1653, 5
        %v1656 = vsel %vm1584, %v1651, %v1655
        %v1658 = vshrl.u32 %v1543, 16
        %v1660 = vrot.slane %v1658, 4
        %v1661 = vshll.u32 %v1543, 16
        %v1663 = vrot.slane %v1661, 5
        %v1664 = vor.u32 %v1660, %v1663
        %v1665 = vrot.slane %v1664, 4
        %v1667 = vshll.u32 %v1544, 16
        %v1669 = vrot.slane %v1667, 5
        %v1670 = vsel %vm1584, %v1665, %v1669
        %v1671 = vshrl.u32 %v1544, 16
        %v1673 = vrot.slane %v1671, 4
        %v1674 = vor.u32 %v1673, %v1669
        %v1675 = vrot.slane %v1674, 4
        %v1677 = vshll.u32 %v1545, 16
        %v1679 = vrot.slane %v1677, 5
        %v1680 = vsel %vm1584, %v1675, %v1679
        %v1682 = vshrl.u32 %v1546, 16
        %v1684 = vrot.slane %v1682, 4
        %v1685 = vshll.u32 %v1546, 16
        %v1687 = vrot.slane %v1685, 5
        %v1688 = vor.u32 %v1684, %v1687
        %v1689 = vrot.slane %v1688, 4
        %v1691 = vshll.u32 %v1547, 16
        %v1693 = vrot.slane %v1691, 5
        %v1694 = vsel %vm1584, %v1689, %v1693
        %v1695 = vshrl.u32 %v1547, 16
        %v1697 = vrot.slane %v1695, 4
        %v1698 = vor.u32 %v1697, %v1693
        %v1699 = vrot.slane %v1698, 4
        %v1701 = vshll.u32 %v1548, 16
        %v1703 = vrot.slane %v1701, 5
        %v1704 = vsel %vm1584, %v1699, %v1703
        %v1706 = vshrl.u32 %v1549, 16
        %v1708 = vrot.slane %v1706, 4
        %v1709 = vshll.u32 %v1549, 16
        %v1711 = vrot.slane %v1709, 5
        %v1712 = vor.u32 %v1708, %v1711
        %v1713 = vrot.slane %v1712, 4
        %v1715 = vshll.u32 %v1550, 16
        %v1717 = vrot.slane %v1715, 5
        %v1718 = vsel %vm1584, %v1713, %v1717
        %v1719 = vshrl.u32 %v1550, 16
        %v1721 = vrot.slane %v1719, 4
        %v1722 = vor.u32 %v1721, %v1717
        %v1723 = vrot.slane %v1722, 4
        %v1725 = vshll.u32 %v1551, 16
        %v1727 = vrot.slane %v1725, 5
        %v1728 = vsel %vm1584, %v1723, %v1727
        %v1730 = vshrl.u32 %v1552, 16
        %v1732 = vrot.slane %v1730, 4
        %v1733 = vshll.u32 %v1552, 16
        %v1735 = vrot.slane %v1733, 5
        %v1736 = vor.u32 %v1732, %v1735
        %v1737 = vrot.slane %v1736, 4
        %v1739 = vshll.u32 %v1553, 16
        %v1741 = vrot.slane %v1739, 5
        %v1742 = vsel %vm1584, %v1737, %v1741
        %v1743 = vshrl.u32 %v1553, 16
        %v1745 = vrot.slane %v1743, 4
        %v1746 = vor.u32 %v1745, %v1741
        %v1747 = vrot.slane %v1746, 4
        %v1749 = vshll.u32 %v1554, 16
        %v1751 = vrot.slane %v1749, 5
        %v1752 = vsel %vm1584, %v1747, %v1751
        %v1754 = vshrl.u32 %v1555, 16
        %v1756 = vrot.slane %v1754, 4
        %v1757 = vshll.u32 %v1555, 16
        %v1759 = vrot.slane %v1757, 5
        %v1760 = vor.u32 %v1756, %v1759
        %v1761 = vrot.slane %v1760, 4
        %v1763 = vshll.u32 %v1556, 16
        %v1765 = vrot.slane %v1763, 5
        %v1766 = vsel %vm1584, %v1761, %v1765
        %v1767 = vshrl.u32 %v1556, 16
        %v1769 = vrot.slane %v1767, 4
        %v1770 = vor.u32 %v1769, %v1765
        %v1771 = vrot.slane %v1770, 4
        %v1773 = vshll.u32 %v1557, 16
        %v1775 = vrot.slane %v1773, 5
        %v1776 = vsel %vm1584, %v1771, %v1775
        %v1778 = vshrl.u32 %v1558, 16
        %v1780 = vrot.slane %v1778, 4
        %v1781 = vshll.u32 %v1558, 16
        %v1783 = vrot.slane %v1781, 5
        %v1784 = vor.u32 %v1780, %v1783
        %v1785 = vrot.slane %v1784, 4
        %v1787 = vshll.u32 %v1559, 16
        %v1789 = vrot.slane %v1787, 5
        %v1790 = vsel %vm1584, %v1785, %v1789
        %v1791 = vshrl.u32 %v1559, 16
        %v1793 = vrot.slane %v1791, 4
        %v1794 = vor.u32 %v1793, %v1789
        %v1795 = vrot.slane %v1794, 4
        %v1797 = vshll.u32 %v1560, 16
        %v1799 = vrot.slane %v1797, 5
        %v1800 = vsel %vm1584, %v1795, %v1799
        %v1802 = vshrl.u32 %v1561, 16
        %v1804 = vrot.slane %v1802, 4
        %v1805 = vshll.u32 %v1561, 16
        %v1807 = vrot.slane %v1805, 5
        %v1808 = vor.u32 %v1804, %v1807
        %v1809 = vrot.slane %v1808, 4
        %v1811 = vshll.u32 %v1562, 16
        %v1813 = vrot.slane %v1811, 5
        %v1814 = vsel %vm1584, %v1809, %v1813
        %v1815 = vshrl.u32 %v1562, 16
        %v1817 = vrot.slane %v1815, 4
        %v1818 = vor.u32 %v1817, %v1813
        %v1819 = vrot.slane %v1818, 4
        %v1821 = vshll.u32 %v1563, 16
        %v1823 = vrot.slane %v1821, 5
        %v1824 = vsel %vm1584, %v1819, %v1823
        %v1826 = vshrl.u32 %v1564, 16
        %v1828 = vrot.slane %v1826, 4
        %v1829 = vshll.u32 %v1564, 16
        %v1831 = vrot.slane %v1829, 5
        %v1832 = vor.u32 %v1828, %v1831
        %v1833 = vrot.slane %v1832, 4
        %v1835 = vshll.u32 %v1565, 16
        %v1837 = vrot.slane %v1835, 5
        %v1838 = vsel %vm1584, %v1833, %v1837
        %v1839 = vshrl.u32 %v1565, 16
        %v1841 = vrot.slane %v1839, 4
        %v1842 = vor.u32 %v1841, %v1837
        %v1843 = vrot.slane %v1842, 4
        %v1845 = vshll.u32 %v1566, 16
        %v1847 = vrot.slane %v1845, 5
        %v1848 = vsel %vm1584, %v1843, %v1847
        %v1850 = vshrl.u32 %v1567, 16
        %v1852 = vrot.slane %v1850, 4
        %v1853 = vshll.u32 %v1567, 16
        %v1855 = vrot.slane %v1853, 5
        %v1856 = vor.u32 %v1852, %v1855
        %v1857 = vrot.slane %v1856, 4
        %v1859 = vshll.u32 %v1568, 16
        %v1861 = vrot.slane %v1859, 5
        %v1862 = vsel %vm1584, %v1857, %v1861
        %v1863 = vshrl.u32 %v1568, 16
        %v1865 = vrot.slane %v1863, 4
        %v1866 = vor.u32 %v1865, %v1861
        %v1867 = vrot.slane %v1866, 4
        %v1869 = vshll.u32 %v1569, 16
        %v1871 = vrot.slane %v1869, 5
        %v1872 = vsel %vm1584, %v1867, %v1871
        %v1874 = vshrl.u32 %v1570, 16
        %v1876 = vrot.slane %v1874, 4
        %v1877 = vshll.u32 %v1570, 16
        %v1879 = vrot.slane %v1877, 5
        %v1880 = vor.u32 %v1876, %v1879
        %v1881 = vrot.slane %v1880, 4
        %v1883 = vshll.u32 %v1571, 16
        %v1885 = vrot.slane %v1883, 5
        %v1886 = vsel %vm1584, %v1881, %v1885
        %v1887 = vshrl.u32 %v1571, 16
        %v1889 = vrot.slane %v1887, 4
        %v1890 = vor.u32 %v1889, %v1885
        %v1891 = vrot.slane %v1890, 4
        %v1893 = vshll.u32 %v1572, 16
        %v1895 = vrot.slane %v1893, 5
        %v1896 = vsel %vm1584, %v1891, %v1895
        %v1898 = vshrl.u32 %v1573, 16
        %v1900 = vrot.slane %v1898, 4
        %v1901 = vshll.u32 %v1573, 16
        %v1903 = vrot.slane %v1901, 5
        %v1904 = vor.u32 %v1900, %v1903
        %v1905 = vrot.slane %v1904, 4
        %v1907 = vshll.u32 %v1574, 16
        %v1909 = vrot.slane %v1907, 5
        %v1910 = vsel %vm1584, %v1905, %v1909
        %v1911 = vshrl.u32 %v1574, 16
        %v1913 = vrot.slane %v1911, 4
        %v1914 = vor.u32 %v1913, %v1909
        %v1915 = vrot.slane %v1914, 4
        %v1917 = vshll.u32 %v1575, 16
        %v1919 = vrot.slane %v1917, 5
        %v1920 = vsel %vm1584, %v1915, %v1919
        %v1922 = vshrl.u32 %v1576, 16
        %v1924 = vrot.slane %v1922, 4
        %v1925 = vshll.u32 %v1576, 16
        %v1927 = vrot.slane %v1925, 5
        %v1928 = vor.u32 %v1924, %v1927
        %v1929 = vrot.slane %v1928, 4
        %v1931 = vshll.u32 %v1577, 16
        %v1933 = vrot.slane %v1931, 5
        %v1934 = vsel %vm1584, %v1929, %v1933
        %v1935 = vshrl.u32 %v1577, 16
        %v1937 = vrot.slane %v1935, 4
        %v1938 = vor.u32 %v1937, %v1933
        %v1939 = vrot.slane %v1938, 4
        %v1941 = vshll.u32 %v1578, 16
        %v1943 = vrot.slane %v1941, 5
        %v1944 = vsel %vm1584, %v1939, %v1943
        %v1946 = vshrl.u32 %v1579, 16
        %v1948 = vrot.slane %v1946, 4
        %v1949 = vshll.u32 %v1579, 16
        %v1951 = vrot.slane %v1949, 5
        %v1952 = vor.u32 %v1948, %v1951
        %v1953 = vrot.slane %v1952, 4
        %v1955 = vshll.u32 %v1580, 16
        %v1957 = vrot.slane %v1955, 5
        %v1958 = vsel %vm1584, %v1953, %v1957
        %v1959 = vshrl.u32 %v1580, 16
        %v1961 = vrot.slane %v1959, 4
        %v1962 = vor.u32 %v1961, %v1957
        %v1963 = vrot.slane %v1962, 4
        %v1965 = vshll.u32 %v1581, 16
        %v1967 = vrot.slane %v1965, 5
        %v1968 = vsel %vm1584, %v1963, %v1967
        %1969 = vrot.lane.b32.xlu0 %v1598, 4
        %v1970 = vpop.permute.xlu0 %1969
        %1971 = vrot.lane.b32.xlu0 %v1608, 4
        %v1972 = vpop.permute.xlu0 %1971
        %1973 = vrot.lane.b32.xlu0 %v1622, 4
        %v1974 = vpop.permute.xlu0 %1973
        %1975 = vrot.lane.b32.xlu0 %v1632, 4
        %v1976 = vpop.permute.xlu0 %1975
        %1977 = vrot.lane.b32.xlu0 %v1646, 4
        %v1978 = vpop.permute.xlu0 %1977
        %1979 = vrot.lane.b32.xlu0 %v1656, 4
        %v1980 = vpop.permute.xlu0 %1979
        %1981 = vrot.lane.b32.xlu0 %v1670, 4
        %v1982 = vpop.permute.xlu0 %1981
        %1983 = vrot.lane.b32.xlu0 %v1680, 4
        %v1984 = vpop.permute.xlu0 %1983
        %1985 = vrot.lane.b32.xlu0 %v1694, 4
        %v1986 = vpop.permute.xlu0 %1985
        %1987 = vrot.lane.b32.xlu0 %v1704, 4
        %v1988 = vpop.permute.xlu0 %1987
        %1989 = vrot.lane.b32.xlu0 %v1718, 4
        %v1990 = vpop.permute.xlu0 %1989
        %1991 = vrot.lane.b32.xlu0 %v1728, 4
        %v1992 = vpop.permute.xlu0 %1991
        %1993 = vrot.lane.b32.xlu0 %v1742, 4
        %v1994 = vpop.permute.xlu0 %1993
        %1995 = vrot.lane.b32.xlu0 %v1752, 4
        %v1996 = vpop.permute.xlu0 %1995
        %1997 = vrot.lane.b32.xlu0 %v1766, 4
        %v1998 = vpop.permute.xlu0 %1997
        %1999 = vrot.lane.b32.xlu0 %v1776, 4
        %v2000 = vpop.permute.xlu0 %1999
        %2001 = vrot.lane.b32.xlu0 %v1790, 4
        %v2002 = vpop.permute.xlu0 %2001
        %2003 = vrot.lane.b32.xlu0 %v1800, 4
        %v2004 = vpop.permute.xlu0 %2003
        %2005 = vrot.lane.b32.xlu0 %v1814, 4
        %v2006 = vpop.permute.xlu0 %2005
        %2007 = vrot.lane.b32.xlu0 %v1824, 4
        %v2008 = vpop.permute.xlu0 %2007
        %2009 = vrot.lane.b32.xlu0 %v1838, 4
        %v2010 = vpop.permute.xlu0 %2009
        %2011 = vrot.lane.b32.xlu0 %v1848, 4
        %v2012 = vpop.permute.xlu0 %2011
        %2013 = vrot.lane.b32.xlu0 %v1862, 4
        %v2014 = vpop.permute.xlu0 %2013
        %2015 = vrot.lane.b32.xlu0 %v1872, 4
        %v2016 = vpop.permute.xlu0 %2015
        %2017 = vrot.lane.b32.xlu0 %v1886, 4
        %v2018 = vpop.permute.xlu0 %2017
        %2019 = vrot.lane.b32.xlu0 %v1896, 4
        %v2020 = vpop.permute.xlu0 %2019
        %2021 = vrot.lane.b32.xlu0 %v1910, 4
        %v2022 = vpop.permute.xlu0 %2021
        %2023 = vrot.lane.b32.xlu0 %v1920, 4
        %v2024 = vpop.permute.xlu0 %2023
        %2025 = vrot.lane.b32.xlu0 %v1934, 4
        %v2026 = vpop.permute.xlu0 %2025
        %2027 = vrot.lane.b32.xlu0 %v1944, 4
        %v2028 = vpop.permute.xlu0 %2027
        %2029 = vrot.lane.b32.xlu0 %v1958, 4
        %v2030 = vpop.permute.xlu0 %2029
        %2031 = vrot.lane.b32.xlu0 %v1968, 4
        %v2032 = vpop.permute.xlu0 %2031
        %vm2065 = vcmask 60448
        %2066 = vst.msk [vmem:[#allocation4] sm:$0xf] %vm2065, %v1970
        %2067 = vst.msk [vmem:[#allocation4 + $0x4] sm:$0xf] %vm2065, %v1972
        %2068 = vst.msk [vmem:[#allocation4 + $0x8] sm:$0xf] %vm2065, %v1974
        %2069 = vst.msk [vmem:[#allocation4 + $0xc] sm:$0xf] %vm2065, %v1976
        %2070 = vst.msk [vmem:[#allocation4 + $0x10] sm:$0xf] %vm2065, %v1978
        %2071 = vst.msk [vmem:[#allocation4 + $0x14] sm:$0xf] %vm2065, %v1980
        %2072 = vst.msk [vmem:[#allocation4 + $0x18] sm:$0xf] %vm2065, %v1982
        %2073 = vst.msk [vmem:[#allocation4 + $0x1c] sm:$0xf] %vm2065, %v1984
        %2074 = vst.msk [vmem:[#allocation4 + $0x20] sm:$0xf] %vm2065, %v1986
        %2075 = vst.msk [vmem:[#allocation4 + $0x24] sm:$0xf] %vm2065, %v1988
        %2076 = vst.msk [vmem:[#allocation4 + $0x28] sm:$0xf] %vm2065, %v1990
        %2077 = vst.msk [vmem:[#allocation4 + $0x2c] sm:$0xf] %vm2065, %v1992
        %2078 = vst.msk [vmem:[#allocation4 + $0x30] sm:$0xf] %vm2065, %v1994
        %2079 = vst.msk [vmem:[#allocation4 + $0x34] sm:$0xf] %vm2065, %v1996
        %2080 = vst.msk [vmem:[#allocation4 + $0x38] sm:$0xf] %vm2065, %v1998
        %2081 = vst.msk [vmem:[#allocation4 + $0x3c] sm:$0xf] %vm2065, %v2000
        %2082 = vst.msk [vmem:[#allocation4 + $0x40] sm:$0xf] %vm2065, %v2002
        %2083 = vst.msk [vmem:[#allocation4 + $0x44] sm:$0xf] %vm2065, %v2004
        %2084 = vst.msk [vmem:[#allocation4 + $0x48] sm:$0xf] %vm2065, %v2006
        %2085 = vst.msk [vmem:[#allocation4 + $0x4c] sm:$0xf] %vm2065, %v2008
        %2086 = vst.msk [vmem:[#allocation4 + $0x50] sm:$0xf] %vm2065, %v2010
        %2087 = vst.msk [vmem:[#allocation4 + $0x54] sm:$0xf] %vm2065, %v2012
        %2088 = vst.msk [vmem:[#allocation4 + $0x58] sm:$0xf] %vm2065, %v2014
        %2089 = vst.msk [vmem:[#allocation4 + $0x5c] sm:$0xf] %vm2065, %v2016
        %2090 = vst.msk [vmem:[#allocation4 + $0x60] sm:$0xf] %vm2065, %v2018
        %2091 = vst.msk [vmem:[#allocation4 + $0x64] sm:$0xf] %vm2065, %v2020
        %2092 = vst.msk [vmem:[#allocation4 + $0x68] sm:$0xf] %vm2065, %v2022
        %2093 = vst.msk [vmem:[#allocation4 + $0x6c] sm:$0xf] %vm2065, %v2024
        %2094 = vst.msk [vmem:[#allocation4 + $0x70] sm:$0xf] %vm2065, %v2026
        %2095 = vst.msk [vmem:[#allocation4 + $0x74] sm:$0xf] %vm2065, %v2028
        %2096 = vst.msk [vmem:[#allocation4 + $0x78] sm:$0xf] %vm2065, %v2030
        %2097 = vst.msk [vmem:[#allocation4 + $0x7c] sm:$0xf] %vm2065, %v2032
        %v2098 = vld [vmem:[#allocation3] sm:$0xf]
        %v2099 = vld [vmem:[#allocation3 + $0x4] sm:$0xf]
        %v2100 = vld [vmem:[#allocation3 + $0x8] sm:$0x1]
        %v2101 = vld [vmem:[#allocation3 + $0xc] sm:$0xf]
        %v2102 = vld [vmem:[#allocation3 + $0x10] sm:$0xf]
        %v2103 = vld [vmem:[#allocation3 + $0x14] sm:$0x1]
        %v2104 = vld [vmem:[#allocation3 + $0x18] sm:$0xf]
        %v2105 = vld [vmem:[#allocation3 + $0x1c] sm:$0xf]
        %v2106 = vld [vmem:[#allocation3 + $0x20] sm:$0x1]
        %v2107 = vld [vmem:[#allocation3 + $0x24] sm:$0xf]
        %v2108 = vld [vmem:[#allocation3 + $0x28] sm:$0xf]
        %v2109 = vld [vmem:[#allocation3 + $0x2c] sm:$0x1]
        %v2110 = vld [vmem:[#allocation3 + $0x30] sm:$0xf]
        %v2111 = vld [vmem:[#allocation3 + $0x34] sm:$0xf]
        %v2112 = vld [vmem:[#allocation3 + $0x38] sm:$0x1]
        %v2113 = vld [vmem:[#allocation3 + $0x3c] sm:$0xf]
        %v2114 = vld [vmem:[#allocation3 + $0x40] sm:$0xf]
        %v2115 = vld [vmem:[#allocation3 + $0x44] sm:$0x1]
        %v2116 = vld [vmem:[#allocation3 + $0x48] sm:$0xf]
        %v2117 = vld [vmem:[#allocation3 + $0x4c] sm:$0xf]
        %v2118 = vld [vmem:[#allocation3 + $0x50] sm:$0x1]
        %v2119 = vld [vmem:[#allocation3 + $0x54] sm:$0xf]
        %v2120 = vld [vmem:[#allocation3 + $0x58] sm:$0xf]
        %v2121 = vld [vmem:[#allocation3 + $0x5c] sm:$0x1]
        %v2122 = vld [vmem:[#allocation3 + $0x60] sm:$0xf]
        %v2123 = vld [vmem:[#allocation3 + $0x64] sm:$0xf]
        %v2124 = vld [vmem:[#allocation3 + $0x68] sm:$0x1]
        %v2125 = vld [vmem:[#allocation3 + $0x6c] sm:$0xf]
        %v2126 = vld [vmem:[#allocation3 + $0x70] sm:$0xf]
        %v2127 = vld [vmem:[#allocation3 + $0x74] sm:$0x1]
        %v2128 = vld [vmem:[#allocation3 + $0x78] sm:$0xf]
        %v2129 = vld [vmem:[#allocation3 + $0x7c] sm:$0xf]
        %v2130 = vld [vmem:[#allocation3 + $0x80] sm:$0x1]
        %v2131 = vld [vmem:[#allocation3 + $0x84] sm:$0xf]
        %v2132 = vld [vmem:[#allocation3 + $0x88] sm:$0xf]
        %v2133 = vld [vmem:[#allocation3 + $0x8c] sm:$0x1]
        %v2134 = vld [vmem:[#allocation3 + $0x90] sm:$0xf]
        %v2135 = vld [vmem:[#allocation3 + $0x94] sm:$0xf]
        %v2136 = vld [vmem:[#allocation3 + $0x98] sm:$0x1]
        %v2137 = vld [vmem:[#allocation3 + $0x9c] sm:$0xf]
        %v2138 = vld [vmem:[#allocation3 + $0xa0] sm:$0xf]
        %v2139 = vld [vmem:[#allocation3 + $0xa4] sm:$0x1]
        %v2140 = vld [vmem:[#allocation3 + $0xa8] sm:$0xf]
        %v2141 = vld [vmem:[#allocation3 + $0xac] sm:$0xf]
        %v2142 = vld [vmem:[#allocation3 + $0xb0] sm:$0x1]
        %v2143 = vld [vmem:[#allocation3 + $0xb4] sm:$0xf]
        %v2144 = vld [vmem:[#allocation3 + $0xb8] sm:$0xf]
        %v2145 = vld [vmem:[#allocation3 + $0xbc] sm:$0x1]
        %v2147 = vshrl.u32 %v2098, 16
        %v2149 = vrot.slane %v2147, 4
        %v2150 = vshll.u32 %v2098, 16
        %v2152 = vrot.slane %v2150, 5
        %v2153 = vor.u32 %v2149, %v2152
        %v2154 = vrot.slane %v2153, 4
        %v2156 = vshll.u32 %v2099, 16
        %v2158 = vrot.slane %v2156, 5
        %v2159 = vsel %vm1584, %v2154, %v2158
        %v2160 = vshrl.u32 %v2099, 16
        %v2162 = vrot.slane %v2160, 4
        %v2163 = vor.u32 %v2162, %v2158
        %v2164 = vrot.slane %v2163, 4
        %v2166 = vshll.u32 %v2100, 16
        %v2168 = vrot.slane %v2166, 5
        %v2169 = vsel %vm1584, %v2164, %v2168
        %v2171 = vshrl.u32 %v2101, 16
        %v2173 = vrot.slane %v2171, 4
        %v2174 = vshll.u32 %v2101, 16
        %v2176 = vrot.slane %v2174, 5
        %v2177 = vor.u32 %v2173, %v2176
        %v2178 = vrot.slane %v2177, 4
        %v2180 = vshll.u32 %v2102, 16
        %v2182 = vrot.slane %v2180, 5
        %v2183 = vsel %vm1584, %v2178, %v2182
        %v2184 = vshrl.u32 %v2102, 16
        %v2186 = vrot.slane %v2184, 4
        %v2187 = vor.u32 %v2186, %v2182
        %v2188 = vrot.slane %v2187, 4
        %v2190 = vshll.u32 %v2103, 16
        %v2192 = vrot.slane %v2190, 5
        %v2193 = vsel %vm1584, %v2188, %v2192
        %v2195 = vshrl.u32 %v2104, 16
        %v2197 = vrot.slane %v2195, 4
        %v2198 = vshll.u32 %v2104, 16
        %v2200 = vrot.slane %v2198, 5
        %v2201 = vor.u32 %v2197, %v2200
        %v2202 = vrot.slane %v2201, 4
        %v2204 = vshll.u32 %v2105, 16
        %v2206 = vrot.slane %v2204, 5
        %v2207 = vsel %vm1584, %v2202, %v2206
        %v2208 = vshrl.u32 %v2105, 16
        %v2210 = vrot.slane %v2208, 4
        %v2211 = vor.u32 %v2210, %v2206
        %v2212 = vrot.slane %v2211, 4
        %v2214 = vshll.u32 %v2106, 16
        %v2216 = vrot.slane %v2214, 5
        %v2217 = vsel %vm1584, %v2212, %v2216
        %v2219 = vshrl.u32 %v2107, 16
        %v2221 = vrot.slane %v2219, 4
        %v2222 = vshll.u32 %v2107, 16
        %v2224 = vrot.slane %v2222, 5
        %v2225 = vor.u32 %v2221, %v2224
        %v2226 = vrot.slane %v2225, 4
        %v2228 = vshll.u32 %v2108, 16
        %v2230 = vrot.slane %v2228, 5
        %v2231 = vsel %vm1584, %v2226, %v2230
        %v2232 = vshrl.u32 %v2108, 16
        %v2234 = vrot.slane %v2232, 4
        %v2235 = vor.u32 %v2234, %v2230
        %v2236 = vrot.slane %v2235, 4
        %v2238 = vshll.u32 %v2109, 16
        %v2240 = vrot.slane %v2238, 5
        %v2241 = vsel %vm1584, %v2236, %v2240
        %v2243 = vshrl.u32 %v2110, 16
        %v2245 = vrot.slane %v2243, 4
        %v2246 = vshll.u32 %v2110, 16
        %v2248 = vrot.slane %v2246, 5
        %v2249 = vor.u32 %v2245, %v2248
        %v2250 = vrot.slane %v2249, 4
        %v2252 = vshll.u32 %v2111, 16
        %v2254 = vrot.slane %v2252, 5
        %v2255 = vsel %vm1584, %v2250, %v2254
        %v2256 = vshrl.u32 %v2111, 16
        %v2258 = vrot.slane %v2256, 4
        %v2259 = vor.u32 %v2258, %v2254
        %v2260 = vrot.slane %v2259, 4
        %v2262 = vshll.u32 %v2112, 16
        %v2264 = vrot.slane %v2262, 5
        %v2265 = vsel %vm1584, %v2260, %v2264
        %v2267 = vshrl.u32 %v2113, 16
        %v2269 = vrot.slane %v2267, 4
        %v2270 = vshll.u32 %v2113, 16
        %v2272 = vrot.slane %v2270, 5
        %v2273 = vor.u32 %v2269, %v2272
        %v2274 = vrot.slane %v2273, 4
        %v2276 = vshll.u32 %v2114, 16
        %v2278 = vrot.slane %v2276, 5
        %v2279 = vsel %vm1584, %v2274, %v2278
        %v2280 = vshrl.u32 %v2114, 16
        %v2282 = vrot.slane %v2280, 4
        %v2283 = vor.u32 %v2282, %v2278
        %v2284 = vrot.slane %v2283, 4
        %v2286 = vshll.u32 %v2115, 16
        %v2288 = vrot.slane %v2286, 5
        %v2289 = vsel %vm1584, %v2284, %v2288
        %v2291 = vshrl.u32 %v2116, 16
        %v2293 = vrot.slane %v2291, 4
        %v2294 = vshll.u32 %v2116, 16
        %v2296 = vrot.slane %v2294, 5
        %v2297 = vor.u32 %v2293, %v2296
        %v2298 = vrot.slane %v2297, 4
        %v2300 = vshll.u32 %v2117, 16
        %v2302 = vrot.slane %v2300, 5
        %v2303 = vsel %vm1584, %v2298, %v2302
        %v2304 = vshrl.u32 %v2117, 16
        %v2306 = vrot.slane %v2304, 4
        %v2307 = vor.u32 %v2306, %v2302
        %v2308 = vrot.slane %v2307, 4
        %v2310 = vshll.u32 %v2118, 16
        %v2312 = vrot.slane %v2310, 5
        %v2313 = vsel %vm1584, %v2308, %v2312
        %v2315 = vshrl.u32 %v2119, 16
        %v2317 = vrot.slane %v2315, 4
        %v2318 = vshll.u32 %v2119, 16
        %v2320 = vrot.slane %v2318, 5
        %v2321 = vor.u32 %v2317, %v2320
        %v2322 = vrot.slane %v2321, 4
        %v2324 = vshll.u32 %v2120, 16
        %v2326 = vrot.slane %v2324, 5
        %v2327 = vsel %vm1584, %v2322, %v2326
        %v2328 = vshrl.u32 %v2120, 16
        %v2330 = vrot.slane %v2328, 4
        %v2331 = vor.u32 %v2330, %v2326
        %v2332 = vrot.slane %v2331, 4
        %v2334 = vshll.u32 %v2121, 16
        %v2336 = vrot.slane %v2334, 5
        %v2337 = vsel %vm1584, %v2332, %v2336
        %v2339 = vshrl.u32 %v2122, 16
        %v2341 = vrot.slane %v2339, 4
        %v2342 = vshll.u32 %v2122, 16
        %v2344 = vrot.slane %v2342, 5
        %v2345 = vor.u32 %v2341, %v2344
        %v2346 = vrot.slane %v2345, 4
        %v2348 = vshll.u32 %v2123, 16
        %v2350 = vrot.slane %v2348, 5
        %v2351 = vsel %vm1584, %v2346, %v2350
        %v2352 = vshrl.u32 %v2123, 16
        %v2354 = vrot.slane %v2352, 4
        %v2355 = vor.u32 %v2354, %v2350
        %v2356 = vrot.slane %v2355, 4
        %v2358 = vshll.u32 %v2124, 16
        %v2360 = vrot.slane %v2358, 5
        %v2361 = vsel %vm1584, %v2356, %v2360
        %v2363 = vshrl.u32 %v2125, 16
        %v2365 = vrot.slane %v2363, 4
        %v2366 = vshll.u32 %v2125, 16
        %v2368 = vrot.slane %v2366, 5
        %v2369 = vor.u32 %v2365, %v2368
        %v2370 = vrot.slane %v2369, 4
        %v2372 = vshll.u32 %v2126, 16
        %v2374 = vrot.slane %v2372, 5
        %v2375 = vsel %vm1584, %v2370, %v2374
        %v2376 = vshrl.u32 %v2126, 16
        %v2378 = vrot.slane %v2376, 4
        %v2379 = vor.u32 %v2378, %v2374
        %v2380 = vrot.slane %v2379, 4
        %v2382 = vshll.u32 %v2127, 16
        %v2384 = vrot.slane %v2382, 5
        %v2385 = vsel %vm1584, %v2380, %v2384
        %v2387 = vshrl.u32 %v2128, 16
        %v2389 = vrot.slane %v2387, 4
        %v2390 = vshll.u32 %v2128, 16
        %v2392 = vrot.slane %v2390, 5
        %v2393 = vor.u32 %v2389, %v2392
        %v2394 = vrot.slane %v2393, 4
        %v2396 = vshll.u32 %v2129, 16
        %v2398 = vrot.slane %v2396, 5
        %v2399 = vsel %vm1584, %v2394, %v2398
        %v2400 = vshrl.u32 %v2129, 16
        %v2402 = vrot.slane %v2400, 4
        %v2403 = vor.u32 %v2402, %v2398
        %v2404 = vrot.slane %v2403, 4
        %v2406 = vshll.u32 %v2130, 16
        %v2408 = vrot.slane %v2406, 5
        %v2409 = vsel %vm1584, %v2404, %v2408
        %v2411 = vshrl.u32 %v2131, 16
        %v2413 = vrot.slane %v2411, 4
        %v2414 = vshll.u32 %v2131, 16
        %v2416 = vrot.slane %v2414, 5
        %v2417 = vor.u32 %v2413, %v2416
        %v2418 = vrot.slane %v2417, 4
        %v2420 = vshll.u32 %v2132, 16
        %v2422 = vrot.slane %v2420, 5
        %v2423 = vsel %vm1584, %v2418, %v2422
        %v2424 = vshrl.u32 %v2132, 16
        %v2426 = vrot.slane %v2424, 4
        %v2427 = vor.u32 %v2426, %v2422
        %v2428 = vrot.slane %v2427, 4
        %v2430 = vshll.u32 %v2133, 16
        %v2432 = vrot.slane %v2430, 5
        %v2433 = vsel %vm1584, %v2428, %v2432
        %v2435 = vshrl.u32 %v2134, 16
        %v2437 = vrot.slane %v2435, 4
        %v2438 = vshll.u32 %v2134, 16
        %v2440 = vrot.slane %v2438, 5
        %v2441 = vor.u32 %v2437, %v2440
        %v2442 = vrot.slane %v2441, 4
        %v2444 = vshll.u32 %v2135, 16
        %v2446 = vrot.slane %v2444, 5
        %v2447 = vsel %vm1584, %v2442, %v2446
        %v2448 = vshrl.u32 %v2135, 16
        %v2450 = vrot.slane %v2448, 4
        %v2451 = vor.u32 %v2450, %v2446
        %v2452 = vrot.slane %v2451, 4
        %v2454 = vshll.u32 %v2136, 16
        %v2456 = vrot.slane %v2454, 5
        %v2457 = vsel %vm1584, %v2452, %v2456
        %v2459 = vshrl.u32 %v2137, 16
        %v2461 = vrot.slane %v2459, 4
        %v2462 = vshll.u32 %v2137, 16
        %v2464 = vrot.slane %v2462, 5
        %v2465 = vor.u32 %v2461, %v2464
        %v2466 = vrot.slane %v2465, 4
        %v2468 = vshll.u32 %v2138, 16
        %v2470 = vrot.slane %v2468, 5
        %v2471 = vsel %vm1584, %v2466, %v2470
        %v2472 = vshrl.u32 %v2138, 16
        %v2474 = vrot.slane %v2472, 4
        %v2475 = vor.u32 %v2474, %v2470
        %v2476 = vrot.slane %v2475, 4
        %v2478 = vshll.u32 %v2139, 16
        %v2480 = vrot.slane %v2478, 5
        %v2481 = vsel %vm1584, %v2476, %v2480
        %v2483 = vshrl.u32 %v2140, 16
        %v2485 = vrot.slane %v2483, 4
        %v2486 = vshll.u32 %v2140, 16
        %v2488 = vrot.slane %v2486, 5
        %v2489 = vor.u32 %v2485, %v2488
        %v2490 = vrot.slane %v2489, 4
        %v2492 = vshll.u32 %v2141, 16
        %v2494 = vrot.slane %v2492, 5
        %v2495 = vsel %vm1584, %v2490, %v2494
        %v2496 = vshrl.u32 %v2141, 16
        %v2498 = vrot.slane %v2496, 4
        %v2499 = vor.u32 %v2498, %v2494
        %v2500 = vrot.slane %v2499, 4
        %v2502 = vshll.u32 %v2142, 16
        %v2504 = vrot.slane %v2502, 5
        %v2505 = vsel %vm1584, %v2500, %v2504
        %v2507 = vshrl.u32 %v2143, 16
        %v2509 = vrot.slane %v2507, 4
        %v2510 = vshll.u32 %v2143, 16
        %v2512 = vrot.slane %v2510, 5
        %v2513 = vor.u32 %v2509, %v2512
        %v2514 = vrot.slane %v2513, 4
        %v2516 = vshll.u32 %v2144, 16
        %v2518 = vrot.slane %v2516, 5
        %v2519 = vsel %vm1584, %v2514, %v2518
        %v2520 = vshrl.u32 %v2144, 16
        %v2522 = vrot.slane %v2520, 4
        %v2523 = vor.u32 %v2522, %v2518
        %v2524 = vrot.slane %v2523, 4
        %v2526 = vshll.u32 %v2145, 16
        %v2528 = vrot.slane %v2526, 5
        %v2529 = vsel %vm1584, %v2524, %v2528
        %2530 = vrot.lane.b32.xlu0 %v2159, 32
        %v2531 = vpop.permute.xlu0 %2530
        %2532 = vrot.lane.b32.xlu0 %v2169, 32
        %v2533 = vpop.permute.xlu0 %2532
        %2534 = vrot.lane.b32.xlu0 %v2183, 32
        %v2535 = vpop.permute.xlu0 %2534
        %2536 = vrot.lane.b32.xlu0 %v2193, 32
        %v2537 = vpop.permute.xlu0 %2536
        %2538 = vrot.lane.b32.xlu0 %v2207, 32
        %v2539 = vpop.permute.xlu0 %2538
        %2540 = vrot.lane.b32.xlu0 %v2217, 32
        %v2541 = vpop.permute.xlu0 %2540
        %2542 = vrot.lane.b32.xlu0 %v2231, 32
        %v2543 = vpop.permute.xlu0 %2542
        %2544 = vrot.lane.b32.xlu0 %v2241, 32
        %v2545 = vpop.permute.xlu0 %2544
        %2546 = vrot.lane.b32.xlu0 %v2255, 32
        %v2547 = vpop.permute.xlu0 %2546
        %2548 = vrot.lane.b32.xlu0 %v2265, 32
        %v2549 = vpop.permute.xlu0 %2548
        %2550 = vrot.lane.b32.xlu0 %v2279, 32
        %v2551 = vpop.permute.xlu0 %2550
        %2552 = vrot.lane.b32.xlu0 %v2289, 32
        %v2553 = vpop.permute.xlu0 %2552
        %2554 = vrot.lane.b32.xlu0 %v2303, 32
        %v2555 = vpop.permute.xlu0 %2554
        %2556 = vrot.lane.b32.xlu0 %v2313, 32
        %v2557 = vpop.permute.xlu0 %2556
        %2558 = vrot.lane.b32.xlu0 %v2327, 32
        %v2559 = vpop.permute.xlu0 %2558
        %2560 = vrot.lane.b32.xlu0 %v2337, 32
        %v2561 = vpop.permute.xlu0 %2560
        %2562 = vrot.lane.b32.xlu0 %v2351, 32
        %v2563 = vpop.permute.xlu0 %2562
        %2564 = vrot.lane.b32.xlu0 %v2361, 32
        %v2565 = vpop.permute.xlu0 %2564
        %2566 = vrot.lane.b32.xlu0 %v2375, 32
        %v2567 = vpop.permute.xlu0 %2566
        %2568 = vrot.lane.b32.xlu0 %v2385, 32
        %v2569 = vpop.permute.xlu0 %2568
        %2570 = vrot.lane.b32.xlu0 %v2399, 32
        %v2571 = vpop.permute.xlu0 %2570
        %2572 = vrot.lane.b32.xlu0 %v2409, 32
        %v2573 = vpop.permute.xlu0 %2572
        %2574 = vrot.lane.b32.xlu0 %v2423, 32
        %v2575 = vpop.permute.xlu0 %2574
        %2576 = vrot.lane.b32.xlu0 %v2433, 32
        %v2577 = vpop.permute.xlu0 %2576
        %2578 = vrot.lane.b32.xlu0 %v2447, 32
        %v2579 = vpop.permute.xlu0 %2578
        %2580 = vrot.lane.b32.xlu0 %v2457, 32
        %v2581 = vpop.permute.xlu0 %2580
        %2582 = vrot.lane.b32.xlu0 %v2471, 32
        %v2583 = vpop.permute.xlu0 %2582
        %2584 = vrot.lane.b32.xlu0 %v2481, 32
        %v2585 = vpop.permute.xlu0 %2584
        %2586 = vrot.lane.b32.xlu0 %v2495, 32
        %v2587 = vpop.permute.xlu0 %2586
        %2588 = vrot.lane.b32.xlu0 %v2505, 32
        %v2589 = vpop.permute.xlu0 %2588
        %2590 = vrot.lane.b32.xlu0 %v2519, 32
        %v2591 = vpop.permute.xlu0 %2590
        %2592 = vrot.lane.b32.xlu0 %v2529, 32
        %v2593 = vpop.permute.xlu0 %2592
        %vm2626 = vcmask 519424
        %2627 = vst.msk [vmem:[#allocation5] sm:$0xf] %vm2626, %v2531
        %2628 = vst.msk [vmem:[#allocation5 + $0xc] sm:$0xf] %vm2626, %v2533
        %2629 = vst.msk [vmem:[#allocation5 + $0x18] sm:$0xf] %vm2626, %v2535
        %2630 = vst.msk [vmem:[#allocation5 + $0x24] sm:$0xf] %vm2626, %v2537
        %2631 = vst.msk [vmem:[#allocation5 + $0x30] sm:$0xf] %vm2626, %v2539
        %2632 = vst.msk [vmem:[#allocation5 + $0x3c] sm:$0xf] %vm2626, %v2541
        %2633 = vst.msk [vmem:[#allocation5 + $0x48] sm:$0xf] %vm2626, %v2543
        %2634 = vst.msk [vmem:[#allocation5 + $0x54] sm:$0xf] %vm2626, %v2545
        %2635 = vst.msk [vmem:[#allocation5 + $0x60] sm:$0xf] %vm2626, %v2547
        %2636 = vst.msk [vmem:[#allocation5 + $0x6c] sm:$0xf] %vm2626, %v2549
        %2637 = vst.msk [vmem:[#allocation5 + $0x78] sm:$0xf] %vm2626, %v2551
        %2638 = vst.msk [vmem:[#allocation5 + $0x84] sm:$0xf] %vm2626, %v2553
        %2639 = vst.msk [vmem:[#allocation5 + $0x90] sm:$0xf] %vm2626, %v2555
        %2640 = vst.msk [vmem:[#allocation5 + $0x9c] sm:$0xf] %vm2626, %v2557
        %2641 = vst.msk [vmem:[#allocation5 + $0xa8] sm:$0xf] %vm2626, %v2559
        %2642 = vst.msk [vmem:[#allocation5 + $0xb4] sm:$0xf] %vm2626, %v2561
        %2643 = vst.msk [vmem:[#allocation5 + $0xc0] sm:$0xf] %vm2626, %v2563
        %2644 = vst.msk [vmem:[#allocation5 + $0xcc] sm:$0xf] %vm2626, %v2565
        %2645 = vst.msk [vmem:[#allocation5 + $0xd8] sm:$0xf] %vm2626, %v2567
        %2646 = vst.msk [vmem:[#allocation5 + $0xe4] sm:$0xf] %vm2626, %v2569
        %2647 = vst.msk [vmem:[#allocation5 + $0xf0] sm:$0xf] %vm2626, %v2571
        %2648 = vst.msk [vmem:[#allocation5 + $0xfc] sm:$0xf] %vm2626, %v2573
        %2649 = vst.msk [vmem:[#allocation5 + $0x108] sm:$0xf] %vm2626, %v2575
        %2650 = vst.msk [vmem:[#allocation5 + $0x114] sm:$0xf] %vm2626, %v2577
        %2651 = vst.msk [vmem:[#allocation5 + $0x120] sm:$0xf] %vm2626, %v2579
        %2652 = vst.msk [vmem:[#allocation5 + $0x12c] sm:$0xf] %vm2626, %v2581
        %2653 = vst.msk [vmem:[#allocation5 + $0x138] sm:$0xf] %vm2626, %v2583
        %2654 = vst.msk [vmem:[#allocation5 + $0x144] sm:$0xf] %vm2626, %v2585
        %2655 = vst.msk [vmem:[#allocation5 + $0x150] sm:$0xf] %vm2626, %v2587
        %2656 = vst.msk [vmem:[#allocation5 + $0x15c] sm:$0xf] %vm2626, %v2589
        %2657 = vst.msk [vmem:[#allocation5 + $0x168] sm:$0xf] %vm2626, %v2591
        %2658 = vst.msk [vmem:[#allocation5 + $0x174] sm:$0xf] %vm2626, %v2593
        %v2659 = vld [vmem:[#allocation2] sm:$0xe]
        %v2660 = vld [vmem:[#allocation2 + $0x4] sm:$0xf]
        %v2661 = vld [vmem:[#allocation2 + $0x8] sm:$0x1]
        %v2662 = vld [vmem:[#allocation2 + $0xc] sm:$0xe]
        %v2663 = vld [vmem:[#allocation2 + $0x10] sm:$0xf]
        %v2664 = vld [vmem:[#allocation2 + $0x14] sm:$0x1]
        %v2665 = vld [vmem:[#allocation2 + $0x18] sm:$0xe]
        %v2666 = vld [vmem:[#allocation2 + $0x1c] sm:$0xf]
        %v2667 = vld [vmem:[#allocation2 + $0x20] sm:$0x1]
        %v2668 = vld [vmem:[#allocation2 + $0x24] sm:$0xe]
        %v2669 = vld [vmem:[#allocation2 + $0x28] sm:$0xf]
        %v2670 = vld [vmem:[#allocation2 + $0x2c] sm:$0x1]
        %v2671 = vld [vmem:[#allocation2 + $0x30] sm:$0xe]
        %v2672 = vld [vmem:[#allocation2 + $0x34] sm:$0xf]
        %v2673 = vld [vmem:[#allocation2 + $0x38] sm:$0x1]
        %v2674 = vld [vmem:[#allocation2 + $0x3c] sm:$0xe]
        %v2675 = vld [vmem:[#allocation2 + $0x40] sm:$0xf]
        %v2676 = vld [vmem:[#allocation2 + $0x44] sm:$0x1]
        %v2677 = vld [vmem:[#allocation2 + $0x48] sm:$0xe]
        %v2678 = vld [vmem:[#allocation2 + $0x4c] sm:$0xf]
        %v2679 = vld [vmem:[#allocation2 + $0x50] sm:$0x1]
        %v2680 = vld [vmem:[#allocation2 + $0x54] sm:$0xe]
        %v2681 = vld [vmem:[#allocation2 + $0x58] sm:$0xf]
        %v2682 = vld [vmem:[#allocation2 + $0x5c] sm:$0x1]
        %v2683 = vld [vmem:[#allocation2 + $0x60] sm:$0xe]
        %v2684 = vld [vmem:[#allocation2 + $0x64] sm:$0xf]
        %v2685 = vld [vmem:[#allocation2 + $0x68] sm:$0x1]
        %v2686 = vld [vmem:[#allocation2 + $0x6c] sm:$0xe]
        %v2687 = vld [vmem:[#allocation2 + $0x70] sm:$0xf]
        %v2688 = vld [vmem:[#allocation2 + $0x74] sm:$0x1]
        %v2689 = vld [vmem:[#allocation2 + $0x78] sm:$0xe]
        %v2690 = vld [vmem:[#allocation2 + $0x7c] sm:$0xf]
        %v2691 = vld [vmem:[#allocation2 + $0x80] sm:$0x1]
        %v2692 = vld [vmem:[#allocation2 + $0x84] sm:$0xe]
        %v2693 = vld [vmem:[#allocation2 + $0x88] sm:$0xf]
        %v2694 = vld [vmem:[#allocation2 + $0x8c] sm:$0x1]
        %v2695 = vld [vmem:[#allocation2 + $0x90] sm:$0xe]
        %v2696 = vld [vmem:[#allocation2 + $0x94] sm:$0xf]
        %v2697 = vld [vmem:[#allocation2 + $0x98] sm:$0x1]
        %v2698 = vld [vmem:[#allocation2 + $0x9c] sm:$0xe]
        %v2699 = vld [vmem:[#allocation2 + $0xa0] sm:$0xf]
        %v2700 = vld [vmem:[#allocation2 + $0xa4] sm:$0x1]
        %v2701 = vld [vmem:[#allocation2 + $0xa8] sm:$0xe]
        %v2702 = vld [vmem:[#allocation2 + $0xac] sm:$0xf]
        %v2703 = vld [vmem:[#allocation2 + $0xb0] sm:$0x1]
        %v2704 = vld [vmem:[#allocation2 + $0xb4] sm:$0xe]
        %v2705 = vld [vmem:[#allocation2 + $0xb8] sm:$0xf]
        %v2706 = vld [vmem:[#allocation2 + $0xbc] sm:$0x1]
        %vm2755 = vcmask 1042432
        %vm2756 = vcmask 1046532
        %vm2757 = vmor %vm2755, %vm2756
        %v2758 = vrot.slane %v2659, 5
        %v2759 = vrot.slane %v2758, 4
        %v2760 = vrot.slane %v2660, 5
        %v2761 = vsel %vm2757, %v2759, %v2760
        %v2762 = vrot.slane %v2760, 4
        %v2763 = vrot.slane %v2661, 5
        %v2764 = vsel %vm2757, %v2762, %v2763
        %v2765 = vrot.slane %v2662, 5
        %v2766 = vrot.slane %v2765, 4
        %v2767 = vrot.slane %v2663, 5
        %v2768 = vsel %vm2757, %v2766, %v2767
        %v2769 = vrot.slane %v2767, 4
        %v2770 = vrot.slane %v2664, 5
        %v2771 = vsel %vm2757, %v2769, %v2770
        %v2772 = vrot.slane %v2665, 5
        %v2773 = vrot.slane %v2772, 4
        %v2774 = vrot.slane %v2666, 5
        %v2775 = vsel %vm2757, %v2773, %v2774
        %v2776 = vrot.slane %v2774, 4
        %v2777 = vrot.slane %v2667, 5
        %v2778 = vsel %vm2757, %v2776, %v2777
        %v2779 = vrot.slane %v2668, 5
        %v2780 = vrot.slane %v2779, 4
        %v2781 = vrot.slane %v2669, 5
        %v2782 = vsel %vm2757, %v2780, %v2781
        %v2783 = vrot.slane %v2781, 4
        %v2784 = vrot.slane %v2670, 5
        %v2785 = vsel %vm2757, %v2783, %v2784
        %v2786 = vrot.slane %v2671, 5
        %v2787 = vrot.slane %v2786, 4
        %v2788 = vrot.slane %v2672, 5
        %v2789 = vsel %vm2757, %v2787, %v2788
        %v2790 = vrot.slane %v2788, 4
        %v2791 = vrot.slane %v2673, 5
        %v2792 = vsel %vm2757, %v2790, %v2791
        %v2793 = vrot.slane %v2674, 5
        %v2794 = vrot.slane %v2793, 4
        %v2795 = vrot.slane %v2675, 5
        %v2796 = vsel %vm2757, %v2794, %v2795
        %v2797 = vrot.slane %v2795, 4
        %v2798 = vrot.slane %v2676, 5
        %v2799 = vsel %vm2757, %v2797, %v2798
        %v2800 = vrot.slane %v2677, 5
        %v2801 = vrot.slane %v2800, 4
        %v2802 = vrot.slane %v2678, 5
        %v2803 = vsel %vm2757, %v2801, %v2802
        %v2804 = vrot.slane %v2802, 4
        %v2805 = vrot.slane %v2679, 5
        %v2806 = vsel %vm2757, %v2804, %v2805
        %v2807 = vrot.slane %v2680, 5
        %v2808 = vrot.slane %v2807, 4
        %v2809 = vrot.slane %v2681, 5
        %v2810 = vsel %vm2757, %v2808, %v2809
        %v2811 = vrot.slane %v2809, 4
        %v2812 = vrot.slane %v2682, 5
        %v2813 = vsel %vm2757, %v2811, %v2812
        %v2814 = vrot.slane %v2683, 5
        %v2815 = vrot.slane %v2814, 4
        %v2816 = vrot.slane %v2684, 5
        %v2817 = vsel %vm2757, %v2815, %v2816
        %v2818 = vrot.slane %v2816, 4
        %v2819 = vrot.slane %v2685, 5
        %v2820 = vsel %vm2757, %v2818, %v2819
        %v2821 = vrot.slane %v2686, 5
        %v2822 = vrot.slane %v2821, 4
        %v2823 = vrot.slane %v2687, 5
        %v2824 = vsel %vm2757, %v2822, %v2823
        %v2825 = vrot.slane %v2823, 4
        %v2826 = vrot.slane %v2688, 5
        %v2827 = vsel %vm2757, %v2825, %v2826
        %v2828 = vrot.slane %v2689, 5
        %v2829 = vrot.slane %v2828, 4
        %v2830 = vrot.slane %v2690, 5
        %v2831 = vsel %vm2757, %v2829, %v2830
        %v2832 = vrot.slane %v2830, 4
        %v2833 = vrot.slane %v2691, 5
        %v2834 = vsel %vm2757, %v2832, %v2833
        %v2835 = vrot.slane %v2692, 5
        %v2836 = vrot.slane %v2835, 4
        %v2837 = vrot.slane %v2693, 5
        %v2838 = vsel %vm2757, %v2836, %v2837
        %v2839 = vrot.slane %v2837, 4
        %v2840 = vrot.slane %v2694, 5
        %v2841 = vsel %vm2757, %v2839, %v2840
        %v2842 = vrot.slane %v2695, 5
        %v2843 = vrot.slane %v2842, 4
        %v2844 = vrot.slane %v2696, 5
        %v2845 = vsel %vm2757, %v2843, %v2844
        %v2846 = vrot.slane %v2844, 4
        %v2847 = vrot.slane %v2697, 5
        %v2848 = vsel %vm2757, %v2846, %v2847
        %v2849 = vrot.slane %v2698, 5
        %v2850 = vrot.slane %v2849, 4
        %v2851 = vrot.slane %v2699, 5
        %v2852 = vsel %vm2757, %v2850, %v2851
        %v2853 = vrot.slane %v2851, 4
        %v2854 = vrot.slane %v2700, 5
        %v2855 = vsel %vm2757, %v2853, %v2854
        %v2856 = vrot.slane %v2701, 5
        %v2857 = vrot.slane %v2856, 4
        %v2858 = vrot.slane %v2702, 5
        %v2859 = vsel %vm2757, %v2857, %v2858
        %v2860 = vrot.slane %v2858, 4
        %v2861 = vrot.slane %v2703, 5
        %v2862 = vsel %vm2757, %v2860, %v2861
        %v2863 = vrot.slane %v2704, 5
        %v2864 = vrot.slane %v2863, 4
        %v2865 = vrot.slane %v2705, 5
        %v2866 = vsel %vm2757, %v2864, %v2865
        %v2867 = vrot.slane %v2865, 4
        %v2868 = vrot.slane %v2706, 5
        %v2869 = vsel %vm2757, %v2867, %v2868
        %2870 = vrot.lane.b32.xlu0 %v2761, 8
        %v2871 = vpop.permute.xlu0 %2870
        %2872 = vrot.lane.b32.xlu0 %v2764, 8
        %v2873 = vpop.permute.xlu0 %2872
        %2874 = vrot.lane.b32.xlu0 %v2768, 8
        %v2875 = vpop.permute.xlu0 %2874
        %2876 = vrot.lane.b32.xlu0 %v2771, 8
        %v2877 = vpop.permute.xlu0 %2876
        %2878 = vrot.lane.b32.xlu0 %v2775, 8
        %v2879 = vpop.permute.xlu0 %2878
        %2880 = vrot.lane.b32.xlu0 %v2778, 8
        %v2881 = vpop.permute.xlu0 %2880
        %2882 = vrot.lane.b32.xlu0 %v2782, 8
        %v2883 = vpop.permute.xlu0 %2882
        %2884 = vrot.lane.b32.xlu0 %v2785, 8
        %v2885 = vpop.permute.xlu0 %2884
        %2886 = vrot.lane.b32.xlu0 %v2789, 8
        %v2887 = vpop.permute.xlu0 %2886
        %2888 = vrot.lane.b32.xlu0 %v2792, 8
        %v2889 = vpop.permute.xlu0 %2888
        %2890 = vrot.lane.b32.xlu0 %v2796, 8
        %v2891 = vpop.permute.xlu0 %2890
        %2892 = vrot.lane.b32.xlu0 %v2799, 8
        %v2893 = vpop.permute.xlu0 %2892
        %2894 = vrot.lane.b32.xlu0 %v2803, 8
        %v2895 = vpop.permute.xlu0 %2894
        %2896 = vrot.lane.b32.xlu0 %v2806, 8
        %v2897 = vpop.permute.xlu0 %2896
        %2898 = vrot.lane.b32.xlu0 %v2810, 8
        %v2899 = vpop.permute.xlu0 %2898
        %2900 = vrot.lane.b32.xlu0 %v2813, 8
        %v2901 = vpop.permute.xlu0 %2900
        %2902 = vrot.lane.b32.xlu0 %v2817, 8
        %v2903 = vpop.permute.xlu0 %2902
        %2904 = vrot.lane.b32.xlu0 %v2820, 8
        %v2905 = vpop.permute.xlu0 %2904
        %2906 = vrot.lane.b32.xlu0 %v2824, 8
        %v2907 = vpop.permute.xlu0 %2906
        %2908 = vrot.lane.b32.xlu0 %v2827, 8
        %v2909 = vpop.permute.xlu0 %2908
        %2910 = vrot.lane.b32.xlu0 %v2831, 8
        %v2911 = vpop.permute.xlu0 %2910
        %2912 = vrot.lane.b32.xlu0 %v2834, 8
        %v2913 = vpop.permute.xlu0 %2912
        %2914 = vrot.lane.b32.xlu0 %v2838, 8
        %v2915 = vpop.permute.xlu0 %2914
        %2916 = vrot.lane.b32.xlu0 %v2841, 8
        %v2917 = vpop.permute.xlu0 %2916
        %2918 = vrot.lane.b32.xlu0 %v2845, 8
        %v2919 = vpop.permute.xlu0 %2918
        %2920 = vrot.lane.b32.xlu0 %v2848, 8
        %v2921 = vpop.permute.xlu0 %2920
        %2922 = vrot.lane.b32.xlu0 %v2852, 8
        %v2923 = vpop.permute.xlu0 %2922
        %2924 = vrot.lane.b32.xlu0 %v2855, 8
        %v2925 = vpop.permute.xlu0 %2924
        %2926 = vrot.lane.b32.xlu0 %v2859, 8
        %v2927 = vpop.permute.xlu0 %2926
        %2928 = vrot.lane.b32.xlu0 %v2862, 8
        %v2929 = vpop.permute.xlu0 %2928
        %2930 = vrot.lane.b32.xlu0 %v2866, 8
        %v2931 = vpop.permute.xlu0 %2930
        %2932 = vrot.lane.b32.xlu0 %v2869, 8
        %v2933 = vpop.permute.xlu0 %2932
        %vm2966 = vcmask 93248
        %2967 = vst.msk [vmem:[#allocation4] sm:$0xf] %vm2966, %v2871
        %2968 = vst.msk [vmem:[#allocation4 + $0x4] sm:$0xf] %vm2966, %v2873
        %2969 = vst.msk [vmem:[#allocation4 + $0x8] sm:$0xf] %vm2966, %v2875
        %2970 = vst.msk [vmem:[#allocation4 + $0xc] sm:$0xf] %vm2966, %v2877
        %2971 = vst.msk [vmem:[#allocation4 + $0x10] sm:$0xf] %vm2966, %v2879
        %2972 = vst.msk [vmem:[#allocation4 + $0x14] sm:$0xf] %vm2966, %v2881
        %2973 = vst.msk [vmem:[#allocation4 + $0x18] sm:$0xf] %vm2966, %v2883
        %2974 = vst.msk [vmem:[#allocation4 + $0x1c] sm:$0xf] %vm2966, %v2885
        %2975 = vst.msk [vmem:[#allocation4 + $0x20] sm:$0xf] %vm2966, %v2887
        %2976 = vst.msk [vmem:[#allocation4 + $0x24] sm:$0xf] %vm2966, %v2889
        %2977 = vst.msk [vmem:[#allocation4 + $0x28] sm:$0xf] %vm2966, %v2891
        %2978 = vst.msk [vmem:[#allocation4 + $0x2c] sm:$0xf] %vm2966, %v2893
        %2979 = vst.msk [vmem:[#allocation4 + $0x30] sm:$0xf] %vm2966, %v2895
        %2980 = vst.msk [vmem:[#allocation4 + $0x34] sm:$0xf] %vm2966, %v2897
        %2981 = vst.msk [vmem:[#allocation4 + $0x38] sm:$0xf] %vm2966, %v2899
        %2982 = vst.msk [vmem:[#allocation4 + $0x3c] sm:$0xf] %vm2966, %v2901
        %2983 = vst.msk [vmem:[#allocation4 + $0x40] sm:$0xf] %vm2966, %v2903
        %2984 = vst.msk [vmem:[#allocation4 + $0x44] sm:$0xf] %vm2966, %v2905
        %2985 = vst.msk [vmem:[#allocation4 + $0x48] sm:$0xf] %vm2966, %v2907
        %2986 = vst.msk [vmem:[#allocation4 + $0x4c] sm:$0xf] %vm2966, %v2909
        %2987 = vst.msk [vmem:[#allocation4 + $0x50] sm:$0xf] %vm2966, %v2911
        %2988 = vst.msk [vmem:[#allocation4 + $0x54] sm:$0xf] %vm2966, %v2913
        %2989 = vst.msk [vmem:[#allocation4 + $0x58] sm:$0xf] %vm2966, %v2915
        %2990 = vst.msk [vmem:[#allocation4 + $0x5c] sm:$0xf] %vm2966, %v2917
        %2991 = vst.msk [vmem:[#allocation4 + $0x60] sm:$0xf] %vm2966, %v2919
        %2992 = vst.msk [vmem:[#allocation4 + $0x64] sm:$0xf] %vm2966, %v2921
        %2993 = vst.msk [vmem:[#allocation4 + $0x68] sm:$0xf] %vm2966, %v2923
        %2994 = vst.msk [vmem:[#allocation4 + $0x6c] sm:$0xf] %vm2966, %v2925
        %2995 = vst.msk [vmem:[#allocation4 + $0x70] sm:$0xf] %vm2966, %v2927
        %2996 = vst.msk [vmem:[#allocation4 + $0x74] sm:$0xf] %vm2966, %v2929
        %2997 = vst.msk [vmem:[#allocation4 + $0x78] sm:$0xf] %vm2966, %v2931
        %2998 = vst.msk [vmem:[#allocation4 + $0x7c] sm:$0xf] %vm2966, %v2933
        %v2999 = vld [vmem:[#allocation3] sm:$0xe]
        %v3000 = vld [vmem:[#allocation3 + $0x4] sm:$0xf]
        %v3001 = vld [vmem:[#allocation3 + $0x8] sm:$0x1]
        %v3002 = vld [vmem:[#allocation3 + $0xc] sm:$0xe]
        %v3003 = vld [vmem:[#allocation3 + $0x10] sm:$0xf]
        %v3004 = vld [vmem:[#allocation3 + $0x14] sm:$0x1]
        %v3005 = vld [vmem:[#allocation3 + $0x18] sm:$0xe]
        %v3006 = vld [vmem:[#allocation3 + $0x1c] sm:$0xf]
        %v3007 = vld [vmem:[#allocation3 + $0x20] sm:$0x1]
        %v3008 = vld [vmem:[#allocation3 + $0x24] sm:$0xe]
        %v3009 = vld [vmem:[#allocation3 + $0x28] sm:$0xf]
        %v3010 = vld [vmem:[#allocation3 + $0x2c] sm:$0x1]
        %v3011 = vld [vmem:[#allocation3 + $0x30] sm:$0xe]
        %v3012 = vld [vmem:[#allocation3 + $0x34] sm:$0xf]
        %v3013 = vld [vmem:[#allocation3 + $0x38] sm:$0x1]
        %v3014 = vld [vmem:[#allocation3 + $0x3c] sm:$0xe]
        %v3015 = vld [vmem:[#allocation3 + $0x40] sm:$0xf]
        %v3016 = vld [vmem:[#allocation3 + $0x44] sm:$0x1]
        %v3017 = vld [vmem:[#allocation3 + $0x48] sm:$0xe]
        %v3018 = vld [vmem:[#allocation3 + $0x4c] sm:$0xf]
        %v3019 = vld [vmem:[#allocation3 + $0x50] sm:$0x1]
        %v3020 = vld [vmem:[#allocation3 + $0x54] sm:$0xe]
        %v3021 = vld [vmem:[#allocation3 + $0x58] sm:$0xf]
        %v3022 = vld [vmem:[#allocation3 + $0x5c] sm:$0x1]
        %v3023 = vld [vmem:[#allocation3 + $0x60] sm:$0xe]
        %v3024 = vld [vmem:[#allocation3 + $0x64] sm:$0xf]
        %v3025 = vld [vmem:[#allocation3 + $0x68] sm:$0x1]
        %v3026 = vld [vmem:[#allocation3 + $0x6c] sm:$0xe]
        %v3027 = vld [vmem:[#allocation3 + $0x70] sm:$0xf]
        %v3028 = vld [vmem:[#allocation3 + $0x74] sm:$0x1]
        %v3029 = vld [vmem:[#allocation3 + $0x78] sm:$0xe]
        %v3030 = vld [vmem:[#allocation3 + $0x7c] sm:$0xf]
        %v3031 = vld [vmem:[#allocation3 + $0x80] sm:$0x1]
        %v3032 = vld [vmem:[#allocation3 + $0x84] sm:$0xe]
        %v3033 = vld [vmem:[#allocation3 + $0x88] sm:$0xf]
        %v3034 = vld [vmem:[#allocation3 + $0x8c] sm:$0x1]
        %v3035 = vld [vmem:[#allocation3 + $0x90] sm:$0xe]
        %v3036 = vld [vmem:[#allocation3 + $0x94] sm:$0xf]
        %v3037 = vld [vmem:[#allocation3 + $0x98] sm:$0x1]
        %v3038 = vld [vmem:[#allocation3 + $0x9c] sm:$0xe]
        %v3039 = vld [vmem:[#allocation3 + $0xa0] sm:$0xf]
        %v3040 = vld [vmem:[#allocation3 + $0xa4] sm:$0x1]
        %v3041 = vld [vmem:[#allocation3 + $0xa8] sm:$0xe]
        %v3042 = vld [vmem:[#allocation3 + $0xac] sm:$0xf]
        %v3043 = vld [vmem:[#allocation3 + $0xb0] sm:$0x1]
        %v3044 = vld [vmem:[#allocation3 + $0xb4] sm:$0xe]
        %v3045 = vld [vmem:[#allocation3 + $0xb8] sm:$0xf]
        %v3046 = vld [vmem:[#allocation3 + $0xbc] sm:$0x1]
        %v3095 = vrot.slane %v2999, 5
        %v3096 = vrot.slane %v3095, 4
        %v3097 = vrot.slane %v3000, 5
        %v3098 = vsel %vm2757, %v3096, %v3097
        %v3099 = vrot.slane %v3097, 4
        %v3100 = vrot.slane %v3001, 5
        %v3101 = vsel %vm2757, %v3099, %v3100
        %v3102 = vrot.slane %v3002, 5
        %v3103 = vrot.slane %v3102, 4
        %v3104 = vrot.slane %v3003, 5
        %v3105 = vsel %vm2757, %v3103, %v3104
        %v3106 = vrot.slane %v3104, 4
        %v3107 = vrot.slane %v3004, 5
        %v3108 = vsel %vm2757, %v3106, %v3107
        %v3109 = vrot.slane %v3005, 5
        %v3110 = vrot.slane %v3109, 4
        %v3111 = vrot.slane %v3006, 5
        %v3112 = vsel %vm2757, %v3110, %v3111
        %v3113 = vrot.slane %v3111, 4
        %v3114 = vrot.slane %v3007, 5
        %v3115 = vsel %vm2757, %v3113, %v3114
        %v3116 = vrot.slane %v3008, 5
        %v3117 = vrot.slane %v3116, 4
        %v3118 = vrot.slane %v3009, 5
        %v3119 = vsel %vm2757, %v3117, %v3118
        %v3120 = vrot.slane %v3118, 4
        %v3121 = vrot.slane %v3010, 5
        %v3122 = vsel %vm2757, %v3120, %v3121
        %v3123 = vrot.slane %v3011, 5
        %v3124 = vrot.slane %v3123, 4
        %v3125 = vrot.slane %v3012, 5
        %v3126 = vsel %vm2757, %v3124, %v3125
        %v3127 = vrot.slane %v3125, 4
        %v3128 = vrot.slane %v3013, 5
        %v3129 = vsel %vm2757, %v3127, %v3128
        %v3130 = vrot.slane %v3014, 5
        %v3131 = vrot.slane %v3130, 4
        %v3132 = vrot.slane %v3015, 5
        %v3133 = vsel %vm2757, %v3131, %v3132
        %v3134 = vrot.slane %v3132, 4
        %v3135 = vrot.slane %v3016, 5
        %v3136 = vsel %vm2757, %v3134, %v3135
        %v3137 = vrot.slane %v3017, 5
        %v3138 = vrot.slane %v3137, 4
        %v3139 = vrot.slane %v3018, 5
        %v3140 = vsel %vm2757, %v3138, %v3139
        %v3141 = vrot.slane %v3139, 4
        %v3142 = vrot.slane %v3019, 5
        %v3143 = vsel %vm2757, %v3141, %v3142
        %v3144 = vrot.slane %v3020, 5
        %v3145 = vrot.slane %v3144, 4
        %v3146 = vrot.slane %v3021, 5
        %v3147 = vsel %vm2757, %v3145, %v3146
        %v3148 = vrot.slane %v3146, 4
        %v3149 = vrot.slane %v3022, 5
        %v3150 = vsel %vm2757, %v3148, %v3149
        %v3151 = vrot.slane %v3023, 5
        %v3152 = vrot.slane %v3151, 4
        %v3153 = vrot.slane %v3024, 5
        %v3154 = vsel %vm2757, %v3152, %v3153
        %v3155 = vrot.slane %v3153, 4
        %v3156 = vrot.slane %v3025, 5
        %v3157 = vsel %vm2757, %v3155, %v3156
        %v3158 = vrot.slane %v3026, 5
        %v3159 = vrot.slane %v3158, 4
        %v3160 = vrot.slane %v3027, 5
        %v3161 = vsel %vm2757, %v3159, %v3160
        %v3162 = vrot.slane %v3160, 4
        %v3163 = vrot.slane %v3028, 5
        %v3164 = vsel %vm2757, %v3162, %v3163
        %v3165 = vrot.slane %v3029, 5
        %v3166 = vrot.slane %v3165, 4
        %v3167 = vrot.slane %v3030, 5
        %v3168 = vsel %vm2757, %v3166, %v3167
        %v3169 = vrot.slane %v3167, 4
        %v3170 = vrot.slane %v3031, 5
        %v3171 = vsel %vm2757, %v3169, %v3170
        %v3172 = vrot.slane %v3032, 5
        %v3173 = vrot.slane %v3172, 4
        %v3174 = vrot.slane %v3033, 5
        %v3175 = vsel %vm2757, %v3173, %v3174
        %v3176 = vrot.slane %v3174, 4
        %v3177 = vrot.slane %v3034, 5
        %v3178 = vsel %vm2757, %v3176, %v3177
        %v3179 = vrot.slane %v3035, 5
        %v3180 = vrot.slane %v3179, 4
        %v3181 = vrot.slane %v3036, 5
        %v3182 = vsel %vm2757, %v3180, %v3181
        %v3183 = vrot.slane %v3181, 4
        %v3184 = vrot.slane %v3037, 5
        %v3185 = vsel %vm2757, %v3183, %v3184
        %v3186 = vrot.slane %v3038, 5
        %v3187 = vrot.slane %v3186, 4
        %v3188 = vrot.slane %v3039, 5
        %v3189 = vsel %vm2757, %v3187, %v3188
        %v3190 = vrot.slane %v3188, 4
        %v3191 = vrot.slane %v3040, 5
        %v3192 = vsel %vm2757, %v3190, %v3191
        %v3193 = vrot.slane %v3041, 5
        %v3194 = vrot.slane %v3193, 4
        %v3195 = vrot.slane %v3042, 5
        %v3196 = vsel %vm2757, %v3194, %v3195
        %v3197 = vrot.slane %v3195, 4
        %v3198 = vrot.slane %v3043, 5
        %v3199 = vsel %vm2757, %v3197, %v3198
        %v3200 = vrot.slane %v3044, 5
        %v3201 = vrot.slane %v3200, 4
        %v3202 = vrot.slane %v3045, 5
        %v3203 = vsel %vm2757, %v3201, %v3202
        %v3204 = vrot.slane %v3202, 4
        %v3205 = vrot.slane %v3046, 5
        %v3206 = vsel %vm2757, %v3204, %v3205
        %3207 = vrot.lane.b32.xlu0 %v3098, 64
        %v3208 = vpop.permute.xlu0 %3207
        %3209 = vrot.lane.b32.xlu0 %v3101, 64
        %v3210 = vpop.permute.xlu0 %3209
        %3211 = vrot.lane.b32.xlu0 %v3105, 64
        %v3212 = vpop.permute.xlu0 %3211
        %3213 = vrot.lane.b32.xlu0 %v3108, 64
        %v3214 = vpop.permute.xlu0 %3213
        %3215 = vrot.lane.b32.xlu0 %v3112, 64
        %v3216 = vpop.permute.xlu0 %3215
        %3217 = vrot.lane.b32.xlu0 %v3115, 64
        %v3218 = vpop.permute.xlu0 %3217
        %3219 = vrot.lane.b32.xlu0 %v3119, 64
        %v3220 = vpop.permute.xlu0 %3219
        %3221 = vrot.lane.b32.xlu0 %v3122, 64
        %v3222 = vpop.permute.xlu0 %3221
        %3223 = vrot.lane.b32.xlu0 %v3126, 64
        %v3224 = vpop.permute.xlu0 %3223
        %3225 = vrot.lane.b32.xlu0 %v3129, 64
        %v3226 = vpop.permute.xlu0 %3225
        %3227 = vrot.lane.b32.xlu0 %v3133, 64
        %v3228 = vpop.permute.xlu0 %3227
        %3229 = vrot.lane.b32.xlu0 %v3136, 64
        %v3230 = vpop.permute.xlu0 %3229
        %3231 = vrot.lane.b32.xlu0 %v3140, 64
        %v3232 = vpop.permute.xlu0 %3231
        %3233 = vrot.lane.b32.xlu0 %v3143, 64
        %v3234 = vpop.permute.xlu0 %3233
        %3235 = vrot.lane.b32.xlu0 %v3147, 64
        %v3236 = vpop.permute.xlu0 %3235
        %3237 = vrot.lane.b32.xlu0 %v3150, 64
        %v3238 = vpop.permute.xlu0 %3237
        %3239 = vrot.lane.b32.xlu0 %v3154, 64
        %v3240 = vpop.permute.xlu0 %3239
        %3241 = vrot.lane.b32.xlu0 %v3157, 64
        %v3242 = vpop.permute.xlu0 %3241
        %3243 = vrot.lane.b32.xlu0 %v3161, 64
        %v3244 = vpop.permute.xlu0 %3243
        %3245 = vrot.lane.b32.xlu0 %v3164, 64
        %v3246 = vpop.permute.xlu0 %3245
        %3247 = vrot.lane.b32.xlu0 %v3168, 64
        %v3248 = vpop.permute.xlu0 %3247
        %3249 = vrot.lane.b32.xlu0 %v3171, 64
        %v3250 = vpop.permute.xlu0 %3249
        %3251 = vrot.lane.b32.xlu0 %v3175, 64
        %v3252 = vpop.permute.xlu0 %3251
        %3253 = vrot.lane.b32.xlu0 %v3178, 64
        %v3254 = vpop.permute.xlu0 %3253
        %3255 = vrot.lane.b32.xlu0 %v3182, 64
        %v3256 = vpop.permute.xlu0 %3255
        %3257 = vrot.lane.b32.xlu0 %v3185, 64
        %v3258 = vpop.permute.xlu0 %3257
        %3259 = vrot.lane.b32.xlu0 %v3189, 64
        %v3260 = vpop.permute.xlu0 %3259
        %3261 = vrot.lane.b32.xlu0 %v3192, 64
        %v3262 = vpop.permute.xlu0 %3261
        %3263 = vrot.lane.b32.xlu0 %v3196, 64
        %v3264 = vpop.permute.xlu0 %3263
        %3265 = vrot.lane.b32.xlu0 %v3199, 64
        %v3266 = vpop.permute.xlu0 %3265
        %3267 = vrot.lane.b32.xlu0 %v3203, 64
        %v3268 = vpop.permute.xlu0 %3267
        %3269 = vrot.lane.b32.xlu0 %v3206, 64
        %v3270 = vpop.permute.xlu0 %3269
        %vm3303 = vcmask 781824
        %3304 = vst.msk [vmem:[#allocation5] sm:$0xf] %vm3303, %v3208
        %3305 = vst.msk [vmem:[#allocation5 + $0xc] sm:$0xf] %vm3303, %v3210
        %3306 = vst.msk [vmem:[#allocation5 + $0x18] sm:$0xf] %vm3303, %v3212
        %3307 = vst.msk [vmem:[#allocation5 + $0x24] sm:$0xf] %vm3303, %v3214
        %3308 = vst.msk [vmem:[#allocation5 + $0x30] sm:$0xf] %vm3303, %v3216
        %3309 = vst.msk [vmem:[#allocation5 + $0x3c] sm:$0xf] %vm3303, %v3218
        %3310 = vst.msk [vmem:[#allocation5 + $0x48] sm:$0xf] %vm3303, %v3220
        %3311 = vst.msk [vmem:[#allocation5 + $0x54] sm:$0xf] %vm3303, %v3222
        %3312 = vst.msk [vmem:[#allocation5 + $0x60] sm:$0xf] %vm3303, %v3224
        %3313 = vst.msk [vmem:[#allocation5 + $0x6c] sm:$0xf] %vm3303, %v3226
        %3314 = vst.msk [vmem:[#allocation5 + $0x78] sm:$0xf] %vm3303, %v3228
        %3315 = vst.msk [vmem:[#allocation5 + $0x84] sm:$0xf] %vm3303, %v3230
        %3316 = vst.msk [vmem:[#allocation5 + $0x90] sm:$0xf] %vm3303, %v3232
        %3317 = vst.msk [vmem:[#allocation5 + $0x9c] sm:$0xf] %vm3303, %v3234
        %3318 = vst.msk [vmem:[#allocation5 + $0xa8] sm:$0xf] %vm3303, %v3236
        %3319 = vst.msk [vmem:[#allocation5 + $0xb4] sm:$0xf] %vm3303, %v3238
        %3320 = vst.msk [vmem:[#allocation5 + $0xc0] sm:$0xf] %vm3303, %v3240
        %3321 = vst.msk [vmem:[#allocation5 + $0xcc] sm:$0xf] %vm3303, %v3242
        %3322 = vst.msk [vmem:[#allocation5 + $0xd8] sm:$0xf] %vm3303, %v3244
        %3323 = vst.msk [vmem:[#allocation5 + $0xe4] sm:$0xf] %vm3303, %v3246
        %3324 = vst.msk [vmem:[#allocation5 + $0xf0] sm:$0xf] %vm3303, %v3248
        %3325 = vst.msk [vmem:[#allocation5 + $0xfc] sm:$0xf] %vm3303, %v3250
        %3326 = vst.msk [vmem:[#allocation5 + $0x108] sm:$0xf] %vm3303, %v3252
        %3327 = vst.msk [vmem:[#allocation5 + $0x114] sm:$0xf] %vm3303, %v3254
        %3328 = vst.msk [vmem:[#allocation5 + $0x120] sm:$0xf] %vm3303, %v3256
        %3329 = vst.msk [vmem:[#allocation5 + $0x12c] sm:$0xf] %vm3303, %v3258
        %3330 = vst.msk [vmem:[#allocation5 + $0x138] sm:$0xf] %vm3303, %v3260
        %3331 = vst.msk [vmem:[#allocation5 + $0x144] sm:$0xf] %vm3303, %v3262
        %3332 = vst.msk [vmem:[#allocation5 + $0x150] sm:$0xf] %vm3303, %v3264
        %3333 = vst.msk [vmem:[#allocation5 + $0x15c] sm:$0xf] %vm3303, %v3266
        %3334 = vst.msk [vmem:[#allocation5 + $0x168] sm:$0xf] %vm3303, %v3268
        %3335 = vst.msk [vmem:[#allocation5 + $0x174] sm:$0xf] %vm3303, %v3270
        %v3336 = vld [vmem:[%s787] sm:$0xf]
        %v3337 = vld [vmem:[%s787 + $0x4] sm:$0xf]
        %v3338 = vld [vmem:[%s787 + $0xc] sm:$0xf]
        %v3339 = vld [vmem:[%s787 + $0x10] sm:$0xf]
        %v3340 = vld [vmem:[%s787 + $0x18] sm:$0xf]
        %v3341 = vld [vmem:[%s787 + $0x1c] sm:$0xf]
        %v3342 = vld [vmem:[%s787 + $0x24] sm:$0xf]
        %v3343 = vld [vmem:[%s787 + $0x28] sm:$0xf]
        %v3344 = vld [vmem:[%s787 + $0x30] sm:$0xf]
        %v3345 = vld [vmem:[%s787 + $0x34] sm:$0xf]
        %v3346 = vld [vmem:[%s787 + $0x3c] sm:$0xf]
        %v3347 = vld [vmem:[%s787 + $0x40] sm:$0xf]
        %v3348 = vld [vmem:[%s787 + $0x48] sm:$0xf]
        %v3349 = vld [vmem:[%s787 + $0x4c] sm:$0xf]
        %v3350 = vld [vmem:[%s787 + $0x54] sm:$0xf]
        %v3351 = vld [vmem:[%s787 + $0x58] sm:$0xf]
        %v3352 = vld [vmem:[%s787 + $0x60] sm:$0xf]
        %v3353 = vld [vmem:[%s787 + $0x64] sm:$0xf]
        %v3354 = vld [vmem:[%s787 + $0x6c] sm:$0xf]
        %v3355 = vld [vmem:[%s787 + $0x70] sm:$0xf]
        %v3356 = vld [vmem:[%s787 + $0x78] sm:$0xf]
        %v3357 = vld [vmem:[%s787 + $0x7c] sm:$0xf]
        %v3358 = vld [vmem:[%s787 + $0x84] sm:$0xf]
        %v3359 = vld [vmem:[%s787 + $0x88] sm:$0xf]
        %v3360 = vld [vmem:[%s787 + $0x90] sm:$0xf]
        %v3361 = vld [vmem:[%s787 + $0x94] sm:$0xf]
        %v3362 = vld [vmem:[%s787 + $0x9c] sm:$0xf]
        %v3363 = vld [vmem:[%s787 + $0xa0] sm:$0xf]
        %v3364 = vld [vmem:[%s787 + $0xa8] sm:$0xf]
        %v3365 = vld [vmem:[%s787 + $0xac] sm:$0xf]
        %v3366 = vld [vmem:[%s787 + $0xb4] sm:$0xf]
        %v3367 = vld [vmem:[%s787 + $0xb8] sm:$0xf]
        %3400 = vrot.lane.b32.xlu0 %v3336, 12
        %v3401 = vpop.permute.xlu0 %3400
        %3402 = vrot.lane.b32.xlu0 %v3337, 12
        %v3403 = vpop.permute.xlu0 %3402
        %3404 = vrot.lane.b32.xlu0 %v3338, 12
        %v3405 = vpop.permute.xlu0 %3404
        %3406 = vrot.lane.b32.xlu0 %v3339, 12
        %v3407 = vpop.permute.xlu0 %3406
        %3408 = vrot.lane.b32.xlu0 %v3340, 12
        %v3409 = vpop.permute.xlu0 %3408
        %3410 = vrot.lane.b32.xlu0 %v3341, 12
        %v3411 = vpop.permute.xlu0 %3410
        %3412 = vrot.lane.b32.xlu0 %v3342, 12
        %v3413 = vpop.permute.xlu0 %3412
        %3414 = vrot.lane.b32.xlu0 %v3343, 12
        %v3415 = vpop.permute.xlu0 %3414
        %3416 = vrot.lane.b32.xlu0 %v3344, 12
        %v3417 = vpop.permute.xlu0 %3416
        %3418 = vrot.lane.b32.xlu0 %v3345, 12
        %v3419 = vpop.permute.xlu0 %3418
        %3420 = vrot.lane.b32.xlu0 %v3346, 12
        %v3421 = vpop.permute.xlu0 %3420
        %3422 = vrot.lane.b32.xlu0 %v3347, 12
        %v3423 = vpop.permute.xlu0 %3422
        %3424 = vrot.lane.b32.xlu0 %v3348, 12
        %v3425 = vpop.permute.xlu0 %3424
        %3426 = vrot.lane.b32.xlu0 %v3349, 12
        %v3427 = vpop.permute.xlu0 %3426
        %3428 = vrot.lane.b32.xlu0 %v3350, 12
        %v3429 = vpop.permute.xlu0 %3428
        %3430 = vrot.lane.b32.xlu0 %v3351, 12
        %v3431 = vpop.permute.xlu0 %3430
        %3432 = vrot.lane.b32.xlu0 %v3352, 12
        %v3433 = vpop.permute.xlu0 %3432
        %3434 = vrot.lane.b32.xlu0 %v3353, 12
        %v3435 = vpop.permute.xlu0 %3434
        %3436 = vrot.lane.b32.xlu0 %v3354, 12
        %v3437 = vpop.permute.xlu0 %3436
        %3438 = vrot.lane.b32.xlu0 %v3355, 12
        %v3439 = vpop.permute.xlu0 %3438
        %3440 = vrot.lane.b32.xlu0 %v3356, 12
        %v3441 = vpop.permute.xlu0 %3440
        %3442 = vrot.lane.b32.xlu0 %v3357, 12
        %v3443 = vpop.permute.xlu0 %3442
        %3444 = vrot.lane.b32.xlu0 %v3358, 12
        %v3445 = vpop.permute.xlu0 %3444
        %3446 = vrot.lane.b32.xlu0 %v3359, 12
        %v3447 = vpop.permute.xlu0 %3446
        %3448 = vrot.lane.b32.xlu0 %v3360, 12
        %v3449 = vpop.permute.xlu0 %3448
        %3450 = vrot.lane.b32.xlu0 %v3361, 12
        %v3451 = vpop.permute.xlu0 %3450
        %3452 = vrot.lane.b32.xlu0 %v3362, 12
        %v3453 = vpop.permute.xlu0 %3452
        %3454 = vrot.lane.b32.xlu0 %v3363, 12
        %v3455 = vpop.permute.xlu0 %3454
        %3456 = vrot.lane.b32.xlu0 %v3364, 12
        %v3457 = vpop.permute.xlu0 %3456
        %3458 = vrot.lane.b32.xlu0 %v3365, 12
        %v3459 = vpop.permute.xlu0 %3458
        %3460 = vrot.lane.b32.xlu0 %v3366, 12
        %v3461 = vpop.permute.xlu0 %3460
        %3462 = vrot.lane.b32.xlu0 %v3367, 12
        %v3463 = vpop.permute.xlu0 %3462
        %vm3496 = vcmask 126048
        %3497 = vst.msk [vmem:[#allocation4] sm:$0xf] %vm3496, %v3401
        %3498 = vst.msk [vmem:[#allocation4 + $0x4] sm:$0xf] %vm3496, %v3403
        %3499 = vst.msk [vmem:[#allocation4 + $0x8] sm:$0xf] %vm3496, %v3405
        %3500 = vst.msk [vmem:[#allocation4 + $0xc] sm:$0xf] %vm3496, %v3407
        %3501 = vst.msk [vmem:[#allocation4 + $0x10] sm:$0xf] %vm3496, %v3409
        %3502 = vst.msk [vmem:[#allocation4 + $0x14] sm:$0xf] %vm3496, %v3411
        %3503 = vst.msk [vmem:[#allocation4 + $0x18] sm:$0xf] %vm3496, %v3413
        %3504 = vst.msk [vmem:[#allocation4 + $0x1c] sm:$0xf] %vm3496, %v3415
        %3505 = vst.msk [vmem:[#allocation4 + $0x20] sm:$0xf] %vm3496, %v3417
        %3506 = vst.msk [vmem:[#allocation4 + $0x24] sm:$0xf] %vm3496, %v3419
        %3507 = vst.msk [vmem:[#allocation4 + $0x28] sm:$0xf] %vm3496, %v3421
        %3508 = vst.msk [vmem:[#allocation4 + $0x2c] sm:$0xf] %vm3496, %v3423
        %3509 = vst.msk [vmem:[#allocation4 + $0x30] sm:$0xf] %vm3496, %v3425
        %3510 = vst.msk [vmem:[#allocation4 + $0x34] sm:$0xf] %vm3496, %v3427
        %3511 = vst.msk [vmem:[#allocation4 + $0x38] sm:$0xf] %vm3496, %v3429
        %3512 = vst.msk [vmem:[#allocation4 + $0x3c] sm:$0xf] %vm3496, %v3431
        %3513 = vst.msk [vmem:[#allocation4 + $0x40] sm:$0xf] %vm3496, %v3433
        %3514 = vst.msk [vmem:[#allocation4 + $0x44] sm:$0xf] %vm3496, %v3435
        %3515 = vst.msk [vmem:[#allocation4 + $0x48] sm:$0xf] %vm3496, %v3437
        %3516 = vst.msk [vmem:[#allocation4 + $0x4c] sm:$0xf] %vm3496, %v3439
        %3517 = vst.msk [vmem:[#allocation4 + $0x50] sm:$0xf] %vm3496, %v3441
        %3518 = vst.msk [vmem:[#allocation4 + $0x54] sm:$0xf] %vm3496, %v3443
        %3519 = vst.msk [vmem:[#allocation4 + $0x58] sm:$0xf] %vm3496, %v3445
        %3520 = vst.msk [vmem:[#allocation4 + $0x5c] sm:$0xf] %vm3496, %v3447
        %3521 = vst.msk [vmem:[#allocation4 + $0x60] sm:$0xf] %vm3496, %v3449
        %3522 = vst.msk [vmem:[#allocation4 + $0x64] sm:$0xf] %vm3496, %v3451
        %3523 = vst.msk [vmem:[#allocation4 + $0x68] sm:$0xf] %vm3496, %v3453
        %3524 = vst.msk [vmem:[#allocation4 + $0x6c] sm:$0xf] %vm3496, %v3455
        %3525 = vst.msk [vmem:[#allocation4 + $0x70] sm:$0xf] %vm3496, %v3457
        %3526 = vst.msk [vmem:[#allocation4 + $0x74] sm:$0xf] %vm3496, %v3459
        %3527 = vst.msk [vmem:[#allocation4 + $0x78] sm:$0xf] %vm3496, %v3461
        %3528 = vst.msk [vmem:[#allocation4 + $0x7c] sm:$0xf] %vm3496, %v3463
        %v3529 = vld [vmem:[%s1289] sm:$0xf]
        %v3530 = vld [vmem:[%s1289 + $0x4] sm:$0xf]
        %v3531 = vld [vmem:[%s1289 + $0xc] sm:$0xf]
        %v3532 = vld [vmem:[%s1289 + $0x10] sm:$0xf]
        %v3533 = vld [vmem:[%s1289 + $0x18] sm:$0xf]
        %v3534 = vld [vmem:[%s1289 + $0x1c] sm:$0xf]
        %v3535 = vld [vmem:[%s1289 + $0x24] sm:$0xf]
        %v3536 = vld [vmem:[%s1289 + $0x28] sm:$0xf]
        %v3537 = vld [vmem:[%s1289 + $0x30] sm:$0xf]
        %v3538 = vld [vmem:[%s1289 + $0x34] sm:$0xf]
        %v3539 = vld [vmem:[%s1289 + $0x3c] sm:$0xf]
        %v3540 = vld [vmem:[%s1289 + $0x40] sm:$0xf]
        %v3541 = vld [vmem:[%s1289 + $0x48] sm:$0xf]
        %v3542 = vld [vmem:[%s1289 + $0x4c] sm:$0xf]
        %v3543 = vld [vmem:[%s1289 + $0x54] sm:$0xf]
        %v3544 = vld [vmem:[%s1289 + $0x58] sm:$0xf]
        %v3545 = vld [vmem:[%s1289 + $0x60] sm:$0xf]
        %v3546 = vld [vmem:[%s1289 + $0x64] sm:$0xf]
        %v3547 = vld [vmem:[%s1289 + $0x6c] sm:$0xf]
        %v3548 = vld [vmem:[%s1289 + $0x70] sm:$0xf]
        %v3549 = vld [vmem:[%s1289 + $0x78] sm:$0xf]
        %v3550 = vld [vmem:[%s1289 + $0x7c] sm:$0xf]
        %v3551 = vld [vmem:[%s1289 + $0x84] sm:$0xf]
        %v3552 = vld [vmem:[%s1289 + $0x88] sm:$0xf]
        %v3553 = vld [vmem:[%s1289 + $0x90] sm:$0xf]
        %v3554 = vld [vmem:[%s1289 + $0x94] sm:$0xf]
        %v3555 = vld [vmem:[%s1289 + $0x9c] sm:$0xf]
        %v3556 = vld [vmem:[%s1289 + $0xa0] sm:$0xf]
        %v3557 = vld [vmem:[%s1289 + $0xa8] sm:$0xf]
        %v3558 = vld [vmem:[%s1289 + $0xac] sm:$0xf]
        %v3559 = vld [vmem:[%s1289 + $0xb4] sm:$0xf]
        %v3560 = vld [vmem:[%s1289 + $0xb8] sm:$0xf]
        %3593 = vrot.lane.b32.xlu0 %v3529, 96
        %v3594 = vpop.permute.xlu0 %3593
        %3595 = vrot.lane.b32.xlu0 %v3530, 96
        %v3596 = vpop.permute.xlu0 %3595
        %3597 = vrot.lane.b32.xlu0 %v3531, 96
        %v3598 = vpop.permute.xlu0 %3597
        %3599 = vrot.lane.b32.xlu0 %v3532, 96
        %v3600 = vpop.permute.xlu0 %3599
        %3601 = vrot.lane.b32.xlu0 %v3533, 96
        %v3602 = vpop.permute.xlu0 %3601
        %3603 = vrot.lane.b32.xlu0 %v3534, 96
        %v3604 = vpop.permute.xlu0 %3603
        %3605 = vrot.lane.b32.xlu0 %v3535, 96
        %v3606 = vpop.permute.xlu0 %3605
        %3607 = vrot.lane.b32.xlu0 %v3536, 96
        %v3608 = vpop.permute.xlu0 %3607
        %3609 = vrot.lane.b32.xlu0 %v3537, 96
        %v3610 = vpop.permute.xlu0 %3609
        %3611 = vrot.lane.b32.xlu0 %v3538, 96
        %v3612 = vpop.permute.xlu0 %3611
        %3613 = vrot.lane.b32.xlu0 %v3539, 96
        %v3614 = vpop.permute.xlu0 %3613
        %3615 = vrot.lane.b32.xlu0 %v3540, 96
        %v3616 = vpop.permute.xlu0 %3615
        %3617 = vrot.lane.b32.xlu0 %v3541, 96
        %v3618 = vpop.permute.xlu0 %3617
        %3619 = vrot.lane.b32.xlu0 %v3542, 96
        %v3620 = vpop.permute.xlu0 %3619
        %3621 = vrot.lane.b32.xlu0 %v3543, 96
        %v3622 = vpop.permute.xlu0 %3621
        %3623 = vrot.lane.b32.xlu0 %v3544, 96
        %v3624 = vpop.permute.xlu0 %3623
        %3625 = vrot.lane.b32.xlu0 %v3545, 96
        %v3626 = vpop.permute.xlu0 %3625
        %3627 = vrot.lane.b32.xlu0 %v3546, 96
        %v3628 = vpop.permute.xlu0 %3627
        %3629 = vrot.lane.b32.xlu0 %v3547, 96
        %v3630 = vpop.permute.xlu0 %3629
        %3631 = vrot.lane.b32.xlu0 %v3548, 96
        %v3632 = vpop.permute.xlu0 %3631
        %3633 = vrot.lane.b32.xlu0 %v3549, 96
        %v3634 = vpop.permute.xlu0 %3633
        %3635 = vrot.lane.b32.xlu0 %v3550, 96
        %v3636 = vpop.permute.xlu0 %3635
        %3637 = vrot.lane.b32.xlu0 %v3551, 96
        %v3638 = vpop.permute.xlu0 %3637
        %3639 = vrot.lane.b32.xlu0 %v3552, 96
        %v3640 = vpop.permute.xlu0 %3639
        %3641 = vrot.lane.b32.xlu0 %v3553, 96
        %v3642 = vpop.permute.xlu0 %3641
        %3643 = vrot.lane.b32.xlu0 %v3554, 96
        %v3644 = vpop.permute.xlu0 %3643
        %3645 = vrot.lane.b32.xlu0 %v3555, 96
        %v3646 = vpop.permute.xlu0 %3645
        %3647 = vrot.lane.b32.xlu0 %v3556, 96
        %v3648 = vpop.permute.xlu0 %3647
        %3649 = vrot.lane.b32.xlu0 %v3557, 96
        %v3650 = vpop.permute.xlu0 %3649
        %3651 = vrot.lane.b32.xlu0 %v3558, 96
        %v3652 = vpop.permute.xlu0 %3651
        %3653 = vrot.lane.b32.xlu0 %v3559, 96
        %v3654 = vpop.permute.xlu0 %3653
        %3655 = vrot.lane.b32.xlu0 %v3560, 96
        %v3656 = vpop.permute.xlu0 %3655
        %vm3689 = vcmask 1044224
        %3690 = vst.msk [vmem:[#allocation5] sm:$0xf] %vm3689, %v3594
        %3691 = vst.msk [vmem:[#allocation5 + $0xc] sm:$0xf] %vm3689, %v3596
        %3692 = vst.msk [vmem:[#allocation5 + $0x18] sm:$0xf] %vm3689, %v3598
        %3693 = vst.msk [vmem:[#allocation5 + $0x24] sm:$0xf] %vm3689, %v3600
        %3694 = vst.msk [vmem:[#allocation5 + $0x30] sm:$0xf] %vm3689, %v3602
        %3695 = vst.msk [vmem:[#allocation5 + $0x3c] sm:$0xf] %vm3689, %v3604
        %3696 = vst.msk [vmem:[#allocation5 + $0x48] sm:$0xf] %vm3689, %v3606
        %3697 = vst.msk [vmem:[#allocation5 + $0x54] sm:$0xf] %vm3689, %v3608
        %3698 = vst.msk [vmem:[#allocation5 + $0x60] sm:$0xf] %vm3689, %v3610
        %3699 = vst.msk [vmem:[#allocation5 + $0x6c] sm:$0xf] %vm3689, %v3612
        %3700 = vst.msk [vmem:[#allocation5 + $0x78] sm:$0xf] %vm3689, %v3614
        %3701 = vst.msk [vmem:[#allocation5 + $0x84] sm:$0xf] %vm3689, %v3616
        %3702 = vst.msk [vmem:[#allocation5 + $0x90] sm:$0xf] %vm3689, %v3618
        %3703 = vst.msk [vmem:[#allocation5 + $0x9c] sm:$0xf] %vm3689, %v3620
        %3704 = vst.msk [vmem:[#allocation5 + $0xa8] sm:$0xf] %vm3689, %v3622
        %3705 = vst.msk [vmem:[#allocation5 + $0xb4] sm:$0xf] %vm3689, %v3624
        %3706 = vst.msk [vmem:[#allocation5 + $0xc0] sm:$0xf] %vm3689, %v3626
        %3707 = vst.msk [vmem:[#allocation5 + $0xcc] sm:$0xf] %vm3689, %v3628
        %3708 = vst.msk [vmem:[#allocation5 + $0xd8] sm:$0xf] %vm3689, %v3630
        %3709 = vst.msk [vmem:[#allocation5 + $0xe4] sm:$0xf] %vm3689, %v3632
        %3710 = vst.msk [vmem:[#allocation5 + $0xf0] sm:$0xf] %vm3689, %v3634
        %3711 = vst.msk [vmem:[#allocation5 + $0xfc] sm:$0xf] %vm3689, %v3636
        %3712 = vst.msk [vmem:[#allocation5 + $0x108] sm:$0xf] %vm3689, %v3638
        %3713 = vst.msk [vmem:[#allocation5 + $0x114] sm:$0xf] %vm3689, %v3640
        %3714 = vst.msk [vmem:[#allocation5 + $0x120] sm:$0xf] %vm3689, %v3642
        %3715 = vst.msk [vmem:[#allocation5 + $0x12c] sm:$0xf] %vm3689, %v3644
        %3716 = vst.msk [vmem:[#allocation5 + $0x138] sm:$0xf] %vm3689, %v3646
        %3717 = vst.msk [vmem:[#allocation5 + $0x144] sm:$0xf] %vm3689, %v3648
        %3718 = vst.msk [vmem:[#allocation5 + $0x150] sm:$0xf] %vm3689, %v3650
        %3719 = vst.msk [vmem:[#allocation5 + $0x15c] sm:$0xf] %vm3689, %v3652
        %3720 = vst.msk [vmem:[#allocation5 + $0x168] sm:$0xf] %vm3689, %v3654
        %3721 = vst.msk [vmem:[#allocation5 + $0x174] sm:$0xf] %vm3689, %v3656
        %v3722 = vld [vmem:[%s787] sm:$0xf]
        %v3723 = vld [vmem:[%s787 + $0x4] sm:$0xf]
        %v3724 = vld [vmem:[%s787 + $0x8] sm:$0x1]
        %v3725 = vld [vmem:[%s787 + $0xc] sm:$0xf]
        %v3726 = vld [vmem:[%s787 + $0x10] sm:$0xf]
        %v3727 = vld [vmem:[%s787 + $0x14] sm:$0x1]
        %v3728 = vld [vmem:[%s787 + $0x18] sm:$0xf]
        %v3729 = vld [vmem:[%s787 + $0x1c] sm:$0xf]
        %v3730 = vld [vmem:[%s787 + $0x20] sm:$0x1]
        %v3731 = vld [vmem:[%s787 + $0x24] sm:$0xf]
        %v3732 = vld [vmem:[%s787 + $0x28] sm:$0xf]
        %v3733 = vld [vmem:[%s787 + $0x2c] sm:$0x1]
        %v3734 = vld [vmem:[%s787 + $0x30] sm:$0xf]
        %v3735 = vld [vmem:[%s787 + $0x34] sm:$0xf]
        %v3736 = vld [vmem:[%s787 + $0x38] sm:$0x1]
        %v3737 = vld [vmem:[%s787 + $0x3c] sm:$0xf]
        %v3738 = vld [vmem:[%s787 + $0x40] sm:$0xf]
        %v3739 = vld [vmem:[%s787 + $0x44] sm:$0x1]
        %v3740 = vld [vmem:[%s787 + $0x48] sm:$0xf]
        %v3741 = vld [vmem:[%s787 + $0x4c] sm:$0xf]
        %v3742 = vld [vmem:[%s787 + $0x50] sm:$0x1]
        %v3743 = vld [vmem:[%s787 + $0x54] sm:$0xf]
        %v3744 = vld [vmem:[%s787 + $0x58] sm:$0xf]
        %v3745 = vld [vmem:[%s787 + $0x5c] sm:$0x1]
        %v3746 = vld [vmem:[%s787 + $0x60] sm:$0xf]
        %v3747 = vld [vmem:[%s787 + $0x64] sm:$0xf]
        %v3748 = vld [vmem:[%s787 + $0x68] sm:$0x1]
        %v3749 = vld [vmem:[%s787 + $0x6c] sm:$0xf]
        %v3750 = vld [vmem:[%s787 + $0x70] sm:$0xf]
        %v3751 = vld [vmem:[%s787 + $0x74] sm:$0x1]
        %v3752 = vld [vmem:[%s787 + $0x78] sm:$0xf]
        %v3753 = vld [vmem:[%s787 + $0x7c] sm:$0xf]
        %v3754 = vld [vmem:[%s787 + $0x80] sm:$0x1]
        %v3755 = vld [vmem:[%s787 + $0x84] sm:$0xf]
        %v3756 = vld [vmem:[%s787 + $0x88] sm:$0xf]
        %v3757 = vld [vmem:[%s787 + $0x8c] sm:$0x1]
        %v3758 = vld [vmem:[%s787 + $0x90] sm:$0xf]
        %v3759 = vld [vmem:[%s787 + $0x94] sm:$0xf]
        %v3760 = vld [vmem:[%s787 + $0x98] sm:$0x1]
        %v3761 = vld [vmem:[%s787 + $0x9c] sm:$0xf]
        %v3762 = vld [vmem:[%s787 + $0xa0] sm:$0xf]
        %v3763 = vld [vmem:[%s787 + $0xa4] sm:$0x1]
        %v3764 = vld [vmem:[%s787 + $0xa8] sm:$0xf]
        %v3765 = vld [vmem:[%s787 + $0xac] sm:$0xf]
        %v3766 = vld [vmem:[%s787 + $0xb0] sm:$0x1]
        %v3767 = vld [vmem:[%s787 + $0xb4] sm:$0xf]
        %v3768 = vld [vmem:[%s787 + $0xb8] sm:$0xf]
        %v3769 = vld [vmem:[%s787 + $0xbc] sm:$0x1]
        %v3771 = vshrl.u32 %v3722, 16
        %v3773 = vrot.slane %v3771, 4
        %v3774 = vshll.u32 %v3722, 16
        %v3776 = vrot.slane %v3774, 5
        %v3777 = vor.u32 %v3773, %v3776
        %v3778 = vrot.slane %v3777, 4
        %v3780 = vshll.u32 %v3723, 16
        %v3782 = vrot.slane %v3780, 5
        %v3783 = vsel %vm1584, %v3778, %v3782
        %v3784 = vshrl.u32 %v3723, 16
        %v3786 = vrot.slane %v3784, 4
        %v3787 = vor.u32 %v3786, %v3782
        %v3788 = vrot.slane %v3787, 4
        %v3790 = vshll.u32 %v3724, 16
        %v3792 = vrot.slane %v3790, 5
        %v3793 = vsel %vm1584, %v3788, %v3792
        %v3795 = vshrl.u32 %v3725, 16
        %v3797 = vrot.slane %v3795, 4
        %v3798 = vshll.u32 %v3725, 16
        %v3800 = vrot.slane %v3798, 5
        %v3801 = vor.u32 %v3797, %v3800
        %v3802 = vrot.slane %v3801, 4
        %v3804 = vshll.u32 %v3726, 16
        %v3806 = vrot.slane %v3804, 5
        %v3807 = vsel %vm1584, %v3802, %v3806
        %v3808 = vshrl.u32 %v3726, 16
        %v3810 = vrot.slane %v3808, 4
        %v3811 = vor.u32 %v3810, %v3806
        %v3812 = vrot.slane %v3811, 4
        %v3814 = vshll.u32 %v3727, 16
        %v3816 = vrot.slane %v3814, 5
        %v3817 = vsel %vm1584, %v3812, %v3816
        %v3819 = vshrl.u32 %v3728, 16
        %v3821 = vrot.slane %v3819, 4
        %v3822 = vshll.u32 %v3728, 16
        %v3824 = vrot.slane %v3822, 5
        %v3825 = vor.u32 %v3821, %v3824
        %v3826 = vrot.slane %v3825, 4
        %v3828 = vshll.u32 %v3729, 16
        %v3830 = vrot.slane %v3828, 5
        %v3831 = vsel %vm1584, %v3826, %v3830
        %v3832 = vshrl.u32 %v3729, 16
        %v3834 = vrot.slane %v3832, 4
        %v3835 = vor.u32 %v3834, %v3830
        %v3836 = vrot.slane %v3835, 4
        %v3838 = vshll.u32 %v3730, 16
        %v3840 = vrot.slane %v3838, 5
        %v3841 = vsel %vm1584, %v3836, %v3840
        %v3843 = vshrl.u32 %v3731, 16
        %v3845 = vrot.slane %v3843, 4
        %v3846 = vshll.u32 %v3731, 16
        %v3848 = vrot.slane %v3846, 5
        %v3849 = vor.u32 %v3845, %v3848
        %v3850 = vrot.slane %v3849, 4
        %v3852 = vshll.u32 %v3732, 16
        %v3854 = vrot.slane %v3852, 5
        %v3855 = vsel %vm1584, %v3850, %v3854
        %v3856 = vshrl.u32 %v3732, 16
        %v3858 = vrot.slane %v3856, 4
        %v3859 = vor.u32 %v3858, %v3854
        %v3860 = vrot.slane %v3859, 4
        %v3862 = vshll.u32 %v3733, 16
        %v3864 = vrot.slane %v3862, 5
        %v3865 = vsel %vm1584, %v3860, %v3864
        %v3867 = vshrl.u32 %v3734, 16
        %v3869 = vrot.slane %v3867, 4
        %v3870 = vshll.u32 %v3734, 16
        %v3872 = vrot.slane %v3870, 5
        %v3873 = vor.u32 %v3869, %v3872
        %v3874 = vrot.slane %v3873, 4
        %v3876 = vshll.u32 %v3735, 16
        %v3878 = vrot.slane %v3876, 5
        %v3879 = vsel %vm1584, %v3874, %v3878
        %v3880 = vshrl.u32 %v3735, 16
        %v3882 = vrot.slane %v3880, 4
        %v3883 = vor.u32 %v3882, %v3878
        %v3884 = vrot.slane %v3883, 4
        %v3886 = vshll.u32 %v3736, 16
        %v3888 = vrot.slane %v3886, 5
        %v3889 = vsel %vm1584, %v3884, %v3888
        %v3891 = vshrl.u32 %v3737, 16
        %v3893 = vrot.slane %v3891, 4
        %v3894 = vshll.u32 %v3737, 16
        %v3896 = vrot.slane %v3894, 5
        %v3897 = vor.u32 %v3893, %v3896
        %v3898 = vrot.slane %v3897, 4
        %v3900 = vshll.u32 %v3738, 16
        %v3902 = vrot.slane %v3900, 5
        %v3903 = vsel %vm1584, %v3898, %v3902
        %v3904 = vshrl.u32 %v3738, 16
        %v3906 = vrot.slane %v3904, 4
        %v3907 = vor.u32 %v3906, %v3902
        %v3908 = vrot.slane %v3907, 4
        %v3910 = vshll.u32 %v3739, 16
        %v3912 = vrot.slane %v3910, 5
        %v3913 = vsel %vm1584, %v3908, %v3912
        %v3915 = vshrl.u32 %v3740, 16
        %v3917 = vrot.slane %v3915, 4
        %v3918 = vshll.u32 %v3740, 16
        %v3920 = vrot.slane %v3918, 5
        %v3921 = vor.u32 %v3917, %v3920
        %v3922 = vrot.slane %v3921, 4
        %v3924 = vshll.u32 %v3741, 16
        %v3926 = vrot.slane %v3924, 5
        %v3927 = vsel %vm1584, %v3922, %v3926
        %v3928 = vshrl.u32 %v3741, 16
        %v3930 = vrot.slane %v3928, 4
        %v3931 = vor.u32 %v3930, %v3926
        %v3932 = vrot.slane %v3931, 4
        %v3934 = vshll.u32 %v3742, 16
        %v3936 = vrot.slane %v3934, 5
        %v3937 = vsel %vm1584, %v3932, %v3936
        %v3939 = vshrl.u32 %v3743, 16
        %v3941 = vrot.slane %v3939, 4
        %v3942 = vshll.u32 %v3743, 16
        %v3944 = vrot.slane %v3942, 5
        %v3945 = vor.u32 %v3941, %v3944
        %v3946 = vrot.slane %v3945, 4
        %v3948 = vshll.u32 %v3744, 16
        %v3950 = vrot.slane %v3948, 5
        %v3951 = vsel %vm1584, %v3946, %v3950
        %v3952 = vshrl.u32 %v3744, 16
        %v3954 = vrot.slane %v3952, 4
        %v3955 = vor.u32 %v3954, %v3950
        %v3956 = vrot.slane %v3955, 4
        %v3958 = vshll.u32 %v3745, 16
        %v3960 = vrot.slane %v3958, 5
        %v3961 = vsel %vm1584, %v3956, %v3960
        %v3963 = vshrl.u32 %v3746, 16
        %v3965 = vrot.slane %v3963, 4
        %v3966 = vshll.u32 %v3746, 16
        %v3968 = vrot.slane %v3966, 5
        %v3969 = vor.u32 %v3965, %v3968
        %v3970 = vrot.slane %v3969, 4
        %v3972 = vshll.u32 %v3747, 16
        %v3974 = vrot.slane %v3972, 5
        %v3975 = vsel %vm1584, %v3970, %v3974
        %v3976 = vshrl.u32 %v3747, 16
        %v3978 = vrot.slane %v3976, 4
        %v3979 = vor.u32 %v3978, %v3974
        %v3980 = vrot.slane %v3979, 4
        %v3982 = vshll.u32 %v3748, 16
        %v3984 = vrot.slane %v3982, 5
        %v3985 = vsel %vm1584, %v3980, %v3984
        %v3987 = vshrl.u32 %v3749, 16
        %v3989 = vrot.slane %v3987, 4
        %v3990 = vshll.u32 %v3749, 16
        %v3992 = vrot.slane %v3990, 5
        %v3993 = vor.u32 %v3989, %v3992
        %v3994 = vrot.slane %v3993, 4
        %v3996 = vshll.u32 %v3750, 16
        %v3998 = vrot.slane %v3996, 5
        %v3999 = vsel %vm1584, %v3994, %v3998
        %v4000 = vshrl.u32 %v3750, 16
        %v4002 = vrot.slane %v4000, 4
        %v4003 = vor.u32 %v4002, %v3998
        %v4004 = vrot.slane %v4003, 4
        %v4006 = vshll.u32 %v3751, 16
        %v4008 = vrot.slane %v4006, 5
        %v4009 = vsel %vm1584, %v4004, %v4008
        %v4011 = vshrl.u32 %v3752, 16
        %v4013 = vrot.slane %v4011, 4
        %v4014 = vshll.u32 %v3752, 16
        %v4016 = vrot.slane %v4014, 5
        %v4017 = vor.u32 %v4013, %v4016
        %v4018 = vrot.slane %v4017, 4
        %v4020 = vshll.u32 %v3753, 16
        %v4022 = vrot.slane %v4020, 5
        %v4023 = vsel %vm1584, %v4018, %v4022
        %v4024 = vshrl.u32 %v3753, 16
        %v4026 = vrot.slane %v4024, 4
        %v4027 = vor.u32 %v4026, %v4022
        %v4028 = vrot.slane %v4027, 4
        %v4030 = vshll.u32 %v3754, 16
        %v4032 = vrot.slane %v4030, 5
        %v4033 = vsel %vm1584, %v4028, %v4032
        %v4035 = vshrl.u32 %v3755, 16
        %v4037 = vrot.slane %v4035, 4
        %v4038 = vshll.u32 %v3755, 16
        %v4040 = vrot.slane %v4038, 5
        %v4041 = vor.u32 %v4037, %v4040
        %v4042 = vrot.slane %v4041, 4
        %v4044 = vshll.u32 %v3756, 16
        %v4046 = vrot.slane %v4044, 5
        %v4047 = vsel %vm1584, %v4042, %v4046
        %v4048 = vshrl.u32 %v3756, 16
        %v4050 = vrot.slane %v4048, 4
        %v4051 = vor.u32 %v4050, %v4046
        %v4052 = vrot.slane %v4051, 4
        %v4054 = vshll.u32 %v3757, 16
        %v4056 = vrot.slane %v4054, 5
        %v4057 = vsel %vm1584, %v4052, %v4056
        %v4059 = vshrl.u32 %v3758, 16
        %v4061 = vrot.slane %v4059, 4
        %v4062 = vshll.u32 %v3758, 16
        %v4064 = vrot.slane %v4062, 5
        %v4065 = vor.u32 %v4061, %v4064
        %v4066 = vrot.slane %v4065, 4
        %v4068 = vshll.u32 %v3759, 16
        %v4070 = vrot.slane %v4068, 5
        %v4071 = vsel %vm1584, %v4066, %v4070
        %v4072 = vshrl.u32 %v3759, 16
        %v4074 = vrot.slane %v4072, 4
        %v4075 = vor.u32 %v4074, %v4070
        %v4076 = vrot.slane %v4075, 4
        %v4078 = vshll.u32 %v3760, 16
        %v4080 = vrot.slane %v4078, 5
        %v4081 = vsel %vm1584, %v4076, %v4080
        %v4083 = vshrl.u32 %v3761, 16
        %v4085 = vrot.slane %v4083, 4
        %v4086 = vshll.u32 %v3761, 16
        %v4088 = vrot.slane %v4086, 5
        %v4089 = vor.u32 %v4085, %v4088
        %v4090 = vrot.slane %v4089, 4
        %v4092 = vshll.u32 %v3762, 16
        %v4094 = vrot.slane %v4092, 5
        %v4095 = vsel %vm1584, %v4090, %v4094
        %v4096 = vshrl.u32 %v3762, 16
        %v4098 = vrot.slane %v4096, 4
        %v4099 = vor.u32 %v4098, %v4094
        %v4100 = vrot.slane %v4099, 4
        %v4102 = vshll.u32 %v3763, 16
        %v4104 = vrot.slane %v4102, 5
        %v4105 = vsel %vm1584, %v4100, %v4104
        %v4107 = vshrl.u32 %v3764, 16
        %v4109 = vrot.slane %v4107, 4
        %v4110 = vshll.u32 %v3764, 16
        %v4112 = vrot.slane %v4110, 5
        %v4113 = vor.u32 %v4109, %v4112
        %v4114 = vrot.slane %v4113, 4
        %v4116 = vshll.u32 %v3765, 16
        %v4118 = vrot.slane %v4116, 5
        %v4119 = vsel %vm1584, %v4114, %v4118
        %v4120 = vshrl.u32 %v3765, 16
        %v4122 = vrot.slane %v4120, 4
        %v4123 = vor.u32 %v4122, %v4118
        %v4124 = vrot.slane %v4123, 4
        %v4126 = vshll.u32 %v3766, 16
        %v4128 = vrot.slane %v4126, 5
        %v4129 = vsel %vm1584, %v4124, %v4128
        %v4131 = vshrl.u32 %v3767, 16
        %v4133 = vrot.slane %v4131, 4
        %v4134 = vshll.u32 %v3767, 16
        %v4136 = vrot.slane %v4134, 5
        %v4137 = vor.u32 %v4133, %v4136
        %v4138 = vrot.slane %v4137, 4
        %v4140 = vshll.u32 %v3768, 16
        %v4142 = vrot.slane %v4140, 5
        %v4143 = vsel %vm1584, %v4138, %v4142
        %v4144 = vshrl.u32 %v3768, 16
        %v4146 = vrot.slane %v4144, 4
        %v4147 = vor.u32 %v4146, %v4142
        %v4148 = vrot.slane %v4147, 4
        %v4150 = vshll.u32 %v3769, 16
        %v4152 = vrot.slane %v4150, 5
        %v4153 = vsel %vm1584, %v4148, %v4152
        %4154 = vrot.lane.b32.xlu0 %v3783, 16
        %v4155 = vpop.permute.xlu0 %4154
        %4156 = vrot.lane.b32.xlu0 %v3793, 16
        %v4157 = vpop.permute.xlu0 %4156
        %4158 = vrot.lane.b32.xlu0 %v3807, 16
        %v4159 = vpop.permute.xlu0 %4158
        %4160 = vrot.lane.b32.xlu0 %v3817, 16
        %v4161 = vpop.permute.xlu0 %4160
        %4162 = vrot.lane.b32.xlu0 %v3831, 16
        %v4163 = vpop.permute.xlu0 %4162
        %4164 = vrot.lane.b32.xlu0 %v3841, 16
        %v4165 = vpop.permute.xlu0 %4164
        %4166 = vrot.lane.b32.xlu0 %v3855, 16
        %v4167 = vpop.permute.xlu0 %4166
        %4168 = vrot.lane.b32.xlu0 %v3865, 16
        %v4169 = vpop.permute.xlu0 %4168
        %4170 = vrot.lane.b32.xlu0 %v3879, 16
        %v4171 = vpop.permute.xlu0 %4170
        %4172 = vrot.lane.b32.xlu0 %v3889, 16
        %v4173 = vpop.permute.xlu0 %4172
        %4174 = vrot.lane.b32.xlu0 %v3903, 16
        %v4175 = vpop.permute.xlu0 %4174
        %4176 = vrot.lane.b32.xlu0 %v3913, 16
        %v4177 = vpop.permute.xlu0 %4176
        %4178 = vrot.lane.b32.xlu0 %v3927, 16
        %v4179 = vpop.permute.xlu0 %4178
        %4180 = vrot.lane.b32.xlu0 %v3937, 16
        %v4181 = vpop.permute.xlu0 %4180
        %4182 = vrot.lane.b32.xlu0 %v3951, 16
        %v4183 = vpop.permute.xlu0 %4182
        %4184 = vrot.lane.b32.xlu0 %v3961, 16
        %v4185 = vpop.permute.xlu0 %4184
        %4186 = vrot.lane.b32.xlu0 %v3975, 16
        %v4187 = vpop.permute.xlu0 %4186
        %4188 = vrot.lane.b32.xlu0 %v3985, 16
        %v4189 = vpop.permute.xlu0 %4188
        %4190 = vrot.lane.b32.xlu0 %v3999, 16
        %v4191 = vpop.permute.xlu0 %4190
        %4192 = vrot.lane.b32.xlu0 %v4009, 16
        %v4193 = vpop.permute.xlu0 %4192
        %4194 = vrot.lane.b32.xlu0 %v4023, 16
        %v4195 = vpop.permute.xlu0 %4194
        %4196 = vrot.lane.b32.xlu0 %v4033, 16
        %v4197 = vpop.permute.xlu0 %4196
        %4198 = vrot.lane.b32.xlu0 %v4047, 16
        %v4199 = vpop.permute.xlu0 %4198
        %4200 = vrot.lane.b32.xlu0 %v4057, 16
        %v4201 = vpop.permute.xlu0 %4200
        %4202 = vrot.lane.b32.xlu0 %v4071, 16
        %v4203 = vpop.permute.xlu0 %4202
        %4204 = vrot.lane.b32.xlu0 %v4081, 16
        %v4205 = vpop.permute.xlu0 %4204
        %4206 = vrot.lane.b32.xlu0 %v4095, 16
        %v4207 = vpop.permute.xlu0 %4206
        %4208 = vrot.lane.b32.xlu0 %v4105, 16
        %v4209 = vpop.permute.xlu0 %4208
        %4210 = vrot.lane.b32.xlu0 %v4119, 16
        %v4211 = vpop.permute.xlu0 %4210
        %4212 = vrot.lane.b32.xlu0 %v4129, 16
        %v4213 = vpop.permute.xlu0 %4212
        %4214 = vrot.lane.b32.xlu0 %v4143, 16
        %v4215 = vpop.permute.xlu0 %4214
        %4216 = vrot.lane.b32.xlu0 %v4153, 16
        %v4217 = vpop.permute.xlu0 %4216
        %vm4250 = vcmask 158848
        %4251 = vst.msk [vmem:[#allocation4] sm:$0xf] %vm4250, %v4155
        %4252 = vst.msk [vmem:[#allocation4 + $0x4] sm:$0xf] %vm4250, %v4157
        %4253 = vst.msk [vmem:[#allocation4 + $0x8] sm:$0xf] %vm4250, %v4159
        %4254 = vst.msk [vmem:[#allocation4 + $0xc] sm:$0xf] %vm4250, %v4161
        %4255 = vst.msk [vmem:[#allocation4 + $0x10] sm:$0xf] %vm4250, %v4163
        %4256 = vst.msk [vmem:[#allocation4 + $0x14] sm:$0xf] %vm4250, %v4165
        %4257 = vst.msk [vmem:[#allocation4 + $0x18] sm:$0xf] %vm4250, %v4167
        %4258 = vst.msk [vmem:[#allocation4 + $0x1c] sm:$0xf] %vm4250, %v4169
        %4259 = vst.msk [vmem:[#allocation4 + $0x20] sm:$0xf] %vm4250, %v4171
        %4260 = vst.msk [vmem:[#allocation4 + $0x24] sm:$0xf] %vm4250, %v4173
        %4261 = vst.msk [vmem:[#allocation4 + $0x28] sm:$0xf] %vm4250, %v4175
        %4262 = vst.msk [vmem:[#allocation4 + $0x2c] sm:$0xf] %vm4250, %v4177
        %4263 = vst.msk [vmem:[#allocation4 + $0x30] sm:$0xf] %vm4250, %v4179
        %4264 = vst.msk [vmem:[#allocation4 + $0x34] sm:$0xf] %vm4250, %v4181
        %4265 = vst.msk [vmem:[#allocation4 + $0x38] sm:$0xf] %vm4250, %v4183
        %4266 = vst.msk [vmem:[#allocation4 + $0x3c] sm:$0xf] %vm4250, %v4185
        %4267 = vst.msk [vmem:[#allocation4 + $0x40] sm:$0xf] %vm4250, %v4187
        %4268 = vst.msk [vmem:[#allocation4 + $0x44] sm:$0xf] %vm4250, %v4189
        %4269 = vst.msk [vmem:[#allocation4 + $0x48] sm:$0xf] %vm4250, %v4191
        %4270 = vst.msk [vmem:[#allocation4 + $0x4c] sm:$0xf] %vm4250, %v4193
        %4271 = vst.msk [vmem:[#allocation4 + $0x50] sm:$0xf] %vm4250, %v4195
        %4272 = vst.msk [vmem:[#allocation4 + $0x54] sm:$0xf] %vm4250, %v4197
        %4273 = vst.msk [vmem:[#allocation4 + $0x58] sm:$0xf] %vm4250, %v4199
        %4274 = vst.msk [vmem:[#allocation4 + $0x5c] sm:$0xf] %vm4250, %v4201
        %4275 = vst.msk [vmem:[#allocation4 + $0x60] sm:$0xf] %vm4250, %v4203
        %4276 = vst.msk [vmem:[#allocation4 + $0x64] sm:$0xf] %vm4250, %v4205
        %4277 = vst.msk [vmem:[#allocation4 + $0x68] sm:$0xf] %vm4250, %v4207
        %4278 = vst.msk [vmem:[#allocation4 + $0x6c] sm:$0xf] %vm4250, %v4209
        %4279 = vst.msk [vmem:[#allocation4 + $0x70] sm:$0xf] %vm4250, %v4211
        %4280 = vst.msk [vmem:[#allocation4 + $0x74] sm:$0xf] %vm4250, %v4213
        %4281 = vst.msk [vmem:[#allocation4 + $0x78] sm:$0xf] %vm4250, %v4215
        %4282 = vst.msk [vmem:[#allocation4 + $0x7c] sm:$0xf] %vm4250, %v4217
        %v4283 = vld [vmem:[%s1289] sm:$0xf]
        %v4284 = vld [vmem:[%s1289 + $0x4] sm:$0xf]
        %v4285 = vld [vmem:[%s1289 + $0x8] sm:$0x1]
        %v4286 = vld [vmem:[%s1289 + $0xc] sm:$0xf]
        %v4287 = vld [vmem:[%s1289 + $0x10] sm:$0xf]
        %v4288 = vld [vmem:[%s1289 + $0x14] sm:$0x1]
        %v4289 = vld [vmem:[%s1289 + $0x18] sm:$0xf]
        %v4290 = vld [vmem:[%s1289 + $0x1c] sm:$0xf]
        %v4291 = vld [vmem:[%s1289 + $0x20] sm:$0x1]
        %v4292 = vld [vmem:[%s1289 + $0x24] sm:$0xf]
        %v4293 = vld [vmem:[%s1289 + $0x28] sm:$0xf]
        %v4294 = vld [vmem:[%s1289 + $0x2c] sm:$0x1]
        %v4295 = vld [vmem:[%s1289 + $0x30] sm:$0xf]
        %v4296 = vld [vmem:[%s1289 + $0x34] sm:$0xf]
        %v4297 = vld [vmem:[%s1289 + $0x38] sm:$0x1]
        %v4298 = vld [vmem:[%s1289 + $0x3c] sm:$0xf]
        %v4299 = vld [vmem:[%s1289 + $0x40] sm:$0xf]
        %v4300 = vld [vmem:[%s1289 + $0x44] sm:$0x1]
        %v4301 = vld [vmem:[%s1289 + $0x48] sm:$0xf]
        %v4302 = vld [vmem:[%s1289 + $0x4c] sm:$0xf]
        %v4303 = vld [vmem:[%s1289 + $0x50] sm:$0x1]
        %v4304 = vld [vmem:[%s1289 + $0x54] sm:$0xf]
        %v4305 = vld [vmem:[%s1289 + $0x58] sm:$0xf]
        %v4306 = vld [vmem:[%s1289 + $0x5c] sm:$0x1]
        %v4307 = vld [vmem:[%s1289 + $0x60] sm:$0xf]
        %v4308 = vld [vmem:[%s1289 + $0x64] sm:$0xf]
        %v4309 = vld [vmem:[%s1289 + $0x68] sm:$0x1]
        %v4310 = vld [vmem:[%s1289 + $0x6c] sm:$0xf]
        %v4311 = vld [vmem:[%s1289 + $0x70] sm:$0xf]
        %v4312 = vld [vmem:[%s1289 + $0x74] sm:$0x1]
        %v4313 = vld [vmem:[%s1289 + $0x78] sm:$0xf]
        %v4314 = vld [vmem:[%s1289 + $0x7c] sm:$0xf]
        %v4315 = vld [vmem:[%s1289 + $0x80] sm:$0x1]
        %v4316 = vld [vmem:[%s1289 + $0x84] sm:$0xf]
        %v4317 = vld [vmem:[%s1289 + $0x88] sm:$0xf]
        %v4318 = vld [vmem:[%s1289 + $0x8c] sm:$0x1]
        %v4319 = vld [vmem:[%s1289 + $0x90] sm:$0xf]
        %v4320 = vld [vmem:[%s1289 + $0x94] sm:$0xf]
        %v4321 = vld [vmem:[%s1289 + $0x98] sm:$0x1]
        %v4322 = vld [vmem:[%s1289 + $0x9c] sm:$0xf]
        %v4323 = vld [vmem:[%s1289 + $0xa0] sm:$0xf]
        %v4324 = vld [vmem:[%s1289 + $0xa4] sm:$0x1]
        %v4325 = vld [vmem:[%s1289 + $0xa8] sm:$0xf]
        %v4326 = vld [vmem:[%s1289 + $0xac] sm:$0xf]
        %v4327 = vld [vmem:[%s1289 + $0xb0] sm:$0x1]
        %v4328 = vld [vmem:[%s1289 + $0xb4] sm:$0xf]
        %v4329 = vld [vmem:[%s1289 + $0xb8] sm:$0xf]
        %v4330 = vld [vmem:[%s1289 + $0xbc] sm:$0x1]
        %v4332 = vshrl.u32 %v4283, 16
        %v4334 = vrot.slane %v4332, 4
        %v4335 = vshll.u32 %v4283, 16
        %v4337 = vrot.slane %v4335, 5
        %v4338 = vor.u32 %v4334, %v4337
        %v4339 = vrot.slane %v4338, 4
        %v4341 = vshll.u32 %v4284, 16
        %v4343 = vrot.slane %v4341, 5
        %v4344 = vsel %vm1584, %v4339, %v4343
        %v4345 = vshrl.u32 %v4284, 16
        %v4347 = vrot.slane %v4345, 4
        %v4348 = vor.u32 %v4347, %v4343
        %v4349 = vrot.slane %v4348, 4
        %v4351 = vshll.u32 %v4285, 16
        %v4353 = vrot.slane %v4351, 5
        %v4354 = vsel %vm1584, %v4349, %v4353
        %v4356 = vshrl.u32 %v4286, 16
        %v4358 = vrot.slane %v4356, 4
        %v4359 = vshll.u32 %v4286, 16
        %v4361 = vrot.slane %v4359, 5
        %v4362 = vor.u32 %v4358, %v4361
        %v4363 = vrot.slane %v4362, 4
        %v4365 = vshll.u32 %v4287, 16
        %v4367 = vrot.slane %v4365, 5
        %v4368 = vsel %vm1584, %v4363, %v4367
        %v4369 = vshrl.u32 %v4287, 16
        %v4371 = vrot.slane %v4369, 4
        %v4372 = vor.u32 %v4371, %v4367
        %v4373 = vrot.slane %v4372, 4
        %v4375 = vshll.u32 %v4288, 16
        %v4377 = vrot.slane %v4375, 5
        %v4378 = vsel %vm1584, %v4373, %v4377
        %v4380 = vshrl.u32 %v4289, 16
        %v4382 = vrot.slane %v4380, 4
        %v4383 = vshll.u32 %v4289, 16
        %v4385 = vrot.slane %v4383, 5
        %v4386 = vor.u32 %v4382, %v4385
        %v4387 = vrot.slane %v4386, 4
        %v4389 = vshll.u32 %v4290, 16
        %v4391 = vrot.slane %v4389, 5
        %v4392 = vsel %vm1584, %v4387, %v4391
        %v4393 = vshrl.u32 %v4290, 16
        %v4395 = vrot.slane %v4393, 4
        %v4396 = vor.u32 %v4395, %v4391
        %v4397 = vrot.slane %v4396, 4
        %v4399 = vshll.u32 %v4291, 16
        %v4401 = vrot.slane %v4399, 5
        %v4402 = vsel %vm1584, %v4397, %v4401
        %v4404 = vshrl.u32 %v4292, 16
        %v4406 = vrot.slane %v4404, 4
        %v4407 = vshll.u32 %v4292, 16
        %v4409 = vrot.slane %v4407, 5
        %v4410 = vor.u32 %v4406, %v4409
        %v4411 = vrot.slane %v4410, 4
        %v4413 = vshll.u32 %v4293, 16
        %v4415 = vrot.slane %v4413, 5
        %v4416 = vsel %vm1584, %v4411, %v4415
        %v4417 = vshrl.u32 %v4293, 16
        %v4419 = vrot.slane %v4417, 4
        %v4420 = vor.u32 %v4419, %v4415
        %v4421 = vrot.slane %v4420, 4
        %v4423 = vshll.u32 %v4294, 16
        %v4425 = vrot.slane %v4423, 5
        %v4426 = vsel %vm1584, %v4421, %v4425
        %v4428 = vshrl.u32 %v4295, 16
        %v4430 = vrot.slane %v4428, 4
        %v4431 = vshll.u32 %v4295, 16
        %v4433 = vrot.slane %v4431, 5
        %v4434 = vor.u32 %v4430, %v4433
        %v4435 = vrot.slane %v4434, 4
        %v4437 = vshll.u32 %v4296, 16
        %v4439 = vrot.slane %v4437, 5
        %v4440 = vsel %vm1584, %v4435, %v4439
        %v4441 = vshrl.u32 %v4296, 16
        %v4443 = vrot.slane %v4441, 4
        %v4444 = vor.u32 %v4443, %v4439
        %v4445 = vrot.slane %v4444, 4
        %v4447 = vshll.u32 %v4297, 16
        %v4449 = vrot.slane %v4447, 5
        %v4450 = vsel %vm1584, %v4445, %v4449
        %v4452 = vshrl.u32 %v4298, 16
        %v4454 = vrot.slane %v4452, 4
        %v4455 = vshll.u32 %v4298, 16
        %v4457 = vrot.slane %v4455, 5
        %v4458 = vor.u32 %v4454, %v4457
        %v4459 = vrot.slane %v4458, 4
        %v4461 = vshll.u32 %v4299, 16
        %v4463 = vrot.slane %v4461, 5
        %v4464 = vsel %vm1584, %v4459, %v4463
        %v4465 = vshrl.u32 %v4299, 16
        %v4467 = vrot.slane %v4465, 4
        %v4468 = vor.u32 %v4467, %v4463
        %v4469 = vrot.slane %v4468, 4
        %v4471 = vshll.u32 %v4300, 16
        %v4473 = vrot.slane %v4471, 5
        %v4474 = vsel %vm1584, %v4469, %v4473
        %v4476 = vshrl.u32 %v4301, 16
        %v4478 = vrot.slane %v4476, 4
        %v4479 = vshll.u32 %v4301, 16
        %v4481 = vrot.slane %v4479, 5
        %v4482 = vor.u32 %v4478, %v4481
        %v4483 = vrot.slane %v4482, 4
        %v4485 = vshll.u32 %v4302, 16
        %v4487 = vrot.slane %v4485, 5
        %v4488 = vsel %vm1584, %v4483, %v4487
        %v4489 = vshrl.u32 %v4302, 16
        %v4491 = vrot.slane %v4489, 4
        %v4492 = vor.u32 %v4491, %v4487
        %v4493 = vrot.slane %v4492, 4
        %v4495 = vshll.u32 %v4303, 16
        %v4497 = vrot.slane %v4495, 5
        %v4498 = vsel %vm1584, %v4493, %v4497
        %v4500 = vshrl.u32 %v4304, 16
        %v4502 = vrot.slane %v4500, 4
        %v4503 = vshll.u32 %v4304, 16
        %v4505 = vrot.slane %v4503, 5
        %v4506 = vor.u32 %v4502, %v4505
        %v4507 = vrot.slane %v4506, 4
        %v4509 = vshll.u32 %v4305, 16
        %v4511 = vrot.slane %v4509, 5
        %v4512 = vsel %vm1584, %v4507, %v4511
        %v4513 = vshrl.u32 %v4305, 16
        %v4515 = vrot.slane %v4513, 4
        %v4516 = vor.u32 %v4515, %v4511
        %v4517 = vrot.slane %v4516, 4
        %v4519 = vshll.u32 %v4306, 16
        %v4521 = vrot.slane %v4519, 5
        %v4522 = vsel %vm1584, %v4517, %v4521
        %v4524 = vshrl.u32 %v4307, 16
        %v4526 = vrot.slane %v4524, 4
        %v4527 = vshll.u32 %v4307, 16
        %v4529 = vrot.slane %v4527, 5
        %v4530 = vor.u32 %v4526, %v4529
        %v4531 = vrot.slane %v4530, 4
        %v4533 = vshll.u32 %v4308, 16
        %v4535 = vrot.slane %v4533, 5
        %v4536 = vsel %vm1584, %v4531, %v4535
        %v4537 = vshrl.u32 %v4308, 16
        %v4539 = vrot.slane %v4537, 4
        %v4540 = vor.u32 %v4539, %v4535
        %v4541 = vrot.slane %v4540, 4
        %v4543 = vshll.u32 %v4309, 16
        %v4545 = vrot.slane %v4543, 5
        %v4546 = vsel %vm1584, %v4541, %v4545
        %v4548 = vshrl.u32 %v4310, 16
        %v4550 = vrot.slane %v4548, 4
        %v4551 = vshll.u32 %v4310, 16
        %v4553 = vrot.slane %v4551, 5
        %v4554 = vor.u32 %v4550, %v4553
        %v4555 = vrot.slane %v4554, 4
        %v4557 = vshll.u32 %v4311, 16
        %v4559 = vrot.slane %v4557, 5
        %v4560 = vsel %vm1584, %v4555, %v4559
        %v4561 = vshrl.u32 %v4311, 16
        %v4563 = vrot.slane %v4561, 4
        %v4564 = vor.u32 %v4563, %v4559
        %v4565 = vrot.slane %v4564, 4
        %v4567 = vshll.u32 %v4312, 16
        %v4569 = vrot.slane %v4567, 5
        %v4570 = vsel %vm1584, %v4565, %v4569
        %v4572 = vshrl.u32 %v4313, 16
        %v4574 = vrot.slane %v4572, 4
        %v4575 = vshll.u32 %v4313, 16
        %v4577 = vrot.slane %v4575, 5
        %v4578 = vor.u32 %v4574, %v4577
        %v4579 = vrot.slane %v4578, 4
        %v4581 = vshll.u32 %v4314, 16
        %v4583 = vrot.slane %v4581, 5
        %v4584 = vsel %vm1584, %v4579, %v4583
        %v4585 = vshrl.u32 %v4314, 16
        %v4587 = vrot.slane %v4585, 4
        %v4588 = vor.u32 %v4587, %v4583
        %v4589 = vrot.slane %v4588, 4
        %v4591 = vshll.u32 %v4315, 16
        %v4593 = vrot.slane %v4591, 5
        %v4594 = vsel %vm1584, %v4589, %v4593
        %v4596 = vshrl.u32 %v4316, 16
        %v4598 = vrot.slane %v4596, 4
        %v4599 = vshll.u32 %v4316, 16
        %v4601 = vrot.slane %v4599, 5
        %v4602 = vor.u32 %v4598, %v4601
        %v4603 = vrot.slane %v4602, 4
        %v4605 = vshll.u32 %v4317, 16
        %v4607 = vrot.slane %v4605, 5
        %v4608 = vsel %vm1584, %v4603, %v4607
        %v4609 = vshrl.u32 %v4317, 16
        %v4611 = vrot.slane %v4609, 4
        %v4612 = vor.u32 %v4611, %v4607
        %v4613 = vrot.slane %v4612, 4
        %v4615 = vshll.u32 %v4318, 16
        %v4617 = vrot.slane %v4615, 5
        %v4618 = vsel %vm1584, %v4613, %v4617
        %v4620 = vshrl.u32 %v4319, 16
        %v4622 = vrot.slane %v4620, 4
        %v4623 = vshll.u32 %v4319, 16
        %v4625 = vrot.slane %v4623, 5
        %v4626 = vor.u32 %v4622, %v4625
        %v4627 = vrot.slane %v4626, 4
        %v4629 = vshll.u32 %v4320, 16
        %v4631 = vrot.slane %v4629, 5
        %v4632 = vsel %vm1584, %v4627, %v4631
        %v4633 = vshrl.u32 %v4320, 16
        %v4635 = vrot.slane %v4633, 4
        %v4636 = vor.u32 %v4635, %v4631
        %v4637 = vrot.slane %v4636, 4
        %v4639 = vshll.u32 %v4321, 16
        %v4641 = vrot.slane %v4639, 5
        %v4642 = vsel %vm1584, %v4637, %v4641
        %v4644 = vshrl.u32 %v4322, 16
        %v4646 = vrot.slane %v4644, 4
        %v4647 = vshll.u32 %v4322, 16
        %v4649 = vrot.slane %v4647, 5
        %v4650 = vor.u32 %v4646, %v4649
        %v4651 = vrot.slane %v4650, 4
        %v4653 = vshll.u32 %v4323, 16
        %v4655 = vrot.slane %v4653, 5
        %v4656 = vsel %vm1584, %v4651, %v4655
        %v4657 = vshrl.u32 %v4323, 16
        %v4659 = vrot.slane %v4657, 4
        %v4660 = vor.u32 %v4659, %v4655
        %v4661 = vrot.slane %v4660, 4
        %v4663 = vshll.u32 %v4324, 16
        %v4665 = vrot.slane %v4663, 5
        %v4666 = vsel %vm1584, %v4661, %v4665
        %v4668 = vshrl.u32 %v4325, 16
        %v4670 = vrot.slane %v4668, 4
        %v4671 = vshll.u32 %v4325, 16
        %v4673 = vrot.slane %v4671, 5
        %v4674 = vor.u32 %v4670, %v4673
        %v4675 = vrot.slane %v4674, 4
        %v4677 = vshll.u32 %v4326, 16
        %v4679 = vrot.slane %v4677, 5
        %v4680 = vsel %vm1584, %v4675, %v4679
        %v4681 = vshrl.u32 %v4326, 16
        %v4683 = vrot.slane %v4681, 4
        %v4684 = vor.u32 %v4683, %v4679
        %v4685 = vrot.slane %v4684, 4
        %v4687 = vshll.u32 %v4327, 16
        %v4689 = vrot.slane %v4687, 5
        %v4690 = vsel %vm1584, %v4685, %v4689
        %v4692 = vshrl.u32 %v4328, 16
        %v4694 = vrot.slane %v4692, 4
        %v4695 = vshll.u32 %v4328, 16
        %v4697 = vrot.slane %v4695, 5
        %v4698 = vor.u32 %v4694, %v4697
        %v4699 = vrot.slane %v4698, 4
        %v4701 = vshll.u32 %v4329, 16
        %v4703 = vrot.slane %v4701, 5
        %v4704 = vsel %vm1584, %v4699, %v4703
        %v4705 = vshrl.u32 %v4329, 16
        %v4707 = vrot.slane %v4705, 4
        %v4708 = vor.u32 %v4707, %v4703
        %v4709 = vrot.slane %v4708, 4
        %v4711 = vshll.u32 %v4330, 16
        %v4713 = vrot.slane %v4711, 5
        %v4714 = vsel %vm1584, %v4709, %v4713
        %4747 = vst.msk [vmem:[#allocation5 + $0x4] sm:$0xf] %vm344, %v4344
        %4748 = vst.msk [vmem:[#allocation5 + $0x10] sm:$0xf] %vm344, %v4354
        %4749 = vst.msk [vmem:[#allocation5 + $0x1c] sm:$0xf] %vm344, %v4368
        %4750 = vst.msk [vmem:[#allocation5 + $0x28] sm:$0xf] %vm344, %v4378
        %4751 = vst.msk [vmem:[#allocation5 + $0x34] sm:$0xf] %vm344, %v4392
        %4752 = vst.msk [vmem:[#allocation5 + $0x40] sm:$0xf] %vm344, %v4402
        %4753 = vst.msk [vmem:[#allocation5 + $0x4c] sm:$0xf] %vm344, %v4416
        %4754 = vst.msk [vmem:[#allocation5 + $0x58] sm:$0xf] %vm344, %v4426
        %4755 = vst.msk [vmem:[#allocation5 + $0x64] sm:$0xf] %vm344, %v4440
        %4756 = vst.msk [vmem:[#allocation5 + $0x70] sm:$0xf] %vm344, %v4450
        %4757 = vst.msk [vmem:[#allocation5 + $0x7c] sm:$0xf] %vm344, %v4464
        %4758 = vst.msk [vmem:[#allocation5 + $0x88] sm:$0xf] %vm344, %v4474
        %4759 = vst.msk [vmem:[#allocation5 + $0x94] sm:$0xf] %vm344, %v4488
        %4760 = vst.msk [vmem:[#allocation5 + $0xa0] sm:$0xf] %vm344, %v4498
        %4761 = vst.msk [vmem:[#allocation5 + $0xac] sm:$0xf] %vm344, %v4512
        %4762 = vst.msk [vmem:[#allocation5 + $0xb8] sm:$0xf] %vm344, %v4522
        %4763 = vst.msk [vmem:[#allocation5 + $0xc4] sm:$0xf] %vm344, %v4536
        %4764 = vst.msk [vmem:[#allocation5 + $0xd0] sm:$0xf] %vm344, %v4546
        %4765 = vst.msk [vmem:[#allocation5 + $0xdc] sm:$0xf] %vm344, %v4560
        %4766 = vst.msk [vmem:[#allocation5 + $0xe8] sm:$0xf] %vm344, %v4570
        %4767 = vst.msk [vmem:[#allocation5 + $0xf4] sm:$0xf] %vm344, %v4584
        %4768 = vst.msk [vmem:[#allocation5 + $0x100] sm:$0xf] %vm344, %v4594
        %4769 = vst.msk [vmem:[#allocation5 + $0x10c] sm:$0xf] %vm344, %v4608
        %4770 = vst.msk [vmem:[#allocation5 + $0x118] sm:$0xf] %vm344, %v4618
        %4771 = vst.msk [vmem:[#allocation5 + $0x124] sm:$0xf] %vm344, %v4632
        %4772 = vst.msk [vmem:[#allocation5 + $0x130] sm:$0xf] %vm344, %v4642
        %4773 = vst.msk [vmem:[#allocation5 + $0x13c] sm:$0xf] %vm344, %v4656
        %4774 = vst.msk [vmem:[#allocation5 + $0x148] sm:$0xf] %vm344, %v4666
        %4775 = vst.msk [vmem:[#allocation5 + $0x154] sm:$0xf] %vm344, %v4680
        %4776 = vst.msk [vmem:[#allocation5 + $0x160] sm:$0xf] %vm344, %v4690
        %4777 = vst.msk [vmem:[#allocation5 + $0x16c] sm:$0xf] %vm344, %v4704
        %4778 = vst.msk [vmem:[#allocation5 + $0x178] sm:$0xf] %vm344, %v4714
        %v4779 = vld [vmem:[%s787] sm:$0xe]
        %v4780 = vld [vmem:[%s787 + $0x4] sm:$0xf]
        %v4781 = vld [vmem:[%s787 + $0x8] sm:$0x1]
        %v4782 = vld [vmem:[%s787 + $0xc] sm:$0xe]
        %v4783 = vld [vmem:[%s787 + $0x10] sm:$0xf]
        %v4784 = vld [vmem:[%s787 + $0x14] sm:$0x1]
        %v4785 = vld [vmem:[%s787 + $0x18] sm:$0xe]
        %v4786 = vld [vmem:[%s787 + $0x1c] sm:$0xf]
        %v4787 = vld [vmem:[%s787 + $0x20] sm:$0x1]
        %v4788 = vld [vmem:[%s787 + $0x24] sm:$0xe]
        %v4789 = vld [vmem:[%s787 + $0x28] sm:$0xf]
        %v4790 = vld [vmem:[%s787 + $0x2c] sm:$0x1]
        %v4791 = vld [vmem:[%s787 + $0x30] sm:$0xe]
        %v4792 = vld [vmem:[%s787 + $0x34] sm:$0xf]
        %v4793 = vld [vmem:[%s787 + $0x38] sm:$0x1]
        %v4794 = vld [vmem:[%s787 + $0x3c] sm:$0xe]
        %v4795 = vld [vmem:[%s787 + $0x40] sm:$0xf]
        %v4796 = vld [vmem:[%s787 + $0x44] sm:$0x1]
        %v4797 = vld [vmem:[%s787 + $0x48] sm:$0xe]
        %v4798 = vld [vmem:[%s787 + $0x4c] sm:$0xf]
        %v4799 = vld [vmem:[%s787 + $0x50] sm:$0x1]
        %v4800 = vld [vmem:[%s787 + $0x54] sm:$0xe]
        %v4801 = vld [vmem:[%s787 + $0x58] sm:$0xf]
        %v4802 = vld [vmem:[%s787 + $0x5c] sm:$0x1]
        %v4803 = vld [vmem:[%s787 + $0x60] sm:$0xe]
        %v4804 = vld [vmem:[%s787 + $0x64] sm:$0xf]
        %v4805 = vld [vmem:[%s787 + $0x68] sm:$0x1]
        %v4806 = vld [vmem:[%s787 + $0x6c] sm:$0xe]
        %v4807 = vld [vmem:[%s787 + $0x70] sm:$0xf]
        %v4808 = vld [vmem:[%s787 + $0x74] sm:$0x1]
        %v4809 = vld [vmem:[%s787 + $0x78] sm:$0xe]
        %v4810 = vld [vmem:[%s787 + $0x7c] sm:$0xf]
        %v4811 = vld [vmem:[%s787 + $0x80] sm:$0x1]
        %v4812 = vld [vmem:[%s787 + $0x84] sm:$0xe]
        %v4813 = vld [vmem:[%s787 + $0x88] sm:$0xf]
        %v4814 = vld [vmem:[%s787 + $0x8c] sm:$0x1]
        %v4815 = vld [vmem:[%s787 + $0x90] sm:$0xe]
        %v4816 = vld [vmem:[%s787 + $0x94] sm:$0xf]
        %v4817 = vld [vmem:[%s787 + $0x98] sm:$0x1]
        %v4818 = vld [vmem:[%s787 + $0x9c] sm:$0xe]
        %v4819 = vld [vmem:[%s787 + $0xa0] sm:$0xf]
        %v4820 = vld [vmem:[%s787 + $0xa4] sm:$0x1]
        %v4821 = vld [vmem:[%s787 + $0xa8] sm:$0xe]
        %v4822 = vld [vmem:[%s787 + $0xac] sm:$0xf]
        %v4823 = vld [vmem:[%s787 + $0xb0] sm:$0x1]
        %v4824 = vld [vmem:[%s787 + $0xb4] sm:$0xe]
        %v4825 = vld [vmem:[%s787 + $0xb8] sm:$0xf]
        %v4826 = vld [vmem:[%s787 + $0xbc] sm:$0x1]
        %v4875 = vrot.slane %v4779, 5
        %v4876 = vrot.slane %v4875, 4
        %v4877 = vrot.slane %v4780, 5
        %v4878 = vsel %vm2757, %v4876, %v4877
        %v4879 = vrot.slane %v4877, 4
        %v4880 = vrot.slane %v4781, 5
        %v4881 = vsel %vm2757, %v4879, %v4880
        %v4882 = vrot.slane %v4782, 5
        %v4883 = vrot.slane %v4882, 4
        %v4884 = vrot.slane %v4783, 5
        %v4885 = vsel %vm2757, %v4883, %v4884
        %v4886 = vrot.slane %v4884, 4
        %v4887 = vrot.slane %v4784, 5
        %v4888 = vsel %vm2757, %v4886, %v4887
        %v4889 = vrot.slane %v4785, 5
        %v4890 = vrot.slane %v4889, 4
        %v4891 = vrot.slane %v4786, 5
        %v4892 = vsel %vm2757, %v4890, %v4891
        %v4893 = vrot.slane %v4891, 4
        %v4894 = vrot.slane %v4787, 5
        %v4895 = vsel %vm2757, %v4893, %v4894
        %v4896 = vrot.slane %v4788, 5
        %v4897 = vrot.slane %v4896, 4
        %v4898 = vrot.slane %v4789, 5
        %v4899 = vsel %vm2757, %v4897, %v4898
        %v4900 = vrot.slane %v4898, 4
        %v4901 = vrot.slane %v4790, 5
        %v4902 = vsel %vm2757, %v4900, %v4901
        %v4903 = vrot.slane %v4791, 5
        %v4904 = vrot.slane %v4903, 4
        %v4905 = vrot.slane %v4792, 5
        %v4906 = vsel %vm2757, %v4904, %v4905
        %v4907 = vrot.slane %v4905, 4
        %v4908 = vrot.slane %v4793, 5
        %v4909 = vsel %vm2757, %v4907, %v4908
        %v4910 = vrot.slane %v4794, 5
        %v4911 = vrot.slane %v4910, 4
        %v4912 = vrot.slane %v4795, 5
        %v4913 = vsel %vm2757, %v4911, %v4912
        %v4914 = vrot.slane %v4912, 4
        %v4915 = vrot.slane %v4796, 5
        %v4916 = vsel %vm2757, %v4914, %v4915
        %v4917 = vrot.slane %v4797, 5
        %v4918 = vrot.slane %v4917, 4
        %v4919 = vrot.slane %v4798, 5
        %v4920 = vsel %vm2757, %v4918, %v4919
        %v4921 = vrot.slane %v4919, 4
        %v4922 = vrot.slane %v4799, 5
        %v4923 = vsel %vm2757, %v4921, %v4922
        %v4924 = vrot.slane %v4800, 5
        %v4925 = vrot.slane %v4924, 4
        %v4926 = vrot.slane %v4801, 5
        %v4927 = vsel %vm2757, %v4925, %v4926
        %v4928 = vrot.slane %v4926, 4
        %v4929 = vrot.slane %v4802, 5
        %v4930 = vsel %vm2757, %v4928, %v4929
        %v4931 = vrot.slane %v4803, 5
        %v4932 = vrot.slane %v4931, 4
        %v4933 = vrot.slane %v4804, 5
        %v4934 = vsel %vm2757, %v4932, %v4933
        %v4935 = vrot.slane %v4933, 4
        %v4936 = vrot.slane %v4805, 5
        %v4937 = vsel %vm2757, %v4935, %v4936
        %v4938 = vrot.slane %v4806, 5
        %v4939 = vrot.slane %v4938, 4
        %v4940 = vrot.slane %v4807, 5
        %v4941 = vsel %vm2757, %v4939, %v4940
        %v4942 = vrot.slane %v4940, 4
        %v4943 = vrot.slane %v4808, 5
        %v4944 = vsel %vm2757, %v4942, %v4943
        %v4945 = vrot.slane %v4809, 5
        %v4946 = vrot.slane %v4945, 4
        %v4947 = vrot.slane %v4810, 5
        %v4948 = vsel %vm2757, %v4946, %v4947
        %v4949 = vrot.slane %v4947, 4
        %v4950 = vrot.slane %v4811, 5
        %v4951 = vsel %vm2757, %v4949, %v4950
        %v4952 = vrot.slane %v4812, 5
        %v4953 = vrot.slane %v4952, 4
        %v4954 = vrot.slane %v4813, 5
        %v4955 = vsel %vm2757, %v4953, %v4954
        %v4956 = vrot.slane %v4954, 4
        %v4957 = vrot.slane %v4814, 5
        %v4958 = vsel %vm2757, %v4956, %v4957
        %v4959 = vrot.slane %v4815, 5
        %v4960 = vrot.slane %v4959, 4
        %v4961 = vrot.slane %v4816, 5
        %v4962 = vsel %vm2757, %v4960, %v4961
        %v4963 = vrot.slane %v4961, 4
        %v4964 = vrot.slane %v4817, 5
        %v4965 = vsel %vm2757, %v4963, %v4964
        %v4966 = vrot.slane %v4818, 5
        %v4967 = vrot.slane %v4966, 4
        %v4968 = vrot.slane %v4819, 5
        %v4969 = vsel %vm2757, %v4967, %v4968
        %v4970 = vrot.slane %v4968, 4
        %v4971 = vrot.slane %v4820, 5
        %v4972 = vsel %vm2757, %v4970, %v4971
        %v4973 = vrot.slane %v4821, 5
        %v4974 = vrot.slane %v4973, 4
        %v4975 = vrot.slane %v4822, 5
        %v4976 = vsel %vm2757, %v4974, %v4975
        %v4977 = vrot.slane %v4975, 4
        %v4978 = vrot.slane %v4823, 5
        %v4979 = vsel %vm2757, %v4977, %v4978
        %v4980 = vrot.slane %v4824, 5
        %v4981 = vrot.slane %v4980, 4
        %v4982 = vrot.slane %v4825, 5
        %v4983 = vsel %vm2757, %v4981, %v4982
        %v4984 = vrot.slane %v4982, 4
        %v4985 = vrot.slane %v4826, 5
        %v4986 = vsel %vm2757, %v4984, %v4985
        %4987 = vrot.lane.b32.xlu0 %v4878, 20
        %v4988 = vpop.permute.xlu0 %4987
        %4989 = vrot.lane.b32.xlu0 %v4881, 20
        %v4990 = vpop.permute.xlu0 %4989
        %4991 = vrot.lane.b32.xlu0 %v4885, 20
        %v4992 = vpop.permute.xlu0 %4991
        %4993 = vrot.lane.b32.xlu0 %v4888, 20
        %v4994 = vpop.permute.xlu0 %4993
        %4995 = vrot.lane.b32.xlu0 %v4892, 20
        %v4996 = vpop.permute.xlu0 %4995
        %4997 = vrot.lane.b32.xlu0 %v4895, 20
        %v4998 = vpop.permute.xlu0 %4997
        %4999 = vrot.lane.b32.xlu0 %v4899, 20
        %v5000 = vpop.permute.xlu0 %4999
        %5001 = vrot.lane.b32.xlu0 %v4902, 20
        %v5002 = vpop.permute.xlu0 %5001
        %5003 = vrot.lane.b32.xlu0 %v4906, 20
        %v5004 = vpop.permute.xlu0 %5003
        %5005 = vrot.lane.b32.xlu0 %v4909, 20
        %v5006 = vpop.permute.xlu0 %5005
        %5007 = vrot.lane.b32.xlu0 %v4913, 20
        %v5008 = vpop.permute.xlu0 %5007
        %5009 = vrot.lane.b32.xlu0 %v4916, 20
        %v5010 = vpop.permute.xlu0 %5009
        %5011 = vrot.lane.b32.xlu0 %v4920, 20
        %v5012 = vpop.permute.xlu0 %5011
        %5013 = vrot.lane.b32.xlu0 %v4923, 20
        %v5014 = vpop.permute.xlu0 %5013
        %5015 = vrot.lane.b32.xlu0 %v4927, 20
        %v5016 = vpop.permute.xlu0 %5015
        %5017 = vrot.lane.b32.xlu0 %v4930, 20
        %v5018 = vpop.permute.xlu0 %5017
        %5019 = vrot.lane.b32.xlu0 %v4934, 20
        %v5020 = vpop.permute.xlu0 %5019
        %5021 = vrot.lane.b32.xlu0 %v4937, 20
        %v5022 = vpop.permute.xlu0 %5021
        %5023 = vrot.lane.b32.xlu0 %v4941, 20
        %v5024 = vpop.permute.xlu0 %5023
        %5025 = vrot.lane.b32.xlu0 %v4944, 20
        %v5026 = vpop.permute.xlu0 %5025
        %5027 = vrot.lane.b32.xlu0 %v4948, 20
        %v5028 = vpop.permute.xlu0 %5027
        %5029 = vrot.lane.b32.xlu0 %v4951, 20
        %v5030 = vpop.permute.xlu0 %5029
        %5031 = vrot.lane.b32.xlu0 %v4955, 20
        %v5032 = vpop.permute.xlu0 %5031
        %5033 = vrot.lane.b32.xlu0 %v4958, 20
        %v5034 = vpop.permute.xlu0 %5033
        %5035 = vrot.lane.b32.xlu0 %v4962, 20
        %v5036 = vpop.permute.xlu0 %5035
        %5037 = vrot.lane.b32.xlu0 %v4965, 20
        %v5038 = vpop.permute.xlu0 %5037
        %5039 = vrot.lane.b32.xlu0 %v4969, 20
        %v5040 = vpop.permute.xlu0 %5039
        %5041 = vrot.lane.b32.xlu0 %v4972, 20
        %v5042 = vpop.permute.xlu0 %5041
        %5043 = vrot.lane.b32.xlu0 %v4976, 20
        %v5044 = vpop.permute.xlu0 %5043
        %5045 = vrot.lane.b32.xlu0 %v4979, 20
        %v5046 = vpop.permute.xlu0 %5045
        %5047 = vrot.lane.b32.xlu0 %v4983, 20
        %v5048 = vpop.permute.xlu0 %5047
        %5049 = vrot.lane.b32.xlu0 %v4986, 20
        %v5050 = vpop.permute.xlu0 %5049
        %vm5083 = vcmask 191648
        %5084 = vst.msk [vmem:[#allocation4] sm:$0xf] %vm5083, %v4988
        %5085 = vst.msk [vmem:[#allocation4 + $0x4] sm:$0xf] %vm5083, %v4990
        %5086 = vst.msk [vmem:[#allocation4 + $0x8] sm:$0xf] %vm5083, %v4992
        %5087 = vst.msk [vmem:[#allocation4 + $0xc] sm:$0xf] %vm5083, %v4994
        %5088 = vst.msk [vmem:[#allocation4 + $0x10] sm:$0xf] %vm5083, %v4996
        %5089 = vst.msk [vmem:[#allocation4 + $0x14] sm:$0xf] %vm5083, %v4998
        %5090 = vst.msk [vmem:[#allocation4 + $0x18] sm:$0xf] %vm5083, %v5000
        %5091 = vst.msk [vmem:[#allocation4 + $0x1c] sm:$0xf] %vm5083, %v5002
        %5092 = vst.msk [vmem:[#allocation4 + $0x20] sm:$0xf] %vm5083, %v5004
        %5093 = vst.msk [vmem:[#allocation4 + $0x24] sm:$0xf] %vm5083, %v5006
        %5094 = vst.msk [vmem:[#allocation4 + $0x28] sm:$0xf] %vm5083, %v5008
        %5095 = vst.msk [vmem:[#allocation4 + $0x2c] sm:$0xf] %vm5083, %v5010
        %5096 = vst.msk [vmem:[#allocation4 + $0x30] sm:$0xf] %vm5083, %v5012
        %5097 = vst.msk [vmem:[#allocation4 + $0x34] sm:$0xf] %vm5083, %v5014
        %5098 = vst.msk [vmem:[#allocation4 + $0x38] sm:$0xf] %vm5083, %v5016
        %5099 = vst.msk [vmem:[#allocation4 + $0x3c] sm:$0xf] %vm5083, %v5018
        %5100 = vst.msk [vmem:[#allocation4 + $0x40] sm:$0xf] %vm5083, %v5020
        %5101 = vst.msk [vmem:[#allocation4 + $0x44] sm:$0xf] %vm5083, %v5022
        %5102 = vst.msk [vmem:[#allocation4 + $0x48] sm:$0xf] %vm5083, %v5024
        %5103 = vst.msk [vmem:[#allocation4 + $0x4c] sm:$0xf] %vm5083, %v5026
        %5104 = vst.msk [vmem:[#allocation4 + $0x50] sm:$0xf] %vm5083, %v5028
        %5105 = vst.msk [vmem:[#allocation4 + $0x54] sm:$0xf] %vm5083, %v5030
        %5106 = vst.msk [vmem:[#allocation4 + $0x58] sm:$0xf] %vm5083, %v5032
        %5107 = vst.msk [vmem:[#allocation4 + $0x5c] sm:$0xf] %vm5083, %v5034
        %5108 = vst.msk [vmem:[#allocation4 + $0x60] sm:$0xf] %vm5083, %v5036
        %5109 = vst.msk [vmem:[#allocation4 + $0x64] sm:$0xf] %vm5083, %v5038
        %5110 = vst.msk [vmem:[#allocation4 + $0x68] sm:$0xf] %vm5083, %v5040
        %5111 = vst.msk [vmem:[#allocation4 + $0x6c] sm:$0xf] %vm5083, %v5042
        %5112 = vst.msk [vmem:[#allocation4 + $0x70] sm:$0xf] %vm5083, %v5044
        %5113 = vst.msk [vmem:[#allocation4 + $0x74] sm:$0xf] %vm5083, %v5046
        %5114 = vst.msk [vmem:[#allocation4 + $0x78] sm:$0xf] %vm5083, %v5048
        %5115 = vst.msk [vmem:[#allocation4 + $0x7c] sm:$0xf] %vm5083, %v5050
        %v5116 = vld [vmem:[%s1289] sm:$0xe]
        %v5117 = vld [vmem:[%s1289 + $0x4] sm:$0xf]
        %v5118 = vld [vmem:[%s1289 + $0x8] sm:$0x1]
        %v5119 = vld [vmem:[%s1289 + $0xc] sm:$0xe]
        %v5120 = vld [vmem:[%s1289 + $0x10] sm:$0xf]
        %v5121 = vld [vmem:[%s1289 + $0x14] sm:$0x1]
        %v5122 = vld [vmem:[%s1289 + $0x18] sm:$0xe]
        %v5123 = vld [vmem:[%s1289 + $0x1c] sm:$0xf]
        %v5124 = vld [vmem:[%s1289 + $0x20] sm:$0x1]
        %v5125 = vld [vmem:[%s1289 + $0x24] sm:$0xe]
        %v5126 = vld [vmem:[%s1289 + $0x28] sm:$0xf]
        %v5127 = vld [vmem:[%s1289 + $0x2c] sm:$0x1]
        %v5128 = vld [vmem:[%s1289 + $0x30] sm:$0xe]
        %v5129 = vld [vmem:[%s1289 + $0x34] sm:$0xf]
        %v5130 = vld [vmem:[%s1289 + $0x38] sm:$0x1]
        %v5131 = vld [vmem:[%s1289 + $0x3c] sm:$0xe]
        %v5132 = vld [vmem:[%s1289 + $0x40] sm:$0xf]
        %v5133 = vld [vmem:[%s1289 + $0x44] sm:$0x1]
        %v5134 = vld [vmem:[%s1289 + $0x48] sm:$0xe]
        %v5135 = vld [vmem:[%s1289 + $0x4c] sm:$0xf]
        %v5136 = vld [vmem:[%s1289 + $0x50] sm:$0x1]
        %v5137 = vld [vmem:[%s1289 + $0x54] sm:$0xe]
        %v5138 = vld [vmem:[%s1289 + $0x58] sm:$0xf]
        %v5139 = vld [vmem:[%s1289 + $0x5c] sm:$0x1]
        %v5140 = vld [vmem:[%s1289 + $0x60] sm:$0xe]
        %v5141 = vld [vmem:[%s1289 + $0x64] sm:$0xf]
        %v5142 = vld [vmem:[%s1289 + $0x68] sm:$0x1]
        %v5143 = vld [vmem:[%s1289 + $0x6c] sm:$0xe]
        %v5144 = vld [vmem:[%s1289 + $0x70] sm:$0xf]
        %v5145 = vld [vmem:[%s1289 + $0x74] sm:$0x1]
        %v5146 = vld [vmem:[%s1289 + $0x78] sm:$0xe]
        %v5147 = vld [vmem:[%s1289 + $0x7c] sm:$0xf]
        %v5148 = vld [vmem:[%s1289 + $0x80] sm:$0x1]
        %v5149 = vld [vmem:[%s1289 + $0x84] sm:$0xe]
        %v5150 = vld [vmem:[%s1289 + $0x88] sm:$0xf]
        %v5151 = vld [vmem:[%s1289 + $0x8c] sm:$0x1]
        %v5152 = vld [vmem:[%s1289 + $0x90] sm:$0xe]
        %v5153 = vld [vmem:[%s1289 + $0x94] sm:$0xf]
        %v5154 = vld [vmem:[%s1289 + $0x98] sm:$0x1]
        %v5155 = vld [vmem:[%s1289 + $0x9c] sm:$0xe]
        %v5156 = vld [vmem:[%s1289 + $0xa0] sm:$0xf]
        %v5157 = vld [vmem:[%s1289 + $0xa4] sm:$0x1]
        %v5158 = vld [vmem:[%s1289 + $0xa8] sm:$0xe]
        %v5159 = vld [vmem:[%s1289 + $0xac] sm:$0xf]
        %v5160 = vld [vmem:[%s1289 + $0xb0] sm:$0x1]
        %v5161 = vld [vmem:[%s1289 + $0xb4] sm:$0xe]
        %v5162 = vld [vmem:[%s1289 + $0xb8] sm:$0xf]
        %v5163 = vld [vmem:[%s1289 + $0xbc] sm:$0x1]
        %v5212 = vrot.slane %v5116, 5
        %v5213 = vrot.slane %v5212, 4
        %v5214 = vrot.slane %v5117, 5
        %v5215 = vsel %vm2757, %v5213, %v5214
        %v5216 = vrot.slane %v5214, 4
        %v5217 = vrot.slane %v5118, 5
        %v5218 = vsel %vm2757, %v5216, %v5217
        %v5219 = vrot.slane %v5119, 5
        %v5220 = vrot.slane %v5219, 4
        %v5221 = vrot.slane %v5120, 5
        %v5222 = vsel %vm2757, %v5220, %v5221
        %v5223 = vrot.slane %v5221, 4
        %v5224 = vrot.slane %v5121, 5
        %v5225 = vsel %vm2757, %v5223, %v5224
        %v5226 = vrot.slane %v5122, 5
        %v5227 = vrot.slane %v5226, 4
        %v5228 = vrot.slane %v5123, 5
        %v5229 = vsel %vm2757, %v5227, %v5228
        %v5230 = vrot.slane %v5228, 4
        %v5231 = vrot.slane %v5124, 5
        %v5232 = vsel %vm2757, %v5230, %v5231
        %v5233 = vrot.slane %v5125, 5
        %v5234 = vrot.slane %v5233, 4
        %v5235 = vrot.slane %v5126, 5
        %v5236 = vsel %vm2757, %v5234, %v5235
        %v5237 = vrot.slane %v5235, 4
        %v5238 = vrot.slane %v5127, 5
        %v5239 = vsel %vm2757, %v5237, %v5238
        %v5240 = vrot.slane %v5128, 5
        %v5241 = vrot.slane %v5240, 4
        %v5242 = vrot.slane %v5129, 5
        %v5243 = vsel %vm2757, %v5241, %v5242
        %v5244 = vrot.slane %v5242, 4
        %v5245 = vrot.slane %v5130, 5
        %v5246 = vsel %vm2757, %v5244, %v5245
        %v5247 = vrot.slane %v5131, 5
        %v5248 = vrot.slane %v5247, 4
        %v5249 = vrot.slane %v5132, 5
        %v5250 = vsel %vm2757, %v5248, %v5249
        %v5251 = vrot.slane %v5249, 4
        %v5252 = vrot.slane %v5133, 5
        %v5253 = vsel %vm2757, %v5251, %v5252
        %v5254 = vrot.slane %v5134, 5
        %v5255 = vrot.slane %v5254, 4
        %v5256 = vrot.slane %v5135, 5
        %v5257 = vsel %vm2757, %v5255, %v5256
        %v5258 = vrot.slane %v5256, 4
        %v5259 = vrot.slane %v5136, 5
        %v5260 = vsel %vm2757, %v5258, %v5259
        %v5261 = vrot.slane %v5137, 5
        %v5262 = vrot.slane %v5261, 4
        %v5263 = vrot.slane %v5138, 5
        %v5264 = vsel %vm2757, %v5262, %v5263
        %v5265 = vrot.slane %v5263, 4
        %v5266 = vrot.slane %v5139, 5
        %v5267 = vsel %vm2757, %v5265, %v5266
        %v5268 = vrot.slane %v5140, 5
        %v5269 = vrot.slane %v5268, 4
        %v5270 = vrot.slane %v5141, 5
        %v5271 = vsel %vm2757, %v5269, %v5270
        %v5272 = vrot.slane %v5270, 4
        %v5273 = vrot.slane %v5142, 5
        %v5274 = vsel %vm2757, %v5272, %v5273
        %v5275 = vrot.slane %v5143, 5
        %v5276 = vrot.slane %v5275, 4
        %v5277 = vrot.slane %v5144, 5
        %v5278 = vsel %vm2757, %v5276, %v5277
        %v5279 = vrot.slane %v5277, 4
        %v5280 = vrot.slane %v5145, 5
        %v5281 = vsel %vm2757, %v5279, %v5280
        %v5282 = vrot.slane %v5146, 5
        %v5283 = vrot.slane %v5282, 4
        %v5284 = vrot.slane %v5147, 5
        %v5285 = vsel %vm2757, %v5283, %v5284
        %v5286 = vrot.slane %v5284, 4
        %v5287 = vrot.slane %v5148, 5
        %v5288 = vsel %vm2757, %v5286, %v5287
        %v5289 = vrot.slane %v5149, 5
        %v5290 = vrot.slane %v5289, 4
        %v5291 = vrot.slane %v5150, 5
        %v5292 = vsel %vm2757, %v5290, %v5291
        %v5293 = vrot.slane %v5291, 4
        %v5294 = vrot.slane %v5151, 5
        %v5295 = vsel %vm2757, %v5293, %v5294
        %v5296 = vrot.slane %v5152, 5
        %v5297 = vrot.slane %v5296, 4
        %v5298 = vrot.slane %v5153, 5
        %v5299 = vsel %vm2757, %v5297, %v5298
        %v5300 = vrot.slane %v5298, 4
        %v5301 = vrot.slane %v5154, 5
        %v5302 = vsel %vm2757, %v5300, %v5301
        %v5303 = vrot.slane %v5155, 5
        %v5304 = vrot.slane %v5303, 4
        %v5305 = vrot.slane %v5156, 5
        %v5306 = vsel %vm2757, %v5304, %v5305
        %v5307 = vrot.slane %v5305, 4
        %v5308 = vrot.slane %v5157, 5
        %v5309 = vsel %vm2757, %v5307, %v5308
        %v5310 = vrot.slane %v5158, 5
        %v5311 = vrot.slane %v5310, 4
        %v5312 = vrot.slane %v5159, 5
        %v5313 = vsel %vm2757, %v5311, %v5312
        %v5314 = vrot.slane %v5312, 4
        %v5315 = vrot.slane %v5160, 5
        %v5316 = vsel %vm2757, %v5314, %v5315
        %v5317 = vrot.slane %v5161, 5
        %v5318 = vrot.slane %v5317, 4
        %v5319 = vrot.slane %v5162, 5
        %v5320 = vsel %vm2757, %v5318, %v5319
        %v5321 = vrot.slane %v5319, 4
        %v5322 = vrot.slane %v5163, 5
        %v5323 = vsel %vm2757, %v5321, %v5322
        %5324 = vrot.lane.b32.xlu0 %v5215, 32
        %v5325 = vpop.permute.xlu0 %5324
        %5326 = vrot.lane.b32.xlu0 %v5218, 32
        %v5327 = vpop.permute.xlu0 %5326
        %5328 = vrot.lane.b32.xlu0 %v5222, 32
        %v5329 = vpop.permute.xlu0 %5328
        %5330 = vrot.lane.b32.xlu0 %v5225, 32
        %v5331 = vpop.permute.xlu0 %5330
        %5332 = vrot.lane.b32.xlu0 %v5229, 32
        %v5333 = vpop.permute.xlu0 %5332
        %5334 = vrot.lane.b32.xlu0 %v5232, 32
        %v5335 = vpop.permute.xlu0 %5334
        %5336 = vrot.lane.b32.xlu0 %v5236, 32
        %v5337 = vpop.permute.xlu0 %5336
        %5338 = vrot.lane.b32.xlu0 %v5239, 32
        %v5339 = vpop.permute.xlu0 %5338
        %5340 = vrot.lane.b32.xlu0 %v5243, 32
        %v5341 = vpop.permute.xlu0 %5340
        %5342 = vrot.lane.b32.xlu0 %v5246, 32
        %v5343 = vpop.permute.xlu0 %5342
        %5344 = vrot.lane.b32.xlu0 %v5250, 32
        %v5345 = vpop.permute.xlu0 %5344
        %5346 = vrot.lane.b32.xlu0 %v5253, 32
        %v5347 = vpop.permute.xlu0 %5346
        %5348 = vrot.lane.b32.xlu0 %v5257, 32
        %v5349 = vpop.permute.xlu0 %5348
        %5350 = vrot.lane.b32.xlu0 %v5260, 32
        %v5351 = vpop.permute.xlu0 %5350
        %5352 = vrot.lane.b32.xlu0 %v5264, 32
        %v5353 = vpop.permute.xlu0 %5352
        %5354 = vrot.lane.b32.xlu0 %v5267, 32
        %v5355 = vpop.permute.xlu0 %5354
        %5356 = vrot.lane.b32.xlu0 %v5271, 32
        %v5357 = vpop.permute.xlu0 %5356
        %5358 = vrot.lane.b32.xlu0 %v5274, 32
        %v5359 = vpop.permute.xlu0 %5358
        %5360 = vrot.lane.b32.xlu0 %v5278, 32
        %v5361 = vpop.permute.xlu0 %5360
        %5362 = vrot.lane.b32.xlu0 %v5281, 32
        %v5363 = vpop.permute.xlu0 %5362
        %5364 = vrot.lane.b32.xlu0 %v5285, 32
        %v5365 = vpop.permute.xlu0 %5364
        %5366 = vrot.lane.b32.xlu0 %v5288, 32
        %v5367 = vpop.permute.xlu0 %5366
        %5368 = vrot.lane.b32.xlu0 %v5292, 32
        %v5369 = vpop.permute.xlu0 %5368
        %5370 = vrot.lane.b32.xlu0 %v5295, 32
        %v5371 = vpop.permute.xlu0 %5370
        %5372 = vrot.lane.b32.xlu0 %v5299, 32
        %v5373 = vpop.permute.xlu0 %5372
        %5374 = vrot.lane.b32.xlu0 %v5302, 32
        %v5375 = vpop.permute.xlu0 %5374
        %5376 = vrot.lane.b32.xlu0 %v5306, 32
        %v5377 = vpop.permute.xlu0 %5376
        %5378 = vrot.lane.b32.xlu0 %v5309, 32
        %v5379 = vpop.permute.xlu0 %5378
        %5380 = vrot.lane.b32.xlu0 %v5313, 32
        %v5381 = vpop.permute.xlu0 %5380
        %5382 = vrot.lane.b32.xlu0 %v5316, 32
        %v5383 = vpop.permute.xlu0 %5382
        %5384 = vrot.lane.b32.xlu0 %v5320, 32
        %v5385 = vpop.permute.xlu0 %5384
        %5386 = vrot.lane.b32.xlu0 %v5323, 32
        %v5387 = vpop.permute.xlu0 %5386
        %5420 = vst.msk [vmem:[#allocation5 + $0x4] sm:$0xf] %vm2626, %v5325
        %5421 = vst.msk [vmem:[#allocation5 + $0x10] sm:$0xf] %vm2626, %v5327
        %5422 = vst.msk [vmem:[#allocation5 + $0x1c] sm:$0xf] %vm2626, %v5329
        %5423 = vst.msk [vmem:[#allocation5 + $0x28] sm:$0xf] %vm2626, %v5331
        %5424 = vst.msk [vmem:[#allocation5 + $0x34] sm:$0xf] %vm2626, %v5333
        %5425 = vst.msk [vmem:[#allocation5 + $0x40] sm:$0xf] %vm2626, %v5335
        %5426 = vst.msk [vmem:[#allocation5 + $0x4c] sm:$0xf] %vm2626, %v5337
        %5427 = vst.msk [vmem:[#allocation5 + $0x58] sm:$0xf] %vm2626, %v5339
        %5428 = vst.msk [vmem:[#allocation5 + $0x64] sm:$0xf] %vm2626, %v5341
        %5429 = vst.msk [vmem:[#allocation5 + $0x70] sm:$0xf] %vm2626, %v5343
        %5430 = vst.msk [vmem:[#allocation5 + $0x7c] sm:$0xf] %vm2626, %v5345
        %5431 = vst.msk [vmem:[#allocation5 + $0x88] sm:$0xf] %vm2626, %v5347
        %5432 = vst.msk [vmem:[#allocation5 + $0x94] sm:$0xf] %vm2626, %v5349
        %5433 = vst.msk [vmem:[#allocation5 + $0xa0] sm:$0xf] %vm2626, %v5351
        %5434 = vst.msk [vmem:[#allocation5 + $0xac] sm:$0xf] %vm2626, %v5353
        %5435 = vst.msk [vmem:[#allocation5 + $0xb8] sm:$0xf] %vm2626, %v5355
        %5436 = vst.msk [vmem:[#allocation5 + $0xc4] sm:$0xf] %vm2626, %v5357
        %5437 = vst.msk [vmem:[#allocation5 + $0xd0] sm:$0xf] %vm2626, %v5359
        %5438 = vst.msk [vmem:[#allocation5 + $0xdc] sm:$0xf] %vm2626, %v5361
        %5439 = vst.msk [vmem:[#allocation5 + $0xe8] sm:$0xf] %vm2626, %v5363
        %5440 = vst.msk [vmem:[#allocation5 + $0xf4] sm:$0xf] %vm2626, %v5365
        %5441 = vst.msk [vmem:[#allocation5 + $0x100] sm:$0xf] %vm2626, %v5367
        %5442 = vst.msk [vmem:[#allocation5 + $0x10c] sm:$0xf] %vm2626, %v5369
        %5443 = vst.msk [vmem:[#allocation5 + $0x118] sm:$0xf] %vm2626, %v5371
        %5444 = vst.msk [vmem:[#allocation5 + $0x124] sm:$0xf] %vm2626, %v5373
        %5445 = vst.msk [vmem:[#allocation5 + $0x130] sm:$0xf] %vm2626, %v5375
        %5446 = vst.msk [vmem:[#allocation5 + $0x13c] sm:$0xf] %vm2626, %v5377
        %5447 = vst.msk [vmem:[#allocation5 + $0x148] sm:$0xf] %vm2626, %v5379
        %5448 = vst.msk [vmem:[#allocation5 + $0x154] sm:$0xf] %vm2626, %v5381
        %5449 = vst.msk [vmem:[#allocation5 + $0x160] sm:$0xf] %vm2626, %v5383
        %5450 = vst.msk [vmem:[#allocation5 + $0x16c] sm:$0xf] %vm2626, %v5385
        %5451 = vst.msk [vmem:[#allocation5 + $0x178] sm:$0xf] %vm2626, %v5387
        %s5452 = scalar_lea.vmem [#allocation2], 24
        %v5453 = vld [vmem:[%s5452] sm:$0xf]
        %v5454 = vld [vmem:[%s5452 + $0x4] sm:$0xf]
        %v5455 = vld [vmem:[%s5452 + $0xc] sm:$0xf]
        %v5456 = vld [vmem:[%s5452 + $0x10] sm:$0xf]
        %v5457 = vld [vmem:[%s5452 + $0x18] sm:$0xf]
        %v5458 = vld [vmem:[%s5452 + $0x1c] sm:$0xf]
        %v5459 = vld [vmem:[%s5452 + $0x24] sm:$0xf]
        %v5460 = vld [vmem:[%s5452 + $0x28] sm:$0xf]
        %v5461 = vld [vmem:[%s5452 + $0x30] sm:$0xf]
        %v5462 = vld [vmem:[%s5452 + $0x34] sm:$0xf]
        %v5463 = vld [vmem:[%s5452 + $0x3c] sm:$0xf]
        %v5464 = vld [vmem:[%s5452 + $0x40] sm:$0xf]
        %v5465 = vld [vmem:[%s5452 + $0x48] sm:$0xf]
        %v5466 = vld [vmem:[%s5452 + $0x4c] sm:$0xf]
        %v5467 = vld [vmem:[%s5452 + $0x54] sm:$0xf]
        %v5468 = vld [vmem:[%s5452 + $0x58] sm:$0xf]
        %v5469 = vld [vmem:[%s5452 + $0x60] sm:$0xf]
        %v5470 = vld [vmem:[%s5452 + $0x64] sm:$0xf]
        %v5471 = vld [vmem:[%s5452 + $0x6c] sm:$0xf]
        %v5472 = vld [vmem:[%s5452 + $0x70] sm:$0xf]
        %v5473 = vld [vmem:[%s5452 + $0x78] sm:$0xf]
        %v5474 = vld [vmem:[%s5452 + $0x7c] sm:$0xf]
        %v5475 = vld [vmem:[%s5452 + $0x84] sm:$0xf]
        %v5476 = vld [vmem:[%s5452 + $0x88] sm:$0xf]
        %v5477 = vld [vmem:[%s5452 + $0x90] sm:$0xf]
        %v5478 = vld [vmem:[%s5452 + $0x94] sm:$0xf]
        %v5479 = vld [vmem:[%s5452 + $0x9c] sm:$0xf]
        %v5480 = vld [vmem:[%s5452 + $0xa0] sm:$0xf]
        %v5481 = vld [vmem:[%s5452 + $0xa8] sm:$0xf]
        %v5482 = vld [vmem:[%s5452 + $0xac] sm:$0xf]
        %v5483 = vld [vmem:[%s5452 + $0xb4] sm:$0xf]
        %v5484 = vld [vmem:[%s5452 + $0xb8] sm:$0xf]
        %5517 = vrot.lane.b32.xlu0 %v5453, 24
        %v5518 = vpop.permute.xlu0 %5517
        %5519 = vrot.lane.b32.xlu0 %v5454, 24
        %v5520 = vpop.permute.xlu0 %5519
        %5521 = vrot.lane.b32.xlu0 %v5455, 24
        %v5522 = vpop.permute.xlu0 %5521
        %5523 = vrot.lane.b32.xlu0 %v5456, 24
        %v5524 = vpop.permute.xlu0 %5523
        %5525 = vrot.lane.b32.xlu0 %v5457, 24
        %v5526 = vpop.permute.xlu0 %5525
        %5527 = vrot.lane.b32.xlu0 %v5458, 24
        %v5528 = vpop.permute.xlu0 %5527
        %5529 = vrot.lane.b32.xlu0 %v5459, 24
        %v5530 = vpop.permute.xlu0 %5529
        %5531 = vrot.lane.b32.xlu0 %v5460, 24
        %v5532 = vpop.permute.xlu0 %5531
        %5533 = vrot.lane.b32.xlu0 %v5461, 24
        %v5534 = vpop.permute.xlu0 %5533
        %5535 = vrot.lane.b32.xlu0 %v5462, 24
        %v5536 = vpop.permute.xlu0 %5535
        %5537 = vrot.lane.b32.xlu0 %v5463, 24
        %v5538 = vpop.permute.xlu0 %5537
        %5539 = vrot.lane.b32.xlu0 %v5464, 24
        %v5540 = vpop.permute.xlu0 %5539
        %5541 = vrot.lane.b32.xlu0 %v5465, 24
        %v5542 = vpop.permute.xlu0 %5541
        %5543 = vrot.lane.b32.xlu0 %v5466, 24
        %v5544 = vpop.permute.xlu0 %5543
        %5545 = vrot.lane.b32.xlu0 %v5467, 24
        %v5546 = vpop.permute.xlu0 %5545
        %5547 = vrot.lane.b32.xlu0 %v5468, 24
        %v5548 = vpop.permute.xlu0 %5547
        %5549 = vrot.lane.b32.xlu0 %v5469, 24
        %v5550 = vpop.permute.xlu0 %5549
        %5551 = vrot.lane.b32.xlu0 %v5470, 24
        %v5552 = vpop.permute.xlu0 %5551
        %5553 = vrot.lane.b32.xlu0 %v5471, 24
        %v5554 = vpop.permute.xlu0 %5553
        %5555 = vrot.lane.b32.xlu0 %v5472, 24
        %v5556 = vpop.permute.xlu0 %5555
        %5557 = vrot.lane.b32.xlu0 %v5473, 24
        %v5558 = vpop.permute.xlu0 %5557
        %5559 = vrot.lane.b32.xlu0 %v5474, 24
        %v5560 = vpop.permute.xlu0 %5559
        %5561 = vrot.lane.b32.xlu0 %v5475, 24
        %v5562 = vpop.permute.xlu0 %5561
        %5563 = vrot.lane.b32.xlu0 %v5476, 24
        %v5564 = vpop.permute.xlu0 %5563
        %5565 = vrot.lane.b32.xlu0 %v5477, 24
        %v5566 = vpop.permute.xlu0 %5565
        %5567 = vrot.lane.b32.xlu0 %v5478, 24
        %v5568 = vpop.permute.xlu0 %5567
        %5569 = vrot.lane.b32.xlu0 %v5479, 24
        %v5570 = vpop.permute.xlu0 %5569
        %5571 = vrot.lane.b32.xlu0 %v5480, 24
        %v5572 = vpop.permute.xlu0 %5571
        %5573 = vrot.lane.b32.xlu0 %v5481, 24
        %v5574 = vpop.permute.xlu0 %5573
        %5575 = vrot.lane.b32.xlu0 %v5482, 24
        %v5576 = vpop.permute.xlu0 %5575
        %5577 = vrot.lane.b32.xlu0 %v5483, 24
        %v5578 = vpop.permute.xlu0 %5577
        %5579 = vrot.lane.b32.xlu0 %v5484, 24
        %v5580 = vpop.permute.xlu0 %5579
        %vm5613 = vcmask 224448
        %5614 = vst.msk [vmem:[#allocation4] sm:$0xf] %vm5613, %v5518
        %5615 = vst.msk [vmem:[#allocation4 + $0x4] sm:$0xf] %vm5613, %v5520
        %5616 = vst.msk [vmem:[#allocation4 + $0x8] sm:$0xf] %vm5613, %v5522
        %5617 = vst.msk [vmem:[#allocation4 + $0xc] sm:$0xf] %vm5613, %v5524
        %5618 = vst.msk [vmem:[#allocation4 + $0x10] sm:$0xf] %vm5613, %v5526
        %5619 = vst.msk [vmem:[#allocation4 + $0x14] sm:$0xf] %vm5613, %v5528
        %5620 = vst.msk [vmem:[#allocation4 + $0x18] sm:$0xf] %vm5613, %v5530
        %5621 = vst.msk [vmem:[#allocation4 + $0x1c] sm:$0xf] %vm5613, %v5532
        %5622 = vst.msk [vmem:[#allocation4 + $0x20] sm:$0xf] %vm5613, %v5534
        %5623 = vst.msk [vmem:[#allocation4 + $0x24] sm:$0xf] %vm5613, %v5536
        %5624 = vst.msk [vmem:[#allocation4 + $0x28] sm:$0xf] %vm5613, %v5538
        %5625 = vst.msk [vmem:[#allocation4 + $0x2c] sm:$0xf] %vm5613, %v5540
        %5626 = vst.msk [vmem:[#allocation4 + $0x30] sm:$0xf] %vm5613, %v5542
        %5627 = vst.msk [vmem:[#allocation4 + $0x34] sm:$0xf] %vm5613, %v5544
        %5628 = vst.msk [vmem:[#allocation4 + $0x38] sm:$0xf] %vm5613, %v5546
        %5629 = vst.msk [vmem:[#allocation4 + $0x3c] sm:$0xf] %vm5613, %v5548
        %5630 = vst.msk [vmem:[#allocation4 + $0x40] sm:$0xf] %vm5613, %v5550
        %5631 = vst.msk [vmem:[#allocation4 + $0x44] sm:$0xf] %vm5613, %v5552
        %5632 = vst.msk [vmem:[#allocation4 + $0x48] sm:$0xf] %vm5613, %v5554
        %5633 = vst.msk [vmem:[#allocation4 + $0x4c] sm:$0xf] %vm5613, %v5556
        %5634 = vst.msk [vmem:[#allocation4 + $0x50] sm:$0xf] %vm5613, %v5558
        %5635 = vst.msk [vmem:[#allocation4 + $0x54] sm:$0xf] %vm5613, %v5560
        %5636 = vst.msk [vmem:[#allocation4 + $0x58] sm:$0xf] %vm5613, %v5562
        %5637 = vst.msk [vmem:[#allocation4 + $0x5c] sm:$0xf] %vm5613, %v5564
        %5638 = vst.msk [vmem:[#allocation4 + $0x60] sm:$0xf] %vm5613, %v5566
        %5639 = vst.msk [vmem:[#allocation4 + $0x64] sm:$0xf] %vm5613, %v5568
        %5640 = vst.msk [vmem:[#allocation4 + $0x68] sm:$0xf] %vm5613, %v5570
        %5641 = vst.msk [vmem:[#allocation4 + $0x6c] sm:$0xf] %vm5613, %v5572
        %5642 = vst.msk [vmem:[#allocation4 + $0x70] sm:$0xf] %vm5613, %v5574
        %5643 = vst.msk [vmem:[#allocation4 + $0x74] sm:$0xf] %vm5613, %v5576
        %5644 = vst.msk [vmem:[#allocation4 + $0x78] sm:$0xf] %vm5613, %v5578
        %5645 = vst.msk [vmem:[#allocation4 + $0x7c] sm:$0xf] %vm5613, %v5580
        %s5646 = scalar_lea.vmem [#allocation3], 24
        %v5647 = vld [vmem:[%s5646] sm:$0xf]
        %v5648 = vld [vmem:[%s5646 + $0x4] sm:$0xf]
        %v5649 = vld [vmem:[%s5646 + $0xc] sm:$0xf]
        %v5650 = vld [vmem:[%s5646 + $0x10] sm:$0xf]
        %v5651 = vld [vmem:[%s5646 + $0x18] sm:$0xf]
        %v5652 = vld [vmem:[%s5646 + $0x1c] sm:$0xf]
        %v5653 = vld [vmem:[%s5646 + $0x24] sm:$0xf]
        %v5654 = vld [vmem:[%s5646 + $0x28] sm:$0xf]
        %v5655 = vld [vmem:[%s5646 + $0x30] sm:$0xf]
        %v5656 = vld [vmem:[%s5646 + $0x34] sm:$0xf]
        %v5657 = vld [vmem:[%s5646 + $0x3c] sm:$0xf]
        %v5658 = vld [vmem:[%s5646 + $0x40] sm:$0xf]
        %v5659 = vld [vmem:[%s5646 + $0x48] sm:$0xf]
        %v5660 = vld [vmem:[%s5646 + $0x4c] sm:$0xf]
        %v5661 = vld [vmem:[%s5646 + $0x54] sm:$0xf]
        %v5662 = vld [vmem:[%s5646 + $0x58] sm:$0xf]
        %v5663 = vld [vmem:[%s5646 + $0x60] sm:$0xf]
        %v5664 = vld [vmem:[%s5646 + $0x64] sm:$0xf]
        %v5665 = vld [vmem:[%s5646 + $0x6c] sm:$0xf]
        %v5666 = vld [vmem:[%s5646 + $0x70] sm:$0xf]
        %v5667 = vld [vmem:[%s5646 + $0x78] sm:$0xf]
        %v5668 = vld [vmem:[%s5646 + $0x7c] sm:$0xf]
        %v5669 = vld [vmem:[%s5646 + $0x84] sm:$0xf]
        %v5670 = vld [vmem:[%s5646 + $0x88] sm:$0xf]
        %v5671 = vld [vmem:[%s5646 + $0x90] sm:$0xf]
        %v5672 = vld [vmem:[%s5646 + $0x94] sm:$0xf]
        %v5673 = vld [vmem:[%s5646 + $0x9c] sm:$0xf]
        %v5674 = vld [vmem:[%s5646 + $0xa0] sm:$0xf]
        %v5675 = vld [vmem:[%s5646 + $0xa8] sm:$0xf]
        %v5676 = vld [vmem:[%s5646 + $0xac] sm:$0xf]
        %v5677 = vld [vmem:[%s5646 + $0xb4] sm:$0xf]
        %v5678 = vld [vmem:[%s5646 + $0xb8] sm:$0xf]
        %5711 = vrot.lane.b32.xlu0 %v5647, 64
        %v5712 = vpop.permute.xlu0 %5711
        %5713 = vrot.lane.b32.xlu0 %v5648, 64
        %v5714 = vpop.permute.xlu0 %5713
        %5715 = vrot.lane.b32.xlu0 %v5649, 64
        %v5716 = vpop.permute.xlu0 %5715
        %5717 = vrot.lane.b32.xlu0 %v5650, 64
        %v5718 = vpop.permute.xlu0 %5717
        %5719 = vrot.lane.b32.xlu0 %v5651, 64
        %v5720 = vpop.permute.xlu0 %5719
        %5721 = vrot.lane.b32.xlu0 %v5652, 64
        %v5722 = vpop.permute.xlu0 %5721
        %5723 = vrot.lane.b32.xlu0 %v5653, 64
        %v5724 = vpop.permute.xlu0 %5723
        %5725 = vrot.lane.b32.xlu0 %v5654, 64
        %v5726 = vpop.permute.xlu0 %5725
        %5727 = vrot.lane.b32.xlu0 %v5655, 64
        %v5728 = vpop.permute.xlu0 %5727
        %5729 = vrot.lane.b32.xlu0 %v5656, 64
        %v5730 = vpop.permute.xlu0 %5729
        %5731 = vrot.lane.b32.xlu0 %v5657, 64
        %v5732 = vpop.permute.xlu0 %5731
        %5733 = vrot.lane.b32.xlu0 %v5658, 64
        %v5734 = vpop.permute.xlu0 %5733
        %5735 = vrot.lane.b32.xlu0 %v5659, 64
        %v5736 = vpop.permute.xlu0 %5735
        %5737 = vrot.lane.b32.xlu0 %v5660, 64
        %v5738 = vpop.permute.xlu0 %5737
        %5739 = vrot.lane.b32.xlu0 %v5661, 64
        %v5740 = vpop.permute.xlu0 %5739
        %5741 = vrot.lane.b32.xlu0 %v5662, 64
        %v5742 = vpop.permute.xlu0 %5741
        %5743 = vrot.lane.b32.xlu0 %v5663, 64
        %v5744 = vpop.permute.xlu0 %5743
        %5745 = vrot.lane.b32.xlu0 %v5664, 64
        %v5746 = vpop.permute.xlu0 %5745
        %5747 = vrot.lane.b32.xlu0 %v5665, 64
        %v5748 = vpop.permute.xlu0 %5747
        %5749 = vrot.lane.b32.xlu0 %v5666, 64
        %v5750 = vpop.permute.xlu0 %5749
        %5751 = vrot.lane.b32.xlu0 %v5667, 64
        %v5752 = vpop.permute.xlu0 %5751
        %5753 = vrot.lane.b32.xlu0 %v5668, 64
        %v5754 = vpop.permute.xlu0 %5753
        %5755 = vrot.lane.b32.xlu0 %v5669, 64
        %v5756 = vpop.permute.xlu0 %5755
        %5757 = vrot.lane.b32.xlu0 %v5670, 64
        %v5758 = vpop.permute.xlu0 %5757
        %5759 = vrot.lane.b32.xlu0 %v5671, 64
        %v5760 = vpop.permute.xlu0 %5759
        %5761 = vrot.lane.b32.xlu0 %v5672, 64
        %v5762 = vpop.permute.xlu0 %5761
        %5763 = vrot.lane.b32.xlu0 %v5673, 64
        %v5764 = vpop.permute.xlu0 %5763
        %5765 = vrot.lane.b32.xlu0 %v5674, 64
        %v5766 = vpop.permute.xlu0 %5765
        %5767 = vrot.lane.b32.xlu0 %v5675, 64
        %v5768 = vpop.permute.xlu0 %5767
        %5769 = vrot.lane.b32.xlu0 %v5676, 64
        %v5770 = vpop.permute.xlu0 %5769
        %5771 = vrot.lane.b32.xlu0 %v5677, 64
        %v5772 = vpop.permute.xlu0 %5771
        %5773 = vrot.lane.b32.xlu0 %v5678, 64
        %v5774 = vpop.permute.xlu0 %5773
        %5807 = vst.msk [vmem:[#allocation5 + $0x4] sm:$0xf] %vm3303, %v5712
        %5808 = vst.msk [vmem:[#allocation5 + $0x10] sm:$0xf] %vm3303, %v5714
        %5809 = vst.msk [vmem:[#allocation5 + $0x1c] sm:$0xf] %vm3303, %v5716
        %5810 = vst.msk [vmem:[#allocation5 + $0x28] sm:$0xf] %vm3303, %v5718
        %5811 = vst.msk [vmem:[#allocation5 + $0x34] sm:$0xf] %vm3303, %v5720
        %5812 = vst.msk [vmem:[#allocation5 + $0x40] sm:$0xf] %vm3303, %v5722
        %5813 = vst.msk [vmem:[#allocation5 + $0x4c] sm:$0xf] %vm3303, %v5724
        %5814 = vst.msk [vmem:[#allocation5 + $0x58] sm:$0xf] %vm3303, %v5726
        %5815 = vst.msk [vmem:[#allocation5 + $0x64] sm:$0xf] %vm3303, %v5728
        %5816 = vst.msk [vmem:[#allocation5 + $0x70] sm:$0xf] %vm3303, %v5730
        %5817 = vst.msk [vmem:[#allocation5 + $0x7c] sm:$0xf] %vm3303, %v5732
        %5818 = vst.msk [vmem:[#allocation5 + $0x88] sm:$0xf] %vm3303, %v5734
        %5819 = vst.msk [vmem:[#allocation5 + $0x94] sm:$0xf] %vm3303, %v5736
        %5820 = vst.msk [vmem:[#allocation5 + $0xa0] sm:$0xf] %vm3303, %v5738
        %5821 = vst.msk [vmem:[#allocation5 + $0xac] sm:$0xf] %vm3303, %v5740
        %5822 = vst.msk [vmem:[#allocation5 + $0xb8] sm:$0xf] %vm3303, %v5742
        %5823 = vst.msk [vmem:[#allocation5 + $0xc4] sm:$0xf] %vm3303, %v5744
        %5824 = vst.msk [vmem:[#allocation5 + $0xd0] sm:$0xf] %vm3303, %v5746
        %5825 = vst.msk [vmem:[#allocation5 + $0xdc] sm:$0xf] %vm3303, %v5748
        %5826 = vst.msk [vmem:[#allocation5 + $0xe8] sm:$0xf] %vm3303, %v5750
        %5827 = vst.msk [vmem:[#allocation5 + $0xf4] sm:$0xf] %vm3303, %v5752
        %5828 = vst.msk [vmem:[#allocation5 + $0x100] sm:$0xf] %vm3303, %v5754
        %5829 = vst.msk [vmem:[#allocation5 + $0x10c] sm:$0xf] %vm3303, %v5756
        %5830 = vst.msk [vmem:[#allocation5 + $0x118] sm:$0xf] %vm3303, %v5758
        %5831 = vst.msk [vmem:[#allocation5 + $0x124] sm:$0xf] %vm3303, %v5760
        %5832 = vst.msk [vmem:[#allocation5 + $0x130] sm:$0xf] %vm3303, %v5762
        %5833 = vst.msk [vmem:[#allocation5 + $0x13c] sm:$0xf] %vm3303, %v5764
        %5834 = vst.msk [vmem:[#allocation5 + $0x148] sm:$0xf] %vm3303, %v5766
        %5835 = vst.msk [vmem:[#allocation5 + $0x154] sm:$0xf] %vm3303, %v5768
        %5836 = vst.msk [vmem:[#allocation5 + $0x160] sm:$0xf] %vm3303, %v5770
        %5837 = vst.msk [vmem:[#allocation5 + $0x16c] sm:$0xf] %vm3303, %v5772
        %5838 = vst.msk [vmem:[#allocation5 + $0x178] sm:$0xf] %vm3303, %v5774
        %v5839 = vld [vmem:[%s5452] sm:$0xf]
        %v5840 = vld [vmem:[%s5452 + $0x4] sm:$0xf]
        %v5841 = vld [vmem:[%s5452 + $0x8] sm:$0x1]
        %v5842 = vld [vmem:[%s5452 + $0xc] sm:$0xf]
        %v5843 = vld [vmem:[%s5452 + $0x10] sm:$0xf]
        %v5844 = vld [vmem:[%s5452 + $0x14] sm:$0x1]
        %v5845 = vld [vmem:[%s5452 + $0x18] sm:$0xf]
        %v5846 = vld [vmem:[%s5452 + $0x1c] sm:$0xf]
        %v5847 = vld [vmem:[%s5452 + $0x20] sm:$0x1]
        %v5848 = vld [vmem:[%s5452 + $0x24] sm:$0xf]
        %v5849 = vld [vmem:[%s5452 + $0x28] sm:$0xf]
        %v5850 = vld [vmem:[%s5452 + $0x2c] sm:$0x1]
        %v5851 = vld [vmem:[%s5452 + $0x30] sm:$0xf]
        %v5852 = vld [vmem:[%s5452 + $0x34] sm:$0xf]
        %v5853 = vld [vmem:[%s5452 + $0x38] sm:$0x1]
        %v5854 = vld [vmem:[%s5452 + $0x3c] sm:$0xf]
        %v5855 = vld [vmem:[%s5452 + $0x40] sm:$0xf]
        %v5856 = vld [vmem:[%s5452 + $0x44] sm:$0x1]
        %v5857 = vld [vmem:[%s5452 + $0x48] sm:$0xf]
        %v5858 = vld [vmem:[%s5452 + $0x4c] sm:$0xf]
        %v5859 = vld [vmem:[%s5452 + $0x50] sm:$0x1]
        %v5860 = vld [vmem:[%s5452 + $0x54] sm:$0xf]
        %v5861 = vld [vmem:[%s5452 + $0x58] sm:$0xf]
        %v5862 = vld [vmem:[%s5452 + $0x5c] sm:$0x1]
        %v5863 = vld [vmem:[%s5452 + $0x60] sm:$0xf]
        %v5864 = vld [vmem:[%s5452 + $0x64] sm:$0xf]
        %v5865 = vld [vmem:[%s5452 + $0x68] sm:$0x1]
        %v5866 = vld [vmem:[%s5452 + $0x6c] sm:$0xf]
        %v5867 = vld [vmem:[%s5452 + $0x70] sm:$0xf]
        %v5868 = vld [vmem:[%s5452 + $0x74] sm:$0x1]
        %v5869 = vld [vmem:[%s5452 + $0x78] sm:$0xf]
        %v5870 = vld [vmem:[%s5452 + $0x7c] sm:$0xf]
        %v5871 = vld [vmem:[%s5452 + $0x80] sm:$0x1]
        %v5872 = vld [vmem:[%s5452 + $0x84] sm:$0xf]
        %v5873 = vld [vmem:[%s5452 + $0x88] sm:$0xf]
        %v5874 = vld [vmem:[%s5452 + $0x8c] sm:$0x1]
        %v5875 = vld [vmem:[%s5452 + $0x90] sm:$0xf]
        %v5876 = vld [vmem:[%s5452 + $0x94] sm:$0xf]
        %v5877 = vld [vmem:[%s5452 + $0x98] sm:$0x1]
        %v5878 = vld [vmem:[%s5452 + $0x9c] sm:$0xf]
        %v5879 = vld [vmem:[%s5452 + $0xa0] sm:$0xf]
        %v5880 = vld [vmem:[%s5452 + $0xa4] sm:$0x1]
        %v5881 = vld [vmem:[%s5452 + $0xa8] sm:$0xf]
        %v5882 = vld [vmem:[%s5452 + $0xac] sm:$0xf]
        %v5883 = vld [vmem:[%s5452 + $0xb0] sm:$0x1]
        %v5884 = vld [vmem:[%s5452 + $0xb4] sm:$0xf]
        %v5885 = vld [vmem:[%s5452 + $0xb8] sm:$0xf]
        %v5886 = vld [vmem:[%s5452 + $0xbc] sm:$0x1]
        %v5888 = vshrl.u32 %v5839, 16
        %v5890 = vrot.slane %v5888, 4
        %v5891 = vshll.u32 %v5839, 16
        %v5893 = vrot.slane %v5891, 5
        %v5894 = vor.u32 %v5890, %v5893
        %v5895 = vrot.slane %v5894, 4
        %v5897 = vshll.u32 %v5840, 16
        %v5899 = vrot.slane %v5897, 5
        %v5900 = vsel %vm1584, %v5895, %v5899
        %v5901 = vshrl.u32 %v5840, 16
        %v5903 = vrot.slane %v5901, 4
        %v5904 = vor.u32 %v5903, %v5899
        %v5905 = vrot.slane %v5904, 4
        %v5907 = vshll.u32 %v5841, 16
        %v5909 = vrot.slane %v5907, 5
        %v5910 = vsel %vm1584, %v5905, %v5909
        %v5912 = vshrl.u32 %v5842, 16
        %v5914 = vrot.slane %v5912, 4
        %v5915 = vshll.u32 %v5842, 16
        %v5917 = vrot.slane %v5915, 5
        %v5918 = vor.u32 %v5914, %v5917
        %v5919 = vrot.slane %v5918, 4
        %v5921 = vshll.u32 %v5843, 16
        %v5923 = vrot.slane %v5921, 5
        %v5924 = vsel %vm1584, %v5919, %v5923
        %v5925 = vshrl.u32 %v5843, 16
        %v5927 = vrot.slane %v5925, 4
        %v5928 = vor.u32 %v5927, %v5923
        %v5929 = vrot.slane %v5928, 4
        %v5931 = vshll.u32 %v5844, 16
        %v5933 = vrot.slane %v5931, 5
        %v5934 = vsel %vm1584, %v5929, %v5933
        %v5936 = vshrl.u32 %v5845, 16
        %v5938 = vrot.slane %v5936, 4
        %v5939 = vshll.u32 %v5845, 16
        %v5941 = vrot.slane %v5939, 5
        %v5942 = vor.u32 %v5938, %v5941
        %v5943 = vrot.slane %v5942, 4
        %v5945 = vshll.u32 %v5846, 16
        %v5947 = vrot.slane %v5945, 5
        %v5948 = vsel %vm1584, %v5943, %v5947
        %v5949 = vshrl.u32 %v5846, 16
        %v5951 = vrot.slane %v5949, 4
        %v5952 = vor.u32 %v5951, %v5947
        %v5953 = vrot.slane %v5952, 4
        %v5955 = vshll.u32 %v5847, 16
        %v5957 = vrot.slane %v5955, 5
        %v5958 = vsel %vm1584, %v5953, %v5957
        %v5960 = vshrl.u32 %v5848, 16
        %v5962 = vrot.slane %v5960, 4
        %v5963 = vshll.u32 %v5848, 16
        %v5965 = vrot.slane %v5963, 5
        %v5966 = vor.u32 %v5962, %v5965
        %v5967 = vrot.slane %v5966, 4
        %v5969 = vshll.u32 %v5849, 16
        %v5971 = vrot.slane %v5969, 5
        %v5972 = vsel %vm1584, %v5967, %v5971
        %v5973 = vshrl.u32 %v5849, 16
        %v5975 = vrot.slane %v5973, 4
        %v5976 = vor.u32 %v5975, %v5971
        %v5977 = vrot.slane %v5976, 4
        %v5979 = vshll.u32 %v5850, 16
        %v5981 = vrot.slane %v5979, 5
        %v5982 = vsel %vm1584, %v5977, %v5981
        %v5984 = vshrl.u32 %v5851, 16
        %v5986 = vrot.slane %v5984, 4
        %v5987 = vshll.u32 %v5851, 16
        %v5989 = vrot.slane %v5987, 5
        %v5990 = vor.u32 %v5986, %v5989
        %v5991 = vrot.slane %v5990, 4
        %v5993 = vshll.u32 %v5852, 16
        %v5995 = vrot.slane %v5993, 5
        %v5996 = vsel %vm1584, %v5991, %v5995
        %v5997 = vshrl.u32 %v5852, 16
        %v5999 = vrot.slane %v5997, 4
        %v6000 = vor.u32 %v5999, %v5995
        %v6001 = vrot.slane %v6000, 4
        %v6003 = vshll.u32 %v5853, 16
        %v6005 = vrot.slane %v6003, 5
        %v6006 = vsel %vm1584, %v6001, %v6005
        %v6008 = vshrl.u32 %v5854, 16
        %v6010 = vrot.slane %v6008, 4
        %v6011 = vshll.u32 %v5854, 16
        %v6013 = vrot.slane %v6011, 5
        %v6014 = vor.u32 %v6010, %v6013
        %v6015 = vrot.slane %v6014, 4
        %v6017 = vshll.u32 %v5855, 16
        %v6019 = vrot.slane %v6017, 5
        %v6020 = vsel %vm1584, %v6015, %v6019
        %v6021 = vshrl.u32 %v5855, 16
        %v6023 = vrot.slane %v6021, 4
        %v6024 = vor.u32 %v6023, %v6019
        %v6025 = vrot.slane %v6024, 4
        %v6027 = vshll.u32 %v5856, 16
        %v6029 = vrot.slane %v6027, 5
        %v6030 = vsel %vm1584, %v6025, %v6029
        %v6032 = vshrl.u32 %v5857, 16
        %v6034 = vrot.slane %v6032, 4
        %v6035 = vshll.u32 %v5857, 16
        %v6037 = vrot.slane %v6035, 5
        %v6038 = vor.u32 %v6034, %v6037
        %v6039 = vrot.slane %v6038, 4
        %v6041 = vshll.u32 %v5858, 16
        %v6043 = vrot.slane %v6041, 5
        %v6044 = vsel %vm1584, %v6039, %v6043
        %v6045 = vshrl.u32 %v5858, 16
        %v6047 = vrot.slane %v6045, 4
        %v6048 = vor.u32 %v6047, %v6043
        %v6049 = vrot.slane %v6048, 4
        %v6051 = vshll.u32 %v5859, 16
        %v6053 = vrot.slane %v6051, 5
        %v6054 = vsel %vm1584, %v6049, %v6053
        %v6056 = vshrl.u32 %v5860, 16
        %v6058 = vrot.slane %v6056, 4
        %v6059 = vshll.u32 %v5860, 16
        %v6061 = vrot.slane %v6059, 5
        %v6062 = vor.u32 %v6058, %v6061
        %v6063 = vrot.slane %v6062, 4
        %v6065 = vshll.u32 %v5861, 16
        %v6067 = vrot.slane %v6065, 5
        %v6068 = vsel %vm1584, %v6063, %v6067
        %v6069 = vshrl.u32 %v5861, 16
        %v6071 = vrot.slane %v6069, 4
        %v6072 = vor.u32 %v6071, %v6067
        %v6073 = vrot.slane %v6072, 4
        %v6075 = vshll.u32 %v5862, 16
        %v6077 = vrot.slane %v6075, 5
        %v6078 = vsel %vm1584, %v6073, %v6077
        %v6080 = vshrl.u32 %v5863, 16
        %v6082 = vrot.slane %v6080, 4
        %v6083 = vshll.u32 %v5863, 16
        %v6085 = vrot.slane %v6083, 5
        %v6086 = vor.u32 %v6082, %v6085
        %v6087 = vrot.slane %v6086, 4
        %v6089 = vshll.u32 %v5864, 16
        %v6091 = vrot.slane %v6089, 5
        %v6092 = vsel %vm1584, %v6087, %v6091
        %v6093 = vshrl.u32 %v5864, 16
        %v6095 = vrot.slane %v6093, 4
        %v6096 = vor.u32 %v6095, %v6091
        %v6097 = vrot.slane %v6096, 4
        %v6099 = vshll.u32 %v5865, 16
        %v6101 = vrot.slane %v6099, 5
        %v6102 = vsel %vm1584, %v6097, %v6101
        %v6104 = vshrl.u32 %v5866, 16
        %v6106 = vrot.slane %v6104, 4
        %v6107 = vshll.u32 %v5866, 16
        %v6109 = vrot.slane %v6107, 5
        %v6110 = vor.u32 %v6106, %v6109
        %v6111 = vrot.slane %v6110, 4
        %v6113 = vshll.u32 %v5867, 16
        %v6115 = vrot.slane %v6113, 5
        %v6116 = vsel %vm1584, %v6111, %v6115
        %v6117 = vshrl.u32 %v5867, 16
        %v6119 = vrot.slane %v6117, 4
        %v6120 = vor.u32 %v6119, %v6115
        %v6121 = vrot.slane %v6120, 4
        %v6123 = vshll.u32 %v5868, 16
        %v6125 = vrot.slane %v6123, 5
        %v6126 = vsel %vm1584, %v6121, %v6125
        %v6128 = vshrl.u32 %v5869, 16
        %v6130 = vrot.slane %v6128, 4
        %v6131 = vshll.u32 %v5869, 16
        %v6133 = vrot.slane %v6131, 5
        %v6134 = vor.u32 %v6130, %v6133
        %v6135 = vrot.slane %v6134, 4
        %v6137 = vshll.u32 %v5870, 16
        %v6139 = vrot.slane %v6137, 5
        %v6140 = vsel %vm1584, %v6135, %v6139
        %v6141 = vshrl.u32 %v5870, 16
        %v6143 = vrot.slane %v6141, 4
        %v6144 = vor.u32 %v6143, %v6139
        %v6145 = vrot.slane %v6144, 4
        %v6147 = vshll.u32 %v5871, 16
        %v6149 = vrot.slane %v6147, 5
        %v6150 = vsel %vm1584, %v6145, %v6149
        %v6152 = vshrl.u32 %v5872, 16
        %v6154 = vrot.slane %v6152, 4
        %v6155 = vshll.u32 %v5872, 16
        %v6157 = vrot.slane %v6155, 5
        %v6158 = vor.u32 %v6154, %v6157
        %v6159 = vrot.slane %v6158, 4
        %v6161 = vshll.u32 %v5873, 16
        %v6163 = vrot.slane %v6161, 5
        %v6164 = vsel %vm1584, %v6159, %v6163
        %v6165 = vshrl.u32 %v5873, 16
        %v6167 = vrot.slane %v6165, 4
        %v6168 = vor.u32 %v6167, %v6163
        %v6169 = vrot.slane %v6168, 4
        %v6171 = vshll.u32 %v5874, 16
        %v6173 = vrot.slane %v6171, 5
        %v6174 = vsel %vm1584, %v6169, %v6173
        %v6176 = vshrl.u32 %v5875, 16
        %v6178 = vrot.slane %v6176, 4
        %v6179 = vshll.u32 %v5875, 16
        %v6181 = vrot.slane %v6179, 5
        %v6182 = vor.u32 %v6178, %v6181
        %v6183 = vrot.slane %v6182, 4
        %v6185 = vshll.u32 %v5876, 16
        %v6187 = vrot.slane %v6185, 5
        %v6188 = vsel %vm1584, %v6183, %v6187
        %v6189 = vshrl.u32 %v5876, 16
        %v6191 = vrot.slane %v6189, 4
        %v6192 = vor.u32 %v6191, %v6187
        %v6193 = vrot.slane %v6192, 4
        %v6195 = vshll.u32 %v5877, 16
        %v6197 = vrot.slane %v6195, 5
        %v6198 = vsel %vm1584, %v6193, %v6197
        %v6200 = vshrl.u32 %v5878, 16
        %v6202 = vrot.slane %v6200, 4
        %v6203 = vshll.u32 %v5878, 16
        %v6205 = vrot.slane %v6203, 5
        %v6206 = vor.u32 %v6202, %v6205
        %v6207 = vrot.slane %v6206, 4
        %v6209 = vshll.u32 %v5879, 16
        %v6211 = vrot.slane %v6209, 5
        %v6212 = vsel %vm1584, %v6207, %v6211
        %v6213 = vshrl.u32 %v5879, 16
        %v6215 = vrot.slane %v6213, 4
        %v6216 = vor.u32 %v6215, %v6211
        %v6217 = vrot.slane %v6216, 4
        %v6219 = vshll.u32 %v5880, 16
        %v6221 = vrot.slane %v6219, 5
        %v6222 = vsel %vm1584, %v6217, %v6221
        %v6224 = vshrl.u32 %v5881, 16
        %v6226 = vrot.slane %v6224, 4
        %v6227 = vshll.u32 %v5881, 16
        %v6229 = vrot.slane %v6227, 5
        %v6230 = vor.u32 %v6226, %v6229
        %v6231 = vrot.slane %v6230, 4
        %v6233 = vshll.u32 %v5882, 16
        %v6235 = vrot.slane %v6233, 5
        %v6236 = vsel %vm1584, %v6231, %v6235
        %v6237 = vshrl.u32 %v5882, 16
        %v6239 = vrot.slane %v6237, 4
        %v6240 = vor.u32 %v6239, %v6235
        %v6241 = vrot.slane %v6240, 4
        %v6243 = vshll.u32 %v5883, 16
        %v6245 = vrot.slane %v6243, 5
        %v6246 = vsel %vm1584, %v6241, %v6245
        %v6248 = vshrl.u32 %v5884, 16
        %v6250 = vrot.slane %v6248, 4
        %v6251 = vshll.u32 %v5884, 16
        %v6253 = vrot.slane %v6251, 5
        %v6254 = vor.u32 %v6250, %v6253
        %v6255 = vrot.slane %v6254, 4
        %v6257 = vshll.u32 %v5885, 16
        %v6259 = vrot.slane %v6257, 5
        %v6260 = vsel %vm1584, %v6255, %v6259
        %v6261 = vshrl.u32 %v5885, 16
        %v6263 = vrot.slane %v6261, 4
        %v6264 = vor.u32 %v6263, %v6259
        %v6265 = vrot.slane %v6264, 4
        %v6267 = vshll.u32 %v5886, 16
        %v6269 = vrot.slane %v6267, 5
        %v6270 = vsel %vm1584, %v6265, %v6269
        %6271 = vrot.lane.b32.xlu0 %v5900, 28
        %v6272 = vpop.permute.xlu0 %6271
        %6273 = vrot.lane.b32.xlu0 %v5910, 28
        %v6274 = vpop.permute.xlu0 %6273
        %6275 = vrot.lane.b32.xlu0 %v5924, 28
        %v6276 = vpop.permute.xlu0 %6275
        %6277 = vrot.lane.b32.xlu0 %v5934, 28
        %v6278 = vpop.permute.xlu0 %6277
        %6279 = vrot.lane.b32.xlu0 %v5948, 28
        %v6280 = vpop.permute.xlu0 %6279
        %6281 = vrot.lane.b32.xlu0 %v5958, 28
        %v6282 = vpop.permute.xlu0 %6281
        %6283 = vrot.lane.b32.xlu0 %v5972, 28
        %v6284 = vpop.permute.xlu0 %6283
        %6285 = vrot.lane.b32.xlu0 %v5982, 28
        %v6286 = vpop.permute.xlu0 %6285
        %6287 = vrot.lane.b32.xlu0 %v5996, 28
        %v6288 = vpop.permute.xlu0 %6287
        %6289 = vrot.lane.b32.xlu0 %v6006, 28
        %v6290 = vpop.permute.xlu0 %6289
        %6291 = vrot.lane.b32.xlu0 %v6020, 28
        %v6292 = vpop.permute.xlu0 %6291
        %6293 = vrot.lane.b32.xlu0 %v6030, 28
        %v6294 = vpop.permute.xlu0 %6293
        %6295 = vrot.lane.b32.xlu0 %v6044, 28
        %v6296 = vpop.permute.xlu0 %6295
        %6297 = vrot.lane.b32.xlu0 %v6054, 28
        %v6298 = vpop.permute.xlu0 %6297
        %6299 = vrot.lane.b32.xlu0 %v6068, 28
        %v6300 = vpop.permute.xlu0 %6299
        %6301 = vrot.lane.b32.xlu0 %v6078, 28
        %v6302 = vpop.permute.xlu0 %6301
        %6303 = vrot.lane.b32.xlu0 %v6092, 28
        %v6304 = vpop.permute.xlu0 %6303
        %6305 = vrot.lane.b32.xlu0 %v6102, 28
        %v6306 = vpop.permute.xlu0 %6305
        %6307 = vrot.lane.b32.xlu0 %v6116, 28
        %v6308 = vpop.permute.xlu0 %6307
        %6309 = vrot.lane.b32.xlu0 %v6126, 28
        %v6310 = vpop.permute.xlu0 %6309
        %6311 = vrot.lane.b32.xlu0 %v6140, 28
        %v6312 = vpop.permute.xlu0 %6311
        %6313 = vrot.lane.b32.xlu0 %v6150, 28
        %v6314 = vpop.permute.xlu0 %6313
        %6315 = vrot.lane.b32.xlu0 %v6164, 28
        %v6316 = vpop.permute.xlu0 %6315
        %6317 = vrot.lane.b32.xlu0 %v6174, 28
        %v6318 = vpop.permute.xlu0 %6317
        %6319 = vrot.lane.b32.xlu0 %v6188, 28
        %v6320 = vpop.permute.xlu0 %6319
        %6321 = vrot.lane.b32.xlu0 %v6198, 28
        %v6322 = vpop.permute.xlu0 %6321
        %6323 = vrot.lane.b32.xlu0 %v6212, 28
        %v6324 = vpop.permute.xlu0 %6323
        %6325 = vrot.lane.b32.xlu0 %v6222, 28
        %v6326 = vpop.permute.xlu0 %6325
        %6327 = vrot.lane.b32.xlu0 %v6236, 28
        %v6328 = vpop.permute.xlu0 %6327
        %6329 = vrot.lane.b32.xlu0 %v6246, 28
        %v6330 = vpop.permute.xlu0 %6329
        %6331 = vrot.lane.b32.xlu0 %v6260, 28
        %v6332 = vpop.permute.xlu0 %6331
        %6333 = vrot.lane.b32.xlu0 %v6270, 28
        %v6334 = vpop.permute.xlu0 %6333
        %vm6367 = vcmask 257248
        %6368 = vst.msk [vmem:[#allocation4] sm:$0xf] %vm6367, %v6272
        %6369 = vst.msk [vmem:[#allocation4 + $0x4] sm:$0xf] %vm6367, %v6274
        %6370 = vst.msk [vmem:[#allocation4 + $0x8] sm:$0xf] %vm6367, %v6276
        %6371 = vst.msk [vmem:[#allocation4 + $0xc] sm:$0xf] %vm6367, %v6278
        %6372 = vst.msk [vmem:[#allocation4 + $0x10] sm:$0xf] %vm6367, %v6280
        %6373 = vst.msk [vmem:[#allocation4 + $0x14] sm:$0xf] %vm6367, %v6282
        %6374 = vst.msk [vmem:[#allocation4 + $0x18] sm:$0xf] %vm6367, %v6284
        %6375 = vst.msk [vmem:[#allocation4 + $0x1c] sm:$0xf] %vm6367, %v6286
        %6376 = vst.msk [vmem:[#allocation4 + $0x20] sm:$0xf] %vm6367, %v6288
        %6377 = vst.msk [vmem:[#allocation4 + $0x24] sm:$0xf] %vm6367, %v6290
        %6378 = vst.msk [vmem:[#allocation4 + $0x28] sm:$0xf] %vm6367, %v6292
        %6379 = vst.msk [vmem:[#allocation4 + $0x2c] sm:$0xf] %vm6367, %v6294
        %6380 = vst.msk [vmem:[#allocation4 + $0x30] sm:$0xf] %vm6367, %v6296
        %6381 = vst.msk [vmem:[#allocation4 + $0x34] sm:$0xf] %vm6367, %v6298
        %6382 = vst.msk [vmem:[#allocation4 + $0x38] sm:$0xf] %vm6367, %v6300
        %6383 = vst.msk [vmem:[#allocation4 + $0x3c] sm:$0xf] %vm6367, %v6302
        %6384 = vst.msk [vmem:[#allocation4 + $0x40] sm:$0xf] %vm6367, %v6304
        %6385 = vst.msk [vmem:[#allocation4 + $0x44] sm:$0xf] %vm6367, %v6306
        %6386 = vst.msk [vmem:[#allocation4 + $0x48] sm:$0xf] %vm6367, %v6308
        %6387 = vst.msk [vmem:[#allocation4 + $0x4c] sm:$0xf] %vm6367, %v6310
        %6388 = vst.msk [vmem:[#allocation4 + $0x50] sm:$0xf] %vm6367, %v6312
        %6389 = vst.msk [vmem:[#allocation4 + $0x54] sm:$0xf] %vm6367, %v6314
        %6390 = vst.msk [vmem:[#allocation4 + $0x58] sm:$0xf] %vm6367, %v6316
        %6391 = vst.msk [vmem:[#allocation4 + $0x5c] sm:$0xf] %vm6367, %v6318
        %6392 = vst.msk [vmem:[#allocation4 + $0x60] sm:$0xf] %vm6367, %v6320
        %6393 = vst.msk [vmem:[#allocation4 + $0x64] sm:$0xf] %vm6367, %v6322
        %6394 = vst.msk [vmem:[#allocation4 + $0x68] sm:$0xf] %vm6367, %v6324
        %6395 = vst.msk [vmem:[#allocation4 + $0x6c] sm:$0xf] %vm6367, %v6326
        %6396 = vst.msk [vmem:[#allocation4 + $0x70] sm:$0xf] %vm6367, %v6328
        %6397 = vst.msk [vmem:[#allocation4 + $0x74] sm:$0xf] %vm6367, %v6330
        %6398 = vst.msk [vmem:[#allocation4 + $0x78] sm:$0xf] %vm6367, %v6332
        %6399 = vst.msk [vmem:[#allocation4 + $0x7c] sm:$0xf] %vm6367, %v6334
        %v6400 = vld [vmem:[%s5646] sm:$0xf]
        %v6401 = vld [vmem:[%s5646 + $0x4] sm:$0xf]
        %v6402 = vld [vmem:[%s5646 + $0x8] sm:$0x1]
        %v6403 = vld [vmem:[%s5646 + $0xc] sm:$0xf]
        %v6404 = vld [vmem:[%s5646 + $0x10] sm:$0xf]
        %v6405 = vld [vmem:[%s5646 + $0x14] sm:$0x1]
        %v6406 = vld [vmem:[%s5646 + $0x18] sm:$0xf]
        %v6407 = vld [vmem:[%s5646 + $0x1c] sm:$0xf]
        %v6408 = vld [vmem:[%s5646 + $0x20] sm:$0x1]
        %v6409 = vld [vmem:[%s5646 + $0x24] sm:$0xf]
        %v6410 = vld [vmem:[%s5646 + $0x28] sm:$0xf]
        %v6411 = vld [vmem:[%s5646 + $0x2c] sm:$0x1]
        %v6412 = vld [vmem:[%s5646 + $0x30] sm:$0xf]
        %v6413 = vld [vmem:[%s5646 + $0x34] sm:$0xf]
        %v6414 = vld [vmem:[%s5646 + $0x38] sm:$0x1]
        %v6415 = vld [vmem:[%s5646 + $0x3c] sm:$0xf]
        %v6416 = vld [vmem:[%s5646 + $0x40] sm:$0xf]
        %v6417 = vld [vmem:[%s5646 + $0x44] sm:$0x1]
        %v6418 = vld [vmem:[%s5646 + $0x48] sm:$0xf]
        %v6419 = vld [vmem:[%s5646 + $0x4c] sm:$0xf]
        %v6420 = vld [vmem:[%s5646 + $0x50] sm:$0x1]
        %v6421 = vld [vmem:[%s5646 + $0x54] sm:$0xf]
        %v6422 = vld [vmem:[%s5646 + $0x58] sm:$0xf]
        %v6423 = vld [vmem:[%s5646 + $0x5c] sm:$0x1]
        %v6424 = vld [vmem:[%s5646 + $0x60] sm:$0xf]
        %v6425 = vld [vmem:[%s5646 + $0x64] sm:$0xf]
        %v6426 = vld [vmem:[%s5646 + $0x68] sm:$0x1]
        %v6427 = vld [vmem:[%s5646 + $0x6c] sm:$0xf]
        %v6428 = vld [vmem:[%s5646 + $0x70] sm:$0xf]
        %v6429 = vld [vmem:[%s5646 + $0x74] sm:$0x1]
        %v6430 = vld [vmem:[%s5646 + $0x78] sm:$0xf]
        %v6431 = vld [vmem:[%s5646 + $0x7c] sm:$0xf]
        %v6432 = vld [vmem:[%s5646 + $0x80] sm:$0x1]
        %v6433 = vld [vmem:[%s5646 + $0x84] sm:$0xf]
        %v6434 = vld [vmem:[%s5646 + $0x88] sm:$0xf]
        %v6435 = vld [vmem:[%s5646 + $0x8c] sm:$0x1]
        %v6436 = vld [vmem:[%s5646 + $0x90] sm:$0xf]
        %v6437 = vld [vmem:[%s5646 + $0x94] sm:$0xf]
        %v6438 = vld [vmem:[%s5646 + $0x98] sm:$0x1]
        %v6439 = vld [vmem:[%s5646 + $0x9c] sm:$0xf]
        %v6440 = vld [vmem:[%s5646 + $0xa0] sm:$0xf]
        %v6441 = vld [vmem:[%s5646 + $0xa4] sm:$0x1]
        %v6442 = vld [vmem:[%s5646 + $0xa8] sm:$0xf]
        %v6443 = vld [vmem:[%s5646 + $0xac] sm:$0xf]
        %v6444 = vld [vmem:[%s5646 + $0xb0] sm:$0x1]
        %v6445 = vld [vmem:[%s5646 + $0xb4] sm:$0xf]
        %v6446 = vld [vmem:[%s5646 + $0xb8] sm:$0xf]
        %v6447 = vld [vmem:[%s5646 + $0xbc] sm:$0x1]
        %v6449 = vshrl.u32 %v6400, 16
        %v6451 = vrot.slane %v6449, 4
        %v6452 = vshll.u32 %v6400, 16
        %v6454 = vrot.slane %v6452, 5
        %v6455 = vor.u32 %v6451, %v6454
        %v6456 = vrot.slane %v6455, 4
        %v6458 = vshll.u32 %v6401, 16
        %v6460 = vrot.slane %v6458, 5
        %v6461 = vsel %vm1584, %v6456, %v6460
        %v6462 = vshrl.u32 %v6401, 16
        %v6464 = vrot.slane %v6462, 4
        %v6465 = vor.u32 %v6464, %v6460
        %v6466 = vrot.slane %v6465, 4
        %v6468 = vshll.u32 %v6402, 16
        %v6470 = vrot.slane %v6468, 5
        %v6471 = vsel %vm1584, %v6466, %v6470
        %v6473 = vshrl.u32 %v6403, 16
        %v6475 = vrot.slane %v6473, 4
        %v6476 = vshll.u32 %v6403, 16
        %v6478 = vrot.slane %v6476, 5
        %v6479 = vor.u32 %v6475, %v6478
        %v6480 = vrot.slane %v6479, 4
        %v6482 = vshll.u32 %v6404, 16
        %v6484 = vrot.slane %v6482, 5
        %v6485 = vsel %vm1584, %v6480, %v6484
        %v6486 = vshrl.u32 %v6404, 16
        %v6488 = vrot.slane %v6486, 4
        %v6489 = vor.u32 %v6488, %v6484
        %v6490 = vrot.slane %v6489, 4
        %v6492 = vshll.u32 %v6405, 16
        %v6494 = vrot.slane %v6492, 5
        %v6495 = vsel %vm1584, %v6490, %v6494
        %v6497 = vshrl.u32 %v6406, 16
        %v6499 = vrot.slane %v6497, 4
        %v6500 = vshll.u32 %v6406, 16
        %v6502 = vrot.slane %v6500, 5
        %v6503 = vor.u32 %v6499, %v6502
        %v6504 = vrot.slane %v6503, 4
        %v6506 = vshll.u32 %v6407, 16
        %v6508 = vrot.slane %v6506, 5
        %v6509 = vsel %vm1584, %v6504, %v6508
        %v6510 = vshrl.u32 %v6407, 16
        %v6512 = vrot.slane %v6510, 4
        %v6513 = vor.u32 %v6512, %v6508
        %v6514 = vrot.slane %v6513, 4
        %v6516 = vshll.u32 %v6408, 16
        %v6518 = vrot.slane %v6516, 5
        %v6519 = vsel %vm1584, %v6514, %v6518
        %v6521 = vshrl.u32 %v6409, 16
        %v6523 = vrot.slane %v6521, 4
        %v6524 = vshll.u32 %v6409, 16
        %v6526 = vrot.slane %v6524, 5
        %v6527 = vor.u32 %v6523, %v6526
        %v6528 = vrot.slane %v6527, 4
        %v6530 = vshll.u32 %v6410, 16
        %v6532 = vrot.slane %v6530, 5
        %v6533 = vsel %vm1584, %v6528, %v6532
        %v6534 = vshrl.u32 %v6410, 16
        %v6536 = vrot.slane %v6534, 4
        %v6537 = vor.u32 %v6536, %v6532
        %v6538 = vrot.slane %v6537, 4
        %v6540 = vshll.u32 %v6411, 16
        %v6542 = vrot.slane %v6540, 5
        %v6543 = vsel %vm1584, %v6538, %v6542
        %v6545 = vshrl.u32 %v6412, 16
        %v6547 = vrot.slane %v6545, 4
        %v6548 = vshll.u32 %v6412, 16
        %v6550 = vrot.slane %v6548, 5
        %v6551 = vor.u32 %v6547, %v6550
        %v6552 = vrot.slane %v6551, 4
        %v6554 = vshll.u32 %v6413, 16
        %v6556 = vrot.slane %v6554, 5
        %v6557 = vsel %vm1584, %v6552, %v6556
        %v6558 = vshrl.u32 %v6413, 16
        %v6560 = vrot.slane %v6558, 4
        %v6561 = vor.u32 %v6560, %v6556
        %v6562 = vrot.slane %v6561, 4
        %v6564 = vshll.u32 %v6414, 16
        %v6566 = vrot.slane %v6564, 5
        %v6567 = vsel %vm1584, %v6562, %v6566
        %v6569 = vshrl.u32 %v6415, 16
        %v6571 = vrot.slane %v6569, 4
        %v6572 = vshll.u32 %v6415, 16
        %v6574 = vrot.slane %v6572, 5
        %v6575 = vor.u32 %v6571, %v6574
        %v6576 = vrot.slane %v6575, 4
        %v6578 = vshll.u32 %v6416, 16
        %v6580 = vrot.slane %v6578, 5
        %v6581 = vsel %vm1584, %v6576, %v6580
        %v6582 = vshrl.u32 %v6416, 16
        %v6584 = vrot.slane %v6582, 4
        %v6585 = vor.u32 %v6584, %v6580
        %v6586 = vrot.slane %v6585, 4
        %v6588 = vshll.u32 %v6417, 16
        %v6590 = vrot.slane %v6588, 5
        %v6591 = vsel %vm1584, %v6586, %v6590
        %v6593 = vshrl.u32 %v6418, 16
        %v6595 = vrot.slane %v6593, 4
        %v6596 = vshll.u32 %v6418, 16
        %v6598 = vrot.slane %v6596, 5
        %v6599 = vor.u32 %v6595, %v6598
        %v6600 = vrot.slane %v6599, 4
        %v6602 = vshll.u32 %v6419, 16
        %v6604 = vrot.slane %v6602, 5
        %v6605 = vsel %vm1584, %v6600, %v6604
        %v6606 = vshrl.u32 %v6419, 16
        %v6608 = vrot.slane %v6606, 4
        %v6609 = vor.u32 %v6608, %v6604
        %v6610 = vrot.slane %v6609, 4
        %v6612 = vshll.u32 %v6420, 16
        %v6614 = vrot.slane %v6612, 5
        %v6615 = vsel %vm1584, %v6610, %v6614
        %v6617 = vshrl.u32 %v6421, 16
        %v6619 = vrot.slane %v6617, 4
        %v6620 = vshll.u32 %v6421, 16
        %v6622 = vrot.slane %v6620, 5
        %v6623 = vor.u32 %v6619, %v6622
        %v6624 = vrot.slane %v6623, 4
        %v6626 = vshll.u32 %v6422, 16
        %v6628 = vrot.slane %v6626, 5
        %v6629 = vsel %vm1584, %v6624, %v6628
        %v6630 = vshrl.u32 %v6422, 16
        %v6632 = vrot.slane %v6630, 4
        %v6633 = vor.u32 %v6632, %v6628
        %v6634 = vrot.slane %v6633, 4
        %v6636 = vshll.u32 %v6423, 16
        %v6638 = vrot.slane %v6636, 5
        %v6639 = vsel %vm1584, %v6634, %v6638
        %v6641 = vshrl.u32 %v6424, 16
        %v6643 = vrot.slane %v6641, 4
        %v6644 = vshll.u32 %v6424, 16
        %v6646 = vrot.slane %v6644, 5
        %v6647 = vor.u32 %v6643, %v6646
        %v6648 = vrot.slane %v6647, 4
        %v6650 = vshll.u32 %v6425, 16
        %v6652 = vrot.slane %v6650, 5
        %v6653 = vsel %vm1584, %v6648, %v6652
        %v6654 = vshrl.u32 %v6425, 16
        %v6656 = vrot.slane %v6654, 4
        %v6657 = vor.u32 %v6656, %v6652
        %v6658 = vrot.slane %v6657, 4
        %v6660 = vshll.u32 %v6426, 16
        %v6662 = vrot.slane %v6660, 5
        %v6663 = vsel %vm1584, %v6658, %v6662
        %v6665 = vshrl.u32 %v6427, 16
        %v6667 = vrot.slane %v6665, 4
        %v6668 = vshll.u32 %v6427, 16
        %v6670 = vrot.slane %v6668, 5
        %v6671 = vor.u32 %v6667, %v6670
        %v6672 = vrot.slane %v6671, 4
        %v6674 = vshll.u32 %v6428, 16
        %v6676 = vrot.slane %v6674, 5
        %v6677 = vsel %vm1584, %v6672, %v6676
        %v6678 = vshrl.u32 %v6428, 16
        %v6680 = vrot.slane %v6678, 4
        %v6681 = vor.u32 %v6680, %v6676
        %v6682 = vrot.slane %v6681, 4
        %v6684 = vshll.u32 %v6429, 16
        %v6686 = vrot.slane %v6684, 5
        %v6687 = vsel %vm1584, %v6682, %v6686
        %v6689 = vshrl.u32 %v6430, 16
        %v6691 = vrot.slane %v6689, 4
        %v6692 = vshll.u32 %v6430, 16
        %v6694 = vrot.slane %v6692, 5
        %v6695 = vor.u32 %v6691, %v6694
        %v6696 = vrot.slane %v6695, 4
        %v6698 = vshll.u32 %v6431, 16
        %v6700 = vrot.slane %v6698, 5
        %v6701 = vsel %vm1584, %v6696, %v6700
        %v6702 = vshrl.u32 %v6431, 16
        %v6704 = vrot.slane %v6702, 4
        %v6705 = vor.u32 %v6704, %v6700
        %v6706 = vrot.slane %v6705, 4
        %v6708 = vshll.u32 %v6432, 16
        %v6710 = vrot.slane %v6708, 5
        %v6711 = vsel %vm1584, %v6706, %v6710
        %v6713 = vshrl.u32 %v6433, 16
        %v6715 = vrot.slane %v6713, 4
        %v6716 = vshll.u32 %v6433, 16
        %v6718 = vrot.slane %v6716, 5
        %v6719 = vor.u32 %v6715, %v6718
        %v6720 = vrot.slane %v6719, 4
        %v6722 = vshll.u32 %v6434, 16
        %v6724 = vrot.slane %v6722, 5
        %v6725 = vsel %vm1584, %v6720, %v6724
        %v6726 = vshrl.u32 %v6434, 16
        %v6728 = vrot.slane %v6726, 4
        %v6729 = vor.u32 %v6728, %v6724
        %v6730 = vrot.slane %v6729, 4
        %v6732 = vshll.u32 %v6435, 16
        %v6734 = vrot.slane %v6732, 5
        %v6735 = vsel %vm1584, %v6730, %v6734
        %v6737 = vshrl.u32 %v6436, 16
        %v6739 = vrot.slane %v6737, 4
        %v6740 = vshll.u32 %v6436, 16
        %v6742 = vrot.slane %v6740, 5
        %v6743 = vor.u32 %v6739, %v6742
        %v6744 = vrot.slane %v6743, 4
        %v6746 = vshll.u32 %v6437, 16
        %v6748 = vrot.slane %v6746, 5
        %v6749 = vsel %vm1584, %v6744, %v6748
        %v6750 = vshrl.u32 %v6437, 16
        %v6752 = vrot.slane %v6750, 4
        %v6753 = vor.u32 %v6752, %v6748
        %v6754 = vrot.slane %v6753, 4
        %v6756 = vshll.u32 %v6438, 16
        %v6758 = vrot.slane %v6756, 5
        %v6759 = vsel %vm1584, %v6754, %v6758
        %v6761 = vshrl.u32 %v6439, 16
        %v6763 = vrot.slane %v6761, 4
        %v6764 = vshll.u32 %v6439, 16
        %v6766 = vrot.slane %v6764, 5
        %v6767 = vor.u32 %v6763, %v6766
        %v6768 = vrot.slane %v6767, 4
        %v6770 = vshll.u32 %v6440, 16
        %v6772 = vrot.slane %v6770, 5
        %v6773 = vsel %vm1584, %v6768, %v6772
        %v6774 = vshrl.u32 %v6440, 16
        %v6776 = vrot.slane %v6774, 4
        %v6777 = vor.u32 %v6776, %v6772
        %v6778 = vrot.slane %v6777, 4
        %v6780 = vshll.u32 %v6441, 16
        %v6782 = vrot.slane %v6780, 5
        %v6783 = vsel %vm1584, %v6778, %v6782
        %v6785 = vshrl.u32 %v6442, 16
        %v6787 = vrot.slane %v6785, 4
        %v6788 = vshll.u32 %v6442, 16
        %v6790 = vrot.slane %v6788, 5
        %v6791 = vor.u32 %v6787, %v6790
        %v6792 = vrot.slane %v6791, 4
        %v6794 = vshll.u32 %v6443, 16
        %v6796 = vrot.slane %v6794, 5
        %v6797 = vsel %vm1584, %v6792, %v6796
        %v6798 = vshrl.u32 %v6443, 16
        %v6800 = vrot.slane %v6798, 4
        %v6801 = vor.u32 %v6800, %v6796
        %v6802 = vrot.slane %v6801, 4
        %v6804 = vshll.u32 %v6444, 16
        %v6806 = vrot.slane %v6804, 5
        %v6807 = vsel %vm1584, %v6802, %v6806
        %v6809 = vshrl.u32 %v6445, 16
        %v6811 = vrot.slane %v6809, 4
        %v6812 = vshll.u32 %v6445, 16
        %v6814 = vrot.slane %v6812, 5
        %v6815 = vor.u32 %v6811, %v6814
        %v6816 = vrot.slane %v6815, 4
        %v6818 = vshll.u32 %v6446, 16
        %v6820 = vrot.slane %v6818, 5
        %v6821 = vsel %vm1584, %v6816, %v6820
        %v6822 = vshrl.u32 %v6446, 16
        %v6824 = vrot.slane %v6822, 4
        %v6825 = vor.u32 %v6824, %v6820
        %v6826 = vrot.slane %v6825, 4
        %v6828 = vshll.u32 %v6447, 16
        %v6830 = vrot.slane %v6828, 5
        %v6831 = vsel %vm1584, %v6826, %v6830
        %6832 = vrot.lane.b32.xlu0 %v6461, 96
        %v6833 = vpop.permute.xlu0 %6832
        %6834 = vrot.lane.b32.xlu0 %v6471, 96
        %v6835 = vpop.permute.xlu0 %6834
        %6836 = vrot.lane.b32.xlu0 %v6485, 96
        %v6837 = vpop.permute.xlu0 %6836
        %6838 = vrot.lane.b32.xlu0 %v6495, 96
        %v6839 = vpop.permute.xlu0 %6838
        %6840 = vrot.lane.b32.xlu0 %v6509, 96
        %v6841 = vpop.permute.xlu0 %6840
        %6842 = vrot.lane.b32.xlu0 %v6519, 96
        %v6843 = vpop.permute.xlu0 %6842
        %6844 = vrot.lane.b32.xlu0 %v6533, 96
        %v6845 = vpop.permute.xlu0 %6844
        %6846 = vrot.lane.b32.xlu0 %v6543, 96
        %v6847 = vpop.permute.xlu0 %6846
        %6848 = vrot.lane.b32.xlu0 %v6557, 96
        %v6849 = vpop.permute.xlu0 %6848
        %6850 = vrot.lane.b32.xlu0 %v6567, 96
        %v6851 = vpop.permute.xlu0 %6850
        %6852 = vrot.lane.b32.xlu0 %v6581, 96
        %v6853 = vpop.permute.xlu0 %6852
        %6854 = vrot.lane.b32.xlu0 %v6591, 96
        %v6855 = vpop.permute.xlu0 %6854
        %6856 = vrot.lane.b32.xlu0 %v6605, 96
        %v6857 = vpop.permute.xlu0 %6856
        %6858 = vrot.lane.b32.xlu0 %v6615, 96
        %v6859 = vpop.permute.xlu0 %6858
        %6860 = vrot.lane.b32.xlu0 %v6629, 96
        %v6861 = vpop.permute.xlu0 %6860
        %6862 = vrot.lane.b32.xlu0 %v6639, 96
        %v6863 = vpop.permute.xlu0 %6862
        %6864 = vrot.lane.b32.xlu0 %v6653, 96
        %v6865 = vpop.permute.xlu0 %6864
        %6866 = vrot.lane.b32.xlu0 %v6663, 96
        %v6867 = vpop.permute.xlu0 %6866
        %6868 = vrot.lane.b32.xlu0 %v6677, 96
        %v6869 = vpop.permute.xlu0 %6868
        %6870 = vrot.lane.b32.xlu0 %v6687, 96
        %v6871 = vpop.permute.xlu0 %6870
        %6872 = vrot.lane.b32.xlu0 %v6701, 96
        %v6873 = vpop.permute.xlu0 %6872
        %6874 = vrot.lane.b32.xlu0 %v6711, 96
        %v6875 = vpop.permute.xlu0 %6874
        %6876 = vrot.lane.b32.xlu0 %v6725, 96
        %v6877 = vpop.permute.xlu0 %6876
        %6878 = vrot.lane.b32.xlu0 %v6735, 96
        %v6879 = vpop.permute.xlu0 %6878
        %6880 = vrot.lane.b32.xlu0 %v6749, 96
        %v6881 = vpop.permute.xlu0 %6880
        %6882 = vrot.lane.b32.xlu0 %v6759, 96
        %v6883 = vpop.permute.xlu0 %6882
        %6884 = vrot.lane.b32.xlu0 %v6773, 96
        %v6885 = vpop.permute.xlu0 %6884
        %6886 = vrot.lane.b32.xlu0 %v6783, 96
        %v6887 = vpop.permute.xlu0 %6886
        %6888 = vrot.lane.b32.xlu0 %v6797, 96
        %v6889 = vpop.permute.xlu0 %6888
        %6890 = vrot.lane.b32.xlu0 %v6807, 96
        %v6891 = vpop.permute.xlu0 %6890
        %6892 = vrot.lane.b32.xlu0 %v6821, 96
        %v6893 = vpop.permute.xlu0 %6892
        %6894 = vrot.lane.b32.xlu0 %v6831, 96
        %v6895 = vpop.permute.xlu0 %6894
        %6928 = vst.msk [vmem:[#allocation5 + $0x4] sm:$0xf] %vm3689, %v6833
        %6929 = vst.msk [vmem:[#allocation5 + $0x10] sm:$0xf] %vm3689, %v6835
        %6930 = vst.msk [vmem:[#allocation5 + $0x1c] sm:$0xf] %vm3689, %v6837
        %6931 = vst.msk [vmem:[#allocation5 + $0x28] sm:$0xf] %vm3689, %v6839
        %6932 = vst.msk [vmem:[#allocation5 + $0x34] sm:$0xf] %vm3689, %v6841
        %6933 = vst.msk [vmem:[#allocation5 + $0x40] sm:$0xf] %vm3689, %v6843
        %6934 = vst.msk [vmem:[#allocation5 + $0x4c] sm:$0xf] %vm3689, %v6845
        %6935 = vst.msk [vmem:[#allocation5 + $0x58] sm:$0xf] %vm3689, %v6847
        %6936 = vst.msk [vmem:[#allocation5 + $0x64] sm:$0xf] %vm3689, %v6849
        %6937 = vst.msk [vmem:[#allocation5 + $0x70] sm:$0xf] %vm3689, %v6851
        %6938 = vst.msk [vmem:[#allocation5 + $0x7c] sm:$0xf] %vm3689, %v6853
        %6939 = vst.msk [vmem:[#allocation5 + $0x88] sm:$0xf] %vm3689, %v6855
        %6940 = vst.msk [vmem:[#allocation5 + $0x94] sm:$0xf] %vm3689, %v6857
        %6941 = vst.msk [vmem:[#allocation5 + $0xa0] sm:$0xf] %vm3689, %v6859
        %6942 = vst.msk [vmem:[#allocation5 + $0xac] sm:$0xf] %vm3689, %v6861
        %6943 = vst.msk [vmem:[#allocation5 + $0xb8] sm:$0xf] %vm3689, %v6863
        %6944 = vst.msk [vmem:[#allocation5 + $0xc4] sm:$0xf] %vm3689, %v6865
        %6945 = vst.msk [vmem:[#allocation5 + $0xd0] sm:$0xf] %vm3689, %v6867
        %6946 = vst.msk [vmem:[#allocation5 + $0xdc] sm:$0xf] %vm3689, %v6869
        %6947 = vst.msk [vmem:[#allocation5 + $0xe8] sm:$0xf] %vm3689, %v6871
        %6948 = vst.msk [vmem:[#allocation5 + $0xf4] sm:$0xf] %vm3689, %v6873
        %6949 = vst.msk [vmem:[#allocation5 + $0x100] sm:$0xf] %vm3689, %v6875
        %6950 = vst.msk [vmem:[#allocation5 + $0x10c] sm:$0xf] %vm3689, %v6877
        %6951 = vst.msk [vmem:[#allocation5 + $0x118] sm:$0xf] %vm3689, %v6879
        %6952 = vst.msk [vmem:[#allocation5 + $0x124] sm:$0xf] %vm3689, %v6881
        %6953 = vst.msk [vmem:[#allocation5 + $0x130] sm:$0xf] %vm3689, %v6883
        %6954 = vst.msk [vmem:[#allocation5 + $0x13c] sm:$0xf] %vm3689, %v6885
        %6955 = vst.msk [vmem:[#allocation5 + $0x148] sm:$0xf] %vm3689, %v6887
        %6956 = vst.msk [vmem:[#allocation5 + $0x154] sm:$0xf] %vm3689, %v6889
        %6957 = vst.msk [vmem:[#allocation5 + $0x160] sm:$0xf] %vm3689, %v6891
        %6958 = vst.msk [vmem:[#allocation5 + $0x16c] sm:$0xf] %vm3689, %v6893
        %6959 = vst.msk [vmem:[#allocation5 + $0x178] sm:$0xf] %vm3689, %v6895
        %v6960 = vld [vmem:[%s5452] sm:$0xe]
        %v6961 = vld [vmem:[%s5452 + $0x4] sm:$0xf]
        %v6962 = vld [vmem:[%s5452 + $0x8] sm:$0x1]
        %v6963 = vld [vmem:[%s5452 + $0xc] sm:$0xe]
        %v6964 = vld [vmem:[%s5452 + $0x10] sm:$0xf]
        %v6965 = vld [vmem:[%s5452 + $0x14] sm:$0x1]
        %v6966 = vld [vmem:[%s5452 + $0x18] sm:$0xe]
        %v6967 = vld [vmem:[%s5452 + $0x1c] sm:$0xf]
        %v6968 = vld [vmem:[%s5452 + $0x20] sm:$0x1]
        %v6969 = vld [vmem:[%s5452 + $0x24] sm:$0xe]
        %v6970 = vld [vmem:[%s5452 + $0x28] sm:$0xf]
        %v6971 = vld [vmem:[%s5452 + $0x2c] sm:$0x1]
        %v6972 = vld [vmem:[%s5452 + $0x30] sm:$0xe]
        %v6973 = vld [vmem:[%s5452 + $0x34] sm:$0xf]
        %v6974 = vld [vmem:[%s5452 + $0x38] sm:$0x1]
        %v6975 = vld [vmem:[%s5452 + $0x3c] sm:$0xe]
        %v6976 = vld [vmem:[%s5452 + $0x40] sm:$0xf]
        %v6977 = vld [vmem:[%s5452 + $0x44] sm:$0x1]
        %v6978 = vld [vmem:[%s5452 + $0x48] sm:$0xe]
        %v6979 = vld [vmem:[%s5452 + $0x4c] sm:$0xf]
        %v6980 = vld [vmem:[%s5452 + $0x50] sm:$0x1]
        %v6981 = vld [vmem:[%s5452 + $0x54] sm:$0xe]
        %v6982 = vld [vmem:[%s5452 + $0x58] sm:$0xf]
        %v6983 = vld [vmem:[%s5452 + $0x5c] sm:$0x1]
        %v6984 = vld [vmem:[%s5452 + $0x60] sm:$0xe]
        %v6985 = vld [vmem:[%s5452 + $0x64] sm:$0xf]
        %v6986 = vld [vmem:[%s5452 + $0x68] sm:$0x1]
        %v6987 = vld [vmem:[%s5452 + $0x6c] sm:$0xe]
        %v6988 = vld [vmem:[%s5452 + $0x70] sm:$0xf]
        %v6989 = vld [vmem:[%s5452 + $0x74] sm:$0x1]
        %v6990 = vld [vmem:[%s5452 + $0x78] sm:$0xe]
        %v6991 = vld [vmem:[%s5452 + $0x7c] sm:$0xf]
        %v6992 = vld [vmem:[%s5452 + $0x80] sm:$0x1]
        %v6993 = vld [vmem:[%s5452 + $0x84] sm:$0xe]
        %v6994 = vld [vmem:[%s5452 + $0x88] sm:$0xf]
        %v6995 = vld [vmem:[%s5452 + $0x8c] sm:$0x1]
        %v6996 = vld [vmem:[%s5452 + $0x90] sm:$0xe]
        %v6997 = vld [vmem:[%s5452 + $0x94] sm:$0xf]
        %v6998 = vld [vmem:[%s5452 + $0x98] sm:$0x1]
        %v6999 = vld [vmem:[%s5452 + $0x9c] sm:$0xe]
        %v7000 = vld [vmem:[%s5452 + $0xa0] sm:$0xf]
        %v7001 = vld [vmem:[%s5452 + $0xa4] sm:$0x1]
        %v7002 = vld [vmem:[%s5452 + $0xa8] sm:$0xe]
        %v7003 = vld [vmem:[%s5452 + $0xac] sm:$0xf]
        %v7004 = vld [vmem:[%s5452 + $0xb0] sm:$0x1]
        %v7005 = vld [vmem:[%s5452 + $0xb4] sm:$0xe]
        %v7006 = vld [vmem:[%s5452 + $0xb8] sm:$0xf]
        %v7007 = vld [vmem:[%s5452 + $0xbc] sm:$0x1]
        %v7056 = vrot.slane %v6960, 5
        %v7057 = vrot.slane %v7056, 4
        %v7058 = vrot.slane %v6961, 5
        %v7059 = vsel %vm2757, %v7057, %v7058
        %v7060 = vrot.slane %v7058, 4
        %v7061 = vrot.slane %v6962, 5
        %v7062 = vsel %vm2757, %v7060, %v7061
        %v7063 = vrot.slane %v6963, 5
        %v7064 = vrot.slane %v7063, 4
        %v7065 = vrot.slane %v6964, 5
        %v7066 = vsel %vm2757, %v7064, %v7065
        %v7067 = vrot.slane %v7065, 4
        %v7068 = vrot.slane %v6965, 5
        %v7069 = vsel %vm2757, %v7067, %v7068
        %v7070 = vrot.slane %v6966, 5
        %v7071 = vrot.slane %v7070, 4
        %v7072 = vrot.slane %v6967, 5
        %v7073 = vsel %vm2757, %v7071, %v7072
        %v7074 = vrot.slane %v7072, 4
        %v7075 = vrot.slane %v6968, 5
        %v7076 = vsel %vm2757, %v7074, %v7075
        %v7077 = vrot.slane %v6969, 5
        %v7078 = vrot.slane %v7077, 4
        %v7079 = vrot.slane %v6970, 5
        %v7080 = vsel %vm2757, %v7078, %v7079
        %v7081 = vrot.slane %v7079, 4
        %v7082 = vrot.slane %v6971, 5
        %v7083 = vsel %vm2757, %v7081, %v7082
        %v7084 = vrot.slane %v6972, 5
        %v7085 = vrot.slane %v7084, 4
        %v7086 = vrot.slane %v6973, 5
        %v7087 = vsel %vm2757, %v7085, %v7086
        %v7088 = vrot.slane %v7086, 4
        %v7089 = vrot.slane %v6974, 5
        %v7090 = vsel %vm2757, %v7088, %v7089
        %v7091 = vrot.slane %v6975, 5
        %v7092 = vrot.slane %v7091, 4
        %v7093 = vrot.slane %v6976, 5
        %v7094 = vsel %vm2757, %v7092, %v7093
        %v7095 = vrot.slane %v7093, 4
        %v7096 = vrot.slane %v6977, 5
        %v7097 = vsel %vm2757, %v7095, %v7096
        %v7098 = vrot.slane %v6978, 5
        %v7099 = vrot.slane %v7098, 4
        %v7100 = vrot.slane %v6979, 5
        %v7101 = vsel %vm2757, %v7099, %v7100
        %v7102 = vrot.slane %v7100, 4
        %v7103 = vrot.slane %v6980, 5
        %v7104 = vsel %vm2757, %v7102, %v7103
        %v7105 = vrot.slane %v6981, 5
        %v7106 = vrot.slane %v7105, 4
        %v7107 = vrot.slane %v6982, 5
        %v7108 = vsel %vm2757, %v7106, %v7107
        %v7109 = vrot.slane %v7107, 4
        %v7110 = vrot.slane %v6983, 5
        %v7111 = vsel %vm2757, %v7109, %v7110
        %v7112 = vrot.slane %v6984, 5
        %v7113 = vrot.slane %v7112, 4
        %v7114 = vrot.slane %v6985, 5
        %v7115 = vsel %vm2757, %v7113, %v7114
        %v7116 = vrot.slane %v7114, 4
        %v7117 = vrot.slane %v6986, 5
        %v7118 = vsel %vm2757, %v7116, %v7117
        %v7119 = vrot.slane %v6987, 5
        %v7120 = vrot.slane %v7119, 4
        %v7121 = vrot.slane %v6988, 5
        %v7122 = vsel %vm2757, %v7120, %v7121
        %v7123 = vrot.slane %v7121, 4
        %v7124 = vrot.slane %v6989, 5
        %v7125 = vsel %vm2757, %v7123, %v7124
        %v7126 = vrot.slane %v6990, 5
        %v7127 = vrot.slane %v7126, 4
        %v7128 = vrot.slane %v6991, 5
        %v7129 = vsel %vm2757, %v7127, %v7128
        %v7130 = vrot.slane %v7128, 4
        %v7131 = vrot.slane %v6992, 5
        %v7132 = vsel %vm2757, %v7130, %v7131
        %v7133 = vrot.slane %v6993, 5
        %v7134 = vrot.slane %v7133, 4
        %v7135 = vrot.slane %v6994, 5
        %v7136 = vsel %vm2757, %v7134, %v7135
        %v7137 = vrot.slane %v7135, 4
        %v7138 = vrot.slane %v6995, 5
        %v7139 = vsel %vm2757, %v7137, %v7138
        %v7140 = vrot.slane %v6996, 5
        %v7141 = vrot.slane %v7140, 4
        %v7142 = vrot.slane %v6997, 5
        %v7143 = vsel %vm2757, %v7141, %v7142
        %v7144 = vrot.slane %v7142, 4
        %v7145 = vrot.slane %v6998, 5
        %v7146 = vsel %vm2757, %v7144, %v7145
        %v7147 = vrot.slane %v6999, 5
        %v7148 = vrot.slane %v7147, 4
        %v7149 = vrot.slane %v7000, 5
        %v7150 = vsel %vm2757, %v7148, %v7149
        %v7151 = vrot.slane %v7149, 4
        %v7152 = vrot.slane %v7001, 5
        %v7153 = vsel %vm2757, %v7151, %v7152
        %v7154 = vrot.slane %v7002, 5
        %v7155 = vrot.slane %v7154, 4
        %v7156 = vrot.slane %v7003, 5
        %v7157 = vsel %vm2757, %v7155, %v7156
        %v7158 = vrot.slane %v7156, 4
        %v7159 = vrot.slane %v7004, 5
        %v7160 = vsel %vm2757, %v7158, %v7159
        %v7161 = vrot.slane %v7005, 5
        %v7162 = vrot.slane %v7161, 4
        %v7163 = vrot.slane %v7006, 5
        %v7164 = vsel %vm2757, %v7162, %v7163
        %v7165 = vrot.slane %v7163, 4
        %v7166 = vrot.slane %v7007, 5
        %v7167 = vsel %vm2757, %v7165, %v7166
        %7168 = vrot.lane.b32.xlu0 %v7059, 32
        %v7169 = vpop.permute.xlu0 %7168
        %7170 = vrot.lane.b32.xlu0 %v7062, 32
        %v7171 = vpop.permute.xlu0 %7170
        %7172 = vrot.lane.b32.xlu0 %v7066, 32
        %v7173 = vpop.permute.xlu0 %7172
        %7174 = vrot.lane.b32.xlu0 %v7069, 32
        %v7175 = vpop.permute.xlu0 %7174
        %7176 = vrot.lane.b32.xlu0 %v7073, 32
        %v7177 = vpop.permute.xlu0 %7176
        %7178 = vrot.lane.b32.xlu0 %v7076, 32
        %v7179 = vpop.permute.xlu0 %7178
        %7180 = vrot.lane.b32.xlu0 %v7080, 32
        %v7181 = vpop.permute.xlu0 %7180
        %7182 = vrot.lane.b32.xlu0 %v7083, 32
        %v7183 = vpop.permute.xlu0 %7182
        %7184 = vrot.lane.b32.xlu0 %v7087, 32
        %v7185 = vpop.permute.xlu0 %7184
        %7186 = vrot.lane.b32.xlu0 %v7090, 32
        %v7187 = vpop.permute.xlu0 %7186
        %7188 = vrot.lane.b32.xlu0 %v7094, 32
        %v7189 = vpop.permute.xlu0 %7188
        %7190 = vrot.lane.b32.xlu0 %v7097, 32
        %v7191 = vpop.permute.xlu0 %7190
        %7192 = vrot.lane.b32.xlu0 %v7101, 32
        %v7193 = vpop.permute.xlu0 %7192
        %7194 = vrot.lane.b32.xlu0 %v7104, 32
        %v7195 = vpop.permute.xlu0 %7194
        %7196 = vrot.lane.b32.xlu0 %v7108, 32
        %v7197 = vpop.permute.xlu0 %7196
        %7198 = vrot.lane.b32.xlu0 %v7111, 32
        %v7199 = vpop.permute.xlu0 %7198
        %7200 = vrot.lane.b32.xlu0 %v7115, 32
        %v7201 = vpop.permute.xlu0 %7200
        %7202 = vrot.lane.b32.xlu0 %v7118, 32
        %v7203 = vpop.permute.xlu0 %7202
        %7204 = vrot.lane.b32.xlu0 %v7122, 32
        %v7205 = vpop.permute.xlu0 %7204
        %7206 = vrot.lane.b32.xlu0 %v7125, 32
        %v7207 = vpop.permute.xlu0 %7206
        %7208 = vrot.lane.b32.xlu0 %v7129, 32
        %v7209 = vpop.permute.xlu0 %7208
        %7210 = vrot.lane.b32.xlu0 %v7132, 32
        %v7211 = vpop.permute.xlu0 %7210
        %7212 = vrot.lane.b32.xlu0 %v7136, 32
        %v7213 = vpop.permute.xlu0 %7212
        %7214 = vrot.lane.b32.xlu0 %v7139, 32
        %v7215 = vpop.permute.xlu0 %7214
        %7216 = vrot.lane.b32.xlu0 %v7143, 32
        %v7217 = vpop.permute.xlu0 %7216
        %7218 = vrot.lane.b32.xlu0 %v7146, 32
        %v7219 = vpop.permute.xlu0 %7218
        %7220 = vrot.lane.b32.xlu0 %v7150, 32
        %v7221 = vpop.permute.xlu0 %7220
        %7222 = vrot.lane.b32.xlu0 %v7153, 32
        %v7223 = vpop.permute.xlu0 %7222
        %7224 = vrot.lane.b32.xlu0 %v7157, 32
        %v7225 = vpop.permute.xlu0 %7224
        %7226 = vrot.lane.b32.xlu0 %v7160, 32
        %v7227 = vpop.permute.xlu0 %7226
        %7228 = vrot.lane.b32.xlu0 %v7164, 32
        %v7229 = vpop.permute.xlu0 %7228
        %7230 = vrot.lane.b32.xlu0 %v7167, 32
        %v7231 = vpop.permute.xlu0 %7230
        %vm7264 = vcmask 290048
        %7265 = vst.msk [vmem:[#allocation4] sm:$0xf] %vm7264, %v7169
        %7266 = vst.msk [vmem:[#allocation4 + $0x4] sm:$0xf] %vm7264, %v7171
        %7267 = vst.msk [vmem:[#allocation4 + $0x8] sm:$0xf] %vm7264, %v7173
        %7268 = vst.msk [vmem:[#allocation4 + $0xc] sm:$0xf] %vm7264, %v7175
        %7269 = vst.msk [vmem:[#allocation4 + $0x10] sm:$0xf] %vm7264, %v7177
        %7270 = vst.msk [vmem:[#allocation4 + $0x14] sm:$0xf] %vm7264, %v7179
        %7271 = vst.msk [vmem:[#allocation4 + $0x18] sm:$0xf] %vm7264, %v7181
        %7272 = vst.msk [vmem:[#allocation4 + $0x1c] sm:$0xf] %vm7264, %v7183
        %7273 = vst.msk [vmem:[#allocation4 + $0x20] sm:$0xf] %vm7264, %v7185
        %7274 = vst.msk [vmem:[#allocation4 + $0x24] sm:$0xf] %vm7264, %v7187
        %7275 = vst.msk [vmem:[#allocation4 + $0x28] sm:$0xf] %vm7264, %v7189
        %7276 = vst.msk [vmem:[#allocation4 + $0x2c] sm:$0xf] %vm7264, %v7191
        %7277 = vst.msk [vmem:[#allocation4 + $0x30] sm:$0xf] %vm7264, %v7193
        %7278 = vst.msk [vmem:[#allocation4 + $0x34] sm:$0xf] %vm7264, %v7195
        %7279 = vst.msk [vmem:[#allocation4 + $0x38] sm:$0xf] %vm7264, %v7197
        %7280 = vst.msk [vmem:[#allocation4 + $0x3c] sm:$0xf] %vm7264, %v7199
        %7281 = vst.msk [vmem:[#allocation4 + $0x40] sm:$0xf] %vm7264, %v7201
        %7282 = vst.msk [vmem:[#allocation4 + $0x44] sm:$0xf] %vm7264, %v7203
        %7283 = vst.msk [vmem:[#allocation4 + $0x48] sm:$0xf] %vm7264, %v7205
        %7284 = vst.msk [vmem:[#allocation4 + $0x4c] sm:$0xf] %vm7264, %v7207
        %7285 = vst.msk [vmem:[#allocation4 + $0x50] sm:$0xf] %vm7264, %v7209
        %7286 = vst.msk [vmem:[#allocation4 + $0x54] sm:$0xf] %vm7264, %v7211
        %7287 = vst.msk [vmem:[#allocation4 + $0x58] sm:$0xf] %vm7264, %v7213
        %7288 = vst.msk [vmem:[#allocation4 + $0x5c] sm:$0xf] %vm7264, %v7215
        %7289 = vst.msk [vmem:[#allocation4 + $0x60] sm:$0xf] %vm7264, %v7217
        %7290 = vst.msk [vmem:[#allocation4 + $0x64] sm:$0xf] %vm7264, %v7219
        %7291 = vst.msk [vmem:[#allocation4 + $0x68] sm:$0xf] %vm7264, %v7221
        %7292 = vst.msk [vmem:[#allocation4 + $0x6c] sm:$0xf] %vm7264, %v7223
        %7293 = vst.msk [vmem:[#allocation4 + $0x70] sm:$0xf] %vm7264, %v7225
        %7294 = vst.msk [vmem:[#allocation4 + $0x74] sm:$0xf] %vm7264, %v7227
        %7295 = vst.msk [vmem:[#allocation4 + $0x78] sm:$0xf] %vm7264, %v7229
        %7296 = vst.msk [vmem:[#allocation4 + $0x7c] sm:$0xf] %vm7264, %v7231
        %v7297 = vld [vmem:[%s5646] sm:$0xe]
        %v7298 = vld [vmem:[%s5646 + $0x4] sm:$0xf]
        %v7299 = vld [vmem:[%s5646 + $0x8] sm:$0x1]
        %v7300 = vld [vmem:[%s5646 + $0xc] sm:$0xe]
        %v7301 = vld [vmem:[%s5646 + $0x10] sm:$0xf]
        %v7302 = vld [vmem:[%s5646 + $0x14] sm:$0x1]
        %v7303 = vld [vmem:[%s5646 + $0x18] sm:$0xe]
        %v7304 = vld [vmem:[%s5646 + $0x1c] sm:$0xf]
        %v7305 = vld [vmem:[%s5646 + $0x20] sm:$0x1]
        %v7306 = vld [vmem:[%s5646 + $0x24] sm:$0xe]
        %v7307 = vld [vmem:[%s5646 + $0x28] sm:$0xf]
        %v7308 = vld [vmem:[%s5646 + $0x2c] sm:$0x1]
        %v7309 = vld [vmem:[%s5646 + $0x30] sm:$0xe]
        %v7310 = vld [vmem:[%s5646 + $0x34] sm:$0xf]
        %v7311 = vld [vmem:[%s5646 + $0x38] sm:$0x1]
        %v7312 = vld [vmem:[%s5646 + $0x3c] sm:$0xe]
        %v7313 = vld [vmem:[%s5646 + $0x40] sm:$0xf]
        %v7314 = vld [vmem:[%s5646 + $0x44] sm:$0x1]
        %v7315 = vld [vmem:[%s5646 + $0x48] sm:$0xe]
        %v7316 = vld [vmem:[%s5646 + $0x4c] sm:$0xf]
        %v7317 = vld [vmem:[%s5646 + $0x50] sm:$0x1]
        %v7318 = vld [vmem:[%s5646 + $0x54] sm:$0xe]
        %v7319 = vld [vmem:[%s5646 + $0x58] sm:$0xf]
        %v7320 = vld [vmem:[%s5646 + $0x5c] sm:$0x1]
        %v7321 = vld [vmem:[%s5646 + $0x60] sm:$0xe]
        %v7322 = vld [vmem:[%s5646 + $0x64] sm:$0xf]
        %v7323 = vld [vmem:[%s5646 + $0x68] sm:$0x1]
        %v7324 = vld [vmem:[%s5646 + $0x6c] sm:$0xe]
        %v7325 = vld [vmem:[%s5646 + $0x70] sm:$0xf]
        %v7326 = vld [vmem:[%s5646 + $0x74] sm:$0x1]
        %v7327 = vld [vmem:[%s5646 + $0x78] sm:$0xe]
        %v7328 = vld [vmem:[%s5646 + $0x7c] sm:$0xf]
        %v7329 = vld [vmem:[%s5646 + $0x80] sm:$0x1]
        %v7330 = vld [vmem:[%s5646 + $0x84] sm:$0xe]
        %v7331 = vld [vmem:[%s5646 + $0x88] sm:$0xf]
        %v7332 = vld [vmem:[%s5646 + $0x8c] sm:$0x1]
        %v7333 = vld [vmem:[%s5646 + $0x90] sm:$0xe]
        %v7334 = vld [vmem:[%s5646 + $0x94] sm:$0xf]
        %v7335 = vld [vmem:[%s5646 + $0x98] sm:$0x1]
        %v7336 = vld [vmem:[%s5646 + $0x9c] sm:$0xe]
        %v7337 = vld [vmem:[%s5646 + $0xa0] sm:$0xf]
        %v7338 = vld [vmem:[%s5646 + $0xa4] sm:$0x1]
        %v7339 = vld [vmem:[%s5646 + $0xa8] sm:$0xe]
        %v7340 = vld [vmem:[%s5646 + $0xac] sm:$0xf]
        %v7341 = vld [vmem:[%s5646 + $0xb0] sm:$0x1]
        %v7342 = vld [vmem:[%s5646 + $0xb4] sm:$0xe]
        %v7343 = vld [vmem:[%s5646 + $0xb8] sm:$0xf]
        %v7344 = vld [vmem:[%s5646 + $0xbc] sm:$0x1]
        %v7393 = vrot.slane %v7297, 5
        %v7394 = vrot.slane %v7393, 4
        %v7395 = vrot.slane %v7298, 5
        %v7396 = vsel %vm2757, %v7394, %v7395
        %v7397 = vrot.slane %v7395, 4
        %v7398 = vrot.slane %v7299, 5
        %v7399 = vsel %vm2757, %v7397, %v7398
        %v7400 = vrot.slane %v7300, 5
        %v7401 = vrot.slane %v7400, 4
        %v7402 = vrot.slane %v7301, 5
        %v7403 = vsel %vm2757, %v7401, %v7402
        %v7404 = vrot.slane %v7402, 4
        %v7405 = vrot.slane %v7302, 5
        %v7406 = vsel %vm2757, %v7404, %v7405
        %v7407 = vrot.slane %v7303, 5
        %v7408 = vrot.slane %v7407, 4
        %v7409 = vrot.slane %v7304, 5
        %v7410 = vsel %vm2757, %v7408, %v7409
        %v7411 = vrot.slane %v7409, 4
        %v7412 = vrot.slane %v7305, 5
        %v7413 = vsel %vm2757, %v7411, %v7412
        %v7414 = vrot.slane %v7306, 5
        %v7415 = vrot.slane %v7414, 4
        %v7416 = vrot.slane %v7307, 5
        %v7417 = vsel %vm2757, %v7415, %v7416
        %v7418 = vrot.slane %v7416, 4
        %v7419 = vrot.slane %v7308, 5
        %v7420 = vsel %vm2757, %v7418, %v7419
        %v7421 = vrot.slane %v7309, 5
        %v7422 = vrot.slane %v7421, 4
        %v7423 = vrot.slane %v7310, 5
        %v7424 = vsel %vm2757, %v7422, %v7423
        %v7425 = vrot.slane %v7423, 4
        %v7426 = vrot.slane %v7311, 5
        %v7427 = vsel %vm2757, %v7425, %v7426
        %v7428 = vrot.slane %v7312, 5
        %v7429 = vrot.slane %v7428, 4
        %v7430 = vrot.slane %v7313, 5
        %v7431 = vsel %vm2757, %v7429, %v7430
        %v7432 = vrot.slane %v7430, 4
        %v7433 = vrot.slane %v7314, 5
        %v7434 = vsel %vm2757, %v7432, %v7433
        %v7435 = vrot.slane %v7315, 5
        %v7436 = vrot.slane %v7435, 4
        %v7437 = vrot.slane %v7316, 5
        %v7438 = vsel %vm2757, %v7436, %v7437
        %v7439 = vrot.slane %v7437, 4
        %v7440 = vrot.slane %v7317, 5
        %v7441 = vsel %vm2757, %v7439, %v7440
        %v7442 = vrot.slane %v7318, 5
        %v7443 = vrot.slane %v7442, 4
        %v7444 = vrot.slane %v7319, 5
        %v7445 = vsel %vm2757, %v7443, %v7444
        %v7446 = vrot.slane %v7444, 4
        %v7447 = vrot.slane %v7320, 5
        %v7448 = vsel %vm2757, %v7446, %v7447
        %v7449 = vrot.slane %v7321, 5
        %v7450 = vrot.slane %v7449, 4
        %v7451 = vrot.slane %v7322, 5
        %v7452 = vsel %vm2757, %v7450, %v7451
        %v7453 = vrot.slane %v7451, 4
        %v7454 = vrot.slane %v7323, 5
        %v7455 = vsel %vm2757, %v7453, %v7454
        %v7456 = vrot.slane %v7324, 5
        %v7457 = vrot.slane %v7456, 4
        %v7458 = vrot.slane %v7325, 5
        %v7459 = vsel %vm2757, %v7457, %v7458
        %v7460 = vrot.slane %v7458, 4
        %v7461 = vrot.slane %v7326, 5
        %v7462 = vsel %vm2757, %v7460, %v7461
        %v7463 = vrot.slane %v7327, 5
        %v7464 = vrot.slane %v7463, 4
        %v7465 = vrot.slane %v7328, 5
        %v7466 = vsel %vm2757, %v7464, %v7465
        %v7467 = vrot.slane %v7465, 4
        %v7468 = vrot.slane %v7329, 5
        %v7469 = vsel %vm2757, %v7467, %v7468
        %v7470 = vrot.slane %v7330, 5
        %v7471 = vrot.slane %v7470, 4
        %v7472 = vrot.slane %v7331, 5
        %v7473 = vsel %vm2757, %v7471, %v7472
        %v7474 = vrot.slane %v7472, 4
        %v7475 = vrot.slane %v7332, 5
        %v7476 = vsel %vm2757, %v7474, %v7475
        %v7477 = vrot.slane %v7333, 5
        %v7478 = vrot.slane %v7477, 4
        %v7479 = vrot.slane %v7334, 5
        %v7480 = vsel %vm2757, %v7478, %v7479
        %v7481 = vrot.slane %v7479, 4
        %v7482 = vrot.slane %v7335, 5
        %v7483 = vsel %vm2757, %v7481, %v7482
        %v7484 = vrot.slane %v7336, 5
        %v7485 = vrot.slane %v7484, 4
        %v7486 = vrot.slane %v7337, 5
        %v7487 = vsel %vm2757, %v7485, %v7486
        %v7488 = vrot.slane %v7486, 4
        %v7489 = vrot.slane %v7338, 5
        %v7490 = vsel %vm2757, %v7488, %v7489
        %v7491 = vrot.slane %v7339, 5
        %v7492 = vrot.slane %v7491, 4
        %v7493 = vrot.slane %v7340, 5
        %v7494 = vsel %vm2757, %v7492, %v7493
        %v7495 = vrot.slane %v7493, 4
        %v7496 = vrot.slane %v7341, 5
        %v7497 = vsel %vm2757, %v7495, %v7496
        %v7498 = vrot.slane %v7342, 5
        %v7499 = vrot.slane %v7498, 4
        %v7500 = vrot.slane %v7343, 5
        %v7501 = vsel %vm2757, %v7499, %v7500
        %v7502 = vrot.slane %v7500, 4
        %v7503 = vrot.slane %v7344, 5
        %v7504 = vsel %vm2757, %v7502, %v7503
        %7537 = vst.msk [vmem:[#allocation5 + $0x8] sm:$0xf] %vm344, %v7396
        %7538 = vst.msk [vmem:[#allocation5 + $0x14] sm:$0xf] %vm344, %v7399
        %7539 = vst.msk [vmem:[#allocation5 + $0x20] sm:$0xf] %vm344, %v7403
        %7540 = vst.msk [vmem:[#allocation5 + $0x2c] sm:$0xf] %vm344, %v7406
        %7541 = vst.msk [vmem:[#allocation5 + $0x38] sm:$0xf] %vm344, %v7410
        %7542 = vst.msk [vmem:[#allocation5 + $0x44] sm:$0xf] %vm344, %v7413
        %7543 = vst.msk [vmem:[#allocation5 + $0x50] sm:$0xf] %vm344, %v7417
        %7544 = vst.msk [vmem:[#allocation5 + $0x5c] sm:$0xf] %vm344, %v7420
        %7545 = vst.msk [vmem:[#allocation5 + $0x68] sm:$0xf] %vm344, %v7424
        %7546 = vst.msk [vmem:[#allocation5 + $0x74] sm:$0xf] %vm344, %v7427
        %7547 = vst.msk [vmem:[#allocation5 + $0x80] sm:$0xf] %vm344, %v7431
        %7548 = vst.msk [vmem:[#allocation5 + $0x8c] sm:$0xf] %vm344, %v7434
        %7549 = vst.msk [vmem:[#allocation5 + $0x98] sm:$0xf] %vm344, %v7438
        %7550 = vst.msk [vmem:[#allocation5 + $0xa4] sm:$0xf] %vm344, %v7441
        %7551 = vst.msk [vmem:[#allocation5 + $0xb0] sm:$0xf] %vm344, %v7445
        %7552 = vst.msk [vmem:[#allocation5 + $0xbc] sm:$0xf] %vm344, %v7448
        %7553 = vst.msk [vmem:[#allocation5 + $0xc8] sm:$0xf] %vm344, %v7452
        %7554 = vst.msk [vmem:[#allocation5 + $0xd4] sm:$0xf] %vm344, %v7455
        %7555 = vst.msk [vmem:[#allocation5 + $0xe0] sm:$0xf] %vm344, %v7459
        %7556 = vst.msk [vmem:[#allocation5 + $0xec] sm:$0xf] %vm344, %v7462
        %7557 = vst.msk [vmem:[#allocation5 + $0xf8] sm:$0xf] %vm344, %v7466
        %7558 = vst.msk [vmem:[#allocation5 + $0x104] sm:$0xf] %vm344, %v7469
        %7559 = vst.msk [vmem:[#allocation5 + $0x110] sm:$0xf] %vm344, %v7473
        %7560 = vst.msk [vmem:[#allocation5 + $0x11c] sm:$0xf] %vm344, %v7476
        %7561 = vst.msk [vmem:[#allocation5 + $0x128] sm:$0xf] %vm344, %v7480
        %7562 = vst.msk [vmem:[#allocation5 + $0x134] sm:$0xf] %vm344, %v7483
        %7563 = vst.msk [vmem:[#allocation5 + $0x140] sm:$0xf] %vm344, %v7487
        %7564 = vst.msk [vmem:[#allocation5 + $0x14c] sm:$0xf] %vm344, %v7490
        %7565 = vst.msk [vmem:[#allocation5 + $0x158] sm:$0xf] %vm344, %v7494
        %7566 = vst.msk [vmem:[#allocation5 + $0x164] sm:$0xf] %vm344, %v7497
        %7567 = vst.msk [vmem:[#allocation5 + $0x170] sm:$0xf] %vm344, %v7501
        %7568 = vst.msk [vmem:[#allocation5 + $0x17c] sm:$0xf] %vm344, %v7504
        %v7569 = vld [vmem:[#allocation4] sm:$0xf]
        %v7570 = vld [vmem:[#allocation4 + $0x4] sm:$0xf]
        %v7571 = vld [vmem:[#allocation4 + $0x8] sm:$0xf]
        %v7572 = vld [vmem:[#allocation4 + $0xc] sm:$0xf]
        %v7573 = vld [vmem:[#allocation4 + $0x10] sm:$0xf]
        %v7574 = vld [vmem:[#allocation4 + $0x14] sm:$0xf]
        %v7575 = vld [vmem:[#allocation4 + $0x18] sm:$0xf]
        %v7576 = vld [vmem:[#allocation4 + $0x1c] sm:$0xf]
        %v7577 = vld [vmem:[#allocation4 + $0x20] sm:$0xf]
        %v7578 = vld [vmem:[#allocation4 + $0x24] sm:$0xf]
        %v7579 = vld [vmem:[#allocation4 + $0x28] sm:$0xf]
        %v7580 = vld [vmem:[#allocation4 + $0x2c] sm:$0xf]
        %v7581 = vld [vmem:[#allocation4 + $0x30] sm:$0xf]
        %v7582 = vld [vmem:[#allocation4 + $0x34] sm:$0xf]
        %v7583 = vld [vmem:[#allocation4 + $0x38] sm:$0xf]
        %v7584 = vld [vmem:[#allocation4 + $0x3c] sm:$0xf]
        %v7585 = vld [vmem:[#allocation4 + $0x40] sm:$0xf]
        %v7586 = vld [vmem:[#allocation4 + $0x44] sm:$0xf]
        %v7587 = vld [vmem:[#allocation4 + $0x48] sm:$0xf]
        %v7588 = vld [vmem:[#allocation4 + $0x4c] sm:$0xf]
        %v7589 = vld [vmem:[#allocation4 + $0x50] sm:$0xf]
        %v7590 = vld [vmem:[#allocation4 + $0x54] sm:$0xf]
        %v7591 = vld [vmem:[#allocation4 + $0x58] sm:$0xf]
        %v7592 = vld [vmem:[#allocation4 + $0x5c] sm:$0xf]
        %v7593 = vld [vmem:[#allocation4 + $0x60] sm:$0xf]
        %v7594 = vld [vmem:[#allocation4 + $0x64] sm:$0xf]
        %v7595 = vld [vmem:[#allocation4 + $0x68] sm:$0xf]
        %v7596 = vld [vmem:[#allocation4 + $0x6c] sm:$0xf]
        %v7597 = vld [vmem:[#allocation4 + $0x70] sm:$0xf]
        %v7598 = vld [vmem:[#allocation4 + $0x74] sm:$0xf]
        %v7599 = vld [vmem:[#allocation4 + $0x78] sm:$0xf]
        %v7600 = vld [vmem:[#allocation4 + $0x7c] sm:$0xf]
        %v7601 = vld [vmem:[%s2] sm:$0xf]
        %v7602 = vld [vmem:[%s2 + $0x4] sm:$0xf]
        %v7603 = vld [vmem:[%s2 + $0x8] sm:$0xf]
        %v7604 = vld [vmem:[%s2 + $0xc] sm:$0xf]
        %v7605 = vld [vmem:[%s2 + $0x10] sm:$0x3]
        %v7606 = vld [vmem:[%s4] sm:$0x1]
        %v7608 = vperm.slane %v7606, 0
        %v7642 = vunpack.c.l.b16 %v7569
        %v7643 = vunpack.c.l.b16 %v7570
        %v7644 = vunpack.c.l.b16 %v7571
        %v7645 = vunpack.c.l.b16 %v7572
        %v7646 = vunpack.c.l.b16 %v7573
        %v7647 = vunpack.c.l.b16 %v7574
        %v7648 = vunpack.c.l.b16 %v7575
        %v7649 = vunpack.c.l.b16 %v7576
        %v7650 = vunpack.c.l.b16 %v7577
        %v7651 = vunpack.c.l.b16 %v7578
        %v7652 = vunpack.c.l.b16 %v7579
        %v7653 = vunpack.c.l.b16 %v7580
        %v7654 = vunpack.c.l.b16 %v7581
        %v7655 = vunpack.c.l.b16 %v7582
        %v7656 = vunpack.c.l.b16 %v7583
        %v7657 = vunpack.c.l.b16 %v7584
        %v7658 = vunpack.c.l.b16 %v7585
        %v7659 = vunpack.c.l.b16 %v7586
        %v7660 = vunpack.c.l.b16 %v7587
        %v7661 = vunpack.c.l.b16 %v7588
        %v7662 = vunpack.c.l.b16 %v7589
        %v7663 = vunpack.c.l.b16 %v7590
        %v7664 = vunpack.c.l.b16 %v7591
        %v7665 = vunpack.c.l.b16 %v7592
        %v7666 = vunpack.c.l.b16 %v7593
        %v7667 = vunpack.c.l.b16 %v7594
        %v7668 = vunpack.c.l.b16 %v7595
        %v7669 = vunpack.c.l.b16 %v7596
        %v7670 = vunpack.c.l.b16 %v7597
        %v7671 = vunpack.c.l.b16 %v7598
        %v7672 = vunpack.c.l.b16 %v7599
        %v7673 = vunpack.c.l.b16 %v7600
        %v7674 = vpack.c.b16 %v7643, %v7642
        %v7675 = vpack.c.b16 %v7645, %v7644
        %v7676 = vpack.c.b16 %v7647, %v7646
        %v7677 = vpack.c.b16 %v7649, %v7648
        %v7678 = vpack.c.b16 %v7651, %v7650
        %v7679 = vpack.c.b16 %v7653, %v7652
        %v7680 = vpack.c.b16 %v7655, %v7654
        %v7681 = vpack.c.b16 %v7657, %v7656
        %v7682 = vpack.c.b16 %v7659, %v7658
        %v7683 = vpack.c.b16 %v7661, %v7660
        %v7684 = vpack.c.b16 %v7663, %v7662
        %v7685 = vpack.c.b16 %v7665, %v7664
        %v7686 = vpack.c.b16 %v7667, %v7666
        %v7687 = vpack.c.b16 %v7669, %v7668
        %v7688 = vpack.c.b16 %v7671, %v7670
        %v7689 = vpack.c.b16 %v7673, %v7672
        %v7695 = vunpack.c.l.b16 %v7601
        %v7696 = vunpack.c.l.b16 %v7602
        %v7697 = vunpack.c.l.b16 %v7603
        %v7698 = vunpack.c.l.b16 %v7604
        %v7699 = vunpack.c.l.b16 %v7605
        %v7700 = vpack.c.b16 %v7696, %v7695
        %v7701 = vpack.c.b16 %v7698, %v7697
        %v7702 = vpack.c.b16 %v7699, %v7699
        %vm7705 = vcmask 293888
        %v7707 = vsel %vm7705, %v7674, 0
        %v7710 = vsel %vm7705, %v7675, 0
        %v7713 = vsel %vm7705, %v7676, 0
        %v7716 = vsel %vm7705, %v7677, 0
        %v7719 = vsel %vm7705, %v7678, 0
        %v7722 = vsel %vm7705, %v7679, 0
        %v7725 = vsel %vm7705, %v7680, 0
        %v7728 = vsel %vm7705, %v7681, 0
        %v7731 = vsel %vm7705, %v7682, 0
        %v7734 = vsel %vm7705, %v7683, 0
        %v7737 = vsel %vm7705, %v7684, 0
        %v7740 = vsel %vm7705, %v7685, 0
        %v7743 = vsel %vm7705, %v7686, 0
        %v7746 = vsel %vm7705, %v7687, 0
        %v7749 = vsel %vm7705, %v7688, 0
        %v7752 = vsel %vm7705, %v7689, 0
        %vm7754 = vcmask 1041408
        %v7756 = vsel %vm7754, %v7702, 0
        %7758 = vmatpush.bf16.msra.mxu0 0
        %7759 = vmatpush.bf16.msra.mxu0 0
        %7760 = vmatpush.bf16.msra.mxu0 0
        %7761 = vmatpush.bf16.msra.mxu0 0
        %7762 = vmatpush.bf16.msra.mxu0 0
        %7763 = vmatpush.bf16.msra.mxu0 %v7756
        %7764 = vmatpush.bf16.msra.mxu0 %v7701
        %7765 = vmatpush.bf16.msra.mxu0 %v7700
        %7766 = vmatmul.bf16.gmra.mxu0 %v7707
        %v7767 = vpop.f32.mrf.mxu0
        %v7768 = vadd.f32 %v7608, %v7767
        %v7769 = vpop.f32.mrf.mxu0
        %v7770 = vadd.f32 %v7608, %v7769
        %7771 = vmatmul.bf16.gmra.mxu0 %v7710
        %v7772 = vpop.f32.mrf.mxu0
        %v7773 = vadd.f32 %v7608, %v7772
        %v7774 = vpop.f32.mrf.mxu0
        %v7775 = vadd.f32 %v7608, %v7774
        %7776 = vmatmul.bf16.gmra.mxu0 %v7713
        %v7777 = vpop.f32.mrf.mxu0
        %v7778 = vadd.f32 %v7608, %v7777
        %v7779 = vpop.f32.mrf.mxu0
        %v7780 = vadd.f32 %v7608, %v7779
        %7781 = vmatmul.bf16.gmra.mxu0 %v7716
        %v7782 = vpop.f32.mrf.mxu0
        %v7783 = vadd.f32 %v7608, %v7782
        %v7784 = vpop.f32.mrf.mxu0
        %v7785 = vadd.f32 %v7608, %v7784
        %7786 = vmatmul.bf16.gmra.mxu0 %v7719
        %v7787 = vpop.f32.mrf.mxu0
        %v7788 = vadd.f32 %v7608, %v7787
        %v7789 = vpop.f32.mrf.mxu0
        %v7790 = vadd.f32 %v7608, %v7789
        %7791 = vmatmul.bf16.gmra.mxu0 %v7722
        %v7792 = vpop.f32.mrf.mxu0
        %v7793 = vadd.f32 %v7608, %v7792
        %v7794 = vpop.f32.mrf.mxu0
        %v7795 = vadd.f32 %v7608, %v7794
        %7796 = vmatmul.bf16.gmra.mxu0 %v7725
        %v7797 = vpop.f32.mrf.mxu0
        %v7798 = vadd.f32 %v7608, %v7797
        %v7799 = vpop.f32.mrf.mxu0
        %v7800 = vadd.f32 %v7608, %v7799
        %7801 = vmatmul.bf16.gmra.mxu0 %v7728
        %v7802 = vpop.f32.mrf.mxu0
        %v7803 = vadd.f32 %v7608, %v7802
        %v7804 = vpop.f32.mrf.mxu0
        %v7805 = vadd.f32 %v7608, %v7804
        %7806 = vmatmul.bf16.gmra.mxu0 %v7731
        %v7807 = vpop.f32.mrf.mxu0
        %v7808 = vadd.f32 %v7608, %v7807
        %v7809 = vpop.f32.mrf.mxu0
        %v7810 = vadd.f32 %v7608, %v7809
        %7811 = vmatmul.bf16.gmra.mxu0 %v7734
        %v7812 = vpop.f32.mrf.mxu0
        %v7813 = vadd.f32 %v7608, %v7812
        %v7814 = vpop.f32.mrf.mxu0
        %v7815 = vadd.f32 %v7608, %v7814
        %7816 = vmatmul.bf16.gmra.mxu0 %v7737
        %v7817 = vpop.f32.mrf.mxu0
        %v7818 = vadd.f32 %v7608, %v7817
        %v7819 = vpop.f32.mrf.mxu0
        %v7820 = vadd.f32 %v7608, %v7819
        %7821 = vmatmul.bf16.gmra.mxu0 %v7740
        %v7822 = vpop.f32.mrf.mxu0
        %v7823 = vadd.f32 %v7608, %v7822
        %v7824 = vpop.f32.mrf.mxu0
        %v7825 = vadd.f32 %v7608, %v7824
        %7826 = vmatmul.bf16.gmra.mxu0 %v7743
        %v7827 = vpop.f32.mrf.mxu0
        %v7828 = vadd.f32 %v7608, %v7827
        %v7829 = vpop.f32.mrf.mxu0
        %v7830 = vadd.f32 %v7608, %v7829
        %7831 = vmatmul.bf16.gmra.mxu0 %v7746
        %v7832 = vpop.f32.mrf.mxu0
        %v7833 = vadd.f32 %v7608, %v7832
        %v7834 = vpop.f32.mrf.mxu0
        %v7835 = vadd.f32 %v7608, %v7834
        %7836 = vmatmul.bf16.gmra.mxu0 %v7749
        %v7837 = vpop.f32.mrf.mxu0
        %v7838 = vadd.f32 %v7608, %v7837
        %v7839 = vpop.f32.mrf.mxu0
        %v7840 = vadd.f32 %v7608, %v7839
        %7841 = vmatmul.bf16.gmra.mxu0 %v7752
        %v7842 = vpop.f32.mrf.mxu0
        %v7843 = vadd.f32 %v7608, %v7842
        %v7844 = vpop.f32.mrf.mxu0
        %v7845 = vadd.f32 %v7608, %v7844
        %7846 = vdwg.mxu0
        %v7847 = vld [vmem:[#allocation5] sm:$0xff]
        %v7848 = vld [vmem:[#allocation5 + $0x8] sm:$0xf]
        %v7849 = vld [vmem:[#allocation5 + $0xc] sm:$0xff]
        %v7850 = vld [vmem:[#allocation5 + $0x14] sm:$0xf]
        %v7851 = vld [vmem:[#allocation5 + $0x18] sm:$0xff]
        %v7852 = vld [vmem:[#allocation5 + $0x20] sm:$0xf]
        %v7853 = vld [vmem:[#allocation5 + $0x24] sm:$0xff]
        %v7854 = vld [vmem:[#allocation5 + $0x2c] sm:$0xf]
        %v7855 = vld [vmem:[#allocation5 + $0x30] sm:$0xff]
        %v7856 = vld [vmem:[#allocation5 + $0x38] sm:$0xf]
        %v7857 = vld [vmem:[#allocation5 + $0x3c] sm:$0xff]
        %v7858 = vld [vmem:[#allocation5 + $0x44] sm:$0xf]
        %v7859 = vld [vmem:[#allocation5 + $0x48] sm:$0xff]
        %v7860 = vld [vmem:[#allocation5 + $0x50] sm:$0xf]
        %v7861 = vld [vmem:[#allocation5 + $0x54] sm:$0xff]
        %v7862 = vld [vmem:[#allocation5 + $0x5c] sm:$0xf]
        %v7863 = vld [vmem:[#allocation5 + $0x60] sm:$0xff]
        %v7864 = vld [vmem:[#allocation5 + $0x68] sm:$0xf]
        %v7865 = vld [vmem:[#allocation5 + $0x6c] sm:$0xff]
        %v7866 = vld [vmem:[#allocation5 + $0x74] sm:$0xf]
        %v7867 = vld [vmem:[#allocation5 + $0x78] sm:$0xff]
        %v7868 = vld [vmem:[#allocation5 + $0x80] sm:$0xf]
        %v7869 = vld [vmem:[#allocation5 + $0x84] sm:$0xff]
        %v7870 = vld [vmem:[#allocation5 + $0x8c] sm:$0xf]
        %v7871 = vld [vmem:[#allocation5 + $0x90] sm:$0xff]
        %v7872 = vld [vmem:[#allocation5 + $0x98] sm:$0xf]
        %v7873 = vld [vmem:[#allocation5 + $0x9c] sm:$0xff]
        %v7874 = vld [vmem:[#allocation5 + $0xa4] sm:$0xf]
        %v7875 = vld [vmem:[#allocation5 + $0xa8] sm:$0xff]
        %v7876 = vld [vmem:[#allocation5 + $0xb0] sm:$0xf]
        %v7877 = vld [vmem:[#allocation5 + $0xb4] sm:$0xff]
        %v7878 = vld [vmem:[#allocation5 + $0xbc] sm:$0xf]
        %v7879 = vld [vmem:[#allocation5 + $0xc0] sm:$0xff]
        %v7880 = vld [vmem:[#allocation5 + $0xc8] sm:$0xf]
        %v7881 = vld [vmem:[#allocation5 + $0xcc] sm:$0xff]
        %v7882 = vld [vmem:[#allocation5 + $0xd4] sm:$0xf]
        %v7883 = vld [vmem:[#allocation5 + $0xd8] sm:$0xff]
        %v7884 = vld [vmem:[#allocation5 + $0xe0] sm:$0xf]
        %v7885 = vld [vmem:[#allocation5 + $0xe4] sm:$0xff]
        %v7886 = vld [vmem:[#allocation5 + $0xec] sm:$0xf]
        %v7887 = vld [vmem:[#allocation5 + $0xf0] sm:$0xff]
        %v7888 = vld [vmem:[#allocation5 + $0xf8] sm:$0xf]
        %v7889 = vld [vmem:[#allocation5 + $0xfc] sm:$0xff]
        %v7890 = vld [vmem:[#allocation5 + $0x104] sm:$0xf]
        %v7891 = vld [vmem:[#allocation5 + $0x108] sm:$0xff]
        %v7892 = vld [vmem:[#allocation5 + $0x110] sm:$0xf]
        %v7893 = vld [vmem:[#allocation5 + $0x114] sm:$0xff]
        %v7894 = vld [vmem:[#allocation5 + $0x11c] sm:$0xf]
        %v7895 = vld [vmem:[#allocation5 + $0x120] sm:$0xff]
        %v7896 = vld [vmem:[#allocation5 + $0x128] sm:$0xf]
        %v7897 = vld [vmem:[#allocation5 + $0x12c] sm:$0xff]
        %v7898 = vld [vmem:[#allocation5 + $0x134] sm:$0xf]
        %v7899 = vld [vmem:[#allocation5 + $0x138] sm:$0xff]
        %v7900 = vld [vmem:[#allocation5 + $0x140] sm:$0xf]
        %v7901 = vld [vmem:[#allocation5 + $0x144] sm:$0xff]
        %v7902 = vld [vmem:[#allocation5 + $0x14c] sm:$0xf]
        %v7903 = vld [vmem:[#allocation5 + $0x150] sm:$0xff]
        %v7904 = vld [vmem:[#allocation5 + $0x158] sm:$0xf]
        %v7905 = vld [vmem:[#allocation5 + $0x15c] sm:$0xff]
        %v7906 = vld [vmem:[#allocation5 + $0x164] sm:$0xf]
        %v7907 = vld [vmem:[#allocation5 + $0x168] sm:$0xff]
        %v7908 = vld [vmem:[#allocation5 + $0x170] sm:$0xf]
        %v7909 = vld [vmem:[#allocation5 + $0x174] sm:$0xff]
        %v7910 = vld [vmem:[#allocation5 + $0x17c] sm:$0xf]
        %v7911 = vld [vmem:[#allocation6] sm:$0xf]
        %v7912 = vld [vmem:[#allocation6 + $0x4] sm:$0xf]
        %v7913 = vld [vmem:[#allocation6 + $0x8] sm:$0xf]
        %v7914 = vld [vmem:[#allocation6 + $0xc] sm:$0xf]
        %v7915 = vld [vmem:[#allocation6 + $0x10] sm:$0xf]
        %v7916 = vld [vmem:[#allocation6 + $0x14] sm:$0xf]
        %v7917 = vld [vmem:[#allocation6 + $0x18] sm:$0xf]
        %v7918 = vld [vmem:[#allocation6 + $0x1c] sm:$0xf]
        %v7919 = vld [vmem:[#allocation6 + $0x20] sm:$0xf]
        %v7920 = vld [vmem:[#allocation6 + $0x24] sm:$0xf]
        %v7921 = vld [vmem:[#allocation6 + $0x28] sm:$0xf]
        %v7922 = vld [vmem:[#allocation6 + $0x2c] sm:$0xf]
        %v7923 = vld [vmem:[#allocation6 + $0x30] sm:$0xf]
        %v7924 = vld [vmem:[#allocation6 + $0x34] sm:$0xf]
        %v7925 = vld [vmem:[#allocation6 + $0x38] sm:$0xf]
        %v7926 = vld [vmem:[#allocation6 + $0x3c] sm:$0xf]
        %v7927 = vld [vmem:[#allocation6 + $0x40] sm:$0xf]
        %v7928 = vld [vmem:[#allocation6 + $0x44] sm:$0xf]
        %v7929 = vld [vmem:[#allocation6 + $0x48] sm:$0xf]
        %v7930 = vld [vmem:[#allocation6 + $0x4c] sm:$0xf]
        %v7931 = vld [vmem:[#allocation6 + $0x50] sm:$0xf]
        %v7932 = vld [vmem:[#allocation6 + $0x54] sm:$0xf]
        %v7933 = vld [vmem:[#allocation6 + $0x58] sm:$0xf]
        %v7934 = vld [vmem:[#allocation6 + $0x5c] sm:$0xf]
        %v7935 = vld [vmem:[#allocation6 + $0x60] sm:$0xf]
        %v7936 = vld [vmem:[#allocation6 + $0x64] sm:$0xf]
        %v7937 = vld [vmem:[#allocation6 + $0x68] sm:$0xf]
        %v7938 = vld [vmem:[#allocation6 + $0x6c] sm:$0xf]
        %v7939 = vld [vmem:[#allocation6 + $0x70] sm:$0xf]
        %v7940 = vld [vmem:[#allocation6 + $0x74] sm:$0xf]
        %v7941 = vld [vmem:[#allocation6 + $0x78] sm:$0xf]
        %v7942 = vld [vmem:[#allocation6 + $0x7c] sm:$0xf]
        %v7943 = vld [vmem:[#allocation6 + $0x80] sm:$0xf]
        %v7944 = vld [vmem:[#allocation6 + $0x84] sm:$0xf]
        %v7945 = vld [vmem:[#allocation6 + $0x88] sm:$0xf]
        %v7946 = vld [vmem:[#allocation6 + $0x8c] sm:$0xf]
        %v7947 = vld [vmem:[%s5] sm:$0x1]
        %v7949 = vperm.slane %v7947, 0
        %v8015 = vunpack.c.l.b16 %v7847
        %v8016 = vunpack.c.h.b16 %v7847
        %v8017 = vunpack.c.l.b16 %v7848
        %v8018 = vunpack.c.l.b16 %v7849
        %v8019 = vunpack.c.h.b16 %v7849
        %v8020 = vunpack.c.l.b16 %v7850
        %v8021 = vunpack.c.l.b16 %v7851
        %v8022 = vunpack.c.h.b16 %v7851
        %v8023 = vunpack.c.l.b16 %v7852
        %v8024 = vunpack.c.l.b16 %v7853
        %v8025 = vunpack.c.h.b16 %v7853
        %v8026 = vunpack.c.l.b16 %v7854
        %v8027 = vunpack.c.l.b16 %v7855
        %v8028 = vunpack.c.h.b16 %v7855
        %v8029 = vunpack.c.l.b16 %v7856
        %v8030 = vunpack.c.l.b16 %v7857
        %v8031 = vunpack.c.h.b16 %v7857
        %v8032 = vunpack.c.l.b16 %v7858
        %v8033 = vunpack.c.l.b16 %v7859
        %v8034 = vunpack.c.h.b16 %v7859
        %v8035 = vunpack.c.l.b16 %v7860
        %v8036 = vunpack.c.l.b16 %v7861
        %v8037 = vunpack.c.h.b16 %v7861
        %v8038 = vunpack.c.l.b16 %v7862
        %v8039 = vunpack.c.l.b16 %v7863
        %v8040 = vunpack.c.h.b16 %v7863
        %v8041 = vunpack.c.l.b16 %v7864
        %v8042 = vunpack.c.l.b16 %v7865
        %v8043 = vunpack.c.h.b16 %v7865
        %v8044 = vunpack.c.l.b16 %v7866
        %v8045 = vunpack.c.l.b16 %v7867
        %v8046 = vunpack.c.h.b16 %v7867
        %v8047 = vunpack.c.l.b16 %v7868
        %v8048 = vunpack.c.l.b16 %v7869
        %v8049 = vunpack.c.h.b16 %v7869
        %v8050 = vunpack.c.l.b16 %v7870
        %v8051 = vunpack.c.l.b16 %v7871
        %v8052 = vunpack.c.h.b16 %v7871
        %v8053 = vunpack.c.l.b16 %v7872
        %v8054 = vunpack.c.l.b16 %v7873
        %v8055 = vunpack.c.h.b16 %v7873
        %v8056 = vunpack.c.l.b16 %v7874
        %v8057 = vunpack.c.l.b16 %v7875
        %v8058 = vunpack.c.h.b16 %v7875
        %v8059 = vunpack.c.l.b16 %v7876
        %v8060 = vunpack.c.l.b16 %v7877
        %v8061 = vunpack.c.h.b16 %v7877
        %v8062 = vunpack.c.l.b16 %v7878
        %v8063 = vunpack.c.l.b16 %v7879
        %v8064 = vunpack.c.h.b16 %v7879
        %v8065 = vunpack.c.l.b16 %v7880
        %v8066 = vunpack.c.l.b16 %v7881
        %v8067 = vunpack.c.h.b16 %v7881
        %v8068 = vunpack.c.l.b16 %v7882
        %v8069 = vunpack.c.l.b16 %v7883
        %v8070 = vunpack.c.h.b16 %v7883
        %v8071 = vunpack.c.l.b16 %v7884
        %v8072 = vunpack.c.l.b16 %v7885
        %v8073 = vunpack.c.h.b16 %v7885
        %v8074 = vunpack.c.l.b16 %v7886
        %v8075 = vunpack.c.l.b16 %v7887
        %v8076 = vunpack.c.h.b16 %v7887
        %v8077 = vunpack.c.l.b16 %v7888
        %v8078 = vunpack.c.l.b16 %v7889
        %v8079 = vunpack.c.h.b16 %v7889
        %v8080 = vunpack.c.l.b16 %v7890
        %v8081 = vunpack.c.l.b16 %v7891
        %v8082 = vunpack.c.h.b16 %v7891
        %v8083 = vunpack.c.l.b16 %v7892
        %v8084 = vunpack.c.l.b16 %v7893
        %v8085 = vunpack.c.h.b16 %v7893
        %v8086 = vunpack.c.l.b16 %v7894
        %v8087 = vunpack.c.l.b16 %v7895
        %v8088 = vunpack.c.h.b16 %v7895
        %v8089 = vunpack.c.l.b16 %v7896
        %v8090 = vunpack.c.l.b16 %v7897
        %v8091 = vunpack.c.h.b16 %v7897
        %v8092 = vunpack.c.l.b16 %v7898
        %v8093 = vunpack.c.l.b16 %v7899
        %v8094 = vunpack.c.h.b16 %v7899
        %v8095 = vunpack.c.l.b16 %v7900
        %v8096 = vunpack.c.l.b16 %v7901
        %v8097 = vunpack.c.h.b16 %v7901
        %v8098 = vunpack.c.l.b16 %v7902
        %v8099 = vunpack.c.l.b16 %v7903
        %v8100 = vunpack.c.h.b16 %v7903
        %v8101 = vunpack.c.l.b16 %v7904
        %v8102 = vunpack.c.l.b16 %v7905
        %v8103 = vunpack.c.h.b16 %v7905
        %v8104 = vunpack.c.l.b16 %v7906
        %v8105 = vunpack.c.l.b16 %v7907
        %v8106 = vunpack.c.h.b16 %v7907
        %v8107 = vunpack.c.l.b16 %v7908
        %v8108 = vunpack.c.l.b16 %v7909
        %v8109 = vunpack.c.h.b16 %v7909
        %v8110 = vunpack.c.l.b16 %v7910
        %v8111 = vpack.c.b16 %v8018, %v8015
        %v8112 = vpack.c.b16 %v8019, %v8016
        %v8113 = vpack.c.b16 %v8020, %v8017
        %v8114 = vpack.c.b16 %v8024, %v8021
        %v8115 = vpack.c.b16 %v8025, %v8022
        %v8116 = vpack.c.b16 %v8026, %v8023
        %v8117 = vpack.c.b16 %v8030, %v8027
        %v8118 = vpack.c.b16 %v8031, %v8028
        %v8119 = vpack.c.b16 %v8032, %v8029
        %v8120 = vpack.c.b16 %v8036, %v8033
        %v8121 = vpack.c.b16 %v8037, %v8034
        %v8122 = vpack.c.b16 %v8038, %v8035
        %v8123 = vpack.c.b16 %v8042, %v8039
        %v8124 = vpack.c.b16 %v8043, %v8040
        %v8125 = vpack.c.b16 %v8044, %v8041
        %v8126 = vpack.c.b16 %v8048, %v8045
        %v8127 = vpack.c.b16 %v8049, %v8046
        %v8128 = vpack.c.b16 %v8050, %v8047
        %v8129 = vpack.c.b16 %v8054, %v8051
        %v8130 = vpack.c.b16 %v8055, %v8052
        %v8131 = vpack.c.b16 %v8056, %v8053
        %v8132 = vpack.c.b16 %v8060, %v8057
        %v8133 = vpack.c.b16 %v8061, %v8058
        %v8134 = vpack.c.b16 %v8062, %v8059
        %v8135 = vpack.c.b16 %v8066, %v8063
        %v8136 = vpack.c.b16 %v8067, %v8064
        %v8137 = vpack.c.b16 %v8068, %v8065
        %v8138 = vpack.c.b16 %v8072, %v8069
        %v8139 = vpack.c.b16 %v8073, %v8070
        %v8140 = vpack.c.b16 %v8074, %v8071
        %v8141 = vpack.c.b16 %v8078, %v8075
        %v8142 = vpack.c.b16 %v8079, %v8076
        %v8143 = vpack.c.b16 %v8080, %v8077
        %v8144 = vpack.c.b16 %v8084, %v8081
        %v8145 = vpack.c.b16 %v8085, %v8082
        %v8146 = vpack.c.b16 %v8086, %v8083
        %v8147 = vpack.c.b16 %v8090, %v8087
        %v8148 = vpack.c.b16 %v8091, %v8088
        %v8149 = vpack.c.b16 %v8092, %v8089
        %v8150 = vpack.c.b16 %v8096, %v8093
        %v8151 = vpack.c.b16 %v8097, %v8094
        %v8152 = vpack.c.b16 %v8098, %v8095
        %v8153 = vpack.c.b16 %v8102, %v8099
        %v8154 = vpack.c.b16 %v8103, %v8100
        %v8155 = vpack.c.b16 %v8104, %v8101
        %v8156 = vpack.c.b16 %v8108, %v8105
        %v8157 = vpack.c.b16 %v8109, %v8106
        %v8158 = vpack.c.b16 %v8110, %v8107
        %v8227 = vunpack.c.l.b16 %v7911
        %v8228 = vunpack.c.l.b16 %v7912
        %v8229 = vunpack.c.l.b16 %v7913
        %v8230 = vunpack.c.l.b16 %v7914
        %v8231 = vunpack.c.l.b16 %v7915
        %v8232 = vunpack.c.l.b16 %v7916
        %v8233 = vunpack.c.l.b16 %v7917
        %v8234 = vunpack.c.l.b16 %v7918
        %v8235 = vunpack.c.l.b16 %v7919
        %v8236 = vunpack.c.l.b16 %v7920
        %v8237 = vunpack.c.l.b16 %v7921
        %v8238 = vunpack.c.l.b16 %v7922
        %v8239 = vunpack.c.l.b16 %v7923
        %v8240 = vunpack.c.l.b16 %v7924
        %v8241 = vunpack.c.l.b16 %v7925
        %v8242 = vunpack.c.l.b16 %v7926
        %v8243 = vunpack.c.l.b16 %v7927
        %v8244 = vunpack.c.l.b16 %v7928
        %v8245 = vunpack.c.l.b16 %v7929
        %v8246 = vunpack.c.l.b16 %v7930
        %v8247 = vunpack.c.l.b16 %v7931
        %v8248 = vunpack.c.l.b16 %v7932
        %v8249 = vunpack.c.l.b16 %v7933
        %v8250 = vunpack.c.l.b16 %v7934
        %v8251 = vunpack.c.l.b16 %v7935
        %v8252 = vunpack.c.l.b16 %v7936
        %v8253 = vunpack.c.l.b16 %v7937
        %v8254 = vunpack.c.l.b16 %v7938
        %v8255 = vunpack.c.l.b16 %v7939
        %v8256 = vunpack.c.l.b16 %v7940
        %v8257 = vunpack.c.l.b16 %v7941
        %v8258 = vunpack.c.l.b16 %v7942
        %v8259 = vunpack.c.l.b16 %v7943
        %v8260 = vunpack.c.l.b16 %v7944
        %v8261 = vunpack.c.l.b16 %v7945
        %v8262 = vunpack.c.l.b16 %v7946
        %v8263 = vpack.c.b16 %v8228, %v8227
        %v8264 = vpack.c.b16 %v8230, %v8229
        %v8265 = vpack.c.b16 %v8232, %v8231
        %v8266 = vpack.c.b16 %v8234, %v8233
        %v8267 = vpack.c.b16 %v8236, %v8235
        %v8268 = vpack.c.b16 %v8238, %v8237
        %v8269 = vpack.c.b16 %v8240, %v8239
        %v8270 = vpack.c.b16 %v8242, %v8241
        %v8271 = vpack.c.b16 %v8244, %v8243
        %v8272 = vpack.c.b16 %v8246, %v8245
        %v8273 = vpack.c.b16 %v8248, %v8247
        %v8274 = vpack.c.b16 %v8250, %v8249
        %v8275 = vpack.c.b16 %v8252, %v8251
        %v8276 = vpack.c.b16 %v8254, %v8253
        %v8277 = vpack.c.b16 %v8256, %v8255
        %v8278 = vpack.c.b16 %v8258, %v8257
        %v8279 = vpack.c.b16 %v8260, %v8259
        %v8280 = vpack.c.b16 %v8262, %v8261
        %vm8299 = vcmask 261120
        %v8301 = vsel %vm8299, %v8113, 0
        %v8304 = vsel %vm8299, %v8116, 0
        %v8307 = vsel %vm8299, %v8119, 0
        %v8310 = vsel %vm8299, %v8122, 0
        %v8313 = vsel %vm8299, %v8125, 0
        %v8316 = vsel %vm8299, %v8128, 0
        %v8319 = vsel %vm8299, %v8131, 0
        %v8322 = vsel %vm8299, %v8134, 0
        %v8325 = vsel %vm8299, %v8137, 0
        %v8328 = vsel %vm8299, %v8140, 0
        %v8331 = vsel %vm8299, %v8143, 0
        %v8334 = vsel %vm8299, %v8146, 0
        %v8337 = vsel %vm8299, %v8149, 0
        %v8340 = vsel %vm8299, %v8152, 0
        %v8343 = vsel %vm8299, %v8155, 0
        %v8346 = vsel %vm8299, %v8158, 0
        %8348 = vmatpush.bf16.msra.mxu0 %v8270
        %8349 = vmatpush.bf16.msra.mxu0 %v8269
        %8350 = vmatpush.bf16.msra.mxu0 %v8268
        %8351 = vmatpush.bf16.msra.mxu0 %v8267
        %8352 = vmatpush.bf16.msra.mxu0 %v8266
        %8353 = vmatpush.bf16.msra.mxu0 %v8265
        %8354 = vmatpush.bf16.msra.mxu0 %v8264
        %8355 = vmatpush.bf16.msra.mxu0 %v8263
        %8356 = vmatmul.bf16.gmra.mxu0 %v8111
        %v8357 = vpop.f32.mrf.mxu0
        %v8358 = vadd.f32 %v7949, %v8357
        %v8359 = vpop.f32.mrf.mxu0
        %v8360 = vadd.f32 %v7949, %v8359
        %8361 = vmatmul.bf16.gmra.mxu0 %v8114
        %v8362 = vpop.f32.mrf.mxu0
        %v8363 = vadd.f32 %v7949, %v8362
        %v8364 = vpop.f32.mrf.mxu0
        %v8365 = vadd.f32 %v7949, %v8364
        %8366 = vmatmul.bf16.gmra.mxu0 %v8117
        %v8367 = vpop.f32.mrf.mxu0
        %v8368 = vadd.f32 %v7949, %v8367
        %v8369 = vpop.f32.mrf.mxu0
        %v8370 = vadd.f32 %v7949, %v8369
        %8371 = vmatmul.bf16.gmra.mxu0 %v8120
        %v8372 = vpop.f32.mrf.mxu0
        %v8373 = vadd.f32 %v7949, %v8372
        %v8374 = vpop.f32.mrf.mxu0
        %v8375 = vadd.f32 %v7949, %v8374
        %8376 = vmatmul.bf16.gmra.mxu0 %v8123
        %v8377 = vpop.f32.mrf.mxu0
        %v8378 = vadd.f32 %v7949, %v8377
        %v8379 = vpop.f32.mrf.mxu0
        %v8380 = vadd.f32 %v7949, %v8379
        %8381 = vmatmul.bf16.gmra.mxu0 %v8126
        %v8382 = vpop.f32.mrf.mxu0
        %v8383 = vadd.f32 %v7949, %v8382
        %v8384 = vpop.f32.mrf.mxu0
        %v8385 = vadd.f32 %v7949, %v8384
        %8386 = vmatmul.bf16.gmra.mxu0 %v8129
        %v8387 = vpop.f32.mrf.mxu0
        %v8388 = vadd.f32 %v7949, %v8387
        %v8389 = vpop.f32.mrf.mxu0
        %v8390 = vadd.f32 %v7949, %v8389
        %8391 = vmatmul.bf16.gmra.mxu0 %v8132
        %v8392 = vpop.f32.mrf.mxu0
        %v8393 = vadd.f32 %v7949, %v8392
        %v8394 = vpop.f32.mrf.mxu0
        %v8395 = vadd.f32 %v7949, %v8394
        %8396 = vmatmul.bf16.gmra.mxu0 %v8135
        %v8397 = vpop.f32.mrf.mxu0
        %v8398 = vadd.f32 %v7949, %v8397
        %v8399 = vpop.f32.mrf.mxu0
        %v8400 = vadd.f32 %v7949, %v8399
        %8401 = vmatmul.bf16.gmra.mxu0 %v8138
        %v8402 = vpop.f32.mrf.mxu0
        %v8403 = vadd.f32 %v7949, %v8402
        %v8404 = vpop.f32.mrf.mxu0
        %v8405 = vadd.f32 %v7949, %v8404
        %8406 = vmatmul.bf16.gmra.mxu0 %v8141
        %v8407 = vpop.f32.mrf.mxu0
        %v8408 = vadd.f32 %v7949, %v8407
        %v8409 = vpop.f32.mrf.mxu0
        %v8410 = vadd.f32 %v7949, %v8409
        %8411 = vmatmul.bf16.gmra.mxu0 %v8144
        %v8412 = vpop.f32.mrf.mxu0
        %v8413 = vadd.f32 %v7949, %v8412
        %v8414 = vpop.f32.mrf.mxu0
        %v8415 = vadd.f32 %v7949, %v8414
        %8416 = vmatmul.bf16.gmra.mxu0 %v8147
        %v8417 = vpop.f32.mrf.mxu0
        %v8418 = vadd.f32 %v7949, %v8417
        %v8419 = vpop.f32.mrf.mxu0
        %v8420 = vadd.f32 %v7949, %v8419
        %8421 = vmatmul.bf16.gmra.mxu0 %v8150
        %v8422 = vpop.f32.mrf.mxu0
        %v8423 = vadd.f32 %v7949, %v8422
        %v8424 = vpop.f32.mrf.mxu0
        %v8425 = vadd.f32 %v7949, %v8424
        %8426 = vmatmul.bf16.gmra.mxu0 %v8153
        %v8427 = vpop.f32.mrf.mxu0
        %v8428 = vadd.f32 %v7949, %v8427
        %v8429 = vpop.f32.mrf.mxu0
        %v8430 = vadd.f32 %v7949, %v8429
        %8431 = vmatmul.bf16.gmra.mxu0 %v8156
        %v8432 = vpop.f32.mrf.mxu0
        %v8433 = vadd.f32 %v7949, %v8432
        %v8434 = vpop.f32.mrf.mxu0
        %v8435 = vadd.f32 %v7949, %v8434
        %8436 = vdwg.mxu0
        %8437 = vmatpush.bf16.msra.mxu0 %v8278
        %8438 = vmatpush.bf16.msra.mxu0 %v8277
        %8439 = vmatpush.bf16.msra.mxu0 %v8276
        %8440 = vmatpush.bf16.msra.mxu0 %v8275
        %8441 = vmatpush.bf16.msra.mxu0 %v8274
        %8442 = vmatpush.bf16.msra.mxu0 %v8273
        %8443 = vmatpush.bf16.msra.mxu0 %v8272
        %8444 = vmatpush.bf16.msra.mxu0 %v8271
        %8445 = vmatmul.bf16.gmra.mxu0 %v8112
        %v8446 = vpop.f32.mrf.mxu0
        %v8447 = vadd.f32 %v8358, %v8446
        %v8448 = vpop.f32.mrf.mxu0
        %v8449 = vadd.f32 %v8360, %v8448
        %8450 = vmatmul.bf16.gmra.mxu0 %v8115
        %v8451 = vpop.f32.mrf.mxu0
        %v8452 = vadd.f32 %v8363, %v8451
        %v8453 = vpop.f32.mrf.mxu0
        %v8454 = vadd.f32 %v8365, %v8453
        %8455 = vmatmul.bf16.gmra.mxu0 %v8118
        %v8456 = vpop.f32.mrf.mxu0
        %v8457 = vadd.f32 %v8368, %v8456
        %v8458 = vpop.f32.mrf.mxu0
        %v8459 = vadd.f32 %v8370, %v8458
        %8460 = vmatmul.bf16.gmra.mxu0 %v8121
        %v8461 = vpop.f32.mrf.mxu0
        %v8462 = vadd.f32 %v8373, %v8461
        %v8463 = vpop.f32.mrf.mxu0
        %v8464 = vadd.f32 %v8375, %v8463
        %8465 = vmatmul.bf16.gmra.mxu0 %v8124
        %v8466 = vpop.f32.mrf.mxu0
        %v8467 = vadd.f32 %v8378, %v8466
        %v8468 = vpop.f32.mrf.mxu0
        %v8469 = vadd.f32 %v8380, %v8468
        %8470 = vmatmul.bf16.gmra.mxu0 %v8127
        %v8471 = vpop.f32.mrf.mxu0
        %v8472 = vadd.f32 %v8383, %v8471
        %v8473 = vpop.f32.mrf.mxu0
        %v8474 = vadd.f32 %v8385, %v8473
        %8475 = vmatmul.bf16.gmra.mxu0 %v8130
        %v8476 = vpop.f32.mrf.mxu0
        %v8477 = vadd.f32 %v8388, %v8476
        %v8478 = vpop.f32.mrf.mxu0
        %v8479 = vadd.f32 %v8390, %v8478
        %8480 = vmatmul.bf16.gmra.mxu0 %v8133
        %v8481 = vpop.f32.mrf.mxu0
        %v8482 = vadd.f32 %v8393, %v8481
        %v8483 = vpop.f32.mrf.mxu0
        %v8484 = vadd.f32 %v8395, %v8483
        %8485 = vmatmul.bf16.gmra.mxu0 %v8136
        %v8486 = vpop.f32.mrf.mxu0
        %v8487 = vadd.f32 %v8398, %v8486
        %v8488 = vpop.f32.mrf.mxu0
        %v8489 = vadd.f32 %v8400, %v8488
        %8490 = vmatmul.bf16.gmra.mxu0 %v8139
        %v8491 = vpop.f32.mrf.mxu0
        %v8492 = vadd.f32 %v8403, %v8491
        %v8493 = vpop.f32.mrf.mxu0
        %v8494 = vadd.f32 %v8405, %v8493
        %8495 = vmatmul.bf16.gmra.mxu0 %v8142
        %v8496 = vpop.f32.mrf.mxu0
        %v8497 = vadd.f32 %v8408, %v8496
        %v8498 = vpop.f32.mrf.mxu0
        %v8499 = vadd.f32 %v8410, %v8498
        %8500 = vmatmul.bf16.gmra.mxu0 %v8145
        %v8501 = vpop.f32.mrf.mxu0
        %v8502 = vadd.f32 %v8413, %v8501
        %v8503 = vpop.f32.mrf.mxu0
        %v8504 = vadd.f32 %v8415, %v8503
        %8505 = vmatmul.bf16.gmra.mxu0 %v8148
        %v8506 = vpop.f32.mrf.mxu0
        %v8507 = vadd.f32 %v8418, %v8506
        %v8508 = vpop.f32.mrf.mxu0
        %v8509 = vadd.f32 %v8420, %v8508
        %8510 = vmatmul.bf16.gmra.mxu0 %v8151
        %v8511 = vpop.f32.mrf.mxu0
        %v8512 = vadd.f32 %v8423, %v8511
        %v8513 = vpop.f32.mrf.mxu0
        %v8514 = vadd.f32 %v8425, %v8513
        %8515 = vmatmul.bf16.gmra.mxu0 %v8154
        %v8516 = vpop.f32.mrf.mxu0
        %v8517 = vadd.f32 %v8428, %v8516
        %v8518 = vpop.f32.mrf.mxu0
        %v8519 = vadd.f32 %v8430, %v8518
        %8520 = vmatmul.bf16.gmra.mxu0 %v8157
        %v8521 = vpop.f32.mrf.mxu0
        %v8522 = vadd.f32 %v8433, %v8521
        %v8523 = vpop.f32.mrf.mxu0
        %v8524 = vadd.f32 %v8435, %v8523
        %8525 = vdwg.mxu0
        %8526 = vmatpush.bf16.msra.mxu0 0
        %8527 = vmatpush.bf16.msra.mxu0 0
        %8528 = vmatpush.bf16.msra.mxu0 0
        %8529 = vmatpush.bf16.msra.mxu0 0
        %8530 = vmatpush.bf16.msra.mxu0 0
        %8531 = vmatpush.bf16.msra.mxu0 0
        %8532 = vmatpush.bf16.msra.mxu0 %v8280
        %8533 = vmatpush.bf16.msra.mxu0 %v8279
        %8534 = vmatmul.bf16.gmra.mxu0 %v8301
        %v8535 = vpop.f32.mrf.mxu0
        %v8536 = vadd.f32 %v8447, %v8535
        %v8537 = vpop.f32.mrf.mxu0
        %v8538 = vadd.f32 %v8449, %v8537
        %8539 = vmatmul.bf16.gmra.mxu0 %v8304
        %v8540 = vpop.f32.mrf.mxu0
        %v8541 = vadd.f32 %v8452, %v8540
        %v8542 = vpop.f32.mrf.mxu0
        %v8543 = vadd.f32 %v8454, %v8542
        %8544 = vmatmul.bf16.gmra.mxu0 %v8307
        %v8545 = vpop.f32.mrf.mxu0
        %v8546 = vadd.f32 %v8457, %v8545
        %v8547 = vpop.f32.mrf.mxu0
        %v8548 = vadd.f32 %v8459, %v8547
        %8549 = vmatmul.bf16.gmra.mxu0 %v8310
        %v8550 = vpop.f32.mrf.mxu0
        %v8551 = vadd.f32 %v8462, %v8550
        %v8552 = vpop.f32.mrf.mxu0
        %v8553 = vadd.f32 %v8464, %v8552
        %8554 = vmatmul.bf16.gmra.mxu0 %v8313
        %v8555 = vpop.f32.mrf.mxu0
        %v8556 = vadd.f32 %v8467, %v8555
        %v8557 = vpop.f32.mrf.mxu0
        %v8558 = vadd.f32 %v8469, %v8557
        %8559 = vmatmul.bf16.gmra.mxu0 %v8316
        %v8560 = vpop.f32.mrf.mxu0
        %v8561 = vadd.f32 %v8472, %v8560
        %v8562 = vpop.f32.mrf.mxu0
        %v8563 = vadd.f32 %v8474, %v8562
        %8564 = vmatmul.bf16.gmra.mxu0 %v8319
        %v8565 = vpop.f32.mrf.mxu0
        %v8566 = vadd.f32 %v8477, %v8565
        %v8567 = vpop.f32.mrf.mxu0
        %v8568 = vadd.f32 %v8479, %v8567
        %8569 = vmatmul.bf16.gmra.mxu0 %v8322
        %v8570 = vpop.f32.mrf.mxu0
        %v8571 = vadd.f32 %v8482, %v8570
        %v8572 = vpop.f32.mrf.mxu0
        %v8573 = vadd.f32 %v8484, %v8572
        %8574 = vmatmul.bf16.gmra.mxu0 %v8325
        %v8575 = vpop.f32.mrf.mxu0
        %v8576 = vadd.f32 %v8487, %v8575
        %v8577 = vpop.f32.mrf.mxu0
        %v8578 = vadd.f32 %v8489, %v8577
        %8579 = vmatmul.bf16.gmra.mxu0 %v8328
        %v8580 = vpop.f32.mrf.mxu0
        %v8581 = vadd.f32 %v8492, %v8580
        %v8582 = vpop.f32.mrf.mxu0
        %v8583 = vadd.f32 %v8494, %v8582
        %8584 = vmatmul.bf16.gmra.mxu0 %v8331
        %v8585 = vpop.f32.mrf.mxu0
        %v8586 = vadd.f32 %v8497, %v8585
        %v8587 = vpop.f32.mrf.mxu0
        %v8588 = vadd.f32 %v8499, %v8587
        %8589 = vmatmul.bf16.gmra.mxu0 %v8334
        %v8590 = vpop.f32.mrf.mxu0
        %v8591 = vadd.f32 %v8502, %v8590
        %v8592 = vpop.f32.mrf.mxu0
        %v8593 = vadd.f32 %v8504, %v8592
        %8594 = vmatmul.bf16.gmra.mxu0 %v8337
        %v8595 = vpop.f32.mrf.mxu0
        %v8596 = vadd.f32 %v8507, %v8595
        %v8597 = vpop.f32.mrf.mxu0
        %v8598 = vadd.f32 %v8509, %v8597
        %8599 = vmatmul.bf16.gmra.mxu0 %v8340
        %v8600 = vpop.f32.mrf.mxu0
        %v8601 = vadd.f32 %v8512, %v8600
        %v8602 = vpop.f32.mrf.mxu0
        %v8603 = vadd.f32 %v8514, %v8602
        %8604 = vmatmul.bf16.gmra.mxu0 %v8343
        %v8605 = vpop.f32.mrf.mxu0
        %v8606 = vadd.f32 %v8517, %v8605
        %v8607 = vpop.f32.mrf.mxu0
        %v8608 = vadd.f32 %v8519, %v8607
        %8609 = vmatmul.bf16.gmra.mxu0 %v8346
        %v8610 = vpop.f32.mrf.mxu0
        %v8611 = vadd.f32 %v8522, %v8610
        %v8612 = vpop.f32.mrf.mxu0
        %v8613 = vadd.f32 %v8524, %v8612
        %8614 = vdwg.mxu0
        %v8615 = vadd.f32 %v7768, %v8536
        %v8616 = vadd.f32 %v7770, %v8538
        %v8617 = vadd.f32 %v7773, %v8541
        %v8618 = vadd.f32 %v7775, %v8543
        %v8619 = vadd.f32 %v7778, %v8546
        %v8620 = vadd.f32 %v7780, %v8548
        %v8621 = vadd.f32 %v7783, %v8551
        %v8622 = vadd.f32 %v7785, %v8553
        %v8623 = vadd.f32 %v7788, %v8556
        %v8624 = vadd.f32 %v7790, %v8558
        %v8625 = vadd.f32 %v7793, %v8561
        %v8626 = vadd.f32 %v7795, %v8563
        %v8627 = vadd.f32 %v7798, %v8566
        %v8628 = vadd.f32 %v7800, %v8568
        %v8629 = vadd.f32 %v7803, %v8571
        %v8630 = vadd.f32 %v7805, %v8573
        %v8631 = vadd.f32 %v7808, %v8576
        %v8632 = vadd.f32 %v7810, %v8578
        %v8633 = vadd.f32 %v7813, %v8581
        %v8634 = vadd.f32 %v7815, %v8583
        %v8635 = vadd.f32 %v7818, %v8586
        %v8636 = vadd.f32 %v7820, %v8588
        %v8637 = vadd.f32 %v7823, %v8591
        %v8638 = vadd.f32 %v7825, %v8593
        %v8639 = vadd.f32 %v7828, %v8596
        %v8640 = vadd.f32 %v7830, %v8598
        %v8641 = vadd.f32 %v7833, %v8601
        %v8642 = vadd.f32 %v7835, %v8603
        %v8643 = vadd.f32 %v7838, %v8606
        %v8644 = vadd.f32 %v7840, %v8608
        %v8645 = vadd.f32 %v7843, %v8611
        %v8646 = vadd.f32 %v7845, %v8613
        %v8647 = vxor.u32 %v8615, 2147483648
        %v8648 = vxor.u32 %v8616, 2147483648
        %v8649 = vxor.u32 %v8617, 2147483648
        %v8650 = vxor.u32 %v8618, 2147483648
        %v8651 = vxor.u32 %v8619, 2147483648
        %v8652 = vxor.u32 %v8620, 2147483648
        %v8653 = vxor.u32 %v8621, 2147483648
        %v8654 = vxor.u32 %v8622, 2147483648
        %v8655 = vxor.u32 %v8623, 2147483648
        %v8656 = vxor.u32 %v8624, 2147483648
        %v8657 = vxor.u32 %v8625, 2147483648
        %v8658 = vxor.u32 %v8626, 2147483648
        %v8659 = vxor.u32 %v8627, 2147483648
        %v8660 = vxor.u32 %v8628, 2147483648
        %v8661 = vxor.u32 %v8629, 2147483648
        %v8662 = vxor.u32 %v8630, 2147483648
        %v8663 = vxor.u32 %v8631, 2147483648
        %v8664 = vxor.u32 %v8632, 2147483648
        %v8665 = vxor.u32 %v8633, 2147483648
        %v8666 = vxor.u32 %v8634, 2147483648
        %v8667 = vxor.u32 %v8635, 2147483648
        %v8668 = vxor.u32 %v8636, 2147483648
        %v8669 = vxor.u32 %v8637, 2147483648
        %v8670 = vxor.u32 %v8638, 2147483648
        %v8671 = vxor.u32 %v8639, 2147483648
        %v8672 = vxor.u32 %v8640, 2147483648
        %v8673 = vxor.u32 %v8641, 2147483648
        %v8674 = vxor.u32 %v8642, 2147483648
        %v8675 = vxor.u32 %v8643, 2147483648
        %v8676 = vxor.u32 %v8644, 2147483648
        %v8677 = vxor.u32 %v8645, 2147483648
        %v8678 = vxor.u32 %v8646, 2147483648
        %v8679 = vmul.f32 %v8647, 1.442695
        %v8680 = vpow.pop %v8679
        %v8681 = vmul.f32 %v8648, 1.442695
        %v8682 = vpow.pop %v8681
        %v8683 = vmul.f32 %v8649, 1.442695
        %v8684 = vpow.pop %v8683
        %v8685 = vmul.f32 %v8650, 1.442695
        %v8686 = vpow.pop %v8685
        %v8687 = vmul.f32 %v8651, 1.442695
        %v8688 = vpow.pop %v8687
        %v8689 = vmul.f32 %v8652, 1.442695
        %v8690 = vpow.pop %v8689
        %v8691 = vmul.f32 %v8653, 1.442695
        %v8692 = vpow.pop %v8691
        %v8693 = vmul.f32 %v8654, 1.442695
        %v8694 = vpow.pop %v8693
        %v8695 = vmul.f32 %v8655, 1.442695
        %v8696 = vpow.pop %v8695
        %v8697 = vmul.f32 %v8656, 1.442695
        %v8698 = vpow.pop %v8697
        %v8699 = vmul.f32 %v8657, 1.442695
        %v8700 = vpow.pop %v8699
        %v8701 = vmul.f32 %v8658, 1.442695
        %v8702 = vpow.pop %v8701
        %v8703 = vmul.f32 %v8659, 1.442695
        %v8704 = vpow.pop %v8703
        %v8705 = vmul.f32 %v8660, 1.442695
        %v8706 = vpow.pop %v8705
        %v8707 = vmul.f32 %v8661, 1.442695
        %v8708 = vpow.pop %v8707
        %v8709 = vmul.f32 %v8662, 1.442695
        %v8710 = vpow.pop %v8709
        %v8711 = vmul.f32 %v8663, 1.442695
        %v8712 = vpow.pop %v8711
        %v8713 = vmul.f32 %v8664, 1.442695
        %v8714 = vpow.pop %v8713
        %v8715 = vmul.f32 %v8665, 1.442695
        %v8716 = vpow.pop %v8715
        %v8717 = vmul.f32 %v8666, 1.442695
        %v8718 = vpow.pop %v8717
        %v8719 = vmul.f32 %v8667, 1.442695
        %v8720 = vpow.pop %v8719
        %v8721 = vmul.f32 %v8668, 1.442695
        %v8722 = vpow.pop %v8721
        %v8723 = vmul.f32 %v8669, 1.442695
        %v8724 = vpow.pop %v8723
        %v8725 = vmul.f32 %v8670, 1.442695
        %v8726 = vpow.pop %v8725
        %v8727 = vmul.f32 %v8671, 1.442695
        %v8728 = vpow.pop %v8727
        %v8729 = vmul.f32 %v8672, 1.442695
        %v8730 = vpow.pop %v8729
        %v8731 = vmul.f32 %v8673, 1.442695
        %v8732 = vpow.pop %v8731
        %v8733 = vmul.f32 %v8674, 1.442695
        %v8734 = vpow.pop %v8733
        %v8735 = vmul.f32 %v8675, 1.442695
        %v8736 = vpow.pop %v8735
        %v8737 = vmul.f32 %v8676, 1.442695
        %v8738 = vpow.pop %v8737
        %v8739 = vmul.f32 %v8677, 1.442695
        %v8740 = vpow.pop %v8739
        %v8741 = vmul.f32 %v8678, 1.442695
        %v8742 = vpow.pop %v8741
        %v8743 = vadd.f32 %v8680, 1.0
        %v8744 = vadd.f32 %v8682, 1.0
        %v8745 = vadd.f32 %v8684, 1.0
        %v8746 = vadd.f32 %v8686, 1.0
        %v8747 = vadd.f32 %v8688, 1.0
        %v8748 = vadd.f32 %v8690, 1.0
        %v8749 = vadd.f32 %v8692, 1.0
        %v8750 = vadd.f32 %v8694, 1.0
        %v8751 = vadd.f32 %v8696, 1.0
        %v8752 = vadd.f32 %v8698, 1.0
        %v8753 = vadd.f32 %v8700, 1.0
        %v8754 = vadd.f32 %v8702, 1.0
        %v8755 = vadd.f32 %v8704, 1.0
        %v8756 = vadd.f32 %v8706, 1.0
        %v8757 = vadd.f32 %v8708, 1.0
        %v8758 = vadd.f32 %v8710, 1.0
        %v8759 = vadd.f32 %v8712, 1.0
        %v8760 = vadd.f32 %v8714, 1.0
        %v8761 = vadd.f32 %v8716, 1.0
        %v8762 = vadd.f32 %v8718, 1.0
        %v8763 = vadd.f32 %v8720, 1.0
        %v8764 = vadd.f32 %v8722, 1.0
        %v8765 = vadd.f32 %v8724, 1.0
        %v8766 = vadd.f32 %v8726, 1.0
        %v8767 = vadd.f32 %v8728, 1.0
        %v8768 = vadd.f32 %v8730, 1.0
        %v8769 = vadd.f32 %v8732, 1.0
        %v8770 = vadd.f32 %v8734, 1.0
        %v8771 = vadd.f32 %v8736, 1.0
        %v8772 = vadd.f32 %v8738, 1.0
        %v8773 = vadd.f32 %v8740, 1.0
        %v8774 = vadd.f32 %v8742, 1.0
        %v8775 = vrcp.pop %v8743
        %v8776 = vmul.f32 %v8743, %v8775
        %v8777 = vsub.f32 1.0, %v8776
        %v8778 = vmul.f32 %v8775, %v8777
        %v8779 = vadd.f32 %v8775, %v8778
        %vm8780 = vweird.f32 %v8743
        %vm8781 = vweird.f32 %v8775
        %vm8782 = vmor %vm8780, %vm8781
        %v8783 = vsel %vm8782, %v8775, %v8779
        %v8784 = vand.u32 2147483647, %v8743
        %vm8785 = vcmp.eq.f32.partialorder %v8784, 8.507059e+37
        %v8786 = vand.u32 %v8743, 2147483648
        %v8787 = vor.u32 1.1754944e-38, %v8786
        %v8788 = vsel %vm8785, %v8787, %v8783
        %v8789 = vmul.f32 1.0, %v8788
        %v8790 = vrcp.pop %v8744
        %v8791 = vmul.f32 %v8744, %v8790
        %v8792 = vsub.f32 1.0, %v8791
        %v8793 = vmul.f32 %v8790, %v8792
        %v8794 = vadd.f32 %v8790, %v8793
        %vm8795 = vweird.f32 %v8744
        %vm8796 = vweird.f32 %v8790
        %vm8797 = vmor %vm8795, %vm8796
        %v8798 = vsel %vm8797, %v8790, %v8794
        %v8799 = vand.u32 2147483647, %v8744
        %vm8800 = vcmp.eq.f32.partialorder %v8799, 8.507059e+37
        %v8801 = vand.u32 %v8744, 2147483648
        %v8802 = vor.u32 1.1754944e-38, %v8801
        %v8803 = vsel %vm8800, %v8802, %v8798
        %v8804 = vmul.f32 1.0, %v8803
        %v8805 = vrcp.pop %v8745
        %v8806 = vmul.f32 %v8745, %v8805
        %v8807 = vsub.f32 1.0, %v8806
        %v8808 = vmul.f32 %v8805, %v8807
        %v8809 = vadd.f32 %v8805, %v8808
        %vm8810 = vweird.f32 %v8745
        %vm8811 = vweird.f32 %v8805
        %vm8812 = vmor %vm8810, %vm8811
        %v8813 = vsel %vm8812, %v8805, %v8809
        %v8814 = vand.u32 2147483647, %v8745
        %vm8815 = vcmp.eq.f32.partialorder %v8814, 8.507059e+37
        %v8816 = vand.u32 %v8745, 2147483648
        %v8817 = vor.u32 1.1754944e-38, %v8816
        %v8818 = vsel %vm8815, %v8817, %v8813
        %v8819 = vmul.f32 1.0, %v8818
        %v8820 = vrcp.pop %v8746
        %v8821 = vmul.f32 %v8746, %v8820
        %v8822 = vsub.f32 1.0, %v8821
        %v8823 = vmul.f32 %v8820, %v8822
        %v8824 = vadd.f32 %v8820, %v8823
        %vm8825 = vweird.f32 %v8746
        %vm8826 = vweird.f32 %v8820
        %vm8827 = vmor %vm8825, %vm8826
        %v8828 = vsel %vm8827, %v8820, %v8824
        %v8829 = vand.u32 2147483647, %v8746
        %vm8830 = vcmp.eq.f32.partialorder %v8829, 8.507059e+37
        %v8831 = vand.u32 %v8746, 2147483648
        %v8832 = vor.u32 1.1754944e-38, %v8831
        %v8833 = vsel %vm8830, %v8832, %v8828
        %v8834 = vmul.f32 1.0, %v8833
        %v8835 = vrcp.pop %v8747
        %v8836 = vmul.f32 %v8747, %v8835
        %v8837 = vsub.f32 1.0, %v8836
        %v8838 = vmul.f32 %v8835, %v8837
        %v8839 = vadd.f32 %v8835, %v8838
        %vm8840 = vweird.f32 %v8747
        %vm8841 = vweird.f32 %v8835
        %vm8842 = vmor %vm8840, %vm8841
        %v8843 = vsel %vm8842, %v8835, %v8839
        %v8844 = vand.u32 2147483647, %v8747
        %vm8845 = vcmp.eq.f32.partialorder %v8844, 8.507059e+37
        %v8846 = vand.u32 %v8747, 2147483648
        %v8847 = vor.u32 1.1754944e-38, %v8846
        %v8848 = vsel %vm8845, %v8847, %v8843
        %v8849 = vmul.f32 1.0, %v8848
        %v8850 = vrcp.pop %v8748
        %v8851 = vmul.f32 %v8748, %v8850
        %v8852 = vsub.f32 1.0, %v8851
        %v8853 = vmul.f32 %v8850, %v8852
        %v8854 = vadd.f32 %v8850, %v8853
        %vm8855 = vweird.f32 %v8748
        %vm8856 = vweird.f32 %v8850
        %vm8857 = vmor %vm8855, %vm8856
        %v8858 = vsel %vm8857, %v8850, %v8854
        %v8859 = vand.u32 2147483647, %v8748
        %vm8860 = vcmp.eq.f32.partialorder %v8859, 8.507059e+37
        %v8861 = vand.u32 %v8748, 2147483648
        %v8862 = vor.u32 1.1754944e-38, %v8861
        %v8863 = vsel %vm8860, %v8862, %v8858
        %v8864 = vmul.f32 1.0, %v8863
        %v8865 = vrcp.pop %v8749
        %v8866 = vmul.f32 %v8749, %v8865
        %v8867 = vsub.f32 1.0, %v8866
        %v8868 = vmul.f32 %v8865, %v8867
        %v8869 = vadd.f32 %v8865, %v8868
        %vm8870 = vweird.f32 %v8749
        %vm8871 = vweird.f32 %v8865
        %vm8872 = vmor %vm8870, %vm8871
        %v8873 = vsel %vm8872, %v8865, %v8869
        %v8874 = vand.u32 2147483647, %v8749
        %vm8875 = vcmp.eq.f32.partialorder %v8874, 8.507059e+37
        %v8876 = vand.u32 %v8749, 2147483648
        %v8877 = vor.u32 1.1754944e-38, %v8876
        %v8878 = vsel %vm8875, %v8877, %v8873
        %v8879 = vmul.f32 1.0, %v8878
        %v8880 = vrcp.pop %v8750
        %v8881 = vmul.f32 %v8750, %v8880
        %v8882 = vsub.f32 1.0, %v8881
        %v8883 = vmul.f32 %v8880, %v8882
        %v8884 = vadd.f32 %v8880, %v8883
        %vm8885 = vweird.f32 %v8750
        %vm8886 = vweird.f32 %v8880
        %vm8887 = vmor %vm8885, %vm8886
        %v8888 = vsel %vm8887, %v8880, %v8884
        %v8889 = vand.u32 2147483647, %v8750
        %vm8890 = vcmp.eq.f32.partialorder %v8889, 8.507059e+37
        %v8891 = vand.u32 %v8750, 2147483648
        %v8892 = vor.u32 1.1754944e-38, %v8891
        %v8893 = vsel %vm8890, %v8892, %v8888
        %v8894 = vmul.f32 1.0, %v8893
        %v8895 = vrcp.pop %v8751
        %v8896 = vmul.f32 %v8751, %v8895
        %v8897 = vsub.f32 1.0, %v8896
        %v8898 = vmul.f32 %v8895, %v8897
        %v8899 = vadd.f32 %v8895, %v8898
        %vm8900 = vweird.f32 %v8751
        %vm8901 = vweird.f32 %v8895
        %vm8902 = vmor %vm8900, %vm8901
        %v8903 = vsel %vm8902, %v8895, %v8899
        %v8904 = vand.u32 2147483647, %v8751
        %vm8905 = vcmp.eq.f32.partialorder %v8904, 8.507059e+37
        %v8906 = vand.u32 %v8751, 2147483648
        %v8907 = vor.u32 1.1754944e-38, %v8906
        %v8908 = vsel %vm8905, %v8907, %v8903
        %v8909 = vmul.f32 1.0, %v8908
        %v8910 = vrcp.pop %v8752
        %v8911 = vmul.f32 %v8752, %v8910
        %v8912 = vsub.f32 1.0, %v8911
        %v8913 = vmul.f32 %v8910, %v8912
        %v8914 = vadd.f32 %v8910, %v8913
        %vm8915 = vweird.f32 %v8752
        %vm8916 = vweird.f32 %v8910
        %vm8917 = vmor %vm8915, %vm8916
        %v8918 = vsel %vm8917, %v8910, %v8914
        %v8919 = vand.u32 2147483647, %v8752
        %vm8920 = vcmp.eq.f32.partialorder %v8919, 8.507059e+37
        %v8921 = vand.u32 %v8752, 2147483648
        %v8922 = vor.u32 1.1754944e-38, %v8921
        %v8923 = vsel %vm8920, %v8922, %v8918
        %v8924 = vmul.f32 1.0, %v8923
        %v8925 = vrcp.pop %v8753
        %v8926 = vmul.f32 %v8753, %v8925
        %v8927 = vsub.f32 1.0, %v8926
        %v8928 = vmul.f32 %v8925, %v8927
        %v8929 = vadd.f32 %v8925, %v8928
        %vm8930 = vweird.f32 %v8753
        %vm8931 = vweird.f32 %v8925
        %vm8932 = vmor %vm8930, %vm8931
        %v8933 = vsel %vm8932, %v8925, %v8929
        %v8934 = vand.u32 2147483647, %v8753
        %vm8935 = vcmp.eq.f32.partialorder %v8934, 8.507059e+37
        %v8936 = vand.u32 %v8753, 2147483648
        %v8937 = vor.u32 1.1754944e-38, %v8936
        %v8938 = vsel %vm8935, %v8937, %v8933
        %v8939 = vmul.f32 1.0, %v8938
        %v8940 = vrcp.pop %v8754
        %v8941 = vmul.f32 %v8754, %v8940
        %v8942 = vsub.f32 1.0, %v8941
        %v8943 = vmul.f32 %v8940, %v8942
        %v8944 = vadd.f32 %v8940, %v8943
        %vm8945 = vweird.f32 %v8754
        %vm8946 = vweird.f32 %v8940
        %vm8947 = vmor %vm8945, %vm8946
        %v8948 = vsel %vm8947, %v8940, %v8944
        %v8949 = vand.u32 2147483647, %v8754
        %vm8950 = vcmp.eq.f32.partialorder %v8949, 8.507059e+37
        %v8951 = vand.u32 %v8754, 2147483648
        %v8952 = vor.u32 1.1754944e-38, %v8951
        %v8953 = vsel %vm8950, %v8952, %v8948
        %v8954 = vmul.f32 1.0, %v8953
        %v8955 = vrcp.pop %v8755
        %v8956 = vmul.f32 %v8755, %v8955
        %v8957 = vsub.f32 1.0, %v8956
        %v8958 = vmul.f32 %v8955, %v8957
        %v8959 = vadd.f32 %v8955, %v8958
        %vm8960 = vweird.f32 %v8755
        %vm8961 = vweird.f32 %v8955
        %vm8962 = vmor %vm8960, %vm8961
        %v8963 = vsel %vm8962, %v8955, %v8959
        %v8964 = vand.u32 2147483647, %v8755
        %vm8965 = vcmp.eq.f32.partialorder %v8964, 8.507059e+37
        %v8966 = vand.u32 %v8755, 2147483648
        %v8967 = vor.u32 1.1754944e-38, %v8966
        %v8968 = vsel %vm8965, %v8967, %v8963
        %v8969 = vmul.f32 1.0, %v8968
        %v8970 = vrcp.pop %v8756
        %v8971 = vmul.f32 %v8756, %v8970
        %v8972 = vsub.f32 1.0, %v8971
        %v8973 = vmul.f32 %v8970, %v8972
        %v8974 = vadd.f32 %v8970, %v8973
        %vm8975 = vweird.f32 %v8756
        %vm8976 = vweird.f32 %v8970
        %vm8977 = vmor %vm8975, %vm8976
        %v8978 = vsel %vm8977, %v8970, %v8974
        %v8979 = vand.u32 2147483647, %v8756
        %vm8980 = vcmp.eq.f32.partialorder %v8979, 8.507059e+37
        %v8981 = vand.u32 %v8756, 2147483648
        %v8982 = vor.u32 1.1754944e-38, %v8981
        %v8983 = vsel %vm8980, %v8982, %v8978
        %v8984 = vmul.f32 1.0, %v8983
        %v8985 = vrcp.pop %v8757
        %v8986 = vmul.f32 %v8757, %v8985
        %v8987 = vsub.f32 1.0, %v8986
        %v8988 = vmul.f32 %v8985, %v8987
        %v8989 = vadd.f32 %v8985, %v8988
        %vm8990 = vweird.f32 %v8757
        %vm8991 = vweird.f32 %v8985
        %vm8992 = vmor %vm8990, %vm8991
        %v8993 = vsel %vm8992, %v8985, %v8989
        %v8994 = vand.u32 2147483647, %v8757
        %vm8995 = vcmp.eq.f32.partialorder %v8994, 8.507059e+37
        %v8996 = vand.u32 %v8757, 2147483648
        %v8997 = vor.u32 1.1754944e-38, %v8996
        %v8998 = vsel %vm8995, %v8997, %v8993
        %v8999 = vmul.f32 1.0, %v8998
        %v9000 = vrcp.pop %v8758
        %v9001 = vmul.f32 %v8758, %v9000
        %v9002 = vsub.f32 1.0, %v9001
        %v9003 = vmul.f32 %v9000, %v9002
        %v9004 = vadd.f32 %v9000, %v9003
        %vm9005 = vweird.f32 %v8758
        %vm9006 = vweird.f32 %v9000
        %vm9007 = vmor %vm9005, %vm9006
        %v9008 = vsel %vm9007, %v9000, %v9004
        %v9009 = vand.u32 2147483647, %v8758
        %vm9010 = vcmp.eq.f32.partialorder %v9009, 8.507059e+37
        %v9011 = vand.u32 %v8758, 2147483648
        %v9012 = vor.u32 1.1754944e-38, %v9011
        %v9013 = vsel %vm9010, %v9012, %v9008
        %v9014 = vmul.f32 1.0, %v9013
        %v9015 = vrcp.pop %v8759
        %v9016 = vmul.f32 %v8759, %v9015
        %v9017 = vsub.f32 1.0, %v9016
        %v9018 = vmul.f32 %v9015, %v9017
        %v9019 = vadd.f32 %v9015, %v9018
        %vm9020 = vweird.f32 %v8759
        %vm9021 = vweird.f32 %v9015
        %vm9022 = vmor %vm9020, %vm9021
        %v9023 = vsel %vm9022, %v9015, %v9019
        %v9024 = vand.u32 2147483647, %v8759
        %vm9025 = vcmp.eq.f32.partialorder %v9024, 8.507059e+37
        %v9026 = vand.u32 %v8759, 2147483648
        %v9027 = vor.u32 1.1754944e-38, %v9026
        %v9028 = vsel %vm9025, %v9027, %v9023
        %v9029 = vmul.f32 1.0, %v9028
        %v9030 = vrcp.pop %v8760
        %v9031 = vmul.f32 %v8760, %v9030
        %v9032 = vsub.f32 1.0, %v9031
        %v9033 = vmul.f32 %v9030, %v9032
        %v9034 = vadd.f32 %v9030, %v9033
        %vm9035 = vweird.f32 %v8760
        %vm9036 = vweird.f32 %v9030
        %vm9037 = vmor %vm9035, %vm9036
        %v9038 = vsel %vm9037, %v9030, %v9034
        %v9039 = vand.u32 2147483647, %v8760
        %vm9040 = vcmp.eq.f32.partialorder %v9039, 8.507059e+37
        %v9041 = vand.u32 %v8760, 2147483648
        %v9042 = vor.u32 1.1754944e-38, %v9041
        %v9043 = vsel %vm9040, %v9042, %v9038
        %v9044 = vmul.f32 1.0, %v9043
        %v9045 = vrcp.pop %v8761
        %v9046 = vmul.f32 %v8761, %v9045
        %v9047 = vsub.f32 1.0, %v9046
        %v9048 = vmul.f32 %v9045, %v9047
        %v9049 = vadd.f32 %v9045, %v9048
        %vm9050 = vweird.f32 %v8761
        %vm9051 = vweird.f32 %v9045
        %vm9052 = vmor %vm9050, %vm9051
        %v9053 = vsel %vm9052, %v9045, %v9049
        %v9054 = vand.u32 2147483647, %v8761
        %vm9055 = vcmp.eq.f32.partialorder %v9054, 8.507059e+37
        %v9056 = vand.u32 %v8761, 2147483648
        %v9057 = vor.u32 1.1754944e-38, %v9056
        %v9058 = vsel %vm9055, %v9057, %v9053
        %v9059 = vmul.f32 1.0, %v9058
        %v9060 = vrcp.pop %v8762
        %v9061 = vmul.f32 %v8762, %v9060
        %v9062 = vsub.f32 1.0, %v9061
        %v9063 = vmul.f32 %v9060, %v9062
        %v9064 = vadd.f32 %v9060, %v9063
        %vm9065 = vweird.f32 %v8762
        %vm9066 = vweird.f32 %v9060
        %vm9067 = vmor %vm9065, %vm9066
        %v9068 = vsel %vm9067, %v9060, %v9064
        %v9069 = vand.u32 2147483647, %v8762
        %vm9070 = vcmp.eq.f32.partialorder %v9069, 8.507059e+37
        %v9071 = vand.u32 %v8762, 2147483648
        %v9072 = vor.u32 1.1754944e-38, %v9071
        %v9073 = vsel %vm9070, %v9072, %v9068
        %v9074 = vmul.f32 1.0, %v9073
        %v9075 = vrcp.pop %v8763
        %v9076 = vmul.f32 %v8763, %v9075
        %v9077 = vsub.f32 1.0, %v9076
        %v9078 = vmul.f32 %v9075, %v9077
        %v9079 = vadd.f32 %v9075, %v9078
        %vm9080 = vweird.f32 %v8763
        %vm9081 = vweird.f32 %v9075
        %vm9082 = vmor %vm9080, %vm9081
        %v9083 = vsel %vm9082, %v9075, %v9079
        %v9084 = vand.u32 2147483647, %v8763
        %vm9085 = vcmp.eq.f32.partialorder %v9084, 8.507059e+37
        %v9086 = vand.u32 %v8763, 2147483648
        %v9087 = vor.u32 1.1754944e-38, %v9086
        %v9088 = vsel %vm9085, %v9087, %v9083
        %v9089 = vmul.f32 1.0, %v9088
        %v9090 = vrcp.pop %v8764
        %v9091 = vmul.f32 %v8764, %v9090
        %v9092 = vsub.f32 1.0, %v9091
        %v9093 = vmul.f32 %v9090, %v9092
        %v9094 = vadd.f32 %v9090, %v9093
        %vm9095 = vweird.f32 %v8764
        %vm9096 = vweird.f32 %v9090
        %vm9097 = vmor %vm9095, %vm9096
        %v9098 = vsel %vm9097, %v9090, %v9094
        %v9099 = vand.u32 2147483647, %v8764
        %vm9100 = vcmp.eq.f32.partialorder %v9099, 8.507059e+37
        %v9101 = vand.u32 %v8764, 2147483648
        %v9102 = vor.u32 1.1754944e-38, %v9101
        %v9103 = vsel %vm9100, %v9102, %v9098
        %v9104 = vmul.f32 1.0, %v9103
        %v9105 = vrcp.pop %v8765
        %v9106 = vmul.f32 %v8765, %v9105
        %v9107 = vsub.f32 1.0, %v9106
        %v9108 = vmul.f32 %v9105, %v9107
        %v9109 = vadd.f32 %v9105, %v9108
        %vm9110 = vweird.f32 %v8765
        %vm9111 = vweird.f32 %v9105
        %vm9112 = vmor %vm9110, %vm9111
        %v9113 = vsel %vm9112, %v9105, %v9109
        %v9114 = vand.u32 2147483647, %v8765
        %vm9115 = vcmp.eq.f32.partialorder %v9114, 8.507059e+37
        %v9116 = vand.u32 %v8765, 2147483648
        %v9117 = vor.u32 1.1754944e-38, %v9116
        %v9118 = vsel %vm9115, %v9117, %v9113
        %v9119 = vmul.f32 1.0, %v9118
        %v9120 = vrcp.pop %v8766
        %v9121 = vmul.f32 %v8766, %v9120
        %v9122 = vsub.f32 1.0, %v9121
        %v9123 = vmul.f32 %v9120, %v9122
        %v9124 = vadd.f32 %v9120, %v9123
        %vm9125 = vweird.f32 %v8766
        %vm9126 = vweird.f32 %v9120
        %vm9127 = vmor %vm9125, %vm9126
        %v9128 = vsel %vm9127, %v9120, %v9124
        %v9129 = vand.u32 2147483647, %v8766
        %vm9130 = vcmp.eq.f32.partialorder %v9129, 8.507059e+37
        %v9131 = vand.u32 %v8766, 2147483648
        %v9132 = vor.u32 1.1754944e-38, %v9131
        %v9133 = vsel %vm9130, %v9132, %v9128
        %v9134 = vmul.f32 1.0, %v9133
        %v9135 = vrcp.pop %v8767
        %v9136 = vmul.f32 %v8767, %v9135
        %v9137 = vsub.f32 1.0, %v9136
        %v9138 = vmul.f32 %v9135, %v9137
        %v9139 = vadd.f32 %v9135, %v9138
        %vm9140 = vweird.f32 %v8767
        %vm9141 = vweird.f32 %v9135
        %vm9142 = vmor %vm9140, %vm9141
        %v9143 = vsel %vm9142, %v9135, %v9139
        %v9144 = vand.u32 2147483647, %v8767
        %vm9145 = vcmp.eq.f32.partialorder %v9144, 8.507059e+37
        %v9146 = vand.u32 %v8767, 2147483648
        %v9147 = vor.u32 1.1754944e-38, %v9146
        %v9148 = vsel %vm9145, %v9147, %v9143
        %v9149 = vmul.f32 1.0, %v9148
        %v9150 = vrcp.pop %v8768
        %v9151 = vmul.f32 %v8768, %v9150
        %v9152 = vsub.f32 1.0, %v9151
        %v9153 = vmul.f32 %v9150, %v9152
        %v9154 = vadd.f32 %v9150, %v9153
        %vm9155 = vweird.f32 %v8768
        %vm9156 = vweird.f32 %v9150
        %vm9157 = vmor %vm9155, %vm9156
        %v9158 = vsel %vm9157, %v9150, %v9154
        %v9159 = vand.u32 2147483647, %v8768
        %vm9160 = vcmp.eq.f32.partialorder %v9159, 8.507059e+37
        %v9161 = vand.u32 %v8768, 2147483648
        %v9162 = vor.u32 1.1754944e-38, %v9161
        %v9163 = vsel %vm9160, %v9162, %v9158
        %v9164 = vmul.f32 1.0, %v9163
        %v9165 = vrcp.pop %v8769
        %v9166 = vmul.f32 %v8769, %v9165
        %v9167 = vsub.f32 1.0, %v9166
        %v9168 = vmul.f32 %v9165, %v9167
        %v9169 = vadd.f32 %v9165, %v9168
        %vm9170 = vweird.f32 %v8769
        %vm9171 = vweird.f32 %v9165
        %vm9172 = vmor %vm9170, %vm9171
        %v9173 = vsel %vm9172, %v9165, %v9169
        %v9174 = vand.u32 2147483647, %v8769
        %vm9175 = vcmp.eq.f32.partialorder %v9174, 8.507059e+37
        %v9176 = vand.u32 %v8769, 2147483648
        %v9177 = vor.u32 1.1754944e-38, %v9176
        %v9178 = vsel %vm9175, %v9177, %v9173
        %v9179 = vmul.f32 1.0, %v9178
        %v9180 = vrcp.pop %v8770
        %v9181 = vmul.f32 %v8770, %v9180
        %v9182 = vsub.f32 1.0, %v9181
        %v9183 = vmul.f32 %v9180, %v9182
        %v9184 = vadd.f32 %v9180, %v9183
        %vm9185 = vweird.f32 %v8770
        %vm9186 = vweird.f32 %v9180
        %vm9187 = vmor %vm9185, %vm9186
        %v9188 = vsel %vm9187, %v9180, %v9184
        %v9189 = vand.u32 2147483647, %v8770
        %vm9190 = vcmp.eq.f32.partialorder %v9189, 8.507059e+37
        %v9191 = vand.u32 %v8770, 2147483648
        %v9192 = vor.u32 1.1754944e-38, %v9191
        %v9193 = vsel %vm9190, %v9192, %v9188
        %v9194 = vmul.f32 1.0, %v9193
        %v9195 = vrcp.pop %v8771
        %v9196 = vmul.f32 %v8771, %v9195
        %v9197 = vsub.f32 1.0, %v9196
        %v9198 = vmul.f32 %v9195, %v9197
        %v9199 = vadd.f32 %v9195, %v9198
        %vm9200 = vweird.f32 %v8771
        %vm9201 = vweird.f32 %v9195
        %vm9202 = vmor %vm9200, %vm9201
        %v9203 = vsel %vm9202, %v9195, %v9199
        %v9204 = vand.u32 2147483647, %v8771
        %vm9205 = vcmp.eq.f32.partialorder %v9204, 8.507059e+37
        %v9206 = vand.u32 %v8771, 2147483648
        %v9207 = vor.u32 1.1754944e-38, %v9206
        %v9208 = vsel %vm9205, %v9207, %v9203
        %v9209 = vmul.f32 1.0, %v9208
        %v9210 = vrcp.pop %v8772
        %v9211 = vmul.f32 %v8772, %v9210
        %v9212 = vsub.f32 1.0, %v9211
        %v9213 = vmul.f32 %v9210, %v9212
        %v9214 = vadd.f32 %v9210, %v9213
        %vm9215 = vweird.f32 %v8772
        %vm9216 = vweird.f32 %v9210
        %vm9217 = vmor %vm9215, %vm9216
        %v9218 = vsel %vm9217, %v9210, %v9214
        %v9219 = vand.u32 2147483647, %v8772
        %vm9220 = vcmp.eq.f32.partialorder %v9219, 8.507059e+37
        %v9221 = vand.u32 %v8772, 2147483648
        %v9222 = vor.u32 1.1754944e-38, %v9221
        %v9223 = vsel %vm9220, %v9222, %v9218
        %v9224 = vmul.f32 1.0, %v9223
        %v9225 = vrcp.pop %v8773
        %v9226 = vmul.f32 %v8773, %v9225
        %v9227 = vsub.f32 1.0, %v9226
        %v9228 = vmul.f32 %v9225, %v9227
        %v9229 = vadd.f32 %v9225, %v9228
        %vm9230 = vweird.f32 %v8773
        %vm9231 = vweird.f32 %v9225
        %vm9232 = vmor %vm9230, %vm9231
        %v9233 = vsel %vm9232, %v9225, %v9229
        %v9234 = vand.u32 2147483647, %v8773
        %vm9235 = vcmp.eq.f32.partialorder %v9234, 8.507059e+37
        %v9236 = vand.u32 %v8773, 2147483648
        %v9237 = vor.u32 1.1754944e-38, %v9236
        %v9238 = vsel %vm9235, %v9237, %v9233
        %v9239 = vmul.f32 1.0, %v9238
        %v9240 = vrcp.pop %v8774
        %v9241 = vmul.f32 %v8774, %v9240
        %v9242 = vsub.f32 1.0, %v9241
        %v9243 = vmul.f32 %v9240, %v9242
        %v9244 = vadd.f32 %v9240, %v9243
        %vm9245 = vweird.f32 %v8774
        %vm9246 = vweird.f32 %v9240
        %vm9247 = vmor %vm9245, %vm9246
        %v9248 = vsel %vm9247, %v9240, %v9244
        %v9249 = vand.u32 2147483647, %v8774
        %vm9250 = vcmp.eq.f32.partialorder %v9249, 8.507059e+37
        %v9251 = vand.u32 %v8774, 2147483648
        %v9252 = vor.u32 1.1754944e-38, %v9251
        %v9253 = vsel %vm9250, %v9252, %v9248
        %v9254 = vmul.f32 1.0, %v9253
        %9287 = vrot.lane.b32.xlu0 %v8536, 64
        %v9288 = vpop.permute.xlu0 %9287
        %9289 = vrot.lane.b32.xlu0 %v8538, 64
        %v9290 = vpop.permute.xlu0 %9289
        %9291 = vrot.lane.b32.xlu0 %v8541, 64
        %v9292 = vpop.permute.xlu0 %9291
        %9293 = vrot.lane.b32.xlu0 %v8543, 64
        %v9294 = vpop.permute.xlu0 %9293
        %9295 = vrot.lane.b32.xlu0 %v8546, 64
        %v9296 = vpop.permute.xlu0 %9295
        %9297 = vrot.lane.b32.xlu0 %v8548, 64
        %v9298 = vpop.permute.xlu0 %9297
        %9299 = vrot.lane.b32.xlu0 %v8551, 64
        %v9300 = vpop.permute.xlu0 %9299
        %9301 = vrot.lane.b32.xlu0 %v8553, 64
        %v9302 = vpop.permute.xlu0 %9301
        %9303 = vrot.lane.b32.xlu0 %v8556, 64
        %v9304 = vpop.permute.xlu0 %9303
        %9305 = vrot.lane.b32.xlu0 %v8558, 64
        %v9306 = vpop.permute.xlu0 %9305
        %9307 = vrot.lane.b32.xlu0 %v8561, 64
        %v9308 = vpop.permute.xlu0 %9307
        %9309 = vrot.lane.b32.xlu0 %v8563, 64
        %v9310 = vpop.permute.xlu0 %9309
        %9311 = vrot.lane.b32.xlu0 %v8566, 64
        %v9312 = vpop.permute.xlu0 %9311
        %9313 = vrot.lane.b32.xlu0 %v8568, 64
        %v9314 = vpop.permute.xlu0 %9313
        %9315 = vrot.lane.b32.xlu0 %v8571, 64
        %v9316 = vpop.permute.xlu0 %9315
        %9317 = vrot.lane.b32.xlu0 %v8573, 64
        %v9318 = vpop.permute.xlu0 %9317
        %9319 = vrot.lane.b32.xlu0 %v8576, 64
        %v9320 = vpop.permute.xlu0 %9319
        %9321 = vrot.lane.b32.xlu0 %v8578, 64
        %v9322 = vpop.permute.xlu0 %9321
        %9323 = vrot.lane.b32.xlu0 %v8581, 64
        %v9324 = vpop.permute.xlu0 %9323
        %9325 = vrot.lane.b32.xlu0 %v8583, 64
        %v9326 = vpop.permute.xlu0 %9325
        %9327 = vrot.lane.b32.xlu0 %v8586, 64
        %v9328 = vpop.permute.xlu0 %9327
        %9329 = vrot.lane.b32.xlu0 %v8588, 64
        %v9330 = vpop.permute.xlu0 %9329
        %9331 = vrot.lane.b32.xlu0 %v8591, 64
        %v9332 = vpop.permute.xlu0 %9331
        %9333 = vrot.lane.b32.xlu0 %v8593, 64
        %v9334 = vpop.permute.xlu0 %9333
        %9335 = vrot.lane.b32.xlu0 %v8596, 64
        %v9336 = vpop.permute.xlu0 %9335
        %9337 = vrot.lane.b32.xlu0 %v8598, 64
        %v9338 = vpop.permute.xlu0 %9337
        %9339 = vrot.lane.b32.xlu0 %v8601, 64
        %v9340 = vpop.permute.xlu0 %9339
        %9341 = vrot.lane.b32.xlu0 %v8603, 64
        %v9342 = vpop.permute.xlu0 %9341
        %9343 = vrot.lane.b32.xlu0 %v8606, 64
        %v9344 = vpop.permute.xlu0 %9343
        %9345 = vrot.lane.b32.xlu0 %v8608, 64
        %v9346 = vpop.permute.xlu0 %9345
        %9347 = vrot.lane.b32.xlu0 %v8611, 64
        %v9348 = vpop.permute.xlu0 %9347
        %9349 = vrot.lane.b32.xlu0 %v8613, 64
        %v9350 = vpop.permute.xlu0 %9349
        %v9383 = vmul.f32 %v8789, %v9288
        %v9384 = vmul.f32 %v8804, %v9290
        %v9385 = vmul.f32 %v8819, %v9292
        %v9386 = vmul.f32 %v8834, %v9294
        %v9387 = vmul.f32 %v8849, %v9296
        %v9388 = vmul.f32 %v8864, %v9298
        %v9389 = vmul.f32 %v8879, %v9300
        %v9390 = vmul.f32 %v8894, %v9302
        %v9391 = vmul.f32 %v8909, %v9304
        %v9392 = vmul.f32 %v8924, %v9306
        %v9393 = vmul.f32 %v8939, %v9308
        %v9394 = vmul.f32 %v8954, %v9310
        %v9395 = vmul.f32 %v8969, %v9312
        %v9396 = vmul.f32 %v8984, %v9314
        %v9397 = vmul.f32 %v8999, %v9316
        %v9398 = vmul.f32 %v9014, %v9318
        %v9399 = vmul.f32 %v9029, %v9320
        %v9400 = vmul.f32 %v9044, %v9322
        %v9401 = vmul.f32 %v9059, %v9324
        %v9402 = vmul.f32 %v9074, %v9326
        %v9403 = vmul.f32 %v9089, %v9328
        %v9404 = vmul.f32 %v9104, %v9330
        %v9405 = vmul.f32 %v9119, %v9332
        %v9406 = vmul.f32 %v9134, %v9334
        %v9407 = vmul.f32 %v9149, %v9336
        %v9408 = vmul.f32 %v9164, %v9338
        %v9409 = vmul.f32 %v9179, %v9340
        %v9410 = vmul.f32 %v9194, %v9342
        %v9411 = vmul.f32 %v9209, %v9344
        %v9412 = vmul.f32 %v9224, %v9346
        %v9413 = vmul.f32 %v9239, %v9348
        %v9414 = vmul.f32 %v9254, %v9350
        %9447 = vrot.lane.b32.xlu0 %v9383, 64
        %v9448 = vpop.permute.xlu0 %9447
        %9449 = vrot.lane.b32.xlu0 %v9384, 64
        %v9450 = vpop.permute.xlu0 %9449
        %9451 = vrot.lane.b32.xlu0 %v9385, 64
        %v9452 = vpop.permute.xlu0 %9451
        %9453 = vrot.lane.b32.xlu0 %v9386, 64
        %v9454 = vpop.permute.xlu0 %9453
        %9455 = vrot.lane.b32.xlu0 %v9387, 64
        %v9456 = vpop.permute.xlu0 %9455
        %9457 = vrot.lane.b32.xlu0 %v9388, 64
        %v9458 = vpop.permute.xlu0 %9457
        %9459 = vrot.lane.b32.xlu0 %v9389, 64
        %v9460 = vpop.permute.xlu0 %9459
        %9461 = vrot.lane.b32.xlu0 %v9390, 64
        %v9462 = vpop.permute.xlu0 %9461
        %9463 = vrot.lane.b32.xlu0 %v9391, 64
        %v9464 = vpop.permute.xlu0 %9463
        %9465 = vrot.lane.b32.xlu0 %v9392, 64
        %v9466 = vpop.permute.xlu0 %9465
        %9467 = vrot.lane.b32.xlu0 %v9393, 64
        %v9468 = vpop.permute.xlu0 %9467
        %9469 = vrot.lane.b32.xlu0 %v9394, 64
        %v9470 = vpop.permute.xlu0 %9469
        %9471 = vrot.lane.b32.xlu0 %v9395, 64
        %v9472 = vpop.permute.xlu0 %9471
        %9473 = vrot.lane.b32.xlu0 %v9396, 64
        %v9474 = vpop.permute.xlu0 %9473
        %9475 = vrot.lane.b32.xlu0 %v9397, 64
        %v9476 = vpop.permute.xlu0 %9475
        %9477 = vrot.lane.b32.xlu0 %v9398, 64
        %v9478 = vpop.permute.xlu0 %9477
        %9479 = vrot.lane.b32.xlu0 %v9399, 64
        %v9480 = vpop.permute.xlu0 %9479
        %9481 = vrot.lane.b32.xlu0 %v9400, 64
        %v9482 = vpop.permute.xlu0 %9481
        %9483 = vrot.lane.b32.xlu0 %v9401, 64
        %v9484 = vpop.permute.xlu0 %9483
        %9485 = vrot.lane.b32.xlu0 %v9402, 64
        %v9486 = vpop.permute.xlu0 %9485
        %9487 = vrot.lane.b32.xlu0 %v9403, 64
        %v9488 = vpop.permute.xlu0 %9487
        %9489 = vrot.lane.b32.xlu0 %v9404, 64
        %v9490 = vpop.permute.xlu0 %9489
        %9491 = vrot.lane.b32.xlu0 %v9405, 64
        %v9492 = vpop.permute.xlu0 %9491
        %9493 = vrot.lane.b32.xlu0 %v9406, 64
        %v9494 = vpop.permute.xlu0 %9493
        %9495 = vrot.lane.b32.xlu0 %v9407, 64
        %v9496 = vpop.permute.xlu0 %9495
        %9497 = vrot.lane.b32.xlu0 %v9408, 64
        %v9498 = vpop.permute.xlu0 %9497
        %9499 = vrot.lane.b32.xlu0 %v9409, 64
        %v9500 = vpop.permute.xlu0 %9499
        %9501 = vrot.lane.b32.xlu0 %v9410, 64
        %v9502 = vpop.permute.xlu0 %9501
        %9503 = vrot.lane.b32.xlu0 %v9411, 64
        %v9504 = vpop.permute.xlu0 %9503
        %9505 = vrot.lane.b32.xlu0 %v9412, 64
        %v9506 = vpop.permute.xlu0 %9505
        %9507 = vrot.lane.b32.xlu0 %v9413, 64
        %v9508 = vpop.permute.xlu0 %9507
        %9509 = vrot.lane.b32.xlu0 %v9414, 64
        %v9510 = vpop.permute.xlu0 %9509
        %v9543 = vadd.f32 %v7768, %v9448
        %v9544 = vadd.f32 %v7770, %v9450
        %v9545 = vadd.f32 %v7773, %v9452
        %v9546 = vadd.f32 %v7775, %v9454
        %v9547 = vadd.f32 %v7778, %v9456
        %v9548 = vadd.f32 %v7780, %v9458
        %v9549 = vadd.f32 %v7783, %v9460
        %v9550 = vadd.f32 %v7785, %v9462
        %v9551 = vadd.f32 %v7788, %v9464
        %v9552 = vadd.f32 %v7790, %v9466
        %v9553 = vadd.f32 %v7793, %v9468
        %v9554 = vadd.f32 %v7795, %v9470
        %v9555 = vadd.f32 %v7798, %v9472
        %v9556 = vadd.f32 %v7800, %v9474
        %v9557 = vadd.f32 %v7803, %v9476
        %v9558 = vadd.f32 %v7805, %v9478
        %v9559 = vadd.f32 %v7808, %v9480
        %v9560 = vadd.f32 %v7810, %v9482
        %v9561 = vadd.f32 %v7813, %v9484
        %v9562 = vadd.f32 %v7815, %v9486
        %v9563 = vadd.f32 %v7818, %v9488
        %v9564 = vadd.f32 %v7820, %v9490
        %v9565 = vadd.f32 %v7823, %v9492
        %v9566 = vadd.f32 %v7825, %v9494
        %v9567 = vadd.f32 %v7828, %v9496
        %v9568 = vadd.f32 %v7830, %v9498
        %v9569 = vadd.f32 %v7833, %v9500
        %v9570 = vadd.f32 %v7835, %v9502
        %v9571 = vadd.f32 %v7838, %v9504
        %v9572 = vadd.f32 %v7840, %v9506
        %v9573 = vadd.f32 %v7843, %v9508
        %v9574 = vadd.f32 %v7845, %v9510
        %v9575 = vtanh.pop %v9543
        %v9576 = vtanh.pop %v9544
        %v9577 = vtanh.pop %v9545
        %v9578 = vtanh.pop %v9546
        %v9579 = vtanh.pop %v9547
        %v9580 = vtanh.pop %v9548
        %v9581 = vtanh.pop %v9549
        %v9582 = vtanh.pop %v9550
        %v9583 = vtanh.pop %v9551
        %v9584 = vtanh.pop %v9552
        %v9585 = vtanh.pop %v9553
        %v9586 = vtanh.pop %v9554
        %v9587 = vtanh.pop %v9555
        %v9588 = vtanh.pop %v9556
        %v9589 = vtanh.pop %v9557
        %v9590 = vtanh.pop %v9558
        %v9591 = vtanh.pop %v9559
        %v9592 = vtanh.pop %v9560
        %v9593 = vtanh.pop %v9561
        %v9594 = vtanh.pop %v9562
        %v9595 = vtanh.pop %v9563
        %v9596 = vtanh.pop %v9564
        %v9597 = vtanh.pop %v9565
        %v9598 = vtanh.pop %v9566
        %v9599 = vtanh.pop %v9567
        %v9600 = vtanh.pop %v9568
        %v9601 = vtanh.pop %v9569
        %v9602 = vtanh.pop %v9570
        %v9603 = vtanh.pop %v9571
        %v9604 = vtanh.pop %v9572
        %v9605 = vtanh.pop %v9573
        %v9606 = vtanh.pop %v9574
        %v9607 = vld [vmem:[%s286] sm:$0xff]
        %v9608 = vld [vmem:[%s286 + $0x8] sm:$0xff]
        %v9609 = vld [vmem:[%s286 + $0x10] sm:$0xff]
        %v9610 = vld [vmem:[%s286 + $0x18] sm:$0xff]
        %v9611 = vld [vmem:[%s286 + $0x20] sm:$0xff]
        %v9612 = vld [vmem:[%s286 + $0x28] sm:$0xff]
        %v9613 = vld [vmem:[%s286 + $0x30] sm:$0xff]
        %v9614 = vld [vmem:[%s286 + $0x38] sm:$0xff]
        %v9615 = vld [vmem:[%s286 + $0x40] sm:$0xff]
        %v9616 = vld [vmem:[%s286 + $0x48] sm:$0xff]
        %v9617 = vld [vmem:[%s286 + $0x50] sm:$0xff]
        %v9618 = vld [vmem:[%s286 + $0x58] sm:$0xff]
        %v9619 = vld [vmem:[%s286 + $0x60] sm:$0xff]
        %v9620 = vld [vmem:[%s286 + $0x68] sm:$0xff]
        %v9621 = vld [vmem:[%s286 + $0x70] sm:$0xff]
        %v9622 = vld [vmem:[%s286 + $0x78] sm:$0xff]
        %v9623 = vld [vmem:[%s286 + $0x80] sm:$0xff]
        %v9624 = vld [vmem:[%s286 + $0x88] sm:$0xff]
        %v9625 = vld [vmem:[%s286 + $0x90] sm:$0xff]
        %v9626 = vld [vmem:[%s286 + $0x98] sm:$0xff]
        %v9627 = vld [vmem:[%s286 + $0xa0] sm:$0xff]
        %v9628 = vld [vmem:[%s286 + $0xa8] sm:$0xff]
        %v9629 = vld [vmem:[%s286 + $0xb0] sm:$0xff]
        %v9630 = vld [vmem:[%s286 + $0xb8] sm:$0xff]
        %v9631 = vld [vmem:[%s286 + $0xc0] sm:$0xff]
        %v9632 = vld [vmem:[%s286 + $0xc8] sm:$0xff]
        %v9633 = vld [vmem:[%s286 + $0xd0] sm:$0xff]
        %v9634 = vld [vmem:[%s286 + $0xd8] sm:$0xff]
        %v9635 = vld [vmem:[%s286 + $0xe0] sm:$0xff]
        %v9636 = vld [vmem:[%s286 + $0xe8] sm:$0xff]
        %v9637 = vld [vmem:[%s286 + $0xf0] sm:$0xff]
        %v9638 = vld [vmem:[%s286 + $0xf8] sm:$0xff]
        %v9639 = vsub.f32 1.0, %v8789
        %v9640 = vsub.f32 1.0, %v8804
        %v9641 = vsub.f32 1.0, %v8819
        %v9642 = vsub.f32 1.0, %v8834
        %v9643 = vsub.f32 1.0, %v8849
        %v9644 = vsub.f32 1.0, %v8864
        %v9645 = vsub.f32 1.0, %v8879
        %v9646 = vsub.f32 1.0, %v8894
        %v9647 = vsub.f32 1.0, %v8909
        %v9648 = vsub.f32 1.0, %v8924
        %v9649 = vsub.f32 1.0, %v8939
        %v9650 = vsub.f32 1.0, %v8954
        %v9651 = vsub.f32 1.0, %v8969
        %v9652 = vsub.f32 1.0, %v8984
        %v9653 = vsub.f32 1.0, %v8999
        %v9654 = vsub.f32 1.0, %v9014
        %v9655 = vsub.f32 1.0, %v9029
        %v9656 = vsub.f32 1.0, %v9044
        %v9657 = vsub.f32 1.0, %v9059
        %v9658 = vsub.f32 1.0, %v9074
        %v9659 = vsub.f32 1.0, %v9089
        %v9660 = vsub.f32 1.0, %v9104
        %v9661 = vsub.f32 1.0, %v9119
        %v9662 = vsub.f32 1.0, %v9134
        %v9663 = vsub.f32 1.0, %v9149
        %v9664 = vsub.f32 1.0, %v9164
        %v9665 = vsub.f32 1.0, %v9179
        %v9666 = vsub.f32 1.0, %v9194
        %v9667 = vsub.f32 1.0, %v9209
        %v9668 = vsub.f32 1.0, %v9224
        %v9669 = vsub.f32 1.0, %v9239
        %v9670 = vsub.f32 1.0, %v9254
        %9703 = vrot.lane.b32.xlu0 %v9575, 96
        %v9704 = vpop.permute.xlu0 %9703
        %9705 = vrot.lane.b32.xlu0 %v9576, 96
        %v9706 = vpop.permute.xlu0 %9705
        %9707 = vrot.lane.b32.xlu0 %v9577, 96
        %v9708 = vpop.permute.xlu0 %9707
        %9709 = vrot.lane.b32.xlu0 %v9578, 96
        %v9710 = vpop.permute.xlu0 %9709
        %9711 = vrot.lane.b32.xlu0 %v9579, 96
        %v9712 = vpop.permute.xlu0 %9711
        %9713 = vrot.lane.b32.xlu0 %v9580, 96
        %v9714 = vpop.permute.xlu0 %9713
        %9715 = vrot.lane.b32.xlu0 %v9581, 96
        %v9716 = vpop.permute.xlu0 %9715
        %9717 = vrot.lane.b32.xlu0 %v9582, 96
        %v9718 = vpop.permute.xlu0 %9717
        %9719 = vrot.lane.b32.xlu0 %v9583, 96
        %v9720 = vpop.permute.xlu0 %9719
        %9721 = vrot.lane.b32.xlu0 %v9584, 96
        %v9722 = vpop.permute.xlu0 %9721
        %9723 = vrot.lane.b32.xlu0 %v9585, 96
        %v9724 = vpop.permute.xlu0 %9723
        %9725 = vrot.lane.b32.xlu0 %v9586, 96
        %v9726 = vpop.permute.xlu0 %9725
        %9727 = vrot.lane.b32.xlu0 %v9587, 96
        %v9728 = vpop.permute.xlu0 %9727
        %9729 = vrot.lane.b32.xlu0 %v9588, 96
        %v9730 = vpop.permute.xlu0 %9729
        %9731 = vrot.lane.b32.xlu0 %v9589, 96
        %v9732 = vpop.permute.xlu0 %9731
        %9733 = vrot.lane.b32.xlu0 %v9590, 96
        %v9734 = vpop.permute.xlu0 %9733
        %9735 = vrot.lane.b32.xlu0 %v9591, 96
        %v9736 = vpop.permute.xlu0 %9735
        %9737 = vrot.lane.b32.xlu0 %v9592, 96
        %v9738 = vpop.permute.xlu0 %9737
        %9739 = vrot.lane.b32.xlu0 %v9593, 96
        %v9740 = vpop.permute.xlu0 %9739
        %9741 = vrot.lane.b32.xlu0 %v9594, 96
        %v9742 = vpop.permute.xlu0 %9741
        %9743 = vrot.lane.b32.xlu0 %v9595, 96
        %v9744 = vpop.permute.xlu0 %9743
        %9745 = vrot.lane.b32.xlu0 %v9596, 96
        %v9746 = vpop.permute.xlu0 %9745
        %9747 = vrot.lane.b32.xlu0 %v9597, 96
        %v9748 = vpop.permute.xlu0 %9747
        %9749 = vrot.lane.b32.xlu0 %v9598, 96
        %v9750 = vpop.permute.xlu0 %9749
        %9751 = vrot.lane.b32.xlu0 %v9599, 96
        %v9752 = vpop.permute.xlu0 %9751
        %9753 = vrot.lane.b32.xlu0 %v9600, 96
        %v9754 = vpop.permute.xlu0 %9753
        %9755 = vrot.lane.b32.xlu0 %v9601, 96
        %v9756 = vpop.permute.xlu0 %9755
        %9757 = vrot.lane.b32.xlu0 %v9602, 96
        %v9758 = vpop.permute.xlu0 %9757
        %9759 = vrot.lane.b32.xlu0 %v9603, 96
        %v9760 = vpop.permute.xlu0 %9759
        %9761 = vrot.lane.b32.xlu0 %v9604, 96
        %v9762 = vpop.permute.xlu0 %9761
        %9763 = vrot.lane.b32.xlu0 %v9605, 96
        %v9764 = vpop.permute.xlu0 %9763
        %9765 = vrot.lane.b32.xlu0 %v9606, 96
        %v9766 = vpop.permute.xlu0 %9765
        %v9799 = vmul.f32 %v9639, %v9704
        %v9800 = vmul.f32 %v9640, %v9706
        %v9801 = vmul.f32 %v9641, %v9708
        %v9802 = vmul.f32 %v9642, %v9710
        %v9803 = vmul.f32 %v9643, %v9712
        %v9804 = vmul.f32 %v9644, %v9714
        %v9805 = vmul.f32 %v9645, %v9716
        %v9806 = vmul.f32 %v9646, %v9718
        %v9807 = vmul.f32 %v9647, %v9720
        %v9808 = vmul.f32 %v9648, %v9722
        %v9809 = vmul.f32 %v9649, %v9724
        %v9810 = vmul.f32 %v9650, %v9726
        %v9811 = vmul.f32 %v9651, %v9728
        %v9812 = vmul.f32 %v9652, %v9730
        %v9813 = vmul.f32 %v9653, %v9732
        %v9814 = vmul.f32 %v9654, %v9734
        %v9815 = vmul.f32 %v9655, %v9736
        %v9816 = vmul.f32 %v9656, %v9738
        %v9817 = vmul.f32 %v9657, %v9740
        %v9818 = vmul.f32 %v9658, %v9742
        %v9819 = vmul.f32 %v9659, %v9744
        %v9820 = vmul.f32 %v9660, %v9746
        %v9821 = vmul.f32 %v9661, %v9748
        %v9822 = vmul.f32 %v9662, %v9750
        %v9823 = vmul.f32 %v9663, %v9752
        %v9824 = vmul.f32 %v9664, %v9754
        %v9825 = vmul.f32 %v9665, %v9756
        %v9826 = vmul.f32 %v9666, %v9758
        %v9827 = vmul.f32 %v9667, %v9760
        %v9828 = vmul.f32 %v9668, %v9762
        %v9829 = vmul.f32 %v9669, %v9764
        %v9830 = vmul.f32 %v9670, %v9766
        %9863 = vrot.lane.b32.xlu0 %v9607, 32
        %v9864 = vpop.permute.xlu0 %9863
        %9865 = vrot.lane.b32.xlu0 %v9608, 32
        %v9866 = vpop.permute.xlu0 %9865
        %9867 = vrot.lane.b32.xlu0 %v9609, 32
        %v9868 = vpop.permute.xlu0 %9867
        %9869 = vrot.lane.b32.xlu0 %v9610, 32
        %v9870 = vpop.permute.xlu0 %9869
        %9871 = vrot.lane.b32.xlu0 %v9611, 32
        %v9872 = vpop.permute.xlu0 %9871
        %9873 = vrot.lane.b32.xlu0 %v9612, 32
        %v9874 = vpop.permute.xlu0 %9873
        %9875 = vrot.lane.b32.xlu0 %v9613, 32
        %v9876 = vpop.permute.xlu0 %9875
        %9877 = vrot.lane.b32.xlu0 %v9614, 32
        %v9878 = vpop.permute.xlu0 %9877
        %9879 = vrot.lane.b32.xlu0 %v9615, 32
        %v9880 = vpop.permute.xlu0 %9879
        %9881 = vrot.lane.b32.xlu0 %v9616, 32
        %v9882 = vpop.permute.xlu0 %9881
        %9883 = vrot.lane.b32.xlu0 %v9617, 32
        %v9884 = vpop.permute.xlu0 %9883
        %9885 = vrot.lane.b32.xlu0 %v9618, 32
        %v9886 = vpop.permute.xlu0 %9885
        %9887 = vrot.lane.b32.xlu0 %v9619, 32
        %v9888 = vpop.permute.xlu0 %9887
        %9889 = vrot.lane.b32.xlu0 %v9620, 32
        %v9890 = vpop.permute.xlu0 %9889
        %9891 = vrot.lane.b32.xlu0 %v9621, 32
        %v9892 = vpop.permute.xlu0 %9891
        %9893 = vrot.lane.b32.xlu0 %v9622, 32
        %v9894 = vpop.permute.xlu0 %9893
        %9895 = vrot.lane.b32.xlu0 %v9623, 32
        %v9896 = vpop.permute.xlu0 %9895
        %9897 = vrot.lane.b32.xlu0 %v9624, 32
        %v9898 = vpop.permute.xlu0 %9897
        %9899 = vrot.lane.b32.xlu0 %v9625, 32
        %v9900 = vpop.permute.xlu0 %9899
        %9901 = vrot.lane.b32.xlu0 %v9626, 32
        %v9902 = vpop.permute.xlu0 %9901
        %9903 = vrot.lane.b32.xlu0 %v9627, 32
        %v9904 = vpop.permute.xlu0 %9903
        %9905 = vrot.lane.b32.xlu0 %v9628, 32
        %v9906 = vpop.permute.xlu0 %9905
        %9907 = vrot.lane.b32.xlu0 %v9629, 32
        %v9908 = vpop.permute.xlu0 %9907
        %9909 = vrot.lane.b32.xlu0 %v9630, 32
        %v9910 = vpop.permute.xlu0 %9909
        %9911 = vrot.lane.b32.xlu0 %v9631, 32
        %v9912 = vpop.permute.xlu0 %9911
        %9913 = vrot.lane.b32.xlu0 %v9632, 32
        %v9914 = vpop.permute.xlu0 %9913
        %9915 = vrot.lane.b32.xlu0 %v9633, 32
        %v9916 = vpop.permute.xlu0 %9915
        %9917 = vrot.lane.b32.xlu0 %v9634, 32
        %v9918 = vpop.permute.xlu0 %9917
        %9919 = vrot.lane.b32.xlu0 %v9635, 32
        %v9920 = vpop.permute.xlu0 %9919
        %9921 = vrot.lane.b32.xlu0 %v9636, 32
        %v9922 = vpop.permute.xlu0 %9921
        %9923 = vrot.lane.b32.xlu0 %v9637, 32
        %v9924 = vpop.permute.xlu0 %9923
        %9925 = vrot.lane.b32.xlu0 %v9638, 32
        %v9926 = vpop.permute.xlu0 %9925
        %v9959 = vmul.f32 %v8789, %v9864
        %v9960 = vmul.f32 %v8804, %v9866
        %v9961 = vmul.f32 %v8819, %v9868
        %v9962 = vmul.f32 %v8834, %v9870
        %v9963 = vmul.f32 %v8849, %v9872
        %v9964 = vmul.f32 %v8864, %v9874
        %v9965 = vmul.f32 %v8879, %v9876
        %v9966 = vmul.f32 %v8894, %v9878
        %v9967 = vmul.f32 %v8909, %v9880
        %v9968 = vmul.f32 %v8924, %v9882
        %v9969 = vmul.f32 %v8939, %v9884
        %v9970 = vmul.f32 %v8954, %v9886
        %v9971 = vmul.f32 %v8969, %v9888
        %v9972 = vmul.f32 %v8984, %v9890
        %v9973 = vmul.f32 %v8999, %v9892
        %v9974 = vmul.f32 %v9014, %v9894
        %v9975 = vmul.f32 %v9029, %v9896
        %v9976 = vmul.f32 %v9044, %v9898
        %v9977 = vmul.f32 %v9059, %v9900
        %v9978 = vmul.f32 %v9074, %v9902
        %v9979 = vmul.f32 %v9089, %v9904
        %v9980 = vmul.f32 %v9104, %v9906
        %v9981 = vmul.f32 %v9119, %v9908
        %v9982 = vmul.f32 %v9134, %v9910
        %v9983 = vmul.f32 %v9149, %v9912
        %v9984 = vmul.f32 %v9164, %v9914
        %v9985 = vmul.f32 %v9179, %v9916
        %v9986 = vmul.f32 %v9194, %v9918
        %v9987 = vmul.f32 %v9209, %v9920
        %v9988 = vmul.f32 %v9224, %v9922
        %v9989 = vmul.f32 %v9239, %v9924
        %v9990 = vmul.f32 %v9254, %v9926
        %v9991 = vadd.f32 %v9799, %v9959
        %v9992 = vadd.f32 %v9800, %v9960
        %v9993 = vadd.f32 %v9801, %v9961
        %v9994 = vadd.f32 %v9802, %v9962
        %v9995 = vadd.f32 %v9803, %v9963
        %v9996 = vadd.f32 %v9804, %v9964
        %v9997 = vadd.f32 %v9805, %v9965
        %v9998 = vadd.f32 %v9806, %v9966
        %v9999 = vadd.f32 %v9807, %v9967
        %v10000 = vadd.f32 %v9808, %v9968
        %v10001 = vadd.f32 %v9809, %v9969
        %v10002 = vadd.f32 %v9810, %v9970
        %v10003 = vadd.f32 %v9811, %v9971
        %v10004 = vadd.f32 %v9812, %v9972
        %v10005 = vadd.f32 %v9813, %v9973
        %v10006 = vadd.f32 %v9814, %v9974
        %v10007 = vadd.f32 %v9815, %v9975
        %v10008 = vadd.f32 %v9816, %v9976
        %v10009 = vadd.f32 %v9817, %v9977
        %v10010 = vadd.f32 %v9818, %v9978
        %v10011 = vadd.f32 %v9819, %v9979
        %v10012 = vadd.f32 %v9820, %v9980
        %v10013 = vadd.f32 %v9821, %v9981
        %v10014 = vadd.f32 %v9822, %v9982
        %v10015 = vadd.f32 %v9823, %v9983
        %v10016 = vadd.f32 %v9824, %v9984
        %v10017 = vadd.f32 %v9825, %v9985
        %v10018 = vadd.f32 %v9826, %v9986
        %v10019 = vadd.f32 %v9827, %v9987
        %v10020 = vadd.f32 %v9828, %v9988
        %v10021 = vadd.f32 %v9829, %v9989
        %v10022 = vadd.f32 %v9830, %v9990
        %10055 = vrot.lane.b32.xlu0 %v9991, 96
        %v10056 = vpop.permute.xlu0 %10055
        %10057 = vrot.lane.b32.xlu0 %v9992, 96
        %v10058 = vpop.permute.xlu0 %10057
        %10059 = vrot.lane.b32.xlu0 %v9993, 96
        %v10060 = vpop.permute.xlu0 %10059
        %10061 = vrot.lane.b32.xlu0 %v9994, 96
        %v10062 = vpop.permute.xlu0 %10061
        %10063 = vrot.lane.b32.xlu0 %v9995, 96
        %v10064 = vpop.permute.xlu0 %10063
        %10065 = vrot.lane.b32.xlu0 %v9996, 96
        %v10066 = vpop.permute.xlu0 %10065
        %10067 = vrot.lane.b32.xlu0 %v9997, 96
        %v10068 = vpop.permute.xlu0 %10067
        %10069 = vrot.lane.b32.xlu0 %v9998, 96
        %v10070 = vpop.permute.xlu0 %10069
        %10071 = vrot.lane.b32.xlu0 %v9999, 96
        %v10072 = vpop.permute.xlu0 %10071
        %10073 = vrot.lane.b32.xlu0 %v10000, 96
        %v10074 = vpop.permute.xlu0 %10073
        %10075 = vrot.lane.b32.xlu0 %v10001, 96
        %v10076 = vpop.permute.xlu0 %10075
        %10077 = vrot.lane.b32.xlu0 %v10002, 96
        %v10078 = vpop.permute.xlu0 %10077
        %10079 = vrot.lane.b32.xlu0 %v10003, 96
        %v10080 = vpop.permute.xlu0 %10079
        %10081 = vrot.lane.b32.xlu0 %v10004, 96
        %v10082 = vpop.permute.xlu0 %10081
        %10083 = vrot.lane.b32.xlu0 %v10005, 96
        %v10084 = vpop.permute.xlu0 %10083
        %10085 = vrot.lane.b32.xlu0 %v10006, 96
        %v10086 = vpop.permute.xlu0 %10085
        %10087 = vrot.lane.b32.xlu0 %v10007, 96
        %v10088 = vpop.permute.xlu0 %10087
        %10089 = vrot.lane.b32.xlu0 %v10008, 96
        %v10090 = vpop.permute.xlu0 %10089
        %10091 = vrot.lane.b32.xlu0 %v10009, 96
        %v10092 = vpop.permute.xlu0 %10091
        %10093 = vrot.lane.b32.xlu0 %v10010, 96
        %v10094 = vpop.permute.xlu0 %10093
        %10095 = vrot.lane.b32.xlu0 %v10011, 96
        %v10096 = vpop.permute.xlu0 %10095
        %10097 = vrot.lane.b32.xlu0 %v10012, 96
        %v10098 = vpop.permute.xlu0 %10097
        %10099 = vrot.lane.b32.xlu0 %v10013, 96
        %v10100 = vpop.permute.xlu0 %10099
        %10101 = vrot.lane.b32.xlu0 %v10014, 96
        %v10102 = vpop.permute.xlu0 %10101
        %10103 = vrot.lane.b32.xlu0 %v10015, 96
        %v10104 = vpop.permute.xlu0 %10103
        %10105 = vrot.lane.b32.xlu0 %v10016, 96
        %v10106 = vpop.permute.xlu0 %10105
        %10107 = vrot.lane.b32.xlu0 %v10017, 96
        %v10108 = vpop.permute.xlu0 %10107
        %10109 = vrot.lane.b32.xlu0 %v10018, 96
        %v10110 = vpop.permute.xlu0 %10109
        %10111 = vrot.lane.b32.xlu0 %v10019, 96
        %v10112 = vpop.permute.xlu0 %10111
        %10113 = vrot.lane.b32.xlu0 %v10020, 96
        %v10114 = vpop.permute.xlu0 %10113
        %10115 = vrot.lane.b32.xlu0 %v10021, 96
        %v10116 = vpop.permute.xlu0 %10115
        %10117 = vrot.lane.b32.xlu0 %v10022, 96
        %v10118 = vpop.permute.xlu0 %10117
        %10151 = vst.msk [vmem:[%s276] sm:$0xff] %vm8299, %v10056
        %10152 = vst.msk [vmem:[%s276 + $0x8] sm:$0xff] %vm8299, %v10058
        %10153 = vst.msk [vmem:[%s276 + $0x10] sm:$0xff] %vm8299, %v10060
        %10154 = vst.msk [vmem:[%s276 + $0x18] sm:$0xff] %vm8299, %v10062
        %10155 = vst.msk [vmem:[%s276 + $0x20] sm:$0xff] %vm8299, %v10064
        %10156 = vst.msk [vmem:[%s276 + $0x28] sm:$0xff] %vm8299, %v10066
        %10157 = vst.msk [vmem:[%s276 + $0x30] sm:$0xff] %vm8299, %v10068
        %10158 = vst.msk [vmem:[%s276 + $0x38] sm:$0xff] %vm8299, %v10070
        %10159 = vst.msk [vmem:[%s276 + $0x40] sm:$0xff] %vm8299, %v10072
        %10160 = vst.msk [vmem:[%s276 + $0x48] sm:$0xff] %vm8299, %v10074
        %10161 = vst.msk [vmem:[%s276 + $0x50] sm:$0xff] %vm8299, %v10076
        %10162 = vst.msk [vmem:[%s276 + $0x58] sm:$0xff] %vm8299, %v10078
        %10163 = vst.msk [vmem:[%s276 + $0x60] sm:$0xff] %vm8299, %v10080
        %10164 = vst.msk [vmem:[%s276 + $0x68] sm:$0xff] %vm8299, %v10082
        %10165 = vst.msk [vmem:[%s276 + $0x70] sm:$0xff] %vm8299, %v10084
        %10166 = vst.msk [vmem:[%s276 + $0x78] sm:$0xff] %vm8299, %v10086
        %10167 = vst.msk [vmem:[%s276 + $0x80] sm:$0xff] %vm8299, %v10088
        %10168 = vst.msk [vmem:[%s276 + $0x88] sm:$0xff] %vm8299, %v10090
        %10169 = vst.msk [vmem:[%s276 + $0x90] sm:$0xff] %vm8299, %v10092
        %10170 = vst.msk [vmem:[%s276 + $0x98] sm:$0xff] %vm8299, %v10094
        %10171 = vst.msk [vmem:[%s276 + $0xa0] sm:$0xff] %vm8299, %v10096
        %10172 = vst.msk [vmem:[%s276 + $0xa8] sm:$0xff] %vm8299, %v10098
        %10173 = vst.msk [vmem:[%s276 + $0xb0] sm:$0xff] %vm8299, %v10100
        %10174 = vst.msk [vmem:[%s276 + $0xb8] sm:$0xff] %vm8299, %v10102
        %10175 = vst.msk [vmem:[%s276 + $0xc0] sm:$0xff] %vm8299, %v10104
        %10176 = vst.msk [vmem:[%s276 + $0xc8] sm:$0xff] %vm8299, %v10106
        %10177 = vst.msk [vmem:[%s276 + $0xd0] sm:$0xff] %vm8299, %v10108
        %10178 = vst.msk [vmem:[%s276 + $0xd8] sm:$0xff] %vm8299, %v10110
        %10179 = vst.msk [vmem:[%s276 + $0xe0] sm:$0xff] %vm8299, %v10112
        %10180 = vst.msk [vmem:[%s276 + $0xe8] sm:$0xff] %vm8299, %v10114
        %10181 = vst.msk [vmem:[%s276 + $0xf0] sm:$0xff] %vm8299, %v10116
        %10182 = vst.msk [vmem:[%s276 + $0xf8] sm:$0xff] %vm8299, %v10118
        %s10183 = sand.u32 %s165, 1
        %s10184 = scalar_lea.sflag [#allocation8], %s10183
        %s10185 = sand.u32 %s165, 1
        %s10186 = smul.addr %s10185, 256
        %s10187 = scalar_lea.vmem [#allocation9], %s10186
        // Predicated region
        $region49: #{tpu_custom_call.1} parent=43 // pred_check
          %p10188 = pneg %p175
        $region50: #{tpu_custom_call.1} parent=43 // pred_check_branch
          %10190 = sbr.rel (%p10188) target = $region52
        $region51: #{tpu_custom_call.1} parent=43 // pred_region
          %10192 = vsyncadd %s10184, 0
          %s10193 = smul.addr %s21, 32
          %s10194 = smul.addr %s10193, 8
          %s10195 = scalar_lea.hbm %s6, %s10194
          %s10196 = sshll.u32 %s10187, 4
          %s10197 = int_to_ptr.vmem [resolvable:$true] %s10196
          %s10198 = sshll.u32 %s10195, 4
          %s10199 = int_to_ptr.hbm [resolvable:$true] %s10198
          %10204 = dma.vmem_to_hbm [thread:$0]  %s10197, 4096, %s10199, %s10184, 128, 128, 8
        $region52: #{tpu_custom_call.1} parent=43 // pred_fallthru
          _
      $region44: #{tpu_custom_call.1} parent=5 // pred_fallthru
        _
      %p10205 = scmp.le.s32.totalorder 2, %s16
      // Predicated region
      $region53: #{tpu_custom_call.1} parent=5 // pred_check
        %p10206 = pneg %p10205
      $region54: #{tpu_custom_call.1} parent=5 // pred_check_branch
        %10208 = sbr.rel (%p10206) target = $region56
      $region55: #{tpu_custom_call.1} parent=5 // pred_region
        %s10209 = ssub.s32 %s16, 2
        // Predicated region
        $region57: #{tpu_custom_call.1} parent=55 // pred_check
          %p10210 = pneg %p181
        $region58: #{tpu_custom_call.1} parent=55 // pred_check_branch
          %10212 = sbr.rel (%p10210) target = $region60
        $region59: #{tpu_custom_call.1} parent=55 // pred_region
          %s10213 = sand.u32 %s166, 1
          %s10214 = scalar_lea.sflag [#allocation8], %s10213
          %s10215 = sand.u32 %s166, 1
          %s10216 = smul.addr %s10215, 256
          %s10217 = scalar_lea.vmem [#allocation9], %s10216
          %10219 = dma.done %s10214, 4096
        $region60: #{tpu_custom_call.1} parent=55 // pred_fallthru
          _
      $region56: #{tpu_custom_call.1} parent=5 // pred_fallthru
        _
    $region6: #{tpu_custom_call.1} parent=1 // loop_footer
      %s20 = sadd.s32 1, %s16
    $region7: #{tpu_custom_call.1} parent=1 // loop_footer_branch
      %15 = sbr.rel target = $region3
    $region8: #{tpu_custom_call.1} parent=1 // loop_exit
      _
    %10220 = vsyncpa [#allocation7], 1
    %s10221 = scalar_lea.sflag [#allocation7], 1
    %10222 = vsyncpa %s10221, 1
    %10223 = vsyncpa [#allocation8], 1
    %s10224 = scalar_lea.sflag [#allocation8], 1
    %10225 = vsyncpa %s10224, 1

</llo_original>
